<compile_context>
chip_gen: v6e
topology: v6e:2x2x1
jax: 0.10.0
libtpu: 0.0.40
codegen_flags: <defaults>
</compile_context>

<pallas_src>
import functools

import jax
import jax.numpy as jnp
from jax.experimental import pallas as pl
from jax.experimental.pallas import tpu as pltpu


def _round_up(x, m):
    return ((x + m - 1) // m) * m


# ----------------------------------------------------------------------------
# Fused Flow kernel: iconv -> WN (start conv, n_layers dilated+cond+gate+
# res/skip, end conv) -> affine coupling, all on one halo'd time tile.
# ----------------------------------------------------------------------------
def _flow_kernel(x_ref, spec_ref,
                 w_ic_ref, sw_ref, sb_ref,
                 inw_ref, inb_ref, cw_ref, cb_ref, rsw_ref, rsb_ref,
                 ew_ref, eb_ref,
                 xo_ref, ls_ref, *,
                 n_layers, n_channels, n_half, seq_len, tile_t, h_pad):
    tile_in = tile_t + 2 * h_pad
    t_idx = pl.program_id(1)

    x = x_ref[0, 0]            # (C, tile_in)      f32  halo'd audio window
    spec = spec_ref[0, 0]      # (n_mels, tile_in) bf16 halo'd conditioning

    # ---- invertible 1x1 conv (pointwise, exact at every position) ----------
    z = jnp.dot(w_ic_ref[...], x, preferred_element_type=jnp.float32)
    x_a = z[:n_half]
    x_b = z[n_half:]

    # Global positions of this window; positions outside [0, seq_len) must
    # contribute ZERO to every dilated conv (PyTorch Conv1d zero padding).
    gpos = (t_idx * tile_t - h_pad
            + jax.lax.broadcasted_iota(jnp.int32, (1, tile_in), 1))
    valid = jnp.logical_and(gpos >= 0, gpos < seq_len).astype(jnp.float32)

    # ---- WN start conv + ALL layers' conditioning in one tall matmul -------
    h = jnp.dot(sw_ref[...], x_a, preferred_element_type=jnp.float32) + sb_ref[...]
    cond_all = jnp.dot(cw_ref[...], spec,
                       preferred_element_type=jnp.float32) + cb_ref[...]

    out = jnp.zeros((n_channels, tile_in), jnp.float32)
    for l in range(n_layers):               # static unroll; h/out stay in VMEM
        d = 2 ** l
        hm = h * valid                      # zero outside the real sequence
        zpad = jnp.zeros((n_channels, d), jnp.float32)
        tap_m = jnp.concatenate([zpad, hm[:, :tile_in - d]], axis=1)   # h[t-d]
        tap_p = jnp.concatenate([hm[:, d:], zpad], axis=1)             # h[t+d]
        # dilated k=3 conv == 3 accumulating MXU dots (bf16 in, f32 acc)
        in_act = (
            jnp.dot(inw_ref[l, 0], tap_m.astype(jnp.bfloat16),
                    preferred_element_type=jnp.float32)
            + jnp.dot(inw_ref[l, 1], hm.astype(jnp.bfloat16),
                      preferred_element_type=jnp.float32)
            + jnp.dot(inw_ref[l, 2], tap_p.astype(jnp.bfloat16),
                      preferred_element_type=jnp.float32)
            + inb_ref[l])
        pre = in_act + cond_all[2 * n_channels * l: 2 * n_channels * (l + 1)]
        acts = jnp.tanh(pre[:n_channels]) * jax.nn.sigmoid(pre[n_channels:])
        rs = jnp.dot(rsw_ref[l], acts.astype(jnp.bfloat16),
                     preferred_element_type=jnp.float32) + rsb_ref[l]
        h = h + rs[:n_channels]             # zero rows for the last layer
        out = out + rs[n_channels:]

    # ---- end 1x1 conv + affine coupling, tile interior only ----------------
    sl = slice(h_pad, h_pad + tile_t)
    wn = jnp.dot(ew_ref[...], out[:, sl],
                 preferred_element_type=jnp.float32) + eb_ref[...]
    b_coef = wn[:n_half]
    log_s = wn[n_half:]
    xb_new = jnp.exp(log_s) * x_b[:, sl] + b_coef
    xo_ref[0] = jnp.concatenate([x_a[:, sl], xb_new], axis=0)   # (C, tile_t)
    ls_ref[0] = log_s                                           # (n_half, tile_t)


# ----------------------------------------------------------------------------
# Host-side layout plumbing + pallas_call wrapper
# ----------------------------------------------------------------------------
def _unfold_time(arr, t_pad, tile_t, h_pad, n_t):
    """(N, C, T) -> (N, n_t, C, tile_t + 2*h_pad) overlapping halo'd windows."""
    _, _, T = arr.shape
    a = jnp.pad(arr, ((0, 0), (0, 0), (h_pad, h_pad + t_pad - T)))
    tile_in = tile_t + 2 * h_pad
    wins = [jax.lax.slice_in_dim(a, t * tile_t, t * tile_t + tile_in, axis=2)
            for t in range(n_t)]
    return jnp.stack(wins, axis=1)


def flow_forward(params, x, spec, *, tile_t=256):
    """Pallas version of Flow.forward((x, spec)) -> (x_new, log_s, log_det)."""
    N, C, T = x.shape
    n_half = C // 2
    n_mels = spec.shape[1]
    n_layers = params['in_w'].shape[0]
    n_channels = params['start_w'].shape[0]

    # Time tiling (lane axis): tile is a multiple of 128 -> lane-dense stores.
    tile_t = max(128, min(_round_up(tile_t, 128), _round_up(T, 128)))
    n_t = pl.cdiv(T, tile_t)
    t_pad = n_t * tile_t
    halo = 2 ** n_layers - 1                 # WN receptive-field half-width
    h_pad = _round_up(max(halo, 1), 64)      # keep tile_in a multiple of 128
    tile_in = tile_t + 2 * h_pad

    x_unf = _unfold_time(x.astype(jnp.float32), t_pad, tile_t, h_pad, n_t)
    spec_unf = _unfold_time(spec, t_pad, tile_t, h_pad, n_t).astype(jnp.bfloat16)

    weights = (params['iconv_w'], params['start_w'], params['start_b'],
               params['in_w'], params['in_b'],
               params['cond_w'], params['cond_b'],
               params['rs_w'], params['rs_b'],
               params['end_w'], params['end_b'])

    def full_spec(shape):
        nd = len(shape)
        return pl.BlockSpec(shape, lambda n, t: (0,) * nd)

    in_specs = ([pl.BlockSpec((1, 1, C, tile_in), lambda n, t: (n, t, 0, 0)),
                 pl.BlockSpec((1, 1, n_mels, tile_in), lambda n, t: (n, t, 0, 0))]
                + [full_spec(w.shape) for w in weights])
    out_specs = (pl.BlockSpec((1, C, tile_t), lambda n, t: (n, 0, t)),
                 pl.BlockSpec((1, n_half, tile_t), lambda n, t: (n, 0, t)))
    out_shape = (jax.ShapeDtypeStruct((N, C, t_pad), jnp.float32),
                 jax.ShapeDtypeStruct((N, n_half, t_pad), jnp.float32))

    kern = functools.partial(_flow_kernel, n_layers=n_layers,
                             n_channels=n_channels, n_half=n_half,
                             seq_len=T, tile_t=tile_t, h_pad=h_pad)

    x_new_p, log_s_p = pl.pallas_call(
        kern,
        grid=(N, n_t),
        in_specs=in_specs,
        out_specs=out_specs,
        out_shape=out_shape,
        compiler_params=pltpu.CompilerParams(
            dimension_semantics=("parallel", "parallel"),
            vmem_limit_bytes=48 * 1024 * 1024),
    )(x_unf, spec_unf, *weights)

    x_new = x_new_p[:, :, :T]
    log_s = log_s_p[:, :, :T]
    # log_det_W = batch * n_of_groups * logdet(W); logdet precomputed at init.
    log_det = jnp.float32(N * T) * params['logdet_w']
    return x_new, log_s, log_det


# ----------------------------------------------------------------------------
# Parameter construction (deterministic, synthetic)
# ----------------------------------------------------------------------------
def init_flow_params(key, n_remaining, n_layers, n_channels, n_mels):
    # TODO(synk): weight_norm reparametrization is folded into plain weights.
    n_half = n_remaining // 2
    keys = iter(jax.random.split(key, 256))

    def rn(shape, scale=0.05):
        return scale * jax.random.normal(next(keys), shape, dtype=jnp.float32)

    # Invertible1x1Conv: QR-orthogonal weight with det forced positive.
    A = jax.random.normal(next(keys), (n_remaining, n_remaining), jnp.float32)
    Q, _ = jnp.linalg.qr(A)
    sign, _ = jnp.linalg.slogdet(Q)
    Q = Q.at[:, 0].multiply(sign)
    _, logdet_w = jnp.linalg.slogdet(Q)

    start_w = rn((n_channels, n_half))
    start_b = rn((n_channels, 1), 0.01)
    end_w = rn((2 * n_half, n_channels), 0.01)
    end_b = rn((2 * n_half, 1), 0.01)

    in_w, in_b, cond_w, cond_b, rs_w, rs_b = [], [], [], [], [], []
    for l in range(n_layers):
        w3 = rn((2 * n_channels, n_channels, 3))     # Conv1d(k=3, dil=2**l)
        in_w.append(jnp.transpose(w3, (2, 0, 1)))    # (3, 2nc, nc): tap-major
        in_b.append(rn((2 * n_channels, 1), 0.01))
        cond_w.append(rn((2 * n_channels, n_mels)))  # Conv1d(n_mels, 2nc, 1)
        cond_b.append(rn((2 * n_channels, 1), 0.01))
        if l < n_layers - 1:                         # res_skip: 2nc out
            rw = rn((2 * n_channels, n_channels))
            rb = rn((2 * n_channels, 1), 0.01)
        else:                                        # last layer: nc out (skip
            rw_s = rn((n_channels, n_channels))      # only) padded into the
            rb_s = rn((n_channels, 1), 0.01)         # "skip" half; zero "res".
            rw = jnp.concatenate(
                [jnp.zeros((n_channels, n_channels), jnp.float32), rw_s], 0)
            rb = jnp.concatenate(
                [jnp.zeros((n_channels, 1), jnp.float32), rb_s], 0)
        rs_w.append(rw)
        rs_b.append(rb)

    return dict(
        iconv_w=Q, logdet_w=logdet_w,
        start_w=start_w, start_b=start_b,
        in_w=jnp.stack(in_w).astype(jnp.bfloat16),          # (L, 3, 2nc, nc)
        in_b=jnp.stack(in_b),                                # (L, 2nc, 1)
        cond_w=jnp.concatenate(cond_w, 0).astype(jnp.bfloat16),  # (L*2nc, mel)
        cond_b=jnp.concatenate(cond_b, 0),                   # (L*2nc, 1)
        rs_w=jnp.stack(rs_w).astype(jnp.bfloat16),           # (L, 2nc, nc)
        rs_b=jnp.stack(rs_b),                                # (L, 2nc, 1)
        end_w=end_w, end_b=end_b)


# ----------------------------------------------------------------------------
if __name__ == "__main__":
    n_remaining = 8        # audio channels entering this flow
    n_half = n_remaining // 2
    n_layers = 4
    n_channels = 64
    n_mels = 80            # conditioning channels fed to WN
    N, T = 2, 1024

    key = jax.random.PRNGKey(0)
    kp, kx, ks = jax.random.split(key, 3)
    params = init_flow_params(kp, n_remaining, n_layers, n_channels, n_mels)
    x = jax.random.normal(kx, (N, n_remaining, T), dtype=jnp.float32)
    spec = jax.random.normal(ks, (N, n_mels, T), dtype=jnp.float32)

    fwd = jax.jit(functools.partial(flow_forward, tile_t=256))
    x_new, log_s, log_det = fwd(params, x, spec)
    jax.block_until_ready((x_new, log_s, log_det))

    assert x_new.shape == (N, n_remaining, T)
    assert log_s.shape == (N, n_half, T)
    assert log_det.shape == ()
    print("KERNEL_OK")
</pallas_src>

<mosaic_0001>
module attributes {stable_mosaic.version = 11 : i64} {
  func.func @_flow_kernel(%arg0: i32, %arg1: i32, %arg2: memref<1x1x8x384xf32, #tpu.memory_space<vmem>>, %arg3: memref<1x1x80x384xbf16, #tpu.memory_space<vmem>>, %arg4: memref<8x8xf32, #tpu.memory_space<vmem>>, %arg5: memref<64x4xf32, #tpu.memory_space<vmem>>, %arg6: memref<64x1xf32, #tpu.memory_space<vmem>>, %arg7: memref<4x3x128x64xbf16, #tpu.memory_space<vmem>>, %arg8: memref<4x128x1xf32, #tpu.memory_space<vmem>>, %arg9: memref<512x80xbf16, #tpu.memory_space<vmem>>, %arg10: memref<512x1xf32, #tpu.memory_space<vmem>>, %arg11: memref<4x128x64xbf16, #tpu.memory_space<vmem>>, %arg12: memref<4x128x1xf32, #tpu.memory_space<vmem>>, %arg13: memref<8x64xf32, #tpu.memory_space<vmem>>, %arg14: memref<8x1xf32, #tpu.memory_space<vmem>>, %arg15: memref<1x8x256xf32, #tpu.memory_space<vmem>>, %arg16: memref<1x4x256xf32, #tpu.memory_space<vmem>>) attributes {dimension_semantics = [#tpu.dimension_semantics<parallel>, #tpu.dimension_semantics<parallel>], iteration_bounds = array<i64: 2, 4>, scalar_prefetch = 0 : i64, scratch_operands = 0 : i64, tpu.core_type = #tpu.core_type<tc>, window_params = [{transform_indices = @transform_0, window_bounds = array<i64: 1, 1, 8, 384>}, {transform_indices = @transform_1, window_bounds = array<i64: 1, 1, 80, 384>}, {pipeline_mode = #tpu.pipeline_mode<synchronous>, transform_indices = @transform_2, window_bounds = array<i64: 8, 8>}, {pipeline_mode = #tpu.pipeline_mode<synchronous>, transform_indices = @transform_3, window_bounds = array<i64: 64, 4>}, {pipeline_mode = #tpu.pipeline_mode<synchronous>, transform_indices = @transform_4, window_bounds = array<i64: 64, 1>}, {pipeline_mode = #tpu.pipeline_mode<synchronous>, transform_indices = @transform_5, window_bounds = array<i64: 4, 3, 128, 64>}, {pipeline_mode = #tpu.pipeline_mode<synchronous>, transform_indices = @transform_6, window_bounds = array<i64: 4, 128, 1>}, {pipeline_mode = #tpu.pipeline_mode<synchronous>, transform_indices = @transform_7, window_bounds = array<i64: 512, 80>}, {pipeline_mode = #tpu.pipeline_mode<synchronous>, transform_indices = @transform_8, window_bounds = array<i64: 512, 1>}, {pipeline_mode = #tpu.pipeline_mode<synchronous>, transform_indices = @transform_9, window_bounds = array<i64: 4, 128, 64>}, {pipeline_mode = #tpu.pipeline_mode<synchronous>, transform_indices = @transform_10, window_bounds = array<i64: 4, 128, 1>}, {pipeline_mode = #tpu.pipeline_mode<synchronous>, transform_indices = @transform_11, window_bounds = array<i64: 8, 64>}, {pipeline_mode = #tpu.pipeline_mode<synchronous>, transform_indices = @transform_12, window_bounds = array<i64: 8, 1>}, {transform_indices = @transform_13, window_bounds = array<i64: 1, 8, 256>}, {transform_indices = @transform_14, window_bounds = array<i64: 1, 4, 256>}]} {
    %c0 = arith.constant 0 : index
    %c0_0 = arith.constant 0 : index
    %c0_1 = arith.constant 0 : index
    %c0_2 = arith.constant 0 : index
    %0 = vector.load %arg2[%c0, %c0_0, %c0_1, %c0_2] : memref<1x1x8x384xf32, #tpu.memory_space<vmem>>, vector<1x1x8x384xf32>
    %1 = vector.shape_cast %0 : vector<1x1x8x384xf32> to vector<8x384xf32>
    %c0_3 = arith.constant 0 : index
    %c0_4 = arith.constant 0 : index
    %c0_5 = arith.constant 0 : index
    %c0_6 = arith.constant 0 : index
    %2 = vector.load %arg3[%c0_3, %c0_4, %c0_5, %c0_6] : memref<1x1x80x384xbf16, #tpu.memory_space<vmem>>, vector<1x1x80x384xbf16>
    %3 = vector.shape_cast %2 : vector<1x1x80x384xbf16> to vector<80x384xbf16>
    %c0_7 = arith.constant 0 : index
    %c0_8 = arith.constant 0 : index
    %4 = vector.load %arg4[%c0_7, %c0_8] : memref<8x8xf32, #tpu.memory_space<vmem>>, vector<8x8xf32>
    %cst = arith.constant dense<0.000000e+00> : vector<8x384xf32>
    %5 = tpu.matmul %4, %1, %cst {dimension_numbers = #tpu.dot_dimension_numbers<[1], [0], [0], [1], [0, 0, 1, 1], [], []>} : vector<8x8xf32>, vector<8x384xf32>, vector<8x384xf32> -> vector<8x384xf32>
    %6 = vector.extract_strided_slice %5 {offsets = [0, 0], sizes = [4, 384], strides = [1, 1]} : vector<8x384xf32> to vector<4x384xf32>
    %7 = vector.extract_strided_slice %5 {offsets = [4, 0], sizes = [4, 384], strides = [1, 1]} : vector<8x384xf32> to vector<4x384xf32>
    %c256_i32 = arith.constant 256 : i32
    %8 = arith.muli %arg1, %c256_i32 : i32
    %c64_i32 = arith.constant 64 : i32
    %9 = arith.subi %8, %c64_i32 : i32
    %10 = tpu.iota {dimensions = array<i32: 1>} : vector<1x384xi32>
    %11 = vector.broadcast %9 : i32 to vector<1x384xi32>
    %12 = arith.addi %11, %10 : vector<1x384xi32>
    %c0_i32 = arith.constant 0 : i32
    %13 = vector.broadcast %c0_i32 : i32 to vector<1x384xi32>
    %14 = arith.cmpi sge, %12, %13 : vector<1x384xi32>
    %c1024_i32 = arith.constant 1024 : i32
    %15 = vector.broadcast %c1024_i32 : i32 to vector<1x384xi32>
    %16 = arith.cmpi slt, %12, %15 : vector<1x384xi32>
    %17 = arith.andi %14, %16 : vector<1x384xi1>
    %18 = arith.extui %17 : vector<1x384xi1> to vector<1x384xi32>
    %19 = arith.sitofp %18 : vector<1x384xi32> to vector<1x384xf32>
    %c0_9 = arith.constant 0 : index
    %c0_10 = arith.constant 0 : index
    %20 = vector.load %arg5[%c0_9, %c0_10] : memref<64x4xf32, #tpu.memory_space<vmem>>, vector<64x4xf32>
    %cst_11 = arith.constant dense<0.000000e+00> : vector<64x384xf32>
    %21 = tpu.matmul %20, %6, %cst_11 {dimension_numbers = #tpu.dot_dimension_numbers<[1], [0], [0], [1], [0, 0, 1, 1], [], []>} : vector<64x4xf32>, vector<4x384xf32>, vector<64x384xf32> -> vector<64x384xf32>
    %c0_12 = arith.constant 0 : index
    %c0_13 = arith.constant 0 : index
    %22 = vector.load %arg6[%c0_12, %c0_13] : memref<64x1xf32, #tpu.memory_space<vmem>>, vector<64x1xf32>
    %23 = vector.broadcast %22 : vector<64x1xf32> to vector<64x384xf32>
    %24 = arith.addf %21, %23 : vector<64x384xf32>
    %c0_14 = arith.constant 0 : index
    %c0_15 = arith.constant 0 : index
    %25 = vector.load %arg9[%c0_14, %c0_15] : memref<512x80xbf16, #tpu.memory_space<vmem>>, vector<512x80xbf16>
    %cst_16 = arith.constant dense<0.000000e+00> : vector<512x384xf32>
    %26 = tpu.matmul %25, %3, %cst_16 {dimension_numbers = #tpu.dot_dimension_numbers<[1], [0], [0], [1], [0, 0, 1, 1], [], []>} : vector<512x80xbf16>, vector<80x384xbf16>, vector<512x384xf32> -> vector<512x384xf32>
    %c0_17 = arith.constant 0 : index
    %c0_18 = arith.constant 0 : index
    %27 = vector.load %arg10[%c0_17, %c0_18] : memref<512x1xf32, #tpu.memory_space<vmem>>, vector<512x1xf32>
    %28 = vector.broadcast %27 : vector<512x1xf32> to vector<512x384xf32>
    %29 = arith.addf %26, %28 : vector<512x384xf32>
    %cst_19 = arith.constant 0.000000e+00 : f32
    %30 = vector.broadcast %cst_19 : f32 to vector<64x384xf32>
    %31 = vector.broadcast %19 : vector<1x384xf32> to vector<64x384xf32>
    %32 = arith.mulf %24, %31 : vector<64x384xf32>
    %cst_20 = arith.constant 0.000000e+00 : f32
    %33 = vector.broadcast %cst_20 : f32 to vector<64x1xf32>
    %34 = vector.extract_strided_slice %32 {offsets = [0, 0], sizes = [64, 383], strides = [1, 1]} : vector<64x384xf32> to vector<64x383xf32>
    %35 = tpu.concatenate %33, %34 in 1 : vector<64x1xf32>, vector<64x383xf32> -> vector<64x384xf32>
    %36 = vector.extract_strided_slice %32 {offsets = [0, 1], sizes = [64, 383], strides = [1, 1]} : vector<64x384xf32> to vector<64x383xf32>
    %37 = tpu.concatenate %36, %33 in 1 : vector<64x383xf32>, vector<64x1xf32> -> vector<64x384xf32>
    %c0_21 = arith.constant 0 : index
    %c0_22 = arith.constant 0 : index
    %c0_23 = arith.constant 0 : index
    %c0_24 = arith.constant 0 : index
    %38 = vector.load %arg7[%c0_21, %c0_22, %c0_23, %c0_24] : memref<4x3x128x64xbf16, #tpu.memory_space<vmem>>, vector<1x1x128x64xbf16>
    %39 = vector.shape_cast %38 : vector<1x1x128x64xbf16> to vector<128x64xbf16>
    %40 = arith.truncf %35 : vector<64x384xf32> to vector<64x384xbf16>
    %cst_25 = arith.constant dense<0.000000e+00> : vector<128x384xf32>
    %41 = tpu.matmul %39, %40, %cst_25 {dimension_numbers = #tpu.dot_dimension_numbers<[1], [0], [0], [1], [0, 0, 1, 1], [], []>} : vector<128x64xbf16>, vector<64x384xbf16>, vector<128x384xf32> -> vector<128x384xf32>
    %c0_26 = arith.constant 0 : index
    %c1 = arith.constant 1 : index
    %c0_27 = arith.constant 0 : index
    %c0_28 = arith.constant 0 : index
    %42 = vector.load %arg7[%c0_26, %c1, %c0_27, %c0_28] : memref<4x3x128x64xbf16, #tpu.memory_space<vmem>>, vector<1x1x128x64xbf16>
    %43 = vector.shape_cast %42 : vector<1x1x128x64xbf16> to vector<128x64xbf16>
    %44 = arith.truncf %32 : vector<64x384xf32> to vector<64x384xbf16>
    %cst_29 = arith.constant dense<0.000000e+00> : vector<128x384xf32>
    %45 = tpu.matmul %43, %44, %cst_29 {dimension_numbers = #tpu.dot_dimension_numbers<[1], [0], [0], [1], [0, 0, 1, 1], [], []>} : vector<128x64xbf16>, vector<64x384xbf16>, vector<128x384xf32> -> vector<128x384xf32>
    %46 = arith.addf %41, %45 : vector<128x384xf32>
    %c0_30 = arith.constant 0 : index
    %c2 = arith.constant 2 : index
    %c0_31 = arith.constant 0 : index
    %c0_32 = arith.constant 0 : index
    %47 = vector.load %arg7[%c0_30, %c2, %c0_31, %c0_32] : memref<4x3x128x64xbf16, #tpu.memory_space<vmem>>, vector<1x1x128x64xbf16>
    %48 = vector.shape_cast %47 : vector<1x1x128x64xbf16> to vector<128x64xbf16>
    %49 = arith.truncf %37 : vector<64x384xf32> to vector<64x384xbf16>
    %cst_33 = arith.constant dense<0.000000e+00> : vector<128x384xf32>
    %50 = tpu.matmul %48, %49, %cst_33 {dimension_numbers = #tpu.dot_dimension_numbers<[1], [0], [0], [1], [0, 0, 1, 1], [], []>} : vector<128x64xbf16>, vector<64x384xbf16>, vector<128x384xf32> -> vector<128x384xf32>
    %51 = arith.addf %46, %50 : vector<128x384xf32>
    %c0_34 = arith.constant 0 : index
    %c0_35 = arith.constant 0 : index
    %c0_36 = arith.constant 0 : index
    %52 = vector.load %arg8[%c0_34, %c0_35, %c0_36] : memref<4x128x1xf32, #tpu.memory_space<vmem>>, vector<1x128x1xf32>
    %53 = vector.shape_cast %52 : vector<1x128x1xf32> to vector<128x1xf32>
    %54 = vector.broadcast %53 : vector<128x1xf32> to vector<128x384xf32>
    %55 = arith.addf %51, %54 : vector<128x384xf32>
    %56 = vector.extract_strided_slice %29 {offsets = [0, 0], sizes = [128, 384], strides = [1, 1]} : vector<512x384xf32> to vector<128x384xf32>
    %57 = arith.addf %55, %56 : vector<128x384xf32>
    %58 = vector.extract_strided_slice %57 {offsets = [0, 0], sizes = [64, 384], strides = [1, 1]} : vector<128x384xf32> to vector<64x384xf32>
    %59 = math.tanh %58 : vector<64x384xf32>
    %60 = vector.extract_strided_slice %57 {offsets = [64, 0], sizes = [64, 384], strides = [1, 1]} : vector<128x384xf32> to vector<64x384xf32>
    %61 = arith.negf %60 : vector<64x384xf32>
    %62 = math.exp %61 : vector<64x384xf32>
    %cst_37 = arith.constant 1.000000e+00 : f32
    %63 = vector.broadcast %cst_37 : f32 to vector<64x384xf32>
    %64 = arith.addf %63, %62 : vector<64x384xf32>
    %65 = arith.divf %63, %64 : vector<64x384xf32>
    %66 = arith.mulf %59, %65 : vector<64x384xf32>
    %c0_38 = arith.constant 0 : index
    %c0_39 = arith.constant 0 : index
    %c0_40 = arith.constant 0 : index
    %67 = vector.load %arg11[%c0_38, %c0_39, %c0_40] : memref<4x128x64xbf16, #tpu.memory_space<vmem>>, vector<1x128x64xbf16>
    %68 = vector.shape_cast %67 : vector<1x128x64xbf16> to vector<128x64xbf16>
    %69 = arith.truncf %66 : vector<64x384xf32> to vector<64x384xbf16>
    %cst_41 = arith.constant dense<0.000000e+00> : vector<128x384xf32>
    %70 = tpu.matmul %68, %69, %cst_41 {dimension_numbers = #tpu.dot_dimension_numbers<[1], [0], [0], [1], [0, 0, 1, 1], [], []>} : vector<128x64xbf16>, vector<64x384xbf16>, vector<128x384xf32> -> vector<128x384xf32>
    %c0_42 = arith.constant 0 : index
    %c0_43 = arith.constant 0 : index
    %c0_44 = arith.constant 0 : index
    %71 = vector.load %arg12[%c0_42, %c0_43, %c0_44] : memref<4x128x1xf32, #tpu.memory_space<vmem>>, vector<1x128x1xf32>
    %72 = vector.shape_cast %71 : vector<1x128x1xf32> to vector<128x1xf32>
    %73 = vector.broadcast %72 : vector<128x1xf32> to vector<128x384xf32>
    %74 = arith.addf %70, %73 : vector<128x384xf32>
    %75 = vector.extract_strided_slice %74 {offsets = [0, 0], sizes = [64, 384], strides = [1, 1]} : vector<128x384xf32> to vector<64x384xf32>
    %76 = arith.addf %24, %75 : vector<64x384xf32>
    %77 = vector.extract_strided_slice %74 {offsets = [64, 0], sizes = [64, 384], strides = [1, 1]} : vector<128x384xf32> to vector<64x384xf32>
    %78 = arith.addf %30, %77 : vector<64x384xf32>
    %79 = vector.broadcast %19 : vector<1x384xf32> to vector<64x384xf32>
    %80 = arith.mulf %76, %79 : vector<64x384xf32>
    %cst_45 = arith.constant 0.000000e+00 : f32
    %81 = vector.broadcast %cst_45 : f32 to vector<64x2xf32>
    %82 = vector.extract_strided_slice %80 {offsets = [0, 0], sizes = [64, 382], strides = [1, 1]} : vector<64x384xf32> to vector<64x382xf32>
    %83 = tpu.concatenate %81, %82 in 1 : vector<64x2xf32>, vector<64x382xf32> -> vector<64x384xf32>
    %84 = vector.extract_strided_slice %80 {offsets = [0, 2], sizes = [64, 382], strides = [1, 1]} : vector<64x384xf32> to vector<64x382xf32>
    %85 = tpu.concatenate %84, %81 in 1 : vector<64x382xf32>, vector<64x2xf32> -> vector<64x384xf32>
    %c1_46 = arith.constant 1 : index
    %c0_47 = arith.constant 0 : index
    %c0_48 = arith.constant 0 : index
    %c0_49 = arith.constant 0 : index
    %86 = vector.load %arg7[%c1_46, %c0_47, %c0_48, %c0_49] : memref<4x3x128x64xbf16, #tpu.memory_space<vmem>>, vector<1x1x128x64xbf16>
    %87 = vector.shape_cast %86 : vector<1x1x128x64xbf16> to vector<128x64xbf16>
    %88 = arith.truncf %83 : vector<64x384xf32> to vector<64x384xbf16>
    %cst_50 = arith.constant dense<0.000000e+00> : vector<128x384xf32>
    %89 = tpu.matmul %87, %88, %cst_50 {dimension_numbers = #tpu.dot_dimension_numbers<[1], [0], [0], [1], [0, 0, 1, 1], [], []>} : vector<128x64xbf16>, vector<64x384xbf16>, vector<128x384xf32> -> vector<128x384xf32>
    %c1_51 = arith.constant 1 : index
    %c1_52 = arith.constant 1 : index
    %c0_53 = arith.constant 0 : index
    %c0_54 = arith.constant 0 : index
    %90 = vector.load %arg7[%c1_51, %c1_52, %c0_53, %c0_54] : memref<4x3x128x64xbf16, #tpu.memory_space<vmem>>, vector<1x1x128x64xbf16>
    %91 = vector.shape_cast %90 : vector<1x1x128x64xbf16> to vector<128x64xbf16>
    %92 = arith.truncf %80 : vector<64x384xf32> to vector<64x384xbf16>
    %cst_55 = arith.constant dense<0.000000e+00> : vector<128x384xf32>
    %93 = tpu.matmul %91, %92, %cst_55 {dimension_numbers = #tpu.dot_dimension_numbers<[1], [0], [0], [1], [0, 0, 1, 1], [], []>} : vector<128x64xbf16>, vector<64x384xbf16>, vector<128x384xf32> -> vector<128x384xf32>
    %94 = arith.addf %89, %93 : vector<128x384xf32>
    %c1_56 = arith.constant 1 : index
    %c2_57 = arith.constant 2 : index
    %c0_58 = arith.constant 0 : index
    %c0_59 = arith.constant 0 : index
    %95 = vector.load %arg7[%c1_56, %c2_57, %c0_58, %c0_59] : memref<4x3x128x64xbf16, #tpu.memory_space<vmem>>, vector<1x1x128x64xbf16>
    %96 = vector.shape_cast %95 : vector<1x1x128x64xbf16> to vector<128x64xbf16>
    %97 = arith.truncf %85 : vector<64x384xf32> to vector<64x384xbf16>
    %cst_60 = arith.constant dense<0.000000e+00> : vector<128x384xf32>
    %98 = tpu.matmul %96, %97, %cst_60 {dimension_numbers = #tpu.dot_dimension_numbers<[1], [0], [0], [1], [0, 0, 1, 1], [], []>} : vector<128x64xbf16>, vector<64x384xbf16>, vector<128x384xf32> -> vector<128x384xf32>
    %99 = arith.addf %94, %98 : vector<128x384xf32>
    %c1_61 = arith.constant 1 : index
    %c0_62 = arith.constant 0 : index
    %c0_63 = arith.constant 0 : index
    %100 = vector.load %arg8[%c1_61, %c0_62, %c0_63] : memref<4x128x1xf32, #tpu.memory_space<vmem>>, vector<1x128x1xf32>
    %101 = vector.shape_cast %100 : vector<1x128x1xf32> to vector<128x1xf32>
    %102 = vector.broadcast %101 : vector<128x1xf32> to vector<128x384xf32>
    %103 = arith.addf %99, %102 : vector<128x384xf32>
    %104 = vector.extract_strided_slice %29 {offsets = [128, 0], sizes = [128, 384], strides = [1, 1]} : vector<512x384xf32> to vector<128x384xf32>
    %105 = arith.addf %103, %104 : vector<128x384xf32>
    %106 = vector.extract_strided_slice %105 {offsets = [0, 0], sizes = [64, 384], strides = [1, 1]} : vector<128x384xf32> to vector<64x384xf32>
    %107 = math.tanh %106 : vector<64x384xf32>
    %108 = vector.extract_strided_slice %105 {offsets = [64, 0], sizes = [64, 384], strides = [1, 1]} : vector<128x384xf32> to vector<64x384xf32>
    %109 = arith.negf %108 : vector<64x384xf32>
    %110 = math.exp %109 : vector<64x384xf32>
    %cst_64 = arith.constant 1.000000e+00 : f32
    %111 = vector.broadcast %cst_64 : f32 to vector<64x384xf32>
    %112 = arith.addf %111, %110 : vector<64x384xf32>
    %113 = arith.divf %111, %112 : vector<64x384xf32>
    %114 = arith.mulf %107, %113 : vector<64x384xf32>
    %c1_65 = arith.constant 1 : index
    %c0_66 = arith.constant 0 : index
    %c0_67 = arith.constant 0 : index
    %115 = vector.load %arg11[%c1_65, %c0_66, %c0_67] : memref<4x128x64xbf16, #tpu.memory_space<vmem>>, vector<1x128x64xbf16>
    %116 = vector.shape_cast %115 : vector<1x128x64xbf16> to vector<128x64xbf16>
    %117 = arith.truncf %114 : vector<64x384xf32> to vector<64x384xbf16>
    %cst_68 = arith.constant dense<0.000000e+00> : vector<128x384xf32>
    %118 = tpu.matmul %116, %117, %cst_68 {dimension_numbers = #tpu.dot_dimension_numbers<[1], [0], [0], [1], [0, 0, 1, 1], [], []>} : vector<128x64xbf16>, vector<64x384xbf16>, vector<128x384xf32> -> vector<128x384xf32>
    %c1_69 = arith.constant 1 : index
    %c0_70 = arith.constant 0 : index
    %c0_71 = arith.constant 0 : index
    %119 = vector.load %arg12[%c1_69, %c0_70, %c0_71] : memref<4x128x1xf32, #tpu.memory_space<vmem>>, vector<1x128x1xf32>
    %120 = vector.shape_cast %119 : vector<1x128x1xf32> to vector<128x1xf32>
    %121 = vector.broadcast %120 : vector<128x1xf32> to vector<128x384xf32>
    %122 = arith.addf %118, %121 : vector<128x384xf32>
    %123 = vector.extract_strided_slice %122 {offsets = [0, 0], sizes = [64, 384], strides = [1, 1]} : vector<128x384xf32> to vector<64x384xf32>
    %124 = arith.addf %76, %123 : vector<64x384xf32>
    %125 = vector.extract_strided_slice %122 {offsets = [64, 0], sizes = [64, 384], strides = [1, 1]} : vector<128x384xf32> to vector<64x384xf32>
    %126 = arith.addf %78, %125 : vector<64x384xf32>
    %127 = vector.broadcast %19 : vector<1x384xf32> to vector<64x384xf32>
    %128 = arith.mulf %124, %127 : vector<64x384xf32>
    %cst_72 = arith.constant 0.000000e+00 : f32
    %129 = vector.broadcast %cst_72 : f32 to vector<64x4xf32>
    %130 = vector.extract_strided_slice %128 {offsets = [0, 0], sizes = [64, 380], strides = [1, 1]} : vector<64x384xf32> to vector<64x380xf32>
    %131 = tpu.concatenate %129, %130 in 1 : vector<64x4xf32>, vector<64x380xf32> -> vector<64x384xf32>
    %132 = vector.extract_strided_slice %128 {offsets = [0, 4], sizes = [64, 380], strides = [1, 1]} : vector<64x384xf32> to vector<64x380xf32>
    %133 = tpu.concatenate %132, %129 in 1 : vector<64x380xf32>, vector<64x4xf32> -> vector<64x384xf32>
    %c2_73 = arith.constant 2 : index
    %c0_74 = arith.constant 0 : index
    %c0_75 = arith.constant 0 : index
    %c0_76 = arith.constant 0 : index
    %134 = vector.load %arg7[%c2_73, %c0_74, %c0_75, %c0_76] : memref<4x3x128x64xbf16, #tpu.memory_space<vmem>>, vector<1x1x128x64xbf16>
    %135 = vector.shape_cast %134 : vector<1x1x128x64xbf16> to vector<128x64xbf16>
    %136 = arith.truncf %131 : vector<64x384xf32> to vector<64x384xbf16>
    %cst_77 = arith.constant dense<0.000000e+00> : vector<128x384xf32>
    %137 = tpu.matmul %135, %136, %cst_77 {dimension_numbers = #tpu.dot_dimension_numbers<[1], [0], [0], [1], [0, 0, 1, 1], [], []>} : vector<128x64xbf16>, vector<64x384xbf16>, vector<128x384xf32> -> vector<128x384xf32>
    %c2_78 = arith.constant 2 : index
    %c1_79 = arith.constant 1 : index
    %c0_80 = arith.constant 0 : index
    %c0_81 = arith.constant 0 : index
    %138 = vector.load %arg7[%c2_78, %c1_79, %c0_80, %c0_81] : memref<4x3x128x64xbf16, #tpu.memory_space<vmem>>, vector<1x1x128x64xbf16>
    %139 = vector.shape_cast %138 : vector<1x1x128x64xbf16> to vector<128x64xbf16>
    %140 = arith.truncf %128 : vector<64x384xf32> to vector<64x384xbf16>
    %cst_82 = arith.constant dense<0.000000e+00> : vector<128x384xf32>
    %141 = tpu.matmul %139, %140, %cst_82 {dimension_numbers = #tpu.dot_dimension_numbers<[1], [0], [0], [1], [0, 0, 1, 1], [], []>} : vector<128x64xbf16>, vector<64x384xbf16>, vector<128x384xf32> -> vector<128x384xf32>
    %142 = arith.addf %137, %141 : vector<128x384xf32>
    %c2_83 = arith.constant 2 : index
    %c2_84 = arith.constant 2 : index
    %c0_85 = arith.constant 0 : index
    %c0_86 = arith.constant 0 : index
    %143 = vector.load %arg7[%c2_83, %c2_84, %c0_85, %c0_86] : memref<4x3x128x64xbf16, #tpu.memory_space<vmem>>, vector<1x1x128x64xbf16>
    %144 = vector.shape_cast %143 : vector<1x1x128x64xbf16> to vector<128x64xbf16>
    %145 = arith.truncf %133 : vector<64x384xf32> to vector<64x384xbf16>
    %cst_87 = arith.constant dense<0.000000e+00> : vector<128x384xf32>
    %146 = tpu.matmul %144, %145, %cst_87 {dimension_numbers = #tpu.dot_dimension_numbers<[1], [0], [0], [1], [0, 0, 1, 1], [], []>} : vector<128x64xbf16>, vector<64x384xbf16>, vector<128x384xf32> -> vector<128x384xf32>
    %147 = arith.addf %142, %146 : vector<128x384xf32>
    %c2_88 = arith.constant 2 : index
    %c0_89 = arith.constant 0 : index
    %c0_90 = arith.constant 0 : index
    %148 = vector.load %arg8[%c2_88, %c0_89, %c0_90] : memref<4x128x1xf32, #tpu.memory_space<vmem>>, vector<1x128x1xf32>
    %149 = vector.shape_cast %148 : vector<1x128x1xf32> to vector<128x1xf32>
    %150 = vector.broadcast %149 : vector<128x1xf32> to vector<128x384xf32>
    %151 = arith.addf %147, %150 : vector<128x384xf32>
    %152 = vector.extract_strided_slice %29 {offsets = [256, 0], sizes = [128, 384], strides = [1, 1]} : vector<512x384xf32> to vector<128x384xf32>
    %153 = arith.addf %151, %152 : vector<128x384xf32>
    %154 = vector.extract_strided_slice %153 {offsets = [0, 0], sizes = [64, 384], strides = [1, 1]} : vector<128x384xf32> to vector<64x384xf32>
    %155 = math.tanh %154 : vector<64x384xf32>
    %156 = vector.extract_strided_slice %153 {offsets = [64, 0], sizes = [64, 384], strides = [1, 1]} : vector<128x384xf32> to vector<64x384xf32>
    %157 = arith.negf %156 : vector<64x384xf32>
    %158 = math.exp %157 : vector<64x384xf32>
    %cst_91 = arith.constant 1.000000e+00 : f32
    %159 = vector.broadcast %cst_91 : f32 to vector<64x384xf32>
    %160 = arith.addf %159, %158 : vector<64x384xf32>
    %161 = arith.divf %159, %160 : vector<64x384xf32>
    %162 = arith.mulf %155, %161 : vector<64x384xf32>
    %c2_92 = arith.constant 2 : index
    %c0_93 = arith.constant 0 : index
    %c0_94 = arith.constant 0 : index
    %163 = vector.load %arg11[%c2_92, %c0_93, %c0_94] : memref<4x128x64xbf16, #tpu.memory_space<vmem>>, vector<1x128x64xbf16>
    %164 = vector.shape_cast %163 : vector<1x128x64xbf16> to vector<128x64xbf16>
    %165 = arith.truncf %162 : vector<64x384xf32> to vector<64x384xbf16>
    %cst_95 = arith.constant dense<0.000000e+00> : vector<128x384xf32>
    %166 = tpu.matmul %164, %165, %cst_95 {dimension_numbers = #tpu.dot_dimension_numbers<[1], [0], [0], [1], [0, 0, 1, 1], [], []>} : vector<128x64xbf16>, vector<64x384xbf16>, vector<128x384xf32> -> vector<128x384xf32>
    %c2_96 = arith.constant 2 : index
    %c0_97 = arith.constant 0 : index
    %c0_98 = arith.constant 0 : index
    %167 = vector.load %arg12[%c2_96, %c0_97, %c0_98] : memref<4x128x1xf32, #tpu.memory_space<vmem>>, vector<1x128x1xf32>
    %168 = vector.shape_cast %167 : vector<1x128x1xf32> to vector<128x1xf32>
    %169 = vector.broadcast %168 : vector<128x1xf32> to vector<128x384xf32>
    %170 = arith.addf %166, %169 : vector<128x384xf32>
    %171 = vector.extract_strided_slice %170 {offsets = [0, 0], sizes = [64, 384], strides = [1, 1]} : vector<128x384xf32> to vector<64x384xf32>
    %172 = arith.addf %124, %171 : vector<64x384xf32>
    %173 = vector.extract_strided_slice %170 {offsets = [64, 0], sizes = [64, 384], strides = [1, 1]} : vector<128x384xf32> to vector<64x384xf32>
    %174 = arith.addf %126, %173 : vector<64x384xf32>
    %175 = vector.broadcast %19 : vector<1x384xf32> to vector<64x384xf32>
    %176 = arith.mulf %172, %175 : vector<64x384xf32>
    %cst_99 = arith.constant 0.000000e+00 : f32
    %177 = vector.broadcast %cst_99 : f32 to vector<64x8xf32>
    %178 = vector.extract_strided_slice %176 {offsets = [0, 0], sizes = [64, 376], strides = [1, 1]} : vector<64x384xf32> to vector<64x376xf32>
    %179 = tpu.concatenate %177, %178 in 1 : vector<64x8xf32>, vector<64x376xf32> -> vector<64x384xf32>
    %180 = vector.extract_strided_slice %176 {offsets = [0, 8], sizes = [64, 376], strides = [1, 1]} : vector<64x384xf32> to vector<64x376xf32>
    %181 = tpu.concatenate %180, %177 in 1 : vector<64x376xf32>, vector<64x8xf32> -> vector<64x384xf32>
    %c3 = arith.constant 3 : index
    %c0_100 = arith.constant 0 : index
    %c0_101 = arith.constant 0 : index
    %c0_102 = arith.constant 0 : index
    %182 = vector.load %arg7[%c3, %c0_100, %c0_101, %c0_102] : memref<4x3x128x64xbf16, #tpu.memory_space<vmem>>, vector<1x1x128x64xbf16>
    %183 = vector.shape_cast %182 : vector<1x1x128x64xbf16> to vector<128x64xbf16>
    %184 = arith.truncf %179 : vector<64x384xf32> to vector<64x384xbf16>
    %cst_103 = arith.constant dense<0.000000e+00> : vector<128x384xf32>
    %185 = tpu.matmul %183, %184, %cst_103 {dimension_numbers = #tpu.dot_dimension_numbers<[1], [0], [0], [1], [0, 0, 1, 1], [], []>} : vector<128x64xbf16>, vector<64x384xbf16>, vector<128x384xf32> -> vector<128x384xf32>
    %c3_104 = arith.constant 3 : index
    %c1_105 = arith.constant 1 : index
    %c0_106 = arith.constant 0 : index
    %c0_107 = arith.constant 0 : index
    %186 = vector.load %arg7[%c3_104, %c1_105, %c0_106, %c0_107] : memref<4x3x128x64xbf16, #tpu.memory_space<vmem>>, vector<1x1x128x64xbf16>
    %187 = vector.shape_cast %186 : vector<1x1x128x64xbf16> to vector<128x64xbf16>
    %188 = arith.truncf %176 : vector<64x384xf32> to vector<64x384xbf16>
    %cst_108 = arith.constant dense<0.000000e+00> : vector<128x384xf32>
    %189 = tpu.matmul %187, %188, %cst_108 {dimension_numbers = #tpu.dot_dimension_numbers<[1], [0], [0], [1], [0, 0, 1, 1], [], []>} : vector<128x64xbf16>, vector<64x384xbf16>, vector<128x384xf32> -> vector<128x384xf32>
    %190 = arith.addf %185, %189 : vector<128x384xf32>
    %c3_109 = arith.constant 3 : index
    %c2_110 = arith.constant 2 : index
    %c0_111 = arith.constant 0 : index
    %c0_112 = arith.constant 0 : index
    %191 = vector.load %arg7[%c3_109, %c2_110, %c0_111, %c0_112] : memref<4x3x128x64xbf16, #tpu.memory_space<vmem>>, vector<1x1x128x64xbf16>
    %192 = vector.shape_cast %191 : vector<1x1x128x64xbf16> to vector<128x64xbf16>
    %193 = arith.truncf %181 : vector<64x384xf32> to vector<64x384xbf16>
    %cst_113 = arith.constant dense<0.000000e+00> : vector<128x384xf32>
    %194 = tpu.matmul %192, %193, %cst_113 {dimension_numbers = #tpu.dot_dimension_numbers<[1], [0], [0], [1], [0, 0, 1, 1], [], []>} : vector<128x64xbf16>, vector<64x384xbf16>, vector<128x384xf32> -> vector<128x384xf32>
    %195 = arith.addf %190, %194 : vector<128x384xf32>
    %c3_114 = arith.constant 3 : index
    %c0_115 = arith.constant 0 : index
    %c0_116 = arith.constant 0 : index
    %196 = vector.load %arg8[%c3_114, %c0_115, %c0_116] : memref<4x128x1xf32, #tpu.memory_space<vmem>>, vector<1x128x1xf32>
    %197 = vector.shape_cast %196 : vector<1x128x1xf32> to vector<128x1xf32>
    %198 = vector.broadcast %197 : vector<128x1xf32> to vector<128x384xf32>
    %199 = arith.addf %195, %198 : vector<128x384xf32>
    %200 = vector.extract_strided_slice %29 {offsets = [384, 0], sizes = [128, 384], strides = [1, 1]} : vector<512x384xf32> to vector<128x384xf32>
    %201 = arith.addf %199, %200 : vector<128x384xf32>
    %202 = vector.extract_strided_slice %201 {offsets = [0, 0], sizes = [64, 384], strides = [1, 1]} : vector<128x384xf32> to vector<64x384xf32>
    %203 = math.tanh %202 : vector<64x384xf32>
    %204 = vector.extract_strided_slice %201 {offsets = [64, 0], sizes = [64, 384], strides = [1, 1]} : vector<128x384xf32> to vector<64x384xf32>
    %205 = arith.negf %204 : vector<64x384xf32>
    %206 = math.exp %205 : vector<64x384xf32>
    %cst_117 = arith.constant 1.000000e+00 : f32
    %207 = vector.broadcast %cst_117 : f32 to vector<64x384xf32>
    %208 = arith.addf %207, %206 : vector<64x384xf32>
    %209 = arith.divf %207, %208 : vector<64x384xf32>
    %210 = arith.mulf %203, %209 : vector<64x384xf32>
    %c3_118 = arith.constant 3 : index
    %c0_119 = arith.constant 0 : index
    %c0_120 = arith.constant 0 : index
    %211 = vector.load %arg11[%c3_118, %c0_119, %c0_120] : memref<4x128x64xbf16, #tpu.memory_space<vmem>>, vector<1x128x64xbf16>
    %212 = vector.shape_cast %211 : vector<1x128x64xbf16> to vector<128x64xbf16>
    %213 = arith.truncf %210 : vector<64x384xf32> to vector<64x384xbf16>
    %cst_121 = arith.constant dense<0.000000e+00> : vector<128x384xf32>
    %214 = tpu.matmul %212, %213, %cst_121 {dimension_numbers = #tpu.dot_dimension_numbers<[1], [0], [0], [1], [0, 0, 1, 1], [], []>} : vector<128x64xbf16>, vector<64x384xbf16>, vector<128x384xf32> -> vector<128x384xf32>
    %c3_122 = arith.constant 3 : index
    %c0_123 = arith.constant 0 : index
    %c0_124 = arith.constant 0 : index
    %215 = vector.load %arg12[%c3_122, %c0_123, %c0_124] : memref<4x128x1xf32, #tpu.memory_space<vmem>>, vector<1x128x1xf32>
    %216 = vector.shape_cast %215 : vector<1x128x1xf32> to vector<128x1xf32>
    %217 = vector.broadcast %216 : vector<128x1xf32> to vector<128x384xf32>
    %218 = arith.addf %214, %217 : vector<128x384xf32>
    %219 = vector.extract_strided_slice %218 {offsets = [64, 0], sizes = [64, 384], strides = [1, 1]} : vector<128x384xf32> to vector<64x384xf32>
    %220 = arith.addf %174, %219 : vector<64x384xf32>
    %c0_125 = arith.constant 0 : index
    %c0_126 = arith.constant 0 : index
    %221 = vector.load %arg13[%c0_125, %c0_126] : memref<8x64xf32, #tpu.memory_space<vmem>>, vector<8x64xf32>
    %222 = vector.extract_strided_slice %220 {offsets = [0, 64], sizes = [64, 256], strides = [1, 1]} : vector<64x384xf32> to vector<64x256xf32>
    %cst_127 = arith.constant dense<0.000000e+00> : vector<8x256xf32>
    %223 = tpu.matmul %221, %222, %cst_127 {dimension_numbers = #tpu.dot_dimension_numbers<[1], [0], [0], [1], [0, 0, 1, 1], [], []>} : vector<8x64xf32>, vector<64x256xf32>, vector<8x256xf32> -> vector<8x256xf32>
    %c0_128 = arith.constant 0 : index
    %c0_129 = arith.constant 0 : index
    %224 = vector.load %arg14[%c0_128, %c0_129] : memref<8x1xf32, #tpu.memory_space<vmem>>, vector<8x1xf32>
    %225 = vector.broadcast %224 : vector<8x1xf32> to vector<8x256xf32>
    %226 = arith.addf %223, %225 : vector<8x256xf32>
    %227 = vector.extract_strided_slice %226 {offsets = [0, 0], sizes = [4, 256], strides = [1, 1]} : vector<8x256xf32> to vector<4x256xf32>
    %228 = vector.extract_strided_slice %226 {offsets = [4, 0], sizes = [4, 256], strides = [1, 1]} : vector<8x256xf32> to vector<4x256xf32>
    %229 = math.exp %228 : vector<4x256xf32>
    %230 = vector.extract_strided_slice %7 {offsets = [0, 64], sizes = [4, 256], strides = [1, 1]} : vector<4x384xf32> to vector<4x256xf32>
    %231 = arith.mulf %229, %230 : vector<4x256xf32>
    %232 = arith.addf %231, %227 : vector<4x256xf32>
    %233 = vector.extract_strided_slice %6 {offsets = [0, 64], sizes = [4, 256], strides = [1, 1]} : vector<4x384xf32> to vector<4x256xf32>
    %234 = tpu.concatenate %233, %232 in 0 : vector<4x256xf32>, vector<4x256xf32> -> vector<8x256xf32>
    %c0_130 = arith.constant 0 : index
    %c0_131 = arith.constant 0 : index
    %c0_132 = arith.constant 0 : index
    %235 = vector.load %arg15[%c0_130, %c0_131, %c0_132] : memref<1x8x256xf32, #tpu.memory_space<vmem>>, vector<1x8x256xf32>
    %236 = vector.shape_cast %235 : vector<1x8x256xf32> to vector<8x256xf32>
    %237 = vector.shape_cast %234 : vector<8x256xf32> to vector<1x8x256xf32>
    tpu.vector_store %arg15[%c0_130, %c0_131, %c0_132], %237 {strides = array<i32>} : memref<1x8x256xf32, #tpu.memory_space<vmem>>, vector<1x8x256xf32>,
    %c0_133 = arith.constant 0 : index
    %c0_134 = arith.constant 0 : index
    %c0_135 = arith.constant 0 : index
    %238 = vector.load %arg16[%c0_133, %c0_134, %c0_135] : memref<1x4x256xf32, #tpu.memory_space<vmem>>, vector<1x4x256xf32>
    %239 = vector.shape_cast %238 : vector<1x4x256xf32> to vector<4x256xf32>
    %240 = vector.shape_cast %228 : vector<4x256xf32> to vector<1x4x256xf32>
    tpu.vector_store %arg16[%c0_133, %c0_134, %c0_135], %240 {strides = array<i32>} : memref<1x4x256xf32, #tpu.memory_space<vmem>>, vector<1x4x256xf32>,
    return
  }
  func.func @transform_0(%arg0: i32, %arg1: i32) -> (i32, i32, i32, i32) {
    %c0_i32 = arith.constant 0 : i32
    %c0_i32_0 = arith.constant 0 : i32
    %c0_i32_1 = arith.constant 0 : i32
    return %arg0, %arg1, %c0_i32, %c0_i32_0 : i32, i32, i32, i32
  }
  func.func @transform_1(%arg0: i32, %arg1: i32) -> (i32, i32, i32, i32) {
    %c0_i32 = arith.constant 0 : i32
    %c0_i32_0 = arith.constant 0 : i32
    %c0_i32_1 = arith.constant 0 : i32
    return %arg0, %arg1, %c0_i32, %c0_i32_0 : i32, i32, i32, i32
  }
  func.func @transform_2(%arg0: i32, %arg1: i32) -> (i32, i32) {
    %c0_i32 = arith.constant 0 : i32
    %c0_i32_0 = arith.constant 0 : i32
    %c0_i32_1 = arith.constant 0 : i32
    return %c0_i32, %c0_i32_0 : i32, i32
  }
  func.func @transform_3(%arg0: i32, %arg1: i32) -> (i32, i32) {
    %c0_i32 = arith.constant 0 : i32
    %c0_i32_0 = arith.constant 0 : i32
    %c0_i32_1 = arith.constant 0 : i32
    return %c0_i32, %c0_i32_0 : i32, i32
  }
  func.func @transform_4(%arg0: i32, %arg1: i32) -> (i32, i32) {
    %c0_i32 = arith.constant 0 : i32
    %c0_i32_0 = arith.constant 0 : i32
    %c0_i32_1 = arith.constant 0 : i32
    return %c0_i32, %c0_i32_0 : i32, i32
  }
  func.func @transform_5(%arg0: i32, %arg1: i32) -> (i32, i32, i32, i32) {
    %c0_i32 = arith.constant 0 : i32
    %c0_i32_0 = arith.constant 0 : i32
    %c0_i32_1 = arith.constant 0 : i32
    %c0_i32_2 = arith.constant 0 : i32
    %c0_i32_3 = arith.constant 0 : i32
    return %c0_i32, %c0_i32_0, %c0_i32_1, %c0_i32_2 : i32, i32, i32, i32
  }
  func.func @transform_6(%arg0: i32, %arg1: i32) -> (i32, i32, i32) {
    %c0_i32 = arith.constant 0 : i32
    %c0_i32_0 = arith.constant 0 : i32
    %c0_i32_1 = arith.constant 0 : i32
    %c0_i32_2 = arith.constant 0 : i32
    return %c0_i32, %c0_i32_0, %c0_i32_1 : i32, i32, i32
  }
  func.func @transform_7(%arg0: i32, %arg1: i32) -> (i32, i32) {
    %c0_i32 = arith.constant 0 : i32
    %c0_i32_0 = arith.constant 0 : i32
    %c0_i32_1 = arith.constant 0 : i32
    return %c0_i32, %c0_i32_0 : i32, i32
  }
  func.func @transform_8(%arg0: i32, %arg1: i32) -> (i32, i32) {
    %c0_i32 = arith.constant 0 : i32
    %c0_i32_0 = arith.constant 0 : i32
    %c0_i32_1 = arith.constant 0 : i32
    return %c0_i32, %c0_i32_0 : i32, i32
  }
  func.func @transform_9(%arg0: i32, %arg1: i32) -> (i32, i32, i32) {
    %c0_i32 = arith.constant 0 : i32
    %c0_i32_0 = arith.constant 0 : i32
    %c0_i32_1 = arith.constant 0 : i32
    %c0_i32_2 = arith.constant 0 : i32
    return %c0_i32, %c0_i32_0, %c0_i32_1 : i32, i32, i32
  }
  func.func @transform_10(%arg0: i32, %arg1: i32) -> (i32, i32, i32) {
    %c0_i32 = arith.constant 0 : i32
    %c0_i32_0 = arith.constant 0 : i32
    %c0_i32_1 = arith.constant 0 : i32
    %c0_i32_2 = arith.constant 0 : i32
    return %c0_i32, %c0_i32_0, %c0_i32_1 : i32, i32, i32
  }
  func.func @transform_11(%arg0: i32, %arg1: i32) -> (i32, i32) {
    %c0_i32 = arith.constant 0 : i32
    %c0_i32_0 = arith.constant 0 : i32
    %c0_i32_1 = arith.constant 0 : i32
    return %c0_i32, %c0_i32_0 : i32, i32
  }
  func.func @transform_12(%arg0: i32, %arg1: i32) -> (i32, i32) {
    %c0_i32 = arith.constant 0 : i32
    %c0_i32_0 = arith.constant 0 : i32
    %c0_i32_1 = arith.constant 0 : i32
    return %c0_i32, %c0_i32_0 : i32, i32
  }
  func.func @transform_13(%arg0: i32, %arg1: i32) -> (i32, i32, i32) {
    %c0_i32 = arith.constant 0 : i32
    %c0_i32_0 = arith.constant 0 : i32
    return %arg0, %c0_i32, %arg1 : i32, i32, i32
  }
  func.func @transform_14(%arg0: i32, %arg1: i32) -> (i32, i32, i32) {
    %c0_i32 = arith.constant 0 : i32
    %c0_i32_0 = arith.constant 0 : i32
    return %arg0, %c0_i32, %arg1 : i32, i32, i32
  }
}

</mosaic_0001>

<llo_original>
// kernel: flow_forward.1
$region0: #{flow_forward.1}
  #allocation0 [shape = 'u32[]', space=smem, size = 0x4, offset = 0x4, fixed_abs, tag = 'smem constant byte address 0x4 - core index']
  #allocation1 [shape = 'u32[144,128]{1,0:T(1,128)}', space=vmem, size = 0x12000, scoped, tag = 'internal scratch']
  %s0 = inlined_call_operand.vmem [shape: f32[2,4,8,384], index: 0, kind: input, shape index: {}]
  %s1 = inlined_call_operand.vmem [shape: bf16[2,4,80,384], index: 1, kind: input, shape index: {}]
  %s2 = inlined_call_operand.vmem [shape: f32[8,8], index: 2, kind: input, shape index: {}]
  %s3 = inlined_call_operand.vmem [shape: f32[64,4], index: 3, kind: input, shape index: {}]
  %s4 = inlined_call_operand.vmem [shape: f32[64,1], index: 4, kind: input, shape index: {}]
  %s5 = inlined_call_operand.vmem [shape: bf16[4,3,128,64], index: 5, kind: input, shape index: {}]
  %s6 = inlined_call_operand.vmem [shape: f32[4,128,1], index: 6, kind: input, shape index: {}]
  %s7 = inlined_call_operand.vmem [shape: bf16[512,80], index: 7, kind: input, shape index: {}]
  %s8 = inlined_call_operand.vmem [shape: f32[512,1], index: 8, kind: input, shape index: {}]
  %s9 = inlined_call_operand.vmem [shape: bf16[4,128,64], index: 9, kind: input, shape index: {}]
  %s10 = inlined_call_operand.vmem [shape: f32[4,128,1], index: 10, kind: input, shape index: {}]
  %s11 = inlined_call_operand.vmem [shape: f32[8,64], index: 11, kind: input, shape index: {}]
  %s12 = inlined_call_operand.vmem [shape: f32[8,1], index: 12, kind: input, shape index: {}]
  %s13 = inlined_call_operand.hbm [shape: f32[2,8,1024], index: 13, kind: output, shape index: {0}]
  %s14 = inlined_call_operand.hbm [shape: f32[2,4,1024], index: 14, kind: output, shape index: {1}]
  %15 = xla_tuple %s13, %s14
  %s16 = sld [smem:[#allocation0]]
  $region93: #{flow_forward.1} parent=0
    _
  %s18 = ssub.s32 1, %s16
  %s19 = scalar_select 0, %s18, %s16
  $region1: #{flow_forward.1} parent=0
    #allocation2 [shape = 'u8[16384]{0}', space=vmem, size = 0x4000, scoped, tag = 'output window, operand 0']
    #allocation3 [shape = 's32[2]{0}', space=sflag, size = 0x8, scoped, tag = 'scoped memory for flow_forward.1']
    #allocation4 [shape = 'u8[8192]{0}', space=vmem, size = 0x2000, scoped, tag = 'output window, operand 1']
    #allocation5 [shape = 's32[2]{0}', space=sflag, size = 0x8, scoped, tag = 'scoped memory for flow_forward.1']
    %20 = vsyncpa [#allocation3], 0
    %s21 = scalar_lea.sflag [#allocation3], 1
    %22 = vsyncpa %s21, 0
    %23 = vsyncpa [#allocation5], 0
    %s24 = scalar_lea.sflag [#allocation5], 1
    %25 = vsyncpa %s24, 0
    loop: start=0, step=1, limit=10
    $region2: #{flow_forward.1} parent=1 // loop_pre_header
      _
    $region3: #{flow_forward.1} parent=1 // loop_header
      %s27 = sphi 0, %s31
      %p28 = scmp.ge.s32.totalorder %s27, 10
      %s34 = sphi 0, %s46
      %s35 = sphi 0, %s42
      %s36 = sphi 0, %s34
      %s37 = sphi 0, %s35
      %s38 = sphi 0, %s36
      %s39 = sphi 0, %s37
      %s51 = sphi 0, %s53
      %s54 = sphi 0, %s51
      %s55 = sphi 0, %s54
      %s71 = sphi 0, %s55
      %s79 = sphi 0, %s81
      %s82 = sphi 0, %s79
      %s83 = sphi 0, %s82
      %s99 = sphi 0, %s83
      %s103 = sphi 0, %s103
      %s105 = sphi 0, %s103
      %s106 = sphi 0, %s105
      %s120 = sphi 0, %s106
      %s124 = sphi 0, %s124
      %s126 = sphi 0, %s124
      %s127 = sphi 0, %s126
      %s141 = sphi 0, %s127
      %s145 = sphi 0, %s145
      %s147 = sphi 0, %s145
      %s148 = sphi 0, %s147
      %s162 = sphi 0, %s148
      %s166 = sphi 0, %s166
      %s168 = sphi 0, %s166
      %s169 = sphi 0, %s168
      %s183 = sphi 0, %s169
      %s187 = sphi 0, %s187
      %s189 = sphi 0, %s187
      %s190 = sphi 0, %s189
      %s204 = sphi 0, %s190
      %s208 = sphi 0, %s208
      %s210 = sphi 0, %s208
      %s211 = sphi 0, %s210
      %s225 = sphi 0, %s211
      %s229 = sphi 0, %s229
      %s231 = sphi 0, %s229
      %s232 = sphi 0, %s231
      %s246 = sphi 0, %s232
      %s250 = sphi 0, %s250
      %s252 = sphi 0, %s250
      %s253 = sphi 0, %s252
      %s267 = sphi 0, %s253
      %s271 = sphi 0, %s271
      %s273 = sphi 0, %s271
      %s274 = sphi 0, %s273
      %s288 = sphi 0, %s274
      %s292 = sphi 0, %s292
      %s294 = sphi 0, %s292
      %s295 = sphi 0, %s294
      %s309 = sphi 0, %s295
      %s313 = sphi 0, %s313
      %s315 = sphi 0, %s313
      %s316 = sphi 0, %s315
      %s330 = sphi 0, %s316
      %s338 = sphi 0, %s340
      %s341 = sphi 0, %s338
      %s342 = sphi 0, %s341
      %s358 = sphi 0, %s342
      %s366 = sphi 0, %s368
      %s369 = sphi 0, %s366
      %s370 = sphi 0, %s369
      %s386 = sphi 0, %s370
    $region4: #{flow_forward.1} parent=1 // loop_header_branch
      %30 = sbr.rel (%p28) target = $region8
    $region5: #{flow_forward.1} parent=1 // loop_body
      %s32 = ssub.s32 %s27, 1
      %s33 = ssub.s32 %s27, 2
      %s40 = sadd.s32 1, %s35
      %p41 = scmp.ge.s32.totalorder %s40, 4
      %s42 = scalar_select %p41, 0, %s40
      %s43 = sadd.s32 1, %s34
      %s44 = scalar_select %p41, %s43, %s34
      %p45 = scmp.ge.s32.totalorder %s44, 2
      %s46 = scalar_select %p45, 0, %s44
      %s47 = ssub.s32 %s34, %s46
      %s48 = ssub.s32 %s35, %s42
      %s49 = sor.u32 %s47, %s48
      %p50 = scmp.eq.s32.totalorder %s49, 0
      %s52 = sadd.s32 %s51, 1
      %s53 = scalar_select %p50, %s51, %s52
      %p56 = pneg %p50
      %p57 = scmp.eq.s32.totalorder %s27, 7
      %p58 = por %p56, %p57
      %p59 = scmp.ne.s32.totalorder %s51, %s54
      %p60 = scmp.eq.s32.totalorder %s27, 0
      %p61 = por %p59, %p60
      %p62 = scmp.ne.s32.totalorder %s51, %s54
      %p63 = scmp.eq.s32.totalorder %s32, 7
      %p64 = por %p62, %p63
      %p65 = scmp.ne.s32.totalorder %s54, %s55
      %p66 = scmp.eq.s32.totalorder %s32, 0
      %p67 = por %p65, %p66
      %p68 = scmp.ne.s32.totalorder %s54, %s55
      %p69 = scmp.eq.s32.totalorder %s33, 7
      %p70 = por %p68, %p69
      %p72 = scmp.ne.s32.totalorder %s55, %s71
      %p73 = scmp.eq.s32.totalorder %s33, 0
      %p74 = por %p72, %p73
      %s75 = ssub.s32 %s34, %s46
      %s76 = ssub.s32 %s35, %s42
      %s77 = sor.u32 %s75, %s76
      %p78 = scmp.eq.s32.totalorder %s77, 0
      %s80 = sadd.s32 %s79, 1
      %s81 = scalar_select %p78, %s79, %s80
      %p84 = pneg %p78
      %p85 = scmp.eq.s32.totalorder %s27, 7
      %p86 = por %p84, %p85
      %p87 = scmp.ne.s32.totalorder %s79, %s82
      %p88 = scmp.eq.s32.totalorder %s27, 0
      %p89 = por %p87, %p88
      %p90 = scmp.ne.s32.totalorder %s79, %s82
      %p91 = scmp.eq.s32.totalorder %s32, 7
      %p92 = por %p90, %p91
      %p93 = scmp.ne.s32.totalorder %s82, %s83
      %p94 = scmp.eq.s32.totalorder %s32, 0
      %p95 = por %p93, %p94
      %p96 = scmp.ne.s32.totalorder %s82, %s83
      %p97 = scmp.eq.s32.totalorder %s33, 7
      %p98 = por %p96, %p97
      %p100 = scmp.ne.s32.totalorder %s83, %s99
      %p101 = scmp.eq.s32.totalorder %s33, 0
      %p102 = por %p100, %p101
      %s104 = sadd.s32 %s103, 1
      %p107 = scmp.eq.s32.totalorder %s27, 7
      %p108 = scmp.ne.s32.totalorder %s103, %s105
      %p109 = scmp.eq.s32.totalorder %s27, 0
      %p110 = por %p108, %p109
      %p111 = scmp.ne.s32.totalorder %s103, %s105
      %p112 = scmp.eq.s32.totalorder %s32, 7
      %p113 = por %p111, %p112
      %p114 = scmp.ne.s32.totalorder %s105, %s106
      %p115 = scmp.eq.s32.totalorder %s32, 0
      %p116 = por %p114, %p115
      %p117 = scmp.ne.s32.totalorder %s105, %s106
      %p118 = scmp.eq.s32.totalorder %s33, 7
      %p119 = por %p117, %p118
      %p121 = scmp.ne.s32.totalorder %s106, %s120
      %p122 = scmp.eq.s32.totalorder %s33, 0
      %p123 = por %p121, %p122
      %s125 = sadd.s32 %s124, 1
      %p128 = scmp.eq.s32.totalorder %s27, 7
      %p129 = scmp.ne.s32.totalorder %s124, %s126
      %p130 = scmp.eq.s32.totalorder %s27, 0
      %p131 = por %p129, %p130
      %p132 = scmp.ne.s32.totalorder %s124, %s126
      %p133 = scmp.eq.s32.totalorder %s32, 7
      %p134 = por %p132, %p133
      %p135 = scmp.ne.s32.totalorder %s126, %s127
      %p136 = scmp.eq.s32.totalorder %s32, 0
      %p137 = por %p135, %p136
      %p138 = scmp.ne.s32.totalorder %s126, %s127
      %p139 = scmp.eq.s32.totalorder %s33, 7
      %p140 = por %p138, %p139
      %p142 = scmp.ne.s32.totalorder %s127, %s141
      %p143 = scmp.eq.s32.totalorder %s33, 0
      %p144 = por %p142, %p143
      %s146 = sadd.s32 %s145, 1
      %p149 = scmp.eq.s32.totalorder %s27, 7
      %p150 = scmp.ne.s32.totalorder %s145, %s147
      %p151 = scmp.eq.s32.totalorder %s27, 0
      %p152 = por %p150, %p151
      %p153 = scmp.ne.s32.totalorder %s145, %s147
      %p154 = scmp.eq.s32.totalorder %s32, 7
      %p155 = por %p153, %p154
      %p156 = scmp.ne.s32.totalorder %s147, %s148
      %p157 = scmp.eq.s32.totalorder %s32, 0
      %p158 = por %p156, %p157
      %p159 = scmp.ne.s32.totalorder %s147, %s148
      %p160 = scmp.eq.s32.totalorder %s33, 7
      %p161 = por %p159, %p160
      %p163 = scmp.ne.s32.totalorder %s148, %s162
      %p164 = scmp.eq.s32.totalorder %s33, 0
      %p165 = por %p163, %p164
      %s167 = sadd.s32 %s166, 1
      %p170 = scmp.eq.s32.totalorder %s27, 7
      %p171 = scmp.ne.s32.totalorder %s166, %s168
      %p172 = scmp.eq.s32.totalorder %s27, 0
      %p173 = por %p171, %p172
      %p174 = scmp.ne.s32.totalorder %s166, %s168
      %p175 = scmp.eq.s32.totalorder %s32, 7
      %p176 = por %p174, %p175
      %p177 = scmp.ne.s32.totalorder %s168, %s169
      %p178 = scmp.eq.s32.totalorder %s32, 0
      %p179 = por %p177, %p178
      %p180 = scmp.ne.s32.totalorder %s168, %s169
      %p181 = scmp.eq.s32.totalorder %s33, 7
      %p182 = por %p180, %p181
      %p184 = scmp.ne.s32.totalorder %s169, %s183
      %p185 = scmp.eq.s32.totalorder %s33, 0
      %p186 = por %p184, %p185
      %s188 = sadd.s32 %s187, 1
      %p191 = scmp.eq.s32.totalorder %s27, 7
      %p192 = scmp.ne.s32.totalorder %s187, %s189
      %p193 = scmp.eq.s32.totalorder %s27, 0
      %p194 = por %p192, %p193
      %p195 = scmp.ne.s32.totalorder %s187, %s189
      %p196 = scmp.eq.s32.totalorder %s32, 7
      %p197 = por %p195, %p196
      %p198 = scmp.ne.s32.totalorder %s189, %s190
      %p199 = scmp.eq.s32.totalorder %s32, 0
      %p200 = por %p198, %p199
      %p201 = scmp.ne.s32.totalorder %s189, %s190
      %p202 = scmp.eq.s32.totalorder %s33, 7
      %p203 = por %p201, %p202
      %p205 = scmp.ne.s32.totalorder %s190, %s204
      %p206 = scmp.eq.s32.totalorder %s33, 0
      %p207 = por %p205, %p206
      %s209 = sadd.s32 %s208, 1
      %p212 = scmp.eq.s32.totalorder %s27, 7
      %p213 = scmp.ne.s32.totalorder %s208, %s210
      %p214 = scmp.eq.s32.totalorder %s27, 0
      %p215 = por %p213, %p214
      %p216 = scmp.ne.s32.totalorder %s208, %s210
      %p217 = scmp.eq.s32.totalorder %s32, 7
      %p218 = por %p216, %p217
      %p219 = scmp.ne.s32.totalorder %s210, %s211
      %p220 = scmp.eq.s32.totalorder %s32, 0
      %p221 = por %p219, %p220
      %p222 = scmp.ne.s32.totalorder %s210, %s211
      %p223 = scmp.eq.s32.totalorder %s33, 7
      %p224 = por %p222, %p223
      %p226 = scmp.ne.s32.totalorder %s211, %s225
      %p227 = scmp.eq.s32.totalorder %s33, 0
      %p228 = por %p226, %p227
      %s230 = sadd.s32 %s229, 1
      %p233 = scmp.eq.s32.totalorder %s27, 7
      %p234 = scmp.ne.s32.totalorder %s229, %s231
      %p235 = scmp.eq.s32.totalorder %s27, 0
      %p236 = por %p234, %p235
      %p237 = scmp.ne.s32.totalorder %s229, %s231
      %p238 = scmp.eq.s32.totalorder %s32, 7
      %p239 = por %p237, %p238
      %p240 = scmp.ne.s32.totalorder %s231, %s232
      %p241 = scmp.eq.s32.totalorder %s32, 0
      %p242 = por %p240, %p241
      %p243 = scmp.ne.s32.totalorder %s231, %s232
      %p244 = scmp.eq.s32.totalorder %s33, 7
      %p245 = por %p243, %p244
      %p247 = scmp.ne.s32.totalorder %s232, %s246
      %p248 = scmp.eq.s32.totalorder %s33, 0
      %p249 = por %p247, %p248
      %s251 = sadd.s32 %s250, 1
      %p254 = scmp.eq.s32.totalorder %s27, 7
      %p255 = scmp.ne.s32.totalorder %s250, %s252
      %p256 = scmp.eq.s32.totalorder %s27, 0
      %p257 = por %p255, %p256
      %p258 = scmp.ne.s32.totalorder %s250, %s252
      %p259 = scmp.eq.s32.totalorder %s32, 7
      %p260 = por %p258, %p259
      %p261 = scmp.ne.s32.totalorder %s252, %s253
      %p262 = scmp.eq.s32.totalorder %s32, 0
      %p263 = por %p261, %p262
      %p264 = scmp.ne.s32.totalorder %s252, %s253
      %p265 = scmp.eq.s32.totalorder %s33, 7
      %p266 = por %p264, %p265
      %p268 = scmp.ne.s32.totalorder %s253, %s267
      %p269 = scmp.eq.s32.totalorder %s33, 0
      %p270 = por %p268, %p269
      %s272 = sadd.s32 %s271, 1
      %p275 = scmp.eq.s32.totalorder %s27, 7
      %p276 = scmp.ne.s32.totalorder %s271, %s273
      %p277 = scmp.eq.s32.totalorder %s27, 0
      %p278 = por %p276, %p277
      %p279 = scmp.ne.s32.totalorder %s271, %s273
      %p280 = scmp.eq.s32.totalorder %s32, 7
      %p281 = por %p279, %p280
      %p282 = scmp.ne.s32.totalorder %s273, %s274
      %p283 = scmp.eq.s32.totalorder %s32, 0
      %p284 = por %p282, %p283
      %p285 = scmp.ne.s32.totalorder %s273, %s274
      %p286 = scmp.eq.s32.totalorder %s33, 7
      %p287 = por %p285, %p286
      %p289 = scmp.ne.s32.totalorder %s274, %s288
      %p290 = scmp.eq.s32.totalorder %s33, 0
      %p291 = por %p289, %p290
      %s293 = sadd.s32 %s292, 1
      %p296 = scmp.eq.s32.totalorder %s27, 7
      %p297 = scmp.ne.s32.totalorder %s292, %s294
      %p298 = scmp.eq.s32.totalorder %s27, 0
      %p299 = por %p297, %p298
      %p300 = scmp.ne.s32.totalorder %s292, %s294
      %p301 = scmp.eq.s32.totalorder %s32, 7
      %p302 = por %p300, %p301
      %p303 = scmp.ne.s32.totalorder %s294, %s295
      %p304 = scmp.eq.s32.totalorder %s32, 0
      %p305 = por %p303, %p304
      %p306 = scmp.ne.s32.totalorder %s294, %s295
      %p307 = scmp.eq.s32.totalorder %s33, 7
      %p308 = por %p306, %p307
      %p310 = scmp.ne.s32.totalorder %s295, %s309
      %p311 = scmp.eq.s32.totalorder %s33, 0
      %p312 = por %p310, %p311
      %s314 = sadd.s32 %s313, 1
      %p317 = scmp.eq.s32.totalorder %s27, 7
      %p318 = scmp.ne.s32.totalorder %s313, %s315
      %p319 = scmp.eq.s32.totalorder %s27, 0
      %p320 = por %p318, %p319
      %p321 = scmp.ne.s32.totalorder %s313, %s315
      %p322 = scmp.eq.s32.totalorder %s32, 7
      %p323 = por %p321, %p322
      %p324 = scmp.ne.s32.totalorder %s315, %s316
      %p325 = scmp.eq.s32.totalorder %s32, 0
      %p326 = por %p324, %p325
      %p327 = scmp.ne.s32.totalorder %s315, %s316
      %p328 = scmp.eq.s32.totalorder %s33, 7
      %p329 = por %p327, %p328
      %p331 = scmp.ne.s32.totalorder %s316, %s330
      %p332 = scmp.eq.s32.totalorder %s33, 0
      %p333 = por %p331, %p332
      %s334 = ssub.s32 %s34, %s46
      %s335 = ssub.s32 %s35, %s42
      %s336 = sor.u32 %s334, %s335
      %p337 = scmp.eq.s32.totalorder %s336, 0
      %s339 = sadd.s32 %s338, 1
      %s340 = scalar_select %p337, %s338, %s339
      %p343 = pneg %p337
      %p344 = scmp.eq.s32.totalorder %s27, 7
      %p345 = por %p343, %p344
      %p346 = scmp.ne.s32.totalorder %s338, %s341
      %p347 = scmp.eq.s32.totalorder %s27, 0
      %p348 = por %p346, %p347
      %p349 = scmp.ne.s32.totalorder %s338, %s341
      %p350 = scmp.eq.s32.totalorder %s32, 7
      %p351 = por %p349, %p350
      %p352 = scmp.ne.s32.totalorder %s341, %s342
      %p353 = scmp.eq.s32.totalorder %s32, 0
      %p354 = por %p352, %p353
      %p355 = scmp.ne.s32.totalorder %s341, %s342
      %p356 = scmp.eq.s32.totalorder %s33, 7
      %p357 = por %p355, %p356
      %p359 = scmp.ne.s32.totalorder %s342, %s358
      %p360 = scmp.eq.s32.totalorder %s33, 0
      %p361 = por %p359, %p360
      %s362 = ssub.s32 %s34, %s46
      %s363 = ssub.s32 %s35, %s42
      %s364 = sor.u32 %s362, %s363
      %p365 = scmp.eq.s32.totalorder %s364, 0
      %s367 = sadd.s32 %s366, 1
      %s368 = scalar_select %p365, %s366, %s367
      %p371 = pneg %p365
      %p372 = scmp.eq.s32.totalorder %s27, 7
      %p373 = por %p371, %p372
      %p374 = scmp.ne.s32.totalorder %s366, %s369
      %p375 = scmp.eq.s32.totalorder %s27, 0
      %p376 = por %p374, %p375
      %p377 = scmp.ne.s32.totalorder %s366, %s369
      %p378 = scmp.eq.s32.totalorder %s32, 7
      %p379 = por %p377, %p378
      %p380 = scmp.ne.s32.totalorder %s369, %s370
      %p381 = scmp.eq.s32.totalorder %s32, 0
      %p382 = por %p380, %p381
      %p383 = scmp.ne.s32.totalorder %s369, %s370
      %p384 = scmp.eq.s32.totalorder %s33, 7
      %p385 = por %p383, %p384
      %p387 = scmp.ne.s32.totalorder %s370, %s386
      %p388 = scmp.eq.s32.totalorder %s33, 0
      %p389 = por %p387, %p388
      %p390 = scmp.le.s32.totalorder 1, %s27
      %p391 = scmp.lt.s32.totalorder %s27, 9
      %p392 = pnand %p390, %p391
      %p393 = pneg %p392
      // Predicated region
      $region9: #{flow_forward.1} parent=5 // pred_check
        _
      $region10: #{flow_forward.1} parent=5 // pred_check_branch
        %395 = sbr.rel (%p392) target = $region12
      $region11: #{flow_forward.1} parent=5 // pred_region
        %s396 = ssub.s32 %s27, 1
        // Predicated region
        $region13: #{flow_forward.1} parent=11 // pred_check
          %p397 = pneg %p116
        $region14: #{flow_forward.1} parent=11 // pred_check_branch
          %399 = sbr.rel (%p397) target = $region16
        $region15: #{flow_forward.1} parent=11 // pred_region
          _
        $region16: #{flow_forward.1} parent=11 // pred_fallthru
          _
        // Predicated region
        $region17: #{flow_forward.1} parent=11 // pred_check
          %p400 = pneg %p137
        $region18: #{flow_forward.1} parent=11 // pred_check_branch
          %402 = sbr.rel (%p400) target = $region20
        $region19: #{flow_forward.1} parent=11 // pred_region
          _
        $region20: #{flow_forward.1} parent=11 // pred_fallthru
          _
        // Predicated region
        $region21: #{flow_forward.1} parent=11 // pred_check
          %p403 = pneg %p158
        $region22: #{flow_forward.1} parent=11 // pred_check_branch
          %405 = sbr.rel (%p403) target = $region24
        $region23: #{flow_forward.1} parent=11 // pred_region
          _
        $region24: #{flow_forward.1} parent=11 // pred_fallthru
          _
        // Predicated region
        $region25: #{flow_forward.1} parent=11 // pred_check
          %p406 = pneg %p179
        $region26: #{flow_forward.1} parent=11 // pred_check_branch
          %408 = sbr.rel (%p406) target = $region28
        $region27: #{flow_forward.1} parent=11 // pred_region
          _
        $region28: #{flow_forward.1} parent=11 // pred_fallthru
          _
        // Predicated region
        $region29: #{flow_forward.1} parent=11 // pred_check
          %p409 = pneg %p200
        $region30: #{flow_forward.1} parent=11 // pred_check_branch
          %411 = sbr.rel (%p409) target = $region32
        $region31: #{flow_forward.1} parent=11 // pred_region
          _
        $region32: #{flow_forward.1} parent=11 // pred_fallthru
          _
        // Predicated region
        $region33: #{flow_forward.1} parent=11 // pred_check
          %p412 = pneg %p221
        $region34: #{flow_forward.1} parent=11 // pred_check_branch
          %414 = sbr.rel (%p412) target = $region36
        $region35: #{flow_forward.1} parent=11 // pred_region
          _
        $region36: #{flow_forward.1} parent=11 // pred_fallthru
          _
        // Predicated region
        $region37: #{flow_forward.1} parent=11 // pred_check
          %p415 = pneg %p242
        $region38: #{flow_forward.1} parent=11 // pred_check_branch
          %417 = sbr.rel (%p415) target = $region40
        $region39: #{flow_forward.1} parent=11 // pred_region
          _
        $region40: #{flow_forward.1} parent=11 // pred_fallthru
          _
        // Predicated region
        $region41: #{flow_forward.1} parent=11 // pred_check
          %p418 = pneg %p263
        $region42: #{flow_forward.1} parent=11 // pred_check_branch
          %420 = sbr.rel (%p418) target = $region44
        $region43: #{flow_forward.1} parent=11 // pred_region
          _
        $region44: #{flow_forward.1} parent=11 // pred_fallthru
          _
        // Predicated region
        $region45: #{flow_forward.1} parent=11 // pred_check
          %p421 = pneg %p284
        $region46: #{flow_forward.1} parent=11 // pred_check_branch
          %423 = sbr.rel (%p421) target = $region48
        $region47: #{flow_forward.1} parent=11 // pred_region
          _
        $region48: #{flow_forward.1} parent=11 // pred_fallthru
          _
        // Predicated region
        $region49: #{flow_forward.1} parent=11 // pred_check
          %p424 = pneg %p305
        $region50: #{flow_forward.1} parent=11 // pred_check_branch
          %426 = sbr.rel (%p424) target = $region52
        $region51: #{flow_forward.1} parent=11 // pred_region
          _
        $region52: #{flow_forward.1} parent=11 // pred_fallthru
          _
        // Predicated region
        $region53: #{flow_forward.1} parent=11 // pred_check
          %p427 = pneg %p326
        $region54: #{flow_forward.1} parent=11 // pred_check_branch
          %429 = sbr.rel (%p427) target = $region56
        $region55: #{flow_forward.1} parent=11 // pred_region
          _
        $region56: #{flow_forward.1} parent=11 // pred_fallthru
          _
      $region12: #{flow_forward.1} parent=5 // pred_fallthru
        _
      %p430 = scmp.lt.s32.totalorder %s27, 8
      // Predicated region
      $region57: #{flow_forward.1} parent=5 // pred_check
        %p431 = pneg %p430
      $region58: #{flow_forward.1} parent=5 // pred_check_branch
        %433 = sbr.rel (%p431) target = $region60
      $region59: #{flow_forward.1} parent=5 // pred_region
        // Predicated region
        $region61: #{flow_forward.1} parent=59 // pred_check
          %p434 = pneg %p61
        $region62: #{flow_forward.1} parent=59 // pred_check_branch
          %436 = sbr.rel (%p434) target = $region64
        $region63: #{flow_forward.1} parent=59 // pred_region
          %p437 = scmp.lt.s32.totalorder %s34, 1
          %s438 = scalar_select %p437, %s34, 1
          %p439 = scmp.lt.s32.totalorder %s35, 3
          %s440 = scalar_select %p439, %s35, 3
          %s441 = smul.addr %s440, 3
          %s442 = smul.addr %s438, 12
          %s443 = sadd.s32 %s441, %s442
          %s444 = smul.addr %s443, 8
          %s445 = scalar_lea.vmem %s0, %s444
        $region64: #{flow_forward.1} parent=59 // pred_fallthru
          _
        // Predicated region
        $region65: #{flow_forward.1} parent=59 // pred_check
          %p446 = pneg %p89
        $region66: #{flow_forward.1} parent=59 // pred_check_branch
          %448 = sbr.rel (%p446) target = $region68
        $region67: #{flow_forward.1} parent=59 // pred_region
          %p449 = scmp.lt.s32.totalorder %s34, 1
          %s450 = scalar_select %p449, %s34, 1
          %p451 = scmp.lt.s32.totalorder %s35, 3
          %s452 = scalar_select %p451, %s35, 3
          %s453 = smul.addr %s452, 30
          %s454 = smul.addr %s450, 120
          %s455 = sadd.s32 %s453, %s454
          %s456 = smul.addr %s455, 4
          %s457 = scalar_lea.vmem %s1, %s456
        $region68: #{flow_forward.1} parent=59 // pred_fallthru
          _
      $region60: #{flow_forward.1} parent=5 // pred_fallthru
        _
      %p458 = scmp.le.s32.totalorder 1, %s27
      %p459 = scmp.lt.s32.totalorder %s27, 9
      %p460 = pnand %p458, %p459
      %p461 = pneg %p460
      // Predicated region
      $region69: #{flow_forward.1} parent=5 // pred_check
        _
      $region70: #{flow_forward.1} parent=5 // pred_check_branch
        %463 = sbr.rel (%p460) target = $region72
      $region71: #{flow_forward.1} parent=5 // pred_region
        %s464 = ssub.s32 %s27, 1
        %p465 = scmp.lt.s32.totalorder %s36, 1
        %s466 = scalar_select %p465, %s36, 1
        %p467 = scmp.lt.s32.totalorder %s37, 3
        %s468 = scalar_select %p467, %s37, 3
        %s469 = smul.addr %s468, 3
        %s470 = smul.addr %s466, 12
        %s471 = sadd.s32 %s469, %s470
        %s472 = smul.addr %s471, 8
        %s473 = scalar_lea.vmem %s0, %s472
        %p474 = pneg %p67
        %p475 = pneg %p64
        %p476 = scmp.lt.s32.totalorder %s36, 1
        %s477 = scalar_select %p476, %s36, 1
        %p478 = scmp.lt.s32.totalorder %s37, 3
        %s479 = scalar_select %p478, %s37, 3
        %s480 = smul.addr %s479, 30
        %s481 = smul.addr %s477, 120
        %s482 = sadd.s32 %s480, %s481
        %s483 = smul.addr %s482, 4
        %s484 = scalar_lea.vmem %s1, %s483
        %p485 = pneg %p95
        %p486 = pneg %p92
        %p487 = pneg %p116
        %p488 = pneg %p113
        %p489 = pneg %p137
        %p490 = pneg %p134
        %p491 = pneg %p158
        %p492 = pneg %p155
        %p493 = pneg %p179
        %p494 = pneg %p176
        %p495 = pneg %p200
        %p496 = pneg %p197
        %p497 = pneg %p221
        %p498 = pneg %p218
        %p499 = pneg %p242
        %p500 = pneg %p239
        %p501 = pneg %p263
        %p502 = pneg %p260
        %p503 = pneg %p284
        %p504 = pneg %p281
        %p505 = pneg %p305
        %p506 = pneg %p302
        %p507 = pneg %p326
        %p508 = pneg %p323
        %p509 = pneg %p354
        %p510 = pneg %p351
        %s511 = sand.u32 %s341, 1
        %s512 = scalar_lea.sflag [#allocation3], %s511
        %s513 = sand.u32 %s341, 1
        %s514 = smul.addr %s513, 16
        %s515 = scalar_lea.vmem [#allocation2], %s514
        %p516 = pneg %p382
        %p517 = pneg %p379
        %s518 = sand.u32 %s369, 1
        %s519 = scalar_lea.sflag [#allocation5], %s518
        %s520 = sand.u32 %s369, 1
        %s521 = smul.addr %s520, 8
        %s522 = scalar_lea.vmem [#allocation4], %s521
        %p523 = scmp.lt.s32.totalorder %s36, 1
        %s524 = scalar_select %p523, %s36, 1
        %p525 = scmp.lt.s32.totalorder %s37, 3
        %s526 = scalar_select %p525, %s37, 3
        %s527 = smul.addr %s526, 3
        %s528 = smul.addr %s524, 12
        %s529 = sadd.s32 %s527, %s528
        %s530 = smul.addr %s529, 8
        %s531 = scalar_lea.vmem %s0, %s530
        %p532 = scmp.lt.s32.totalorder %s36, 1
        %s533 = scalar_select %p532, %s36, 1
        %p534 = scmp.lt.s32.totalorder %s37, 3
        %s535 = scalar_select %p534, %s37, 3
        %s536 = smul.addr %s535, 30
        %s537 = smul.addr %s533, 120
        %s538 = sadd.s32 %s536, %s537
        %s539 = smul.addr %s538, 4
        %s540 = scalar_lea.vmem %s1, %s539
        %s541 = smul.u32 2, %s37
        %s542 = smul.u32 2, %s37
        %v544 = vld [vmem:[%s531] sm:$0xff]
        %v545 = vld [vmem:[%s531 + $0x8] sm:$0xff]
        %v546 = vld [vmem:[%s531 + $0x10] sm:$0xff]
        %v547 = vld [vmem:[%s540] sm:$0xff]
        %v548 = vld [vmem:[%s540 + $0x8] sm:$0xf]
        %v549 = vld [vmem:[%s540 + $0xc] sm:$0xff]
        %v550 = vld [vmem:[%s540 + $0x14] sm:$0xf]
        %v551 = vld [vmem:[%s540 + $0x18] sm:$0xff]
        %v552 = vld [vmem:[%s540 + $0x20] sm:$0xf]
        %v553 = vld [vmem:[%s540 + $0x24] sm:$0xff]
        %v554 = vld [vmem:[%s540 + $0x2c] sm:$0xf]
        %v555 = vld [vmem:[%s540 + $0x30] sm:$0xff]
        %v556 = vld [vmem:[%s540 + $0x38] sm:$0xf]
        %v557 = vld [vmem:[%s540 + $0x3c] sm:$0xff]
        %v558 = vld [vmem:[%s540 + $0x44] sm:$0xf]
        %v559 = vld [vmem:[%s540 + $0x48] sm:$0xff]
        %v560 = vld [vmem:[%s540 + $0x50] sm:$0xf]
        %v561 = vld [vmem:[%s540 + $0x54] sm:$0xff]
        %v562 = vld [vmem:[%s540 + $0x5c] sm:$0xf]
        %v563 = vld [vmem:[%s540 + $0x60] sm:$0xff]
        %v564 = vld [vmem:[%s540 + $0x68] sm:$0xf]
        %v565 = vld [vmem:[%s540 + $0x6c] sm:$0xff]
        %v566 = vld [vmem:[%s540 + $0x74] sm:$0xf]
        %v567 = vld [vmem:[%s2] sm:$0xff]
        %vm568 = vcmask 64512
        %v570 = vsel %vm568, %v567, 0
        %572 = vmatprep.subr.mxu0 0.0
        %573 = vmatpush1.msra.mxu0 0.0
        %574 = vmatprep.subr.mxu0 0.0
        %575 = vmatpush1.msra.mxu0 0.0
        %576 = vmatprep.subr.mxu0 0.0
        %577 = vmatpush1.msra.mxu0 0.0
        %578 = vmatprep.subr.mxu0 0.0
        %579 = vmatpush1.msra.mxu0 0.0
        %580 = vmatprep.subr.mxu0 0.0
        %581 = vmatpush1.msra.mxu0 0.0
        %582 = vmatprep.subr.mxu0 0.0
        %583 = vmatpush1.msra.mxu0 0.0
        %584 = vmatprep.subr.mxu0 0.0
        %585 = vmatpush1.msra.mxu0 0.0
        %586 = vmatprep.subr.mxu0 0.0
        %587 = vmatpush1.msra.mxu0 0.0
        %588 = vmatprep.subr.mxu0 0.0
        %589 = vmatpush1.msra.mxu0 0.0
        %590 = vmatprep.subr.mxu0 0.0
        %591 = vmatpush1.msra.mxu0 0.0
        %592 = vmatprep.subr.mxu0 0.0
        %593 = vmatpush1.msra.mxu0 0.0
        %594 = vmatprep.subr.mxu0 0.0
        %595 = vmatpush1.msra.mxu0 0.0
        %596 = vmatprep.subr.mxu0 0.0
        %597 = vmatpush1.msra.mxu0 0.0
        %598 = vmatprep.subr.mxu0 0.0
        %599 = vmatpush1.msra.mxu0 0.0
        %600 = vmatprep.subr.mxu0 0.0
        %601 = vmatpush1.msra.mxu0 0.0
        %602 = vmatprep.subr.mxu0 %v545
        %603 = vmatpush1.msra.mxu0 %v544
        %604 = vmatprep.subr.mxu0 0.0
        %605 = vmatpush2.msra.mxu0 0.0
        %606 = vmatprep.subr.mxu0 0.0
        %607 = vmatpush2.msra.mxu0 0.0
        %608 = vmatprep.subr.mxu0 0.0
        %609 = vmatpush2.msra.mxu0 0.0
        %610 = vmatprep.subr.mxu0 0.0
        %611 = vmatpush2.msra.mxu0 0.0
        %612 = vmatprep.subr.mxu0 0.0
        %613 = vmatpush2.msra.mxu0 0.0
        %614 = vmatprep.subr.mxu0 0.0
        %615 = vmatpush2.msra.mxu0 0.0
        %616 = vmatprep.subr.mxu0 0.0
        %617 = vmatpush2.msra.mxu0 0.0
        %618 = vmatprep.subr.mxu0 0.0
        %619 = vmatpush2.msra.mxu0 0.0
        %620 = vmatprep.subr.mxu0 0.0
        %621 = vmatpush2.msra.mxu0 0.0
        %622 = vmatprep.subr.mxu0 0.0
        %623 = vmatpush2.msra.mxu0 0.0
        %624 = vmatprep.subr.mxu0 0.0
        %625 = vmatpush2.msra.mxu0 0.0
        %626 = vmatprep.subr.mxu0 0.0
        %627 = vmatpush2.msra.mxu0 0.0
        %628 = vmatprep.subr.mxu0 0.0
        %629 = vmatpush2.msra.mxu0 0.0
        %630 = vmatprep.subr.mxu0 0.0
        %631 = vmatpush2.msra.mxu0 0.0
        %632 = vmatprep.subr.mxu0 0.0
        %633 = vmatpush2.msra.mxu0 0.0
        %634 = vmatprep.subr.mxu0 0.0
        %635 = vmatpush2.msra.mxu0 0.0
        %636 = vmatprep.mubr.f32.mxu0 0.0
        %637 = vmatmul.mubr.f32.gmra.mxu0 %v570
        %v638 = vpop.f32.mrf.mxu0
        %v639 = vadd.f32 0.0, %v638
        %v640 = vpop.f32.mrf.mxu0
        %v641 = vadd.f32 0.0, %v640
        %642 = vdwg.mxu0
        %643 = vmatprep.subr.mxu0 0.0
        %644 = vmatpush1.msra.mxu0 0.0
        %645 = vmatprep.subr.mxu0 0.0
        %646 = vmatpush1.msra.mxu0 0.0
        %647 = vmatprep.subr.mxu0 0.0
        %648 = vmatpush1.msra.mxu0 0.0
        %649 = vmatprep.subr.mxu0 0.0
        %650 = vmatpush1.msra.mxu0 0.0
        %651 = vmatprep.subr.mxu0 0.0
        %652 = vmatpush1.msra.mxu0 0.0
        %653 = vmatprep.subr.mxu0 0.0
        %654 = vmatpush1.msra.mxu0 0.0
        %655 = vmatprep.subr.mxu0 0.0
        %656 = vmatpush1.msra.mxu0 0.0
        %657 = vmatprep.subr.mxu0 0.0
        %658 = vmatpush1.msra.mxu0 0.0
        %659 = vmatprep.subr.mxu0 0.0
        %660 = vmatpush1.msra.mxu0 0.0
        %661 = vmatprep.subr.mxu0 0.0
        %662 = vmatpush1.msra.mxu0 0.0
        %663 = vmatprep.subr.mxu0 0.0
        %664 = vmatpush1.msra.mxu0 0.0
        %665 = vmatprep.subr.mxu0 0.0
        %666 = vmatpush1.msra.mxu0 0.0
        %667 = vmatprep.subr.mxu0 0.0
        %668 = vmatpush1.msra.mxu0 0.0
        %669 = vmatprep.subr.mxu0 0.0
        %670 = vmatpush1.msra.mxu0 0.0
        %671 = vmatprep.subr.mxu0 0.0
        %672 = vmatpush1.msra.mxu0 0.0
        %673 = vmatprep.subr.mxu0 0.0
        %674 = vmatpush1.msra.mxu0 %v546
        %675 = vmatprep.subr.mxu0 0.0
        %676 = vmatpush2.msra.mxu0 0.0
        %677 = vmatprep.subr.mxu0 0.0
        %678 = vmatpush2.msra.mxu0 0.0
        %679 = vmatprep.subr.mxu0 0.0
        %680 = vmatpush2.msra.mxu0 0.0
        %681 = vmatprep.subr.mxu0 0.0
        %682 = vmatpush2.msra.mxu0 0.0
        %683 = vmatprep.subr.mxu0 0.0
        %684 = vmatpush2.msra.mxu0 0.0
        %685 = vmatprep.subr.mxu0 0.0
        %686 = vmatpush2.msra.mxu0 0.0
        %687 = vmatprep.subr.mxu0 0.0
        %688 = vmatpush2.msra.mxu0 0.0
        %689 = vmatprep.subr.mxu0 0.0
        %690 = vmatpush2.msra.mxu0 0.0
        %691 = vmatprep.subr.mxu0 0.0
        %692 = vmatpush2.msra.mxu0 0.0
        %693 = vmatprep.subr.mxu0 0.0
        %694 = vmatpush2.msra.mxu0 0.0
        %695 = vmatprep.subr.mxu0 0.0
        %696 = vmatpush2.msra.mxu0 0.0
        %697 = vmatprep.subr.mxu0 0.0
        %698 = vmatpush2.msra.mxu0 0.0
        %699 = vmatprep.subr.mxu0 0.0
        %700 = vmatpush2.msra.mxu0 0.0
        %701 = vmatprep.subr.mxu0 0.0
        %702 = vmatpush2.msra.mxu0 0.0
        %703 = vmatprep.subr.mxu0 0.0
        %704 = vmatpush2.msra.mxu0 0.0
        %705 = vmatprep.subr.mxu0 0.0
        %706 = vmatpush2.msra.mxu0 0.0
        %707 = vmatprep.mubr.f32.mxu0 0.0
        %708 = vmatmul.mubr.f32.gmra.mxu0 %v570
        %v709 = vpop.f32.mrf.mxu0
        %v710 = vadd.f32 0.0, %v709
        %v711 = vpop.f32.mrf.mxu0
        %712 = vdwg.mxu0
        %s713 = smul.u32 %s37, 256
        %s714 = ssub.s32 %s713, 64
        %v715 = vlaneseq
        %v716 = vand.u32 %v715, 127
        %v717 = vadd.s32 %v716, 128
        %v718 = vadd.s32 %v716, 256
        %v719 = vstv %s714
        %v720 = vadd.s32 %v719, %v716
        %v721 = vadd.s32 %v719, %v717
        %v722 = vadd.s32 %v719, %v718
        %vm723 = vcmp.ge.s32.totalorder %v720, 0
        %vm724 = vcmp.ge.s32.totalorder %v721, 0
        %vm725 = vcmp.ge.s32.totalorder %v722, 0
        %vm726 = vcmp.lt.s32.totalorder %v720, 1024
        %vm727 = vcmp.lt.s32.totalorder %v721, 1024
        %vm728 = vcmp.lt.s32.totalorder %v722, 1024
        %vm729 = vmand %vm723, %vm726
        %vm730 = vmand %vm724, %vm727
        %vm731 = vmand %vm725, %vm728
        %v732 = vsel %vm729, 1, 0
        %v733 = vsel %vm730, 1, 0
        %v734 = vsel %vm731, 1, 0
        %v735 = vcvt.s32.f32 %v732
        %v736 = vcvt.s32.f32 %v733
        %v737 = vcvt.s32.f32 %v734
        %v738 = vld [vmem:[%s3] sm:$0xff]
        %v739 = vld [vmem:[%s3 + $0x8] sm:$0xff]
        %v740 = vld [vmem:[%s3 + $0x10] sm:$0xff]
        %v741 = vld [vmem:[%s3 + $0x18] sm:$0xff]
        %v742 = vld [vmem:[%s3 + $0x20] sm:$0xff]
        %v743 = vld [vmem:[%s3 + $0x28] sm:$0xff]
        %v744 = vld [vmem:[%s3 + $0x30] sm:$0xff]
        %v745 = vld [vmem:[%s3 + $0x38] sm:$0xff]
        %v746 = vld [vmem:[%s4] sm:$0xff]
        %v747 = vld [vmem:[%s4 + $0x8] sm:$0xff]
        %v748 = vld [vmem:[%s4 + $0x10] sm:$0xff]
        %v749 = vld [vmem:[%s4 + $0x18] sm:$0xff]
        %v750 = vld [vmem:[%s4 + $0x20] sm:$0xff]
        %v751 = vld [vmem:[%s4 + $0x28] sm:$0xff]
        %v752 = vld [vmem:[%s4 + $0x30] sm:$0xff]
        %v753 = vld [vmem:[%s4 + $0x38] sm:$0xff]
        %755 = vset.pattern.permute.xlu0 0
        %756 = vperm.xlu0 %755, %v746
        %v757 = vpop.permute.xlu0 %756
        %760 = vset.pattern.permute.xlu0 0
        %761 = vperm.xlu0 %760, %v747
        %v762 = vpop.permute.xlu0 %761
        %765 = vset.pattern.permute.xlu0 0
        %766 = vperm.xlu0 %765, %v748
        %v767 = vpop.permute.xlu0 %766
        %770 = vset.pattern.permute.xlu0 0
        %771 = vperm.xlu0 %770, %v749
        %v772 = vpop.permute.xlu0 %771
        %775 = vset.pattern.permute.xlu0 0
        %776 = vperm.xlu0 %775, %v750
        %v777 = vpop.permute.xlu0 %776
        %780 = vset.pattern.permute.xlu0 0
        %781 = vperm.xlu0 %780, %v751
        %v782 = vpop.permute.xlu0 %781
        %785 = vset.pattern.permute.xlu0 0
        %786 = vperm.xlu0 %785, %v752
        %v787 = vpop.permute.xlu0 %786
        %790 = vset.pattern.permute.xlu0 0
        %791 = vperm.xlu0 %790, %v753
        %v792 = vpop.permute.xlu0 %791
        %vm794 = vcmask 31744
        %v796 = vsel %vm794, %v738, 0
        %v799 = vsel %vm794, %v739, 0
        %v802 = vsel %vm794, %v740, 0
        %v805 = vsel %vm794, %v741, 0
        %v808 = vsel %vm794, %v742, 0
        %v811 = vsel %vm794, %v743, 0
        %v814 = vsel %vm794, %v744, 0
        %v817 = vsel %vm794, %v745, 0
        %vm819 = vcmask 1043456
        %v821 = vsel %vm819, %v639, 0
        %v824 = vsel %vm819, %v641, 0
        %v827 = vsel %vm819, %v710, 0
        %829 = vmatprep.subr.mxu0 0.0
        %830 = vmatpush1.msra.mxu0 0.0
        %831 = vmatprep.subr.mxu0 0.0
        %832 = vmatpush1.msra.mxu0 0.0
        %833 = vmatprep.subr.mxu0 0.0
        %834 = vmatpush1.msra.mxu0 0.0
        %835 = vmatprep.subr.mxu0 0.0
        %836 = vmatpush1.msra.mxu0 0.0
        %837 = vmatprep.subr.mxu0 0.0
        %838 = vmatpush1.msra.mxu0 0.0
        %839 = vmatprep.subr.mxu0 0.0
        %840 = vmatpush1.msra.mxu0 0.0
        %841 = vmatprep.subr.mxu0 0.0
        %842 = vmatpush1.msra.mxu0 0.0
        %843 = vmatprep.subr.mxu0 0.0
        %844 = vmatpush1.msra.mxu0 0.0
        %845 = vmatprep.subr.mxu0 0.0
        %846 = vmatpush1.msra.mxu0 0.0
        %847 = vmatprep.subr.mxu0 0.0
        %848 = vmatpush1.msra.mxu0 0.0
        %849 = vmatprep.subr.mxu0 0.0
        %850 = vmatpush1.msra.mxu0 0.0
        %851 = vmatprep.subr.mxu0 0.0
        %852 = vmatpush1.msra.mxu0 0.0
        %853 = vmatprep.subr.mxu0 0.0
        %854 = vmatpush1.msra.mxu0 0.0
        %855 = vmatprep.subr.mxu0 0.0
        %856 = vmatpush1.msra.mxu0 0.0
        %857 = vmatprep.subr.mxu0 0.0
        %858 = vmatpush1.msra.mxu0 0.0
        %859 = vmatprep.subr.mxu0 %v824
        %860 = vmatpush1.msra.mxu0 %v821
        %861 = vmatprep.subr.mxu0 0.0
        %862 = vmatpush2.msra.mxu0 0.0
        %863 = vmatprep.subr.mxu0 0.0
        %864 = vmatpush2.msra.mxu0 0.0
        %865 = vmatprep.subr.mxu0 0.0
        %866 = vmatpush2.msra.mxu0 0.0
        %867 = vmatprep.subr.mxu0 0.0
        %868 = vmatpush2.msra.mxu0 0.0
        %869 = vmatprep.subr.mxu0 0.0
        %870 = vmatpush2.msra.mxu0 0.0
        %871 = vmatprep.subr.mxu0 0.0
        %872 = vmatpush2.msra.mxu0 0.0
        %873 = vmatprep.subr.mxu0 0.0
        %874 = vmatpush2.msra.mxu0 0.0
        %875 = vmatprep.subr.mxu0 0.0
        %876 = vmatpush2.msra.mxu0 0.0
        %877 = vmatprep.subr.mxu0 0.0
        %878 = vmatpush2.msra.mxu0 0.0
        %879 = vmatprep.subr.mxu0 0.0
        %880 = vmatpush2.msra.mxu0 0.0
        %881 = vmatprep.subr.mxu0 0.0
        %882 = vmatpush2.msra.mxu0 0.0
        %883 = vmatprep.subr.mxu0 0.0
        %884 = vmatpush2.msra.mxu0 0.0
        %885 = vmatprep.subr.mxu0 0.0
        %886 = vmatpush2.msra.mxu0 0.0
        %887 = vmatprep.subr.mxu0 0.0
        %888 = vmatpush2.msra.mxu0 0.0
        %889 = vmatprep.subr.mxu0 0.0
        %890 = vmatpush2.msra.mxu0 0.0
        %891 = vmatprep.subr.mxu0 0.0
        %892 = vmatpush2.msra.mxu0 0.0
        %893 = vmatprep.mubr.f32.mxu0 0.0
        %894 = vmatmul.mubr.f32.gmra.mxu0 %v796
        %v895 = vpop.f32.mrf.mxu0
        %v896 = vadd.f32 %v757, %v895
        %v897 = vpop.f32.mrf.mxu0
        %v898 = vadd.f32 %v757, %v897
        %899 = vmatprep.mubr.f32.mxu0 0.0
        %900 = vmatmul.mubr.f32.gmra.mxu0 %v799
        %v901 = vpop.f32.mrf.mxu0
        %v902 = vadd.f32 %v762, %v901
        %v903 = vpop.f32.mrf.mxu0
        %v904 = vadd.f32 %v762, %v903
        %905 = vmatprep.mubr.f32.mxu0 0.0
        %906 = vmatmul.mubr.f32.gmra.mxu0 %v802
        %v907 = vpop.f32.mrf.mxu0
        %v908 = vadd.f32 %v767, %v907
        %v909 = vpop.f32.mrf.mxu0
        %v910 = vadd.f32 %v767, %v909
        %911 = vmatprep.mubr.f32.mxu0 0.0
        %912 = vmatmul.mubr.f32.gmra.mxu0 %v805
        %v913 = vpop.f32.mrf.mxu0
        %v914 = vadd.f32 %v772, %v913
        %v915 = vpop.f32.mrf.mxu0
        %v916 = vadd.f32 %v772, %v915
        %917 = vmatprep.mubr.f32.mxu0 0.0
        %918 = vmatmul.mubr.f32.gmra.mxu0 %v808
        %v919 = vpop.f32.mrf.mxu0
        %v920 = vadd.f32 %v777, %v919
        %v921 = vpop.f32.mrf.mxu0
        %v922 = vadd.f32 %v777, %v921
        %923 = vmatprep.mubr.f32.mxu0 0.0
        %924 = vmatmul.mubr.f32.gmra.mxu0 %v811
        %v925 = vpop.f32.mrf.mxu0
        %v926 = vadd.f32 %v782, %v925
        %v927 = vpop.f32.mrf.mxu0
        %v928 = vadd.f32 %v782, %v927
        %929 = vmatprep.mubr.f32.mxu0 0.0
        %930 = vmatmul.mubr.f32.gmra.mxu0 %v814
        %v931 = vpop.f32.mrf.mxu0
        %v932 = vadd.f32 %v787, %v931
        %v933 = vpop.f32.mrf.mxu0
        %v934 = vadd.f32 %v787, %v933
        %935 = vmatprep.mubr.f32.mxu0 0.0
        %936 = vmatmul.mubr.f32.gmra.mxu0 %v817
        %v937 = vpop.f32.mrf.mxu0
        %v938 = vadd.f32 %v792, %v937
        %v939 = vpop.f32.mrf.mxu0
        %v940 = vadd.f32 %v792, %v939
        %941 = vdwg.mxu0
        %942 = vmatprep.subr.mxu0 0.0
        %943 = vmatpush1.msra.mxu0 0.0
        %944 = vmatprep.subr.mxu0 0.0
        %945 = vmatpush1.msra.mxu0 0.0
        %946 = vmatprep.subr.mxu0 0.0
        %947 = vmatpush1.msra.mxu0 0.0
        %948 = vmatprep.subr.mxu0 0.0
        %949 = vmatpush1.msra.mxu0 0.0
        %950 = vmatprep.subr.mxu0 0.0
        %951 = vmatpush1.msra.mxu0 0.0
        %952 = vmatprep.subr.mxu0 0.0
        %953 = vmatpush1.msra.mxu0 0.0
        %954 = vmatprep.subr.mxu0 0.0
        %955 = vmatpush1.msra.mxu0 0.0
        %956 = vmatprep.subr.mxu0 0.0
        %957 = vmatpush1.msra.mxu0 0.0
        %958 = vmatprep.subr.mxu0 0.0
        %959 = vmatpush1.msra.mxu0 0.0
        %960 = vmatprep.subr.mxu0 0.0
        %961 = vmatpush1.msra.mxu0 0.0
        %962 = vmatprep.subr.mxu0 0.0
        %963 = vmatpush1.msra.mxu0 0.0
        %964 = vmatprep.subr.mxu0 0.0
        %965 = vmatpush1.msra.mxu0 0.0
        %966 = vmatprep.subr.mxu0 0.0
        %967 = vmatpush1.msra.mxu0 0.0
        %968 = vmatprep.subr.mxu0 0.0
        %969 = vmatpush1.msra.mxu0 0.0
        %970 = vmatprep.subr.mxu0 0.0
        %971 = vmatpush1.msra.mxu0 0.0
        %972 = vmatprep.subr.mxu0 0.0
        %973 = vmatpush1.msra.mxu0 %v827
        %974 = vmatprep.subr.mxu0 0.0
        %975 = vmatpush2.msra.mxu0 0.0
        %976 = vmatprep.subr.mxu0 0.0
        %977 = vmatpush2.msra.mxu0 0.0
        %978 = vmatprep.subr.mxu0 0.0
        %979 = vmatpush2.msra.mxu0 0.0
        %980 = vmatprep.subr.mxu0 0.0
        %981 = vmatpush2.msra.mxu0 0.0
        %982 = vmatprep.subr.mxu0 0.0
        %983 = vmatpush2.msra.mxu0 0.0
        %984 = vmatprep.subr.mxu0 0.0
        %985 = vmatpush2.msra.mxu0 0.0
        %986 = vmatprep.subr.mxu0 0.0
        %987 = vmatpush2.msra.mxu0 0.0
        %988 = vmatprep.subr.mxu0 0.0
        %989 = vmatpush2.msra.mxu0 0.0
        %990 = vmatprep.subr.mxu0 0.0
        %991 = vmatpush2.msra.mxu0 0.0
        %992 = vmatprep.subr.mxu0 0.0
        %993 = vmatpush2.msra.mxu0 0.0
        %994 = vmatprep.subr.mxu0 0.0
        %995 = vmatpush2.msra.mxu0 0.0
        %996 = vmatprep.subr.mxu0 0.0
        %997 = vmatpush2.msra.mxu0 0.0
        %998 = vmatprep.subr.mxu0 0.0
        %999 = vmatpush2.msra.mxu0 0.0
        %1000 = vmatprep.subr.mxu0 0.0
        %1001 = vmatpush2.msra.mxu0 0.0
        %1002 = vmatprep.subr.mxu0 0.0
        %1003 = vmatpush2.msra.mxu0 0.0
        %1004 = vmatprep.subr.mxu0 0.0
        %1005 = vmatpush2.msra.mxu0 0.0
        %1006 = vmatprep.mubr.f32.mxu0 0.0
        %1007 = vmatmul.mubr.f32.gmra.mxu0 %v796
        %v1008 = vpop.f32.mrf.mxu0
        %v1009 = vadd.f32 %v757, %v1008
        %v1010 = vpop.f32.mrf.mxu0
        %1011 = vmatprep.mubr.f32.mxu0 0.0
        %1012 = vmatmul.mubr.f32.gmra.mxu0 %v799
        %v1013 = vpop.f32.mrf.mxu0
        %v1014 = vadd.f32 %v762, %v1013
        %v1015 = vpop.f32.mrf.mxu0
        %1016 = vmatprep.mubr.f32.mxu0 0.0
        %1017 = vmatmul.mubr.f32.gmra.mxu0 %v802
        %v1018 = vpop.f32.mrf.mxu0
        %v1019 = vadd.f32 %v767, %v1018
        %v1020 = vpop.f32.mrf.mxu0
        %1021 = vmatprep.mubr.f32.mxu0 0.0
        %1022 = vmatmul.mubr.f32.gmra.mxu0 %v805
        %v1023 = vpop.f32.mrf.mxu0
        %v1024 = vadd.f32 %v772, %v1023
        %v1025 = vpop.f32.mrf.mxu0
        %1026 = vmatprep.mubr.f32.mxu0 0.0
        %1027 = vmatmul.mubr.f32.gmra.mxu0 %v808
        %v1028 = vpop.f32.mrf.mxu0
        %v1029 = vadd.f32 %v777, %v1028
        %v1030 = vpop.f32.mrf.mxu0
        %1031 = vmatprep.mubr.f32.mxu0 0.0
        %1032 = vmatmul.mubr.f32.gmra.mxu0 %v811
        %v1033 = vpop.f32.mrf.mxu0
        %v1034 = vadd.f32 %v782, %v1033
        %v1035 = vpop.f32.mrf.mxu0
        %1036 = vmatprep.mubr.f32.mxu0 0.0
        %1037 = vmatmul.mubr.f32.gmra.mxu0 %v814
        %v1038 = vpop.f32.mrf.mxu0
        %v1039 = vadd.f32 %v787, %v1038
        %v1040 = vpop.f32.mrf.mxu0
        %1041 = vmatprep.mubr.f32.mxu0 0.0
        %1042 = vmatmul.mubr.f32.gmra.mxu0 %v817
        %v1043 = vpop.f32.mrf.mxu0
        %v1044 = vadd.f32 %v792, %v1043
        %v1045 = vpop.f32.mrf.mxu0
        %1046 = vdwg.mxu0
        %v1047 = vld [vmem:[%s7] sm:$0xf]
        %v1048 = vld [vmem:[%s7 + $0x4] sm:$0xf]
        %v1049 = vld [vmem:[%s7 + $0x8] sm:$0xf]
        %v1050 = vld [vmem:[%s7 + $0xc] sm:$0xf]
        %v1051 = vld [vmem:[%s7 + $0x10] sm:$0xf]
        %v1052 = vld [vmem:[%s7 + $0x14] sm:$0xf]
        %v1053 = vld [vmem:[%s7 + $0x18] sm:$0xf]
        %v1054 = vld [vmem:[%s7 + $0x1c] sm:$0xf]
        %v1055 = vld [vmem:[%s7 + $0x20] sm:$0xf]
        %v1056 = vld [vmem:[%s7 + $0x24] sm:$0xf]
        %v1057 = vld [vmem:[%s7 + $0x28] sm:$0xf]
        %v1058 = vld [vmem:[%s7 + $0x2c] sm:$0xf]
        %v1059 = vld [vmem:[%s7 + $0x30] sm:$0xf]
        %v1060 = vld [vmem:[%s7 + $0x34] sm:$0xf]
        %v1061 = vld [vmem:[%s7 + $0x38] sm:$0xf]
        %v1062 = vld [vmem:[%s7 + $0x3c] sm:$0xf]
        %v1063 = vld [vmem:[%s7 + $0x40] sm:$0xf]
        %v1064 = vld [vmem:[%s7 + $0x44] sm:$0xf]
        %v1065 = vld [vmem:[%s7 + $0x48] sm:$0xf]
        %v1066 = vld [vmem:[%s7 + $0x4c] sm:$0xf]
        %v1067 = vld [vmem:[%s7 + $0x50] sm:$0xf]
        %v1068 = vld [vmem:[%s7 + $0x54] sm:$0xf]
        %v1069 = vld [vmem:[%s7 + $0x58] sm:$0xf]
        %v1070 = vld [vmem:[%s7 + $0x5c] sm:$0xf]
        %v1071 = vld [vmem:[%s7 + $0x60] sm:$0xf]
        %v1072 = vld [vmem:[%s7 + $0x64] sm:$0xf]
        %v1073 = vld [vmem:[%s7 + $0x68] sm:$0xf]
        %v1074 = vld [vmem:[%s7 + $0x6c] sm:$0xf]
        %v1075 = vld [vmem:[%s7 + $0x70] sm:$0xf]
        %v1076 = vld [vmem:[%s7 + $0x74] sm:$0xf]
        %v1077 = vld [vmem:[%s7 + $0x78] sm:$0xf]
        %v1078 = vld [vmem:[%s7 + $0x7c] sm:$0xf]
        %v1079 = vld [vmem:[%s7 + $0x80] sm:$0xf]
        %v1080 = vld [vmem:[%s7 + $0x84] sm:$0xf]
        %v1081 = vld [vmem:[%s7 + $0x88] sm:$0xf]
        %v1082 = vld [vmem:[%s7 + $0x8c] sm:$0xf]
        %v1083 = vld [vmem:[%s7 + $0x90] sm:$0xf]
        %v1084 = vld [vmem:[%s7 + $0x94] sm:$0xf]
        %v1085 = vld [vmem:[%s7 + $0x98] sm:$0xf]
        %v1086 = vld [vmem:[%s7 + $0x9c] sm:$0xf]
        %v1087 = vld [vmem:[%s7 + $0xa0] sm:$0xf]
        %v1088 = vld [vmem:[%s7 + $0xa4] sm:$0xf]
        %v1089 = vld [vmem:[%s7 + $0xa8] sm:$0xf]
        %v1090 = vld [vmem:[%s7 + $0xac] sm:$0xf]
        %v1091 = vld [vmem:[%s7 + $0xb0] sm:$0xf]
        %v1092 = vld [vmem:[%s7 + $0xb4] sm:$0xf]
        %v1093 = vld [vmem:[%s7 + $0xb8] sm:$0xf]
        %v1094 = vld [vmem:[%s7 + $0xbc] sm:$0xf]
        %v1095 = vld [vmem:[%s7 + $0xc0] sm:$0xf]
        %v1096 = vld [vmem:[%s7 + $0xc4] sm:$0xf]
        %v1097 = vld [vmem:[%s7 + $0xc8] sm:$0xf]
        %v1098 = vld [vmem:[%s7 + $0xcc] sm:$0xf]
        %v1099 = vld [vmem:[%s7 + $0xd0] sm:$0xf]
        %v1100 = vld [vmem:[%s7 + $0xd4] sm:$0xf]
        %v1101 = vld [vmem:[%s7 + $0xd8] sm:$0xf]
        %v1102 = vld [vmem:[%s7 + $0xdc] sm:$0xf]
        %v1103 = vld [vmem:[%s7 + $0xe0] sm:$0xf]
        %v1104 = vld [vmem:[%s7 + $0xe4] sm:$0xf]
        %v1105 = vld [vmem:[%s7 + $0xe8] sm:$0xf]
        %v1106 = vld [vmem:[%s7 + $0xec] sm:$0xf]
        %v1107 = vld [vmem:[%s7 + $0xf0] sm:$0xf]
        %v1108 = vld [vmem:[%s7 + $0xf4] sm:$0xf]
        %v1109 = vld [vmem:[%s7 + $0xf8] sm:$0xf]
        %v1110 = vld [vmem:[%s7 + $0xfc] sm:$0xf]
        %v1111 = vld [vmem:[%s8] sm:$0xff]
        %v1112 = vld [vmem:[%s8 + $0x8] sm:$0xff]
        %v1113 = vld [vmem:[%s8 + $0x10] sm:$0xff]
        %v1114 = vld [vmem:[%s8 + $0x18] sm:$0xff]
        %v1115 = vld [vmem:[%s8 + $0x20] sm:$0xff]
        %v1116 = vld [vmem:[%s8 + $0x28] sm:$0xff]
        %v1117 = vld [vmem:[%s8 + $0x30] sm:$0xff]
        %v1118 = vld [vmem:[%s8 + $0x38] sm:$0xff]
        %v1119 = vld [vmem:[%s8 + $0x40] sm:$0xff]
        %v1120 = vld [vmem:[%s8 + $0x48] sm:$0xff]
        %v1121 = vld [vmem:[%s8 + $0x50] sm:$0xff]
        %v1122 = vld [vmem:[%s8 + $0x58] sm:$0xff]
        %v1123 = vld [vmem:[%s8 + $0x60] sm:$0xff]
        %v1124 = vld [vmem:[%s8 + $0x68] sm:$0xff]
        %v1125 = vld [vmem:[%s8 + $0x70] sm:$0xff]
        %v1126 = vld [vmem:[%s8 + $0x78] sm:$0xff]
        %v1127 = vld [vmem:[%s8 + $0x80] sm:$0xff]
        %v1128 = vld [vmem:[%s8 + $0x88] sm:$0xff]
        %v1129 = vld [vmem:[%s8 + $0x90] sm:$0xff]
        %v1130 = vld [vmem:[%s8 + $0x98] sm:$0xff]
        %v1131 = vld [vmem:[%s8 + $0xa0] sm:$0xff]
        %v1132 = vld [vmem:[%s8 + $0xa8] sm:$0xff]
        %v1133 = vld [vmem:[%s8 + $0xb0] sm:$0xff]
        %v1134 = vld [vmem:[%s8 + $0xb8] sm:$0xff]
        %v1135 = vld [vmem:[%s8 + $0xc0] sm:$0xff]
        %v1136 = vld [vmem:[%s8 + $0xc8] sm:$0xff]
        %v1137 = vld [vmem:[%s8 + $0xd0] sm:$0xff]
        %v1138 = vld [vmem:[%s8 + $0xd8] sm:$0xff]
        %v1139 = vld [vmem:[%s8 + $0xe0] sm:$0xff]
        %v1140 = vld [vmem:[%s8 + $0xe8] sm:$0xff]
        %v1141 = vld [vmem:[%s8 + $0xf0] sm:$0xff]
        %v1142 = vld [vmem:[%s8 + $0xf8] sm:$0xff]
        %v1143 = vld [vmem:[%s8 + $0x100] sm:$0xff]
        %v1144 = vld [vmem:[%s8 + $0x108] sm:$0xff]
        %v1145 = vld [vmem:[%s8 + $0x110] sm:$0xff]
        %v1146 = vld [vmem:[%s8 + $0x118] sm:$0xff]
        %v1147 = vld [vmem:[%s8 + $0x120] sm:$0xff]
        %v1148 = vld [vmem:[%s8 + $0x128] sm:$0xff]
        %v1149 = vld [vmem:[%s8 + $0x130] sm:$0xff]
        %v1150 = vld [vmem:[%s8 + $0x138] sm:$0xff]
        %v1151 = vld [vmem:[%s8 + $0x140] sm:$0xff]
        %v1152 = vld [vmem:[%s8 + $0x148] sm:$0xff]
        %v1153 = vld [vmem:[%s8 + $0x150] sm:$0xff]
        %v1154 = vld [vmem:[%s8 + $0x158] sm:$0xff]
        %v1155 = vld [vmem:[%s8 + $0x160] sm:$0xff]
        %v1156 = vld [vmem:[%s8 + $0x168] sm:$0xff]
        %v1157 = vld [vmem:[%s8 + $0x170] sm:$0xff]
        %v1158 = vld [vmem:[%s8 + $0x178] sm:$0xff]
        %v1159 = vld [vmem:[%s8 + $0x180] sm:$0xff]
        %v1160 = vld [vmem:[%s8 + $0x188] sm:$0xff]
        %v1161 = vld [vmem:[%s8 + $0x190] sm:$0xff]
        %v1162 = vld [vmem:[%s8 + $0x198] sm:$0xff]
        %v1163 = vld [vmem:[%s8 + $0x1a0] sm:$0xff]
        %v1164 = vld [vmem:[%s8 + $0x1a8] sm:$0xff]
        %v1165 = vld [vmem:[%s8 + $0x1b0] sm:$0xff]
        %v1166 = vld [vmem:[%s8 + $0x1b8] sm:$0xff]
        %v1167 = vld [vmem:[%s8 + $0x1c0] sm:$0xff]
        %v1168 = vld [vmem:[%s8 + $0x1c8] sm:$0xff]
        %v1169 = vld [vmem:[%s8 + $0x1d0] sm:$0xff]
        %v1170 = vld [vmem:[%s8 + $0x1d8] sm:$0xff]
        %v1171 = vld [vmem:[%s8 + $0x1e0] sm:$0xff]
        %v1172 = vld [vmem:[%s8 + $0x1e8] sm:$0xff]
        %v1173 = vld [vmem:[%s8 + $0x1f0] sm:$0xff]
        %v1174 = vld [vmem:[%s8 + $0x1f8] sm:$0xff]
        %1176 = vset.pattern.permute.xlu0 0
        %1177 = vperm.xlu0 %1176, %v1111
        %v1178 = vpop.permute.xlu0 %1177
        %1181 = vset.pattern.permute.xlu0 0
        %1182 = vperm.xlu0 %1181, %v1112
        %v1183 = vpop.permute.xlu0 %1182
        %1186 = vset.pattern.permute.xlu0 0
        %1187 = vperm.xlu0 %1186, %v1113
        %v1188 = vpop.permute.xlu0 %1187
        %1191 = vset.pattern.permute.xlu0 0
        %1192 = vperm.xlu0 %1191, %v1114
        %v1193 = vpop.permute.xlu0 %1192
        %1196 = vset.pattern.permute.xlu0 0
        %1197 = vperm.xlu0 %1196, %v1115
        %v1198 = vpop.permute.xlu0 %1197
        %1201 = vset.pattern.permute.xlu0 0
        %1202 = vperm.xlu0 %1201, %v1116
        %v1203 = vpop.permute.xlu0 %1202
        %1206 = vset.pattern.permute.xlu0 0
        %1207 = vperm.xlu0 %1206, %v1117
        %v1208 = vpop.permute.xlu0 %1207
        %1211 = vset.pattern.permute.xlu0 0
        %1212 = vperm.xlu0 %1211, %v1118
        %v1213 = vpop.permute.xlu0 %1212
        %1216 = vset.pattern.permute.xlu0 0
        %1217 = vperm.xlu0 %1216, %v1119
        %v1218 = vpop.permute.xlu0 %1217
        %1221 = vset.pattern.permute.xlu0 0
        %1222 = vperm.xlu0 %1221, %v1120
        %v1223 = vpop.permute.xlu0 %1222
        %1226 = vset.pattern.permute.xlu0 0
        %1227 = vperm.xlu0 %1226, %v1121
        %v1228 = vpop.permute.xlu0 %1227
        %1231 = vset.pattern.permute.xlu0 0
        %1232 = vperm.xlu0 %1231, %v1122
        %v1233 = vpop.permute.xlu0 %1232
        %1236 = vset.pattern.permute.xlu0 0
        %1237 = vperm.xlu0 %1236, %v1123
        %v1238 = vpop.permute.xlu0 %1237
        %1241 = vset.pattern.permute.xlu0 0
        %1242 = vperm.xlu0 %1241, %v1124
        %v1243 = vpop.permute.xlu0 %1242
        %1246 = vset.pattern.permute.xlu0 0
        %1247 = vperm.xlu0 %1246, %v1125
        %v1248 = vpop.permute.xlu0 %1247
        %1251 = vset.pattern.permute.xlu0 0
        %1252 = vperm.xlu0 %1251, %v1126
        %v1253 = vpop.permute.xlu0 %1252
        %1256 = vset.pattern.permute.xlu0 0
        %1257 = vperm.xlu0 %1256, %v1127
        %v1258 = vpop.permute.xlu0 %1257
        %1261 = vset.pattern.permute.xlu0 0
        %1262 = vperm.xlu0 %1261, %v1128
        %v1263 = vpop.permute.xlu0 %1262
        %1266 = vset.pattern.permute.xlu0 0
        %1267 = vperm.xlu0 %1266, %v1129
        %v1268 = vpop.permute.xlu0 %1267
        %1271 = vset.pattern.permute.xlu0 0
        %1272 = vperm.xlu0 %1271, %v1130
        %v1273 = vpop.permute.xlu0 %1272
        %1276 = vset.pattern.permute.xlu0 0
        %1277 = vperm.xlu0 %1276, %v1131
        %v1278 = vpop.permute.xlu0 %1277
        %1281 = vset.pattern.permute.xlu0 0
        %1282 = vperm.xlu0 %1281, %v1132
        %v1283 = vpop.permute.xlu0 %1282
        %1286 = vset.pattern.permute.xlu0 0
        %1287 = vperm.xlu0 %1286, %v1133
        %v1288 = vpop.permute.xlu0 %1287
        %1291 = vset.pattern.permute.xlu0 0
        %1292 = vperm.xlu0 %1291, %v1134
        %v1293 = vpop.permute.xlu0 %1292
        %1296 = vset.pattern.permute.xlu0 0
        %1297 = vperm.xlu0 %1296, %v1135
        %v1298 = vpop.permute.xlu0 %1297
        %1301 = vset.pattern.permute.xlu0 0
        %1302 = vperm.xlu0 %1301, %v1136
        %v1303 = vpop.permute.xlu0 %1302
        %1306 = vset.pattern.permute.xlu0 0
        %1307 = vperm.xlu0 %1306, %v1137
        %v1308 = vpop.permute.xlu0 %1307
        %1311 = vset.pattern.permute.xlu0 0
        %1312 = vperm.xlu0 %1311, %v1138
        %v1313 = vpop.permute.xlu0 %1312
        %1316 = vset.pattern.permute.xlu0 0
        %1317 = vperm.xlu0 %1316, %v1139
        %v1318 = vpop.permute.xlu0 %1317
        %1321 = vset.pattern.permute.xlu0 0
        %1322 = vperm.xlu0 %1321, %v1140
        %v1323 = vpop.permute.xlu0 %1322
        %1326 = vset.pattern.permute.xlu0 0
        %1327 = vperm.xlu0 %1326, %v1141
        %v1328 = vpop.permute.xlu0 %1327
        %1331 = vset.pattern.permute.xlu0 0
        %1332 = vperm.xlu0 %1331, %v1142
        %v1333 = vpop.permute.xlu0 %1332
        %1336 = vset.pattern.permute.xlu0 0
        %1337 = vperm.xlu0 %1336, %v1143
        %v1338 = vpop.permute.xlu0 %1337
        %1341 = vset.pattern.permute.xlu0 0
        %1342 = vperm.xlu0 %1341, %v1144
        %v1343 = vpop.permute.xlu0 %1342
        %1346 = vset.pattern.permute.xlu0 0
        %1347 = vperm.xlu0 %1346, %v1145
        %v1348 = vpop.permute.xlu0 %1347
        %1351 = vset.pattern.permute.xlu0 0
        %1352 = vperm.xlu0 %1351, %v1146
        %v1353 = vpop.permute.xlu0 %1352
        %1356 = vset.pattern.permute.xlu0 0
        %1357 = vperm.xlu0 %1356, %v1147
        %v1358 = vpop.permute.xlu0 %1357
        %1361 = vset.pattern.permute.xlu0 0
        %1362 = vperm.xlu0 %1361, %v1148
        %v1363 = vpop.permute.xlu0 %1362
        %1366 = vset.pattern.permute.xlu0 0
        %1367 = vperm.xlu0 %1366, %v1149
        %v1368 = vpop.permute.xlu0 %1367
        %1371 = vset.pattern.permute.xlu0 0
        %1372 = vperm.xlu0 %1371, %v1150
        %v1373 = vpop.permute.xlu0 %1372
        %1376 = vset.pattern.permute.xlu0 0
        %1377 = vperm.xlu0 %1376, %v1151
        %v1378 = vpop.permute.xlu0 %1377
        %1381 = vset.pattern.permute.xlu0 0
        %1382 = vperm.xlu0 %1381, %v1152
        %v1383 = vpop.permute.xlu0 %1382
        %1386 = vset.pattern.permute.xlu0 0
        %1387 = vperm.xlu0 %1386, %v1153
        %v1388 = vpop.permute.xlu0 %1387
        %1391 = vset.pattern.permute.xlu0 0
        %1392 = vperm.xlu0 %1391, %v1154
        %v1393 = vpop.permute.xlu0 %1392
        %1396 = vset.pattern.permute.xlu0 0
        %1397 = vperm.xlu0 %1396, %v1155
        %v1398 = vpop.permute.xlu0 %1397
        %1401 = vset.pattern.permute.xlu0 0
        %1402 = vperm.xlu0 %1401, %v1156
        %v1403 = vpop.permute.xlu0 %1402
        %1406 = vset.pattern.permute.xlu0 0
        %1407 = vperm.xlu0 %1406, %v1157
        %v1408 = vpop.permute.xlu0 %1407
        %1411 = vset.pattern.permute.xlu0 0
        %1412 = vperm.xlu0 %1411, %v1158
        %v1413 = vpop.permute.xlu0 %1412
        %1416 = vset.pattern.permute.xlu0 0
        %1417 = vperm.xlu0 %1416, %v1159
        %v1418 = vpop.permute.xlu0 %1417
        %1421 = vset.pattern.permute.xlu0 0
        %1422 = vperm.xlu0 %1421, %v1160
        %v1423 = vpop.permute.xlu0 %1422
        %1426 = vset.pattern.permute.xlu0 0
        %1427 = vperm.xlu0 %1426, %v1161
        %v1428 = vpop.permute.xlu0 %1427
        %1431 = vset.pattern.permute.xlu0 0
        %1432 = vperm.xlu0 %1431, %v1162
        %v1433 = vpop.permute.xlu0 %1432
        %1436 = vset.pattern.permute.xlu0 0
        %1437 = vperm.xlu0 %1436, %v1163
        %v1438 = vpop.permute.xlu0 %1437
        %1441 = vset.pattern.permute.xlu0 0
        %1442 = vperm.xlu0 %1441, %v1164
        %v1443 = vpop.permute.xlu0 %1442
        %1446 = vset.pattern.permute.xlu0 0
        %1447 = vperm.xlu0 %1446, %v1165
        %v1448 = vpop.permute.xlu0 %1447
        %1451 = vset.pattern.permute.xlu0 0
        %1452 = vperm.xlu0 %1451, %v1166
        %v1453 = vpop.permute.xlu0 %1452
        %1456 = vset.pattern.permute.xlu0 0
        %1457 = vperm.xlu0 %1456, %v1167
        %v1458 = vpop.permute.xlu0 %1457
        %1461 = vset.pattern.permute.xlu0 0
        %1462 = vperm.xlu0 %1461, %v1168
        %v1463 = vpop.permute.xlu0 %1462
        %1466 = vset.pattern.permute.xlu0 0
        %1467 = vperm.xlu0 %1466, %v1169
        %v1468 = vpop.permute.xlu0 %1467
        %1471 = vset.pattern.permute.xlu0 0
        %1472 = vperm.xlu0 %1471, %v1170
        %v1473 = vpop.permute.xlu0 %1472
        %1476 = vset.pattern.permute.xlu0 0
        %1477 = vperm.xlu0 %1476, %v1171
        %v1478 = vpop.permute.xlu0 %1477
        %1481 = vset.pattern.permute.xlu0 0
        %1482 = vperm.xlu0 %1481, %v1172
        %v1483 = vpop.permute.xlu0 %1482
        %1486 = vset.pattern.permute.xlu0 0
        %1487 = vperm.xlu0 %1486, %v1173
        %v1488 = vpop.permute.xlu0 %1487
        %1491 = vset.pattern.permute.xlu0 0
        %1492 = vperm.xlu0 %1491, %v1174
        %v1493 = vpop.permute.xlu0 %1492
        %v1559 = vunpack.c.l.b16 %v1047
        %v1560 = vunpack.c.l.b16 %v1048
        %v1561 = vunpack.c.l.b16 %v1049
        %v1562 = vunpack.c.l.b16 %v1050
        %v1563 = vunpack.c.l.b16 %v1051
        %v1564 = vunpack.c.l.b16 %v1052
        %v1565 = vunpack.c.l.b16 %v1053
        %v1566 = vunpack.c.l.b16 %v1054
        %v1567 = vunpack.c.l.b16 %v1055
        %v1568 = vunpack.c.l.b16 %v1056
        %v1569 = vunpack.c.l.b16 %v1057
        %v1570 = vunpack.c.l.b16 %v1058
        %v1571 = vunpack.c.l.b16 %v1059
        %v1572 = vunpack.c.l.b16 %v1060
        %v1573 = vunpack.c.l.b16 %v1061
        %v1574 = vunpack.c.l.b16 %v1062
        %v1575 = vunpack.c.l.b16 %v1063
        %v1576 = vunpack.c.l.b16 %v1064
        %v1577 = vunpack.c.l.b16 %v1065
        %v1578 = vunpack.c.l.b16 %v1066
        %v1579 = vunpack.c.l.b16 %v1067
        %v1580 = vunpack.c.l.b16 %v1068
        %v1581 = vunpack.c.l.b16 %v1069
        %v1582 = vunpack.c.l.b16 %v1070
        %v1583 = vunpack.c.l.b16 %v1071
        %v1584 = vunpack.c.l.b16 %v1072
        %v1585 = vunpack.c.l.b16 %v1073
        %v1586 = vunpack.c.l.b16 %v1074
        %v1587 = vunpack.c.l.b16 %v1075
        %v1588 = vunpack.c.l.b16 %v1076
        %v1589 = vunpack.c.l.b16 %v1077
        %v1590 = vunpack.c.l.b16 %v1078
        %v1591 = vunpack.c.l.b16 %v1079
        %v1592 = vunpack.c.l.b16 %v1080
        %v1593 = vunpack.c.l.b16 %v1081
        %v1594 = vunpack.c.l.b16 %v1082
        %v1595 = vunpack.c.l.b16 %v1083
        %v1596 = vunpack.c.l.b16 %v1084
        %v1597 = vunpack.c.l.b16 %v1085
        %v1598 = vunpack.c.l.b16 %v1086
        %v1599 = vunpack.c.l.b16 %v1087
        %v1600 = vunpack.c.l.b16 %v1088
        %v1601 = vunpack.c.l.b16 %v1089
        %v1602 = vunpack.c.l.b16 %v1090
        %v1603 = vunpack.c.l.b16 %v1091
        %v1604 = vunpack.c.l.b16 %v1092
        %v1605 = vunpack.c.l.b16 %v1093
        %v1606 = vunpack.c.l.b16 %v1094
        %v1607 = vunpack.c.l.b16 %v1095
        %v1608 = vunpack.c.l.b16 %v1096
        %v1609 = vunpack.c.l.b16 %v1097
        %v1610 = vunpack.c.l.b16 %v1098
        %v1611 = vunpack.c.l.b16 %v1099
        %v1612 = vunpack.c.l.b16 %v1100
        %v1613 = vunpack.c.l.b16 %v1101
        %v1614 = vunpack.c.l.b16 %v1102
        %v1615 = vunpack.c.l.b16 %v1103
        %v1616 = vunpack.c.l.b16 %v1104
        %v1617 = vunpack.c.l.b16 %v1105
        %v1618 = vunpack.c.l.b16 %v1106
        %v1619 = vunpack.c.l.b16 %v1107
        %v1620 = vunpack.c.l.b16 %v1108
        %v1621 = vunpack.c.l.b16 %v1109
        %v1622 = vunpack.c.l.b16 %v1110
        %v1623 = vpack.c.b16 %v1560, %v1559
        %v1624 = vpack.c.b16 %v1562, %v1561
        %v1625 = vpack.c.b16 %v1564, %v1563
        %v1626 = vpack.c.b16 %v1566, %v1565
        %v1627 = vpack.c.b16 %v1568, %v1567
        %v1628 = vpack.c.b16 %v1570, %v1569
        %v1629 = vpack.c.b16 %v1572, %v1571
        %v1630 = vpack.c.b16 %v1574, %v1573
        %v1631 = vpack.c.b16 %v1576, %v1575
        %v1632 = vpack.c.b16 %v1578, %v1577
        %v1633 = vpack.c.b16 %v1580, %v1579
        %v1634 = vpack.c.b16 %v1582, %v1581
        %v1635 = vpack.c.b16 %v1584, %v1583
        %v1636 = vpack.c.b16 %v1586, %v1585
        %v1637 = vpack.c.b16 %v1588, %v1587
        %v1638 = vpack.c.b16 %v1590, %v1589
        %v1639 = vpack.c.b16 %v1592, %v1591
        %v1640 = vpack.c.b16 %v1594, %v1593
        %v1641 = vpack.c.b16 %v1596, %v1595
        %v1642 = vpack.c.b16 %v1598, %v1597
        %v1643 = vpack.c.b16 %v1600, %v1599
        %v1644 = vpack.c.b16 %v1602, %v1601
        %v1645 = vpack.c.b16 %v1604, %v1603
        %v1646 = vpack.c.b16 %v1606, %v1605
        %v1647 = vpack.c.b16 %v1608, %v1607
        %v1648 = vpack.c.b16 %v1610, %v1609
        %v1649 = vpack.c.b16 %v1612, %v1611
        %v1650 = vpack.c.b16 %v1614, %v1613
        %v1651 = vpack.c.b16 %v1616, %v1615
        %v1652 = vpack.c.b16 %v1618, %v1617
        %v1653 = vpack.c.b16 %v1620, %v1619
        %v1654 = vpack.c.b16 %v1622, %v1621
        %v1675 = vunpack.c.l.b16 %v547
        %v1676 = vunpack.c.h.b16 %v547
        %v1677 = vunpack.c.l.b16 %v548
        %v1678 = vunpack.c.l.b16 %v549
        %v1679 = vunpack.c.h.b16 %v549
        %v1680 = vunpack.c.l.b16 %v550
        %v1681 = vunpack.c.l.b16 %v551
        %v1682 = vunpack.c.h.b16 %v551
        %v1683 = vunpack.c.l.b16 %v552
        %v1684 = vunpack.c.l.b16 %v553
        %v1685 = vunpack.c.h.b16 %v553
        %v1686 = vunpack.c.l.b16 %v554
        %v1687 = vunpack.c.l.b16 %v555
        %v1688 = vunpack.c.h.b16 %v555
        %v1689 = vunpack.c.l.b16 %v556
        %v1690 = vunpack.c.l.b16 %v557
        %v1691 = vunpack.c.h.b16 %v557
        %v1692 = vunpack.c.l.b16 %v558
        %v1693 = vunpack.c.l.b16 %v559
        %v1694 = vunpack.c.h.b16 %v559
        %v1695 = vunpack.c.l.b16 %v560
        %v1696 = vunpack.c.l.b16 %v561
        %v1697 = vunpack.c.h.b16 %v561
        %v1698 = vunpack.c.l.b16 %v562
        %v1699 = vunpack.c.l.b16 %v563
        %v1700 = vunpack.c.h.b16 %v563
        %v1701 = vunpack.c.l.b16 %v564
        %v1702 = vunpack.c.l.b16 %v565
        %v1703 = vunpack.c.h.b16 %v565
        %v1704 = vunpack.c.l.b16 %v566
        %v1705 = vpack.c.b16 %v1678, %v1675
        %v1706 = vpack.c.b16 %v1679, %v1676
        %v1707 = vpack.c.b16 %v1680, %v1677
        %v1708 = vpack.c.b16 %v1684, %v1681
        %v1709 = vpack.c.b16 %v1685, %v1682
        %v1710 = vpack.c.b16 %v1686, %v1683
        %v1711 = vpack.c.b16 %v1690, %v1687
        %v1712 = vpack.c.b16 %v1691, %v1688
        %v1713 = vpack.c.b16 %v1692, %v1689
        %v1714 = vpack.c.b16 %v1696, %v1693
        %v1715 = vpack.c.b16 %v1697, %v1694
        %v1716 = vpack.c.b16 %v1698, %v1695
        %v1717 = vpack.c.b16 %v1702, %v1699
        %v1718 = vpack.c.b16 %v1703, %v1700
        %v1719 = vpack.c.b16 %v1704, %v1701
        %vm1735 = vcmask 654336
        %v1737 = vsel %vm1735, %v1623, 0
        %v1740 = vsel %vm1735, %v1624, 0
        %v1743 = vsel %vm1735, %v1625, 0
        %v1746 = vsel %vm1735, %v1626, 0
        %v1749 = vsel %vm1735, %v1627, 0
        %v1752 = vsel %vm1735, %v1628, 0
        %v1755 = vsel %vm1735, %v1629, 0
        %v1758 = vsel %vm1735, %v1630, 0
        %v1761 = vsel %vm1735, %v1631, 0
        %v1764 = vsel %vm1735, %v1632, 0
        %v1767 = vsel %vm1735, %v1633, 0
        %v1770 = vsel %vm1735, %v1634, 0
        %v1773 = vsel %vm1735, %v1635, 0
        %v1776 = vsel %vm1735, %v1636, 0
        %v1779 = vsel %vm1735, %v1637, 0
        %v1782 = vsel %vm1735, %v1638, 0
        %v1785 = vsel %vm1735, %v1639, 0
        %v1788 = vsel %vm1735, %v1640, 0
        %v1791 = vsel %vm1735, %v1641, 0
        %v1794 = vsel %vm1735, %v1642, 0
        %v1797 = vsel %vm1735, %v1643, 0
        %v1800 = vsel %vm1735, %v1644, 0
        %v1803 = vsel %vm1735, %v1645, 0
        %v1806 = vsel %vm1735, %v1646, 0
        %v1809 = vsel %vm1735, %v1647, 0
        %v1812 = vsel %vm1735, %v1648, 0
        %v1815 = vsel %vm1735, %v1649, 0
        %v1818 = vsel %vm1735, %v1650, 0
        %v1821 = vsel %vm1735, %v1651, 0
        %v1824 = vsel %vm1735, %v1652, 0
        %v1827 = vsel %vm1735, %v1653, 0
        %v1830 = vsel %vm1735, %v1654, 0
        %1832 = vmatprep.subr.bf16.mxu0 0
        %1833 = vmatpush1.bf16.msra.mxu0 0
        %1834 = vmatprep.subr.bf16.mxu0 0
        %1835 = vmatpush1.bf16.msra.mxu0 0
        %1836 = vmatprep.subr.bf16.mxu0 0
        %1837 = vmatpush1.bf16.msra.mxu0 0
        %1838 = vmatprep.subr.bf16.mxu0 %v1718
        %1839 = vmatpush1.bf16.msra.mxu0 %v1717
        %1840 = vmatprep.subr.bf16.mxu0 %v1715
        %1841 = vmatpush1.bf16.msra.mxu0 %v1714
        %1842 = vmatprep.subr.bf16.mxu0 %v1712
        %1843 = vmatpush1.bf16.msra.mxu0 %v1711
        %1844 = vmatprep.subr.bf16.mxu0 %v1709
        %1845 = vmatpush1.bf16.msra.mxu0 %v1708
        %1846 = vmatprep.subr.bf16.mxu0 %v1706
        %1847 = vmatpush1.bf16.msra.mxu0 %v1705
        %1848 = vmatprep.subr.bf16.mxu0 0
        %1849 = vmatpush2.bf16.msra.mxu0 0
        %1850 = vmatprep.subr.bf16.mxu0 0
        %1851 = vmatpush2.bf16.msra.mxu0 0
        %1852 = vmatprep.subr.bf16.mxu0 0
        %1853 = vmatpush2.bf16.msra.mxu0 0
        %1854 = vmatprep.subr.bf16.mxu0 0
        %1855 = vmatpush2.bf16.msra.mxu0 0
        %1856 = vmatprep.subr.bf16.mxu0 0
        %1857 = vmatpush2.bf16.msra.mxu0 0
        %1858 = vmatprep.subr.bf16.mxu0 0
        %1859 = vmatpush2.bf16.msra.mxu0 0
        %1860 = vmatprep.subr.bf16.mxu0 0
        %1861 = vmatpush2.bf16.msra.mxu0 0
        %1862 = vmatprep.subr.bf16.mxu0 0
        %1863 = vmatpush2.bf16.msra.mxu0 0
        %1864 = vmatprep.mubr.bf16.mxu0 0
        %1865 = vmatmul.mubr.bf16.gmra.mxu0 %v1737
        %v1866 = vpop.f32.mrf.mxu0
        %v1867 = vadd.f32 %v1178, %v1866
        %v1868 = vpop.f32.mrf.mxu0
        %v1869 = vadd.f32 %v1178, %v1868
        %v1870 = vpop.f32.mrf.mxu0
        %v1871 = vadd.f32 %v1183, %v1870
        %v1872 = vpop.f32.mrf.mxu0
        %v1873 = vadd.f32 %v1183, %v1872
        %1874 = vmatprep.mubr.bf16.mxu0 0
        %1875 = vmatmul.mubr.bf16.gmra.mxu0 %v1740
        %v1876 = vpop.f32.mrf.mxu0
        %v1877 = vadd.f32 %v1188, %v1876
        %v1878 = vpop.f32.mrf.mxu0
        %v1879 = vadd.f32 %v1188, %v1878
        %v1880 = vpop.f32.mrf.mxu0
        %v1881 = vadd.f32 %v1193, %v1880
        %v1882 = vpop.f32.mrf.mxu0
        %v1883 = vadd.f32 %v1193, %v1882
        %1884 = vmatprep.mubr.bf16.mxu0 0
        %1885 = vmatmul.mubr.bf16.gmra.mxu0 %v1743
        %v1886 = vpop.f32.mrf.mxu0
        %v1887 = vadd.f32 %v1198, %v1886
        %v1888 = vpop.f32.mrf.mxu0
        %v1889 = vadd.f32 %v1198, %v1888
        %v1890 = vpop.f32.mrf.mxu0
        %v1891 = vadd.f32 %v1203, %v1890
        %v1892 = vpop.f32.mrf.mxu0
        %v1893 = vadd.f32 %v1203, %v1892
        %1894 = vmatprep.mubr.bf16.mxu0 0
        %1895 = vmatmul.mubr.bf16.gmra.mxu0 %v1746
        %v1896 = vpop.f32.mrf.mxu0
        %v1897 = vadd.f32 %v1208, %v1896
        %v1898 = vpop.f32.mrf.mxu0
        %v1899 = vadd.f32 %v1208, %v1898
        %v1900 = vpop.f32.mrf.mxu0
        %v1901 = vadd.f32 %v1213, %v1900
        %v1902 = vpop.f32.mrf.mxu0
        %v1903 = vadd.f32 %v1213, %v1902
        %1904 = vmatprep.mubr.bf16.mxu0 0
        %1905 = vmatmul.mubr.bf16.gmra.mxu0 %v1749
        %v1906 = vpop.f32.mrf.mxu0
        %v1907 = vadd.f32 %v1218, %v1906
        %v1908 = vpop.f32.mrf.mxu0
        %v1909 = vadd.f32 %v1218, %v1908
        %v1910 = vpop.f32.mrf.mxu0
        %v1911 = vadd.f32 %v1223, %v1910
        %v1912 = vpop.f32.mrf.mxu0
        %v1913 = vadd.f32 %v1223, %v1912
        %1914 = vmatprep.mubr.bf16.mxu0 0
        %1915 = vmatmul.mubr.bf16.gmra.mxu0 %v1752
        %v1916 = vpop.f32.mrf.mxu0
        %v1917 = vadd.f32 %v1228, %v1916
        %v1918 = vpop.f32.mrf.mxu0
        %v1919 = vadd.f32 %v1228, %v1918
        %v1920 = vpop.f32.mrf.mxu0
        %v1921 = vadd.f32 %v1233, %v1920
        %v1922 = vpop.f32.mrf.mxu0
        %v1923 = vadd.f32 %v1233, %v1922
        %1924 = vmatprep.mubr.bf16.mxu0 0
        %1925 = vmatmul.mubr.bf16.gmra.mxu0 %v1755
        %v1926 = vpop.f32.mrf.mxu0
        %v1927 = vadd.f32 %v1238, %v1926
        %v1928 = vpop.f32.mrf.mxu0
        %v1929 = vadd.f32 %v1238, %v1928
        %v1930 = vpop.f32.mrf.mxu0
        %v1931 = vadd.f32 %v1243, %v1930
        %v1932 = vpop.f32.mrf.mxu0
        %v1933 = vadd.f32 %v1243, %v1932
        %1934 = vmatprep.mubr.bf16.mxu0 0
        %1935 = vmatmul.mubr.bf16.gmra.mxu0 %v1758
        %v1936 = vpop.f32.mrf.mxu0
        %v1937 = vadd.f32 %v1248, %v1936
        %v1938 = vpop.f32.mrf.mxu0
        %v1939 = vadd.f32 %v1248, %v1938
        %v1940 = vpop.f32.mrf.mxu0
        %v1941 = vadd.f32 %v1253, %v1940
        %v1942 = vpop.f32.mrf.mxu0
        %v1943 = vadd.f32 %v1253, %v1942
        %1944 = vmatprep.mubr.bf16.mxu0 0
        %1945 = vmatmul.mubr.bf16.gmra.mxu0 %v1761
        %v1946 = vpop.f32.mrf.mxu0
        %v1947 = vadd.f32 %v1258, %v1946
        %v1948 = vpop.f32.mrf.mxu0
        %v1949 = vadd.f32 %v1258, %v1948
        %v1950 = vpop.f32.mrf.mxu0
        %v1951 = vadd.f32 %v1263, %v1950
        %v1952 = vpop.f32.mrf.mxu0
        %v1953 = vadd.f32 %v1263, %v1952
        %1954 = vmatprep.mubr.bf16.mxu0 0
        %1955 = vmatmul.mubr.bf16.gmra.mxu0 %v1764
        %v1956 = vpop.f32.mrf.mxu0
        %v1957 = vadd.f32 %v1268, %v1956
        %v1958 = vpop.f32.mrf.mxu0
        %v1959 = vadd.f32 %v1268, %v1958
        %v1960 = vpop.f32.mrf.mxu0
        %v1961 = vadd.f32 %v1273, %v1960
        %v1962 = vpop.f32.mrf.mxu0
        %v1963 = vadd.f32 %v1273, %v1962
        %1964 = vmatprep.mubr.bf16.mxu0 0
        %1965 = vmatmul.mubr.bf16.gmra.mxu0 %v1767
        %v1966 = vpop.f32.mrf.mxu0
        %v1967 = vadd.f32 %v1278, %v1966
        %v1968 = vpop.f32.mrf.mxu0
        %v1969 = vadd.f32 %v1278, %v1968
        %v1970 = vpop.f32.mrf.mxu0
        %v1971 = vadd.f32 %v1283, %v1970
        %v1972 = vpop.f32.mrf.mxu0
        %v1973 = vadd.f32 %v1283, %v1972
        %1974 = vmatprep.mubr.bf16.mxu0 0
        %1975 = vmatmul.mubr.bf16.gmra.mxu0 %v1770
        %v1976 = vpop.f32.mrf.mxu0
        %v1977 = vadd.f32 %v1288, %v1976
        %v1978 = vpop.f32.mrf.mxu0
        %v1979 = vadd.f32 %v1288, %v1978
        %v1980 = vpop.f32.mrf.mxu0
        %v1981 = vadd.f32 %v1293, %v1980
        %v1982 = vpop.f32.mrf.mxu0
        %v1983 = vadd.f32 %v1293, %v1982
        %1984 = vmatprep.mubr.bf16.mxu0 0
        %1985 = vmatmul.mubr.bf16.gmra.mxu0 %v1773
        %v1986 = vpop.f32.mrf.mxu0
        %v1987 = vadd.f32 %v1298, %v1986
        %v1988 = vpop.f32.mrf.mxu0
        %v1989 = vadd.f32 %v1298, %v1988
        %v1990 = vpop.f32.mrf.mxu0
        %v1991 = vadd.f32 %v1303, %v1990
        %v1992 = vpop.f32.mrf.mxu0
        %v1993 = vadd.f32 %v1303, %v1992
        %1994 = vmatprep.mubr.bf16.mxu0 0
        %1995 = vmatmul.mubr.bf16.gmra.mxu0 %v1776
        %v1996 = vpop.f32.mrf.mxu0
        %v1997 = vadd.f32 %v1308, %v1996
        %v1998 = vpop.f32.mrf.mxu0
        %v1999 = vadd.f32 %v1308, %v1998
        %v2000 = vpop.f32.mrf.mxu0
        %v2001 = vadd.f32 %v1313, %v2000
        %v2002 = vpop.f32.mrf.mxu0
        %v2003 = vadd.f32 %v1313, %v2002
        %2004 = vmatprep.mubr.bf16.mxu0 0
        %2005 = vmatmul.mubr.bf16.gmra.mxu0 %v1779
        %v2006 = vpop.f32.mrf.mxu0
        %v2007 = vadd.f32 %v1318, %v2006
        %v2008 = vpop.f32.mrf.mxu0
        %v2009 = vadd.f32 %v1318, %v2008
        %v2010 = vpop.f32.mrf.mxu0
        %v2011 = vadd.f32 %v1323, %v2010
        %v2012 = vpop.f32.mrf.mxu0
        %v2013 = vadd.f32 %v1323, %v2012
        %2014 = vmatprep.mubr.bf16.mxu0 0
        %2015 = vmatmul.mubr.bf16.gmra.mxu0 %v1782
        %v2016 = vpop.f32.mrf.mxu0
        %v2017 = vadd.f32 %v1328, %v2016
        %v2018 = vpop.f32.mrf.mxu0
        %v2019 = vadd.f32 %v1328, %v2018
        %v2020 = vpop.f32.mrf.mxu0
        %v2021 = vadd.f32 %v1333, %v2020
        %v2022 = vpop.f32.mrf.mxu0
        %v2023 = vadd.f32 %v1333, %v2022
        %2024 = vmatprep.mubr.bf16.mxu0 0
        %2025 = vmatmul.mubr.bf16.gmra.mxu0 %v1785
        %v2026 = vpop.f32.mrf.mxu0
        %v2027 = vadd.f32 %v1338, %v2026
        %v2028 = vpop.f32.mrf.mxu0
        %v2029 = vadd.f32 %v1338, %v2028
        %v2030 = vpop.f32.mrf.mxu0
        %v2031 = vadd.f32 %v1343, %v2030
        %v2032 = vpop.f32.mrf.mxu0
        %v2033 = vadd.f32 %v1343, %v2032
        %2034 = vmatprep.mubr.bf16.mxu0 0
        %2035 = vmatmul.mubr.bf16.gmra.mxu0 %v1788
        %v2036 = vpop.f32.mrf.mxu0
        %v2037 = vadd.f32 %v1348, %v2036
        %v2038 = vpop.f32.mrf.mxu0
        %v2039 = vadd.f32 %v1348, %v2038
        %v2040 = vpop.f32.mrf.mxu0
        %v2041 = vadd.f32 %v1353, %v2040
        %v2042 = vpop.f32.mrf.mxu0
        %v2043 = vadd.f32 %v1353, %v2042
        %2044 = vmatprep.mubr.bf16.mxu0 0
        %2045 = vmatmul.mubr.bf16.gmra.mxu0 %v1791
        %v2046 = vpop.f32.mrf.mxu0
        %v2047 = vadd.f32 %v1358, %v2046
        %v2048 = vpop.f32.mrf.mxu0
        %v2049 = vadd.f32 %v1358, %v2048
        %v2050 = vpop.f32.mrf.mxu0
        %v2051 = vadd.f32 %v1363, %v2050
        %v2052 = vpop.f32.mrf.mxu0
        %v2053 = vadd.f32 %v1363, %v2052
        %2054 = vmatprep.mubr.bf16.mxu0 0
        %2055 = vmatmul.mubr.bf16.gmra.mxu0 %v1794
        %v2056 = vpop.f32.mrf.mxu0
        %v2057 = vadd.f32 %v1368, %v2056
        %v2058 = vpop.f32.mrf.mxu0
        %v2059 = vadd.f32 %v1368, %v2058
        %v2060 = vpop.f32.mrf.mxu0
        %v2061 = vadd.f32 %v1373, %v2060
        %v2062 = vpop.f32.mrf.mxu0
        %v2063 = vadd.f32 %v1373, %v2062
        %2064 = vmatprep.mubr.bf16.mxu0 0
        %2065 = vmatmul.mubr.bf16.gmra.mxu0 %v1797
        %v2066 = vpop.f32.mrf.mxu0
        %v2067 = vadd.f32 %v1378, %v2066
        %v2068 = vpop.f32.mrf.mxu0
        %v2069 = vadd.f32 %v1378, %v2068
        %v2070 = vpop.f32.mrf.mxu0
        %v2071 = vadd.f32 %v1383, %v2070
        %v2072 = vpop.f32.mrf.mxu0
        %v2073 = vadd.f32 %v1383, %v2072
        %2074 = vmatprep.mubr.bf16.mxu0 0
        %2075 = vmatmul.mubr.bf16.gmra.mxu0 %v1800
        %v2076 = vpop.f32.mrf.mxu0
        %v2077 = vadd.f32 %v1388, %v2076
        %v2078 = vpop.f32.mrf.mxu0
        %v2079 = vadd.f32 %v1388, %v2078
        %v2080 = vpop.f32.mrf.mxu0
        %v2081 = vadd.f32 %v1393, %v2080
        %v2082 = vpop.f32.mrf.mxu0
        %v2083 = vadd.f32 %v1393, %v2082
        %2084 = vmatprep.mubr.bf16.mxu0 0
        %2085 = vmatmul.mubr.bf16.gmra.mxu0 %v1803
        %v2086 = vpop.f32.mrf.mxu0
        %v2087 = vadd.f32 %v1398, %v2086
        %v2088 = vpop.f32.mrf.mxu0
        %v2089 = vadd.f32 %v1398, %v2088
        %v2090 = vpop.f32.mrf.mxu0
        %v2091 = vadd.f32 %v1403, %v2090
        %v2092 = vpop.f32.mrf.mxu0
        %v2093 = vadd.f32 %v1403, %v2092
        %2094 = vmatprep.mubr.bf16.mxu0 0
        %2095 = vmatmul.mubr.bf16.gmra.mxu0 %v1806
        %v2096 = vpop.f32.mrf.mxu0
        %v2097 = vadd.f32 %v1408, %v2096
        %v2098 = vpop.f32.mrf.mxu0
        %v2099 = vadd.f32 %v1408, %v2098
        %v2100 = vpop.f32.mrf.mxu0
        %v2101 = vadd.f32 %v1413, %v2100
        %v2102 = vpop.f32.mrf.mxu0
        %v2103 = vadd.f32 %v1413, %v2102
        %2104 = vmatprep.mubr.bf16.mxu0 0
        %2105 = vmatmul.mubr.bf16.gmra.mxu0 %v1809
        %v2106 = vpop.f32.mrf.mxu0
        %v2107 = vadd.f32 %v1418, %v2106
        %v2108 = vpop.f32.mrf.mxu0
        %v2109 = vadd.f32 %v1418, %v2108
        %v2110 = vpop.f32.mrf.mxu0
        %v2111 = vadd.f32 %v1423, %v2110
        %v2112 = vpop.f32.mrf.mxu0
        %v2113 = vadd.f32 %v1423, %v2112
        %2114 = vmatprep.mubr.bf16.mxu0 0
        %2115 = vmatmul.mubr.bf16.gmra.mxu0 %v1812
        %v2116 = vpop.f32.mrf.mxu0
        %v2117 = vadd.f32 %v1428, %v2116
        %v2118 = vpop.f32.mrf.mxu0
        %v2119 = vadd.f32 %v1428, %v2118
        %v2120 = vpop.f32.mrf.mxu0
        %v2121 = vadd.f32 %v1433, %v2120
        %v2122 = vpop.f32.mrf.mxu0
        %v2123 = vadd.f32 %v1433, %v2122
        %2124 = vmatprep.mubr.bf16.mxu0 0
        %2125 = vmatmul.mubr.bf16.gmra.mxu0 %v1815
        %v2126 = vpop.f32.mrf.mxu0
        %v2127 = vadd.f32 %v1438, %v2126
        %v2128 = vpop.f32.mrf.mxu0
        %v2129 = vadd.f32 %v1438, %v2128
        %v2130 = vpop.f32.mrf.mxu0
        %v2131 = vadd.f32 %v1443, %v2130
        %v2132 = vpop.f32.mrf.mxu0
        %v2133 = vadd.f32 %v1443, %v2132
        %2134 = vmatprep.mubr.bf16.mxu0 0
        %2135 = vmatmul.mubr.bf16.gmra.mxu0 %v1818
        %v2136 = vpop.f32.mrf.mxu0
        %v2137 = vadd.f32 %v1448, %v2136
        %v2138 = vpop.f32.mrf.mxu0
        %v2139 = vadd.f32 %v1448, %v2138
        %v2140 = vpop.f32.mrf.mxu0
        %v2141 = vadd.f32 %v1453, %v2140
        %v2142 = vpop.f32.mrf.mxu0
        %v2143 = vadd.f32 %v1453, %v2142
        %2144 = vmatprep.mubr.bf16.mxu0 0
        %2145 = vmatmul.mubr.bf16.gmra.mxu0 %v1821
        %v2146 = vpop.f32.mrf.mxu0
        %v2147 = vadd.f32 %v1458, %v2146
        %v2148 = vpop.f32.mrf.mxu0
        %v2149 = vadd.f32 %v1458, %v2148
        %v2150 = vpop.f32.mrf.mxu0
        %v2151 = vadd.f32 %v1463, %v2150
        %v2152 = vpop.f32.mrf.mxu0
        %v2153 = vadd.f32 %v1463, %v2152
        %2154 = vmatprep.mubr.bf16.mxu0 0
        %2155 = vmatmul.mubr.bf16.gmra.mxu0 %v1824
        %v2156 = vpop.f32.mrf.mxu0
        %v2157 = vadd.f32 %v1468, %v2156
        %v2158 = vpop.f32.mrf.mxu0
        %v2159 = vadd.f32 %v1468, %v2158
        %v2160 = vpop.f32.mrf.mxu0
        %v2161 = vadd.f32 %v1473, %v2160
        %v2162 = vpop.f32.mrf.mxu0
        %v2163 = vadd.f32 %v1473, %v2162
        %2164 = vmatprep.mubr.bf16.mxu0 0
        %2165 = vmatmul.mubr.bf16.gmra.mxu0 %v1827
        %v2166 = vpop.f32.mrf.mxu0
        %v2167 = vadd.f32 %v1478, %v2166
        %v2168 = vpop.f32.mrf.mxu0
        %v2169 = vadd.f32 %v1478, %v2168
        %v2170 = vpop.f32.mrf.mxu0
        %v2171 = vadd.f32 %v1483, %v2170
        %v2172 = vpop.f32.mrf.mxu0
        %v2173 = vadd.f32 %v1483, %v2172
        %2174 = vmatprep.mubr.bf16.mxu0 0
        %2175 = vmatmul.mubr.bf16.gmra.mxu0 %v1830
        %v2176 = vpop.f32.mrf.mxu0
        %v2177 = vadd.f32 %v1488, %v2176
        %v2178 = vpop.f32.mrf.mxu0
        %v2179 = vadd.f32 %v1488, %v2178
        %v2180 = vpop.f32.mrf.mxu0
        %v2181 = vadd.f32 %v1493, %v2180
        %v2182 = vpop.f32.mrf.mxu0
        %v2183 = vadd.f32 %v1493, %v2182
        %2184 = vdwg.mxu0
        %2185 = vmatprep.subr.bf16.mxu0 0
        %2186 = vmatpush1.bf16.msra.mxu0 0
        %2187 = vmatprep.subr.bf16.mxu0 0
        %2188 = vmatpush1.bf16.msra.mxu0 0
        %2189 = vmatprep.subr.bf16.mxu0 0
        %2190 = vmatpush1.bf16.msra.mxu0 0
        %2191 = vmatprep.subr.bf16.mxu0 0
        %2192 = vmatpush1.bf16.msra.mxu0 %v1719
        %2193 = vmatprep.subr.bf16.mxu0 0
        %2194 = vmatpush1.bf16.msra.mxu0 %v1716
        %2195 = vmatprep.subr.bf16.mxu0 0
        %2196 = vmatpush1.bf16.msra.mxu0 %v1713
        %2197 = vmatprep.subr.bf16.mxu0 0
        %2198 = vmatpush1.bf16.msra.mxu0 %v1710
        %2199 = vmatprep.subr.bf16.mxu0 0
        %2200 = vmatpush1.bf16.msra.mxu0 %v1707
        %2201 = vmatprep.subr.bf16.mxu0 0
        %2202 = vmatpush2.bf16.msra.mxu0 0
        %2203 = vmatprep.subr.bf16.mxu0 0
        %2204 = vmatpush2.bf16.msra.mxu0 0
        %2205 = vmatprep.subr.bf16.mxu0 0
        %2206 = vmatpush2.bf16.msra.mxu0 0
        %2207 = vmatprep.subr.bf16.mxu0 0
        %2208 = vmatpush2.bf16.msra.mxu0 0
        %2209 = vmatprep.subr.bf16.mxu0 0
        %2210 = vmatpush2.bf16.msra.mxu0 0
        %2211 = vmatprep.subr.bf16.mxu0 0
        %2212 = vmatpush2.bf16.msra.mxu0 0
        %2213 = vmatprep.subr.bf16.mxu0 0
        %2214 = vmatpush2.bf16.msra.mxu0 0
        %2215 = vmatprep.subr.bf16.mxu0 0
        %2216 = vmatpush2.bf16.msra.mxu0 0
        %2217 = vmatprep.mubr.bf16.mxu0 0
        %2218 = vmatmul.mubr.bf16.gmra.mxu0 %v1737
        %v2219 = vpop.f32.mrf.mxu0
        %v2220 = vadd.f32 %v1178, %v2219
        %v2221 = vpop.f32.mrf.mxu0
        %v2222 = vpop.f32.mrf.mxu0
        %v2223 = vadd.f32 %v1183, %v2222
        %v2224 = vpop.f32.mrf.mxu0
        %2225 = vmatprep.mubr.bf16.mxu0 0
        %2226 = vmatmul.mubr.bf16.gmra.mxu0 %v1740
        %v2227 = vpop.f32.mrf.mxu0
        %v2228 = vadd.f32 %v1188, %v2227
        %v2229 = vpop.f32.mrf.mxu0
        %v2230 = vpop.f32.mrf.mxu0
        %v2231 = vadd.f32 %v1193, %v2230
        %v2232 = vpop.f32.mrf.mxu0
        %2233 = vmatprep.mubr.bf16.mxu0 0
        %2234 = vmatmul.mubr.bf16.gmra.mxu0 %v1743
        %v2235 = vpop.f32.mrf.mxu0
        %v2236 = vadd.f32 %v1198, %v2235
        %v2237 = vpop.f32.mrf.mxu0
        %v2238 = vpop.f32.mrf.mxu0
        %v2239 = vadd.f32 %v1203, %v2238
        %v2240 = vpop.f32.mrf.mxu0
        %2241 = vmatprep.mubr.bf16.mxu0 0
        %2242 = vmatmul.mubr.bf16.gmra.mxu0 %v1746
        %v2243 = vpop.f32.mrf.mxu0
        %v2244 = vadd.f32 %v1208, %v2243
        %v2245 = vpop.f32.mrf.mxu0
        %v2246 = vpop.f32.mrf.mxu0
        %v2247 = vadd.f32 %v1213, %v2246
        %v2248 = vpop.f32.mrf.mxu0
        %2249 = vmatprep.mubr.bf16.mxu0 0
        %2250 = vmatmul.mubr.bf16.gmra.mxu0 %v1749
        %v2251 = vpop.f32.mrf.mxu0
        %v2252 = vadd.f32 %v1218, %v2251
        %v2253 = vpop.f32.mrf.mxu0
        %v2254 = vpop.f32.mrf.mxu0
        %v2255 = vadd.f32 %v1223, %v2254
        %v2256 = vpop.f32.mrf.mxu0
        %2257 = vmatprep.mubr.bf16.mxu0 0
        %2258 = vmatmul.mubr.bf16.gmra.mxu0 %v1752
        %v2259 = vpop.f32.mrf.mxu0
        %v2260 = vadd.f32 %v1228, %v2259
        %v2261 = vpop.f32.mrf.mxu0
        %v2262 = vpop.f32.mrf.mxu0
        %v2263 = vadd.f32 %v1233, %v2262
        %v2264 = vpop.f32.mrf.mxu0
        %2265 = vmatprep.mubr.bf16.mxu0 0
        %2266 = vmatmul.mubr.bf16.gmra.mxu0 %v1755
        %v2267 = vpop.f32.mrf.mxu0
        %v2268 = vadd.f32 %v1238, %v2267
        %v2269 = vpop.f32.mrf.mxu0
        %v2270 = vpop.f32.mrf.mxu0
        %v2271 = vadd.f32 %v1243, %v2270
        %v2272 = vpop.f32.mrf.mxu0
        %2273 = vmatprep.mubr.bf16.mxu0 0
        %2274 = vmatmul.mubr.bf16.gmra.mxu0 %v1758
        %v2275 = vpop.f32.mrf.mxu0
        %v2276 = vadd.f32 %v1248, %v2275
        %v2277 = vpop.f32.mrf.mxu0
        %v2278 = vpop.f32.mrf.mxu0
        %v2279 = vadd.f32 %v1253, %v2278
        %v2280 = vpop.f32.mrf.mxu0
        %2281 = vmatprep.mubr.bf16.mxu0 0
        %2282 = vmatmul.mubr.bf16.gmra.mxu0 %v1761
        %v2283 = vpop.f32.mrf.mxu0
        %v2284 = vadd.f32 %v1258, %v2283
        %v2285 = vpop.f32.mrf.mxu0
        %v2286 = vpop.f32.mrf.mxu0
        %v2287 = vadd.f32 %v1263, %v2286
        %v2288 = vpop.f32.mrf.mxu0
        %2289 = vmatprep.mubr.bf16.mxu0 0
        %2290 = vmatmul.mubr.bf16.gmra.mxu0 %v1764
        %v2291 = vpop.f32.mrf.mxu0
        %v2292 = vadd.f32 %v1268, %v2291
        %v2293 = vpop.f32.mrf.mxu0
        %v2294 = vpop.f32.mrf.mxu0
        %v2295 = vadd.f32 %v1273, %v2294
        %v2296 = vpop.f32.mrf.mxu0
        %2297 = vmatprep.mubr.bf16.mxu0 0
        %2298 = vmatmul.mubr.bf16.gmra.mxu0 %v1767
        %v2299 = vpop.f32.mrf.mxu0
        %v2300 = vadd.f32 %v1278, %v2299
        %v2301 = vpop.f32.mrf.mxu0
        %v2302 = vpop.f32.mrf.mxu0
        %v2303 = vadd.f32 %v1283, %v2302
        %v2304 = vpop.f32.mrf.mxu0
        %2305 = vmatprep.mubr.bf16.mxu0 0
        %2306 = vmatmul.mubr.bf16.gmra.mxu0 %v1770
        %v2307 = vpop.f32.mrf.mxu0
        %v2308 = vadd.f32 %v1288, %v2307
        %v2309 = vpop.f32.mrf.mxu0
        %v2310 = vpop.f32.mrf.mxu0
        %v2311 = vadd.f32 %v1293, %v2310
        %v2312 = vpop.f32.mrf.mxu0
        %2313 = vmatprep.mubr.bf16.mxu0 0
        %2314 = vmatmul.mubr.bf16.gmra.mxu0 %v1773
        %v2315 = vpop.f32.mrf.mxu0
        %v2316 = vadd.f32 %v1298, %v2315
        %v2317 = vpop.f32.mrf.mxu0
        %v2318 = vpop.f32.mrf.mxu0
        %v2319 = vadd.f32 %v1303, %v2318
        %v2320 = vpop.f32.mrf.mxu0
        %2321 = vmatprep.mubr.bf16.mxu0 0
        %2322 = vmatmul.mubr.bf16.gmra.mxu0 %v1776
        %v2323 = vpop.f32.mrf.mxu0
        %v2324 = vadd.f32 %v1308, %v2323
        %v2325 = vpop.f32.mrf.mxu0
        %v2326 = vpop.f32.mrf.mxu0
        %v2327 = vadd.f32 %v1313, %v2326
        %v2328 = vpop.f32.mrf.mxu0
        %2329 = vmatprep.mubr.bf16.mxu0 0
        %2330 = vmatmul.mubr.bf16.gmra.mxu0 %v1779
        %v2331 = vpop.f32.mrf.mxu0
        %v2332 = vadd.f32 %v1318, %v2331
        %v2333 = vpop.f32.mrf.mxu0
        %v2334 = vpop.f32.mrf.mxu0
        %v2335 = vadd.f32 %v1323, %v2334
        %v2336 = vpop.f32.mrf.mxu0
        %2337 = vmatprep.mubr.bf16.mxu0 0
        %2338 = vmatmul.mubr.bf16.gmra.mxu0 %v1782
        %v2339 = vpop.f32.mrf.mxu0
        %v2340 = vadd.f32 %v1328, %v2339
        %v2341 = vpop.f32.mrf.mxu0
        %v2342 = vpop.f32.mrf.mxu0
        %v2343 = vadd.f32 %v1333, %v2342
        %v2344 = vpop.f32.mrf.mxu0
        %2345 = vmatprep.mubr.bf16.mxu0 0
        %2346 = vmatmul.mubr.bf16.gmra.mxu0 %v1785
        %v2347 = vpop.f32.mrf.mxu0
        %v2348 = vadd.f32 %v1338, %v2347
        %v2349 = vpop.f32.mrf.mxu0
        %v2350 = vpop.f32.mrf.mxu0
        %v2351 = vadd.f32 %v1343, %v2350
        %v2352 = vpop.f32.mrf.mxu0
        %2353 = vmatprep.mubr.bf16.mxu0 0
        %2354 = vmatmul.mubr.bf16.gmra.mxu0 %v1788
        %v2355 = vpop.f32.mrf.mxu0
        %v2356 = vadd.f32 %v1348, %v2355
        %v2357 = vpop.f32.mrf.mxu0
        %v2358 = vpop.f32.mrf.mxu0
        %v2359 = vadd.f32 %v1353, %v2358
        %v2360 = vpop.f32.mrf.mxu0
        %2361 = vmatprep.mubr.bf16.mxu0 0
        %2362 = vmatmul.mubr.bf16.gmra.mxu0 %v1791
        %v2363 = vpop.f32.mrf.mxu0
        %v2364 = vadd.f32 %v1358, %v2363
        %v2365 = vpop.f32.mrf.mxu0
        %v2366 = vpop.f32.mrf.mxu0
        %v2367 = vadd.f32 %v1363, %v2366
        %v2368 = vpop.f32.mrf.mxu0
        %2369 = vmatprep.mubr.bf16.mxu0 0
        %2370 = vmatmul.mubr.bf16.gmra.mxu0 %v1794
        %v2371 = vpop.f32.mrf.mxu0
        %v2372 = vadd.f32 %v1368, %v2371
        %v2373 = vpop.f32.mrf.mxu0
        %v2374 = vpop.f32.mrf.mxu0
        %v2375 = vadd.f32 %v1373, %v2374
        %v2376 = vpop.f32.mrf.mxu0
        %2377 = vmatprep.mubr.bf16.mxu0 0
        %2378 = vmatmul.mubr.bf16.gmra.mxu0 %v1797
        %v2379 = vpop.f32.mrf.mxu0
        %v2380 = vadd.f32 %v1378, %v2379
        %v2381 = vpop.f32.mrf.mxu0
        %v2382 = vpop.f32.mrf.mxu0
        %v2383 = vadd.f32 %v1383, %v2382
        %v2384 = vpop.f32.mrf.mxu0
        %2385 = vmatprep.mubr.bf16.mxu0 0
        %2386 = vmatmul.mubr.bf16.gmra.mxu0 %v1800
        %v2387 = vpop.f32.mrf.mxu0
        %v2388 = vadd.f32 %v1388, %v2387
        %v2389 = vpop.f32.mrf.mxu0
        %v2390 = vpop.f32.mrf.mxu0
        %v2391 = vadd.f32 %v1393, %v2390
        %v2392 = vpop.f32.mrf.mxu0
        %2393 = vmatprep.mubr.bf16.mxu0 0
        %2394 = vmatmul.mubr.bf16.gmra.mxu0 %v1803
        %v2395 = vpop.f32.mrf.mxu0
        %v2396 = vadd.f32 %v1398, %v2395
        %v2397 = vpop.f32.mrf.mxu0
        %v2398 = vpop.f32.mrf.mxu0
        %v2399 = vadd.f32 %v1403, %v2398
        %v2400 = vpop.f32.mrf.mxu0
        %2401 = vmatprep.mubr.bf16.mxu0 0
        %2402 = vmatmul.mubr.bf16.gmra.mxu0 %v1806
        %v2403 = vpop.f32.mrf.mxu0
        %v2404 = vadd.f32 %v1408, %v2403
        %v2405 = vpop.f32.mrf.mxu0
        %v2406 = vpop.f32.mrf.mxu0
        %v2407 = vadd.f32 %v1413, %v2406
        %v2408 = vpop.f32.mrf.mxu0
        %2409 = vmatprep.mubr.bf16.mxu0 0
        %2410 = vmatmul.mubr.bf16.gmra.mxu0 %v1809
        %v2411 = vpop.f32.mrf.mxu0
        %v2412 = vadd.f32 %v1418, %v2411
        %v2413 = vpop.f32.mrf.mxu0
        %v2414 = vpop.f32.mrf.mxu0
        %v2415 = vadd.f32 %v1423, %v2414
        %v2416 = vpop.f32.mrf.mxu0
        %2417 = vmatprep.mubr.bf16.mxu0 0
        %2418 = vmatmul.mubr.bf16.gmra.mxu0 %v1812
        %v2419 = vpop.f32.mrf.mxu0
        %v2420 = vadd.f32 %v1428, %v2419
        %v2421 = vpop.f32.mrf.mxu0
        %v2422 = vpop.f32.mrf.mxu0
        %v2423 = vadd.f32 %v1433, %v2422
        %v2424 = vpop.f32.mrf.mxu0
        %2425 = vmatprep.mubr.bf16.mxu0 0
        %2426 = vmatmul.mubr.bf16.gmra.mxu0 %v1815
        %v2427 = vpop.f32.mrf.mxu0
        %v2428 = vadd.f32 %v1438, %v2427
        %v2429 = vpop.f32.mrf.mxu0
        %v2430 = vpop.f32.mrf.mxu0
        %v2431 = vadd.f32 %v1443, %v2430
        %v2432 = vpop.f32.mrf.mxu0
        %2433 = vmatprep.mubr.bf16.mxu0 0
        %2434 = vmatmul.mubr.bf16.gmra.mxu0 %v1818
        %v2435 = vpop.f32.mrf.mxu0
        %v2436 = vadd.f32 %v1448, %v2435
        %v2437 = vpop.f32.mrf.mxu0
        %v2438 = vpop.f32.mrf.mxu0
        %v2439 = vadd.f32 %v1453, %v2438
        %v2440 = vpop.f32.mrf.mxu0
        %2441 = vmatprep.mubr.bf16.mxu0 0
        %2442 = vmatmul.mubr.bf16.gmra.mxu0 %v1821
        %v2443 = vpop.f32.mrf.mxu0
        %v2444 = vadd.f32 %v1458, %v2443
        %v2445 = vpop.f32.mrf.mxu0
        %v2446 = vpop.f32.mrf.mxu0
        %v2447 = vadd.f32 %v1463, %v2446
        %v2448 = vpop.f32.mrf.mxu0
        %2449 = vmatprep.mubr.bf16.mxu0 0
        %2450 = vmatmul.mubr.bf16.gmra.mxu0 %v1824
        %v2451 = vpop.f32.mrf.mxu0
        %v2452 = vadd.f32 %v1468, %v2451
        %v2453 = vpop.f32.mrf.mxu0
        %v2454 = vpop.f32.mrf.mxu0
        %v2455 = vadd.f32 %v1473, %v2454
        %v2456 = vpop.f32.mrf.mxu0
        %2457 = vmatprep.mubr.bf16.mxu0 0
        %2458 = vmatmul.mubr.bf16.gmra.mxu0 %v1827
        %v2459 = vpop.f32.mrf.mxu0
        %v2460 = vadd.f32 %v1478, %v2459
        %v2461 = vpop.f32.mrf.mxu0
        %v2462 = vpop.f32.mrf.mxu0
        %v2463 = vadd.f32 %v1483, %v2462
        %v2464 = vpop.f32.mrf.mxu0
        %2465 = vmatprep.mubr.bf16.mxu0 0
        %2466 = vmatmul.mubr.bf16.gmra.mxu0 %v1830
        %v2467 = vpop.f32.mrf.mxu0
        %v2468 = vadd.f32 %v1488, %v2467
        %v2469 = vpop.f32.mrf.mxu0
        %v2470 = vpop.f32.mrf.mxu0
        %v2471 = vadd.f32 %v1493, %v2470
        %v2472 = vpop.f32.mrf.mxu0
        %2473 = vdwg.mxu0
        %v2474 = vmul.f32 %v896, %v735
        %v2475 = vmul.f32 %v898, %v736
        %v2476 = vmul.f32 %v1009, %v737
        %v2477 = vmul.f32 %v902, %v735
        %v2478 = vmul.f32 %v904, %v736
        %v2479 = vmul.f32 %v1014, %v737
        %v2480 = vmul.f32 %v908, %v735
        %v2481 = vmul.f32 %v910, %v736
        %v2482 = vmul.f32 %v1019, %v737
        %v2483 = vmul.f32 %v914, %v735
        %v2484 = vmul.f32 %v916, %v736
        %v2485 = vmul.f32 %v1024, %v737
        %v2486 = vmul.f32 %v920, %v735
        %v2487 = vmul.f32 %v922, %v736
        %v2488 = vmul.f32 %v1029, %v737
        %v2489 = vmul.f32 %v926, %v735
        %v2490 = vmul.f32 %v928, %v736
        %v2491 = vmul.f32 %v1034, %v737
        %v2492 = vmul.f32 %v932, %v735
        %v2493 = vmul.f32 %v934, %v736
        %v2494 = vmul.f32 %v1039, %v737
        %v2495 = vmul.f32 %v938, %v735
        %v2496 = vmul.f32 %v940, %v736
        %v2497 = vmul.f32 %v1044, %v737
        %2522 = vrot.lane.b32.xlu0 %v2474, 1
        %v2523 = vpop.permute.xlu0 %2522
        %2524 = vrot.lane.b32.xlu0 %v2475, 1
        %v2525 = vpop.permute.xlu0 %2524
        %2526 = vrot.lane.b32.xlu0 %v2476, 1
        %v2527 = vpop.permute.xlu0 %2526
        %2528 = vrot.lane.b32.xlu0 %v2477, 1
        %v2529 = vpop.permute.xlu0 %2528
        %2530 = vrot.lane.b32.xlu0 %v2478, 1
        %v2531 = vpop.permute.xlu0 %2530
        %2532 = vrot.lane.b32.xlu0 %v2479, 1
        %v2533 = vpop.permute.xlu0 %2532
        %2534 = vrot.lane.b32.xlu0 %v2480, 1
        %v2535 = vpop.permute.xlu0 %2534
        %2536 = vrot.lane.b32.xlu0 %v2481, 1
        %v2537 = vpop.permute.xlu0 %2536
        %2538 = vrot.lane.b32.xlu0 %v2482, 1
        %v2539 = vpop.permute.xlu0 %2538
        %2540 = vrot.lane.b32.xlu0 %v2483, 1
        %v2541 = vpop.permute.xlu0 %2540
        %2542 = vrot.lane.b32.xlu0 %v2484, 1
        %v2543 = vpop.permute.xlu0 %2542
        %2544 = vrot.lane.b32.xlu0 %v2485, 1
        %v2545 = vpop.permute.xlu0 %2544
        %2546 = vrot.lane.b32.xlu0 %v2486, 1
        %v2547 = vpop.permute.xlu0 %2546
        %2548 = vrot.lane.b32.xlu0 %v2487, 1
        %v2549 = vpop.permute.xlu0 %2548
        %2550 = vrot.lane.b32.xlu0 %v2488, 1
        %v2551 = vpop.permute.xlu0 %2550
        %2552 = vrot.lane.b32.xlu0 %v2489, 1
        %v2553 = vpop.permute.xlu0 %2552
        %2554 = vrot.lane.b32.xlu0 %v2490, 1
        %v2555 = vpop.permute.xlu0 %2554
        %2556 = vrot.lane.b32.xlu0 %v2491, 1
        %v2557 = vpop.permute.xlu0 %2556
        %2558 = vrot.lane.b32.xlu0 %v2492, 1
        %v2559 = vpop.permute.xlu0 %2558
        %2560 = vrot.lane.b32.xlu0 %v2493, 1
        %v2561 = vpop.permute.xlu0 %2560
        %2562 = vrot.lane.b32.xlu0 %v2494, 1
        %v2563 = vpop.permute.xlu0 %2562
        %2564 = vrot.lane.b32.xlu0 %v2495, 1
        %v2565 = vpop.permute.xlu0 %2564
        %2566 = vrot.lane.b32.xlu0 %v2496, 1
        %v2567 = vpop.permute.xlu0 %2566
        %2568 = vrot.lane.b32.xlu0 %v2497, 1
        %v2569 = vpop.permute.xlu0 %2568
        %vm2570 = vcmask 7168
        %v2571 = vsel %vm2570, %v2523, %v2525
        %v2572 = vsel %vm2570, %v2525, %v2527
        %v2573 = vsel %vm2570, %v2529, %v2531
        %v2574 = vsel %vm2570, %v2531, %v2533
        %v2575 = vsel %vm2570, %v2535, %v2537
        %v2576 = vsel %vm2570, %v2537, %v2539
        %v2577 = vsel %vm2570, %v2541, %v2543
        %v2578 = vsel %vm2570, %v2543, %v2545
        %v2579 = vsel %vm2570, %v2547, %v2549
        %v2580 = vsel %vm2570, %v2549, %v2551
        %v2581 = vsel %vm2570, %v2553, %v2555
        %v2582 = vsel %vm2570, %v2555, %v2557
        %v2583 = vsel %vm2570, %v2559, %v2561
        %v2584 = vsel %vm2570, %v2561, %v2563
        %v2585 = vsel %vm2570, %v2565, %v2567
        %v2586 = vsel %vm2570, %v2567, %v2569
        %v2611 = vsel %vm2570, 0.0, %v2523
        %v2612 = vsel %vm2570, 0.0, %v2529
        %v2613 = vsel %vm2570, 0.0, %v2535
        %v2614 = vsel %vm2570, 0.0, %v2541
        %v2615 = vsel %vm2570, 0.0, %v2547
        %v2616 = vsel %vm2570, 0.0, %v2553
        %v2617 = vsel %vm2570, 0.0, %v2559
        %v2618 = vsel %vm2570, 0.0, %v2565
        %2619 = vrot.lane.b32.xlu0 %v2474, 127
        %v2620 = vpop.permute.xlu0 %2619
        %2621 = vrot.lane.b32.xlu0 %v2475, 127
        %v2622 = vpop.permute.xlu0 %2621
        %2623 = vrot.lane.b32.xlu0 %v2476, 127
        %v2624 = vpop.permute.xlu0 %2623
        %2625 = vrot.lane.b32.xlu0 %v2477, 127
        %v2626 = vpop.permute.xlu0 %2625
        %2627 = vrot.lane.b32.xlu0 %v2478, 127
        %v2628 = vpop.permute.xlu0 %2627
        %2629 = vrot.lane.b32.xlu0 %v2479, 127
        %v2630 = vpop.permute.xlu0 %2629
        %2631 = vrot.lane.b32.xlu0 %v2480, 127
        %v2632 = vpop.permute.xlu0 %2631
        %2633 = vrot.lane.b32.xlu0 %v2481, 127
        %v2634 = vpop.permute.xlu0 %2633
        %2635 = vrot.lane.b32.xlu0 %v2482, 127
        %v2636 = vpop.permute.xlu0 %2635
        %2637 = vrot.lane.b32.xlu0 %v2483, 127
        %v2638 = vpop.permute.xlu0 %2637
        %2639 = vrot.lane.b32.xlu0 %v2484, 127
        %v2640 = vpop.permute.xlu0 %2639
        %2641 = vrot.lane.b32.xlu0 %v2485, 127
        %v2642 = vpop.permute.xlu0 %2641
        %2643 = vrot.lane.b32.xlu0 %v2486, 127
        %v2644 = vpop.permute.xlu0 %2643
        %2645 = vrot.lane.b32.xlu0 %v2487, 127
        %v2646 = vpop.permute.xlu0 %2645
        %2647 = vrot.lane.b32.xlu0 %v2488, 127
        %v2648 = vpop.permute.xlu0 %2647
        %2649 = vrot.lane.b32.xlu0 %v2489, 127
        %v2650 = vpop.permute.xlu0 %2649
        %2651 = vrot.lane.b32.xlu0 %v2490, 127
        %v2652 = vpop.permute.xlu0 %2651
        %2653 = vrot.lane.b32.xlu0 %v2491, 127
        %v2654 = vpop.permute.xlu0 %2653
        %2655 = vrot.lane.b32.xlu0 %v2492, 127
        %v2656 = vpop.permute.xlu0 %2655
        %2657 = vrot.lane.b32.xlu0 %v2493, 127
        %v2658 = vpop.permute.xlu0 %2657
        %2659 = vrot.lane.b32.xlu0 %v2494, 127
        %v2660 = vpop.permute.xlu0 %2659
        %2661 = vrot.lane.b32.xlu0 %v2495, 127
        %v2662 = vpop.permute.xlu0 %2661
        %2663 = vrot.lane.b32.xlu0 %v2496, 127
        %v2664 = vpop.permute.xlu0 %2663
        %2665 = vrot.lane.b32.xlu0 %v2497, 127
        %v2666 = vpop.permute.xlu0 %2665
        %vm2667 = vcmask 1039360
        %v2668 = vsel %vm2667, %v2620, %v2622
        %v2669 = vsel %vm2667, %v2622, %v2624
        %v2670 = vsel %vm2667, %v2626, %v2628
        %v2671 = vsel %vm2667, %v2628, %v2630
        %v2672 = vsel %vm2667, %v2632, %v2634
        %v2673 = vsel %vm2667, %v2634, %v2636
        %v2674 = vsel %vm2667, %v2638, %v2640
        %v2675 = vsel %vm2667, %v2640, %v2642
        %v2676 = vsel %vm2667, %v2644, %v2646
        %v2677 = vsel %vm2667, %v2646, %v2648
        %v2678 = vsel %vm2667, %v2650, %v2652
        %v2679 = vsel %vm2667, %v2652, %v2654
        %v2680 = vsel %vm2667, %v2656, %v2658
        %v2681 = vsel %vm2667, %v2658, %v2660
        %v2682 = vsel %vm2667, %v2662, %v2664
        %v2683 = vsel %vm2667, %v2664, %v2666
        %v2708 = vsel %vm2667, %v2624, 0.0
        %v2709 = vsel %vm2667, %v2630, 0.0
        %v2710 = vsel %vm2667, %v2636, 0.0
        %v2711 = vsel %vm2667, %v2642, 0.0
        %v2712 = vsel %vm2667, %v2648, 0.0
        %v2713 = vsel %vm2667, %v2654, 0.0
        %v2714 = vsel %vm2667, %v2660, 0.0
        %v2715 = vsel %vm2667, %v2666, 0.0
        %v2716 = vld [vmem:[%s5] sm:$0xf]
        %v2717 = vld [vmem:[%s5 + $0x4] sm:$0xf]
        %v2718 = vld [vmem:[%s5 + $0x8] sm:$0xf]
        %v2719 = vld [vmem:[%s5 + $0xc] sm:$0xf]
        %v2720 = vld [vmem:[%s5 + $0x10] sm:$0xf]
        %v2721 = vld [vmem:[%s5 + $0x14] sm:$0xf]
        %v2722 = vld [vmem:[%s5 + $0x18] sm:$0xf]
        %v2723 = vld [vmem:[%s5 + $0x1c] sm:$0xf]
        %v2724 = vld [vmem:[%s5 + $0x20] sm:$0xf]
        %v2725 = vld [vmem:[%s5 + $0x24] sm:$0xf]
        %v2726 = vld [vmem:[%s5 + $0x28] sm:$0xf]
        %v2727 = vld [vmem:[%s5 + $0x2c] sm:$0xf]
        %v2728 = vld [vmem:[%s5 + $0x30] sm:$0xf]
        %v2729 = vld [vmem:[%s5 + $0x34] sm:$0xf]
        %v2730 = vld [vmem:[%s5 + $0x38] sm:$0xf]
        %v2731 = vld [vmem:[%s5 + $0x3c] sm:$0xf]
        %v2732 = vpack.c.bf16 %v2612, %v2611
        %v2733 = vpack.c.bf16 %v2573, %v2571
        %v2734 = vpack.c.bf16 %v2574, %v2572
        %v2735 = vpack.c.bf16 %v2614, %v2613
        %v2736 = vpack.c.bf16 %v2577, %v2575
        %v2737 = vpack.c.bf16 %v2578, %v2576
        %v2738 = vpack.c.bf16 %v2616, %v2615
        %v2739 = vpack.c.bf16 %v2581, %v2579
        %v2740 = vpack.c.bf16 %v2582, %v2580
        %v2741 = vpack.c.bf16 %v2618, %v2617
        %v2742 = vpack.c.bf16 %v2585, %v2583
        %v2743 = vpack.c.bf16 %v2586, %v2584
        %s2744 = scalar_lea.vmem %s5, 64
        %v2745 = vld [vmem:[%s2744] sm:$0xf]
        %v2746 = vld [vmem:[%s2744 + $0x4] sm:$0xf]
        %v2747 = vld [vmem:[%s2744 + $0x8] sm:$0xf]
        %v2748 = vld [vmem:[%s2744 + $0xc] sm:$0xf]
        %v2749 = vld [vmem:[%s2744 + $0x10] sm:$0xf]
        %v2750 = vld [vmem:[%s2744 + $0x14] sm:$0xf]
        %v2751 = vld [vmem:[%s2744 + $0x18] sm:$0xf]
        %v2752 = vld [vmem:[%s2744 + $0x1c] sm:$0xf]
        %v2753 = vld [vmem:[%s2744 + $0x20] sm:$0xf]
        %v2754 = vld [vmem:[%s2744 + $0x24] sm:$0xf]
        %v2755 = vld [vmem:[%s2744 + $0x28] sm:$0xf]
        %v2756 = vld [vmem:[%s2744 + $0x2c] sm:$0xf]
        %v2757 = vld [vmem:[%s2744 + $0x30] sm:$0xf]
        %v2758 = vld [vmem:[%s2744 + $0x34] sm:$0xf]
        %v2759 = vld [vmem:[%s2744 + $0x38] sm:$0xf]
        %v2760 = vld [vmem:[%s2744 + $0x3c] sm:$0xf]
        %v2761 = vpack.c.bf16 %v2477, %v2474
        %v2762 = vpack.c.bf16 %v2478, %v2475
        %v2763 = vpack.c.bf16 %v2479, %v2476
        %v2764 = vpack.c.bf16 %v2483, %v2480
        %v2765 = vpack.c.bf16 %v2484, %v2481
        %v2766 = vpack.c.bf16 %v2485, %v2482
        %v2767 = vpack.c.bf16 %v2489, %v2486
        %v2768 = vpack.c.bf16 %v2490, %v2487
        %v2769 = vpack.c.bf16 %v2491, %v2488
        %v2770 = vpack.c.bf16 %v2495, %v2492
        %v2771 = vpack.c.bf16 %v2496, %v2493
        %v2772 = vpack.c.bf16 %v2497, %v2494
        %v2789 = vunpack.c.l.b16 %v2745
        %v2790 = vunpack.c.l.b16 %v2746
        %v2791 = vunpack.c.l.b16 %v2747
        %v2792 = vunpack.c.l.b16 %v2748
        %v2793 = vunpack.c.l.b16 %v2749
        %v2794 = vunpack.c.l.b16 %v2750
        %v2795 = vunpack.c.l.b16 %v2751
        %v2796 = vunpack.c.l.b16 %v2752
        %v2797 = vunpack.c.l.b16 %v2753
        %v2798 = vunpack.c.l.b16 %v2754
        %v2799 = vunpack.c.l.b16 %v2755
        %v2800 = vunpack.c.l.b16 %v2756
        %v2801 = vunpack.c.l.b16 %v2757
        %v2802 = vunpack.c.l.b16 %v2758
        %v2803 = vunpack.c.l.b16 %v2759
        %v2804 = vunpack.c.l.b16 %v2760
        %v2805 = vpack.c.b16 %v2790, %v2789
        %v2806 = vpack.c.b16 %v2792, %v2791
        %v2807 = vpack.c.b16 %v2794, %v2793
        %v2808 = vpack.c.b16 %v2796, %v2795
        %v2809 = vpack.c.b16 %v2798, %v2797
        %v2810 = vpack.c.b16 %v2800, %v2799
        %v2811 = vpack.c.b16 %v2802, %v2801
        %v2812 = vpack.c.b16 %v2804, %v2803
        %vm2813 = vcmask 523264
        %v2815 = vsel %vm2813, %v2805, 0
        %v2818 = vsel %vm2813, %v2806, 0
        %v2821 = vsel %vm2813, %v2807, 0
        %v2824 = vsel %vm2813, %v2808, 0
        %v2827 = vsel %vm2813, %v2809, 0
        %v2830 = vsel %vm2813, %v2810, 0
        %v2833 = vsel %vm2813, %v2811, 0
        %v2836 = vsel %vm2813, %v2812, 0
        %2838 = vmatprep.subr.bf16.mxu0 0
        %2839 = vmatpush1.bf16.msra.mxu0 0
        %2840 = vmatprep.subr.bf16.mxu0 0
        %2841 = vmatpush1.bf16.msra.mxu0 0
        %2842 = vmatprep.subr.bf16.mxu0 0
        %2843 = vmatpush1.bf16.msra.mxu0 0
        %2844 = vmatprep.subr.bf16.mxu0 0
        %2845 = vmatpush1.bf16.msra.mxu0 0
        %2846 = vmatprep.subr.bf16.mxu0 %v2771
        %2847 = vmatpush1.bf16.msra.mxu0 %v2770
        %2848 = vmatprep.subr.bf16.mxu0 %v2768
        %2849 = vmatpush1.bf16.msra.mxu0 %v2767
        %2850 = vmatprep.subr.bf16.mxu0 %v2765
        %2851 = vmatpush1.bf16.msra.mxu0 %v2764
        %2852 = vmatprep.subr.bf16.mxu0 %v2762
        %2853 = vmatpush1.bf16.msra.mxu0 %v2761
        %2854 = vmatprep.subr.bf16.mxu0 0
        %2855 = vmatpush2.bf16.msra.mxu0 0
        %2856 = vmatprep.subr.bf16.mxu0 0
        %2857 = vmatpush2.bf16.msra.mxu0 0
        %2858 = vmatprep.subr.bf16.mxu0 0
        %2859 = vmatpush2.bf16.msra.mxu0 0
        %2860 = vmatprep.subr.bf16.mxu0 0
        %2861 = vmatpush2.bf16.msra.mxu0 0
        %2862 = vmatprep.subr.bf16.mxu0 0
        %2863 = vmatpush2.bf16.msra.mxu0 0
        %2864 = vmatprep.subr.bf16.mxu0 0
        %2865 = vmatpush2.bf16.msra.mxu0 0
        %2866 = vmatprep.subr.bf16.mxu0 0
        %2867 = vmatpush2.bf16.msra.mxu0 0
        %2868 = vmatprep.subr.bf16.mxu0 0
        %2869 = vmatpush2.bf16.msra.mxu0 0
        %2870 = vmatprep.mubr.bf16.mxu0 0
        %2871 = vmatmul.mubr.bf16.gmra.mxu0 %v2815
        %v2872 = vpop.f32.mrf.mxu0
        %v2873 = vadd.f32 0.0, %v2872
        %v2874 = vpop.f32.mrf.mxu0
        %v2875 = vadd.f32 0.0, %v2874
        %v2876 = vpop.f32.mrf.mxu0
        %v2877 = vadd.f32 0.0, %v2876
        %v2878 = vpop.f32.mrf.mxu0
        %v2879 = vadd.f32 0.0, %v2878
        %2880 = vmatprep.mubr.bf16.mxu0 0
        %2881 = vmatmul.mubr.bf16.gmra.mxu0 %v2818
        %v2882 = vpop.f32.mrf.mxu0
        %v2883 = vadd.f32 0.0, %v2882
        %v2884 = vpop.f32.mrf.mxu0
        %v2885 = vadd.f32 0.0, %v2884
        %v2886 = vpop.f32.mrf.mxu0
        %v2887 = vadd.f32 0.0, %v2886
        %v2888 = vpop.f32.mrf.mxu0
        %v2889 = vadd.f32 0.0, %v2888
        %2890 = vmatprep.mubr.bf16.mxu0 0
        %2891 = vmatmul.mubr.bf16.gmra.mxu0 %v2821
        %v2892 = vpop.f32.mrf.mxu0
        %v2893 = vadd.f32 0.0, %v2892
        %v2894 = vpop.f32.mrf.mxu0
        %v2895 = vadd.f32 0.0, %v2894
        %v2896 = vpop.f32.mrf.mxu0
        %v2897 = vadd.f32 0.0, %v2896
        %v2898 = vpop.f32.mrf.mxu0
        %v2899 = vadd.f32 0.0, %v2898
        %2900 = vmatprep.mubr.bf16.mxu0 0
        %2901 = vmatmul.mubr.bf16.gmra.mxu0 %v2824
        %v2902 = vpop.f32.mrf.mxu0
        %v2903 = vadd.f32 0.0, %v2902
        %v2904 = vpop.f32.mrf.mxu0
        %v2905 = vadd.f32 0.0, %v2904
        %v2906 = vpop.f32.mrf.mxu0
        %v2907 = vadd.f32 0.0, %v2906
        %v2908 = vpop.f32.mrf.mxu0
        %v2909 = vadd.f32 0.0, %v2908
        %2910 = vmatprep.mubr.bf16.mxu0 0
        %2911 = vmatmul.mubr.bf16.gmra.mxu0 %v2827
        %v2912 = vpop.f32.mrf.mxu0
        %v2913 = vadd.f32 0.0, %v2912
        %v2914 = vpop.f32.mrf.mxu0
        %v2915 = vadd.f32 0.0, %v2914
        %v2916 = vpop.f32.mrf.mxu0
        %v2917 = vadd.f32 0.0, %v2916
        %v2918 = vpop.f32.mrf.mxu0
        %v2919 = vadd.f32 0.0, %v2918
        %2920 = vmatprep.mubr.bf16.mxu0 0
        %2921 = vmatmul.mubr.bf16.gmra.mxu0 %v2830
        %v2922 = vpop.f32.mrf.mxu0
        %v2923 = vadd.f32 0.0, %v2922
        %v2924 = vpop.f32.mrf.mxu0
        %v2925 = vadd.f32 0.0, %v2924
        %v2926 = vpop.f32.mrf.mxu0
        %v2927 = vadd.f32 0.0, %v2926
        %v2928 = vpop.f32.mrf.mxu0
        %v2929 = vadd.f32 0.0, %v2928
        %2930 = vmatprep.mubr.bf16.mxu0 0
        %2931 = vmatmul.mubr.bf16.gmra.mxu0 %v2833
        %v2932 = vpop.f32.mrf.mxu0
        %v2933 = vadd.f32 0.0, %v2932
        %v2934 = vpop.f32.mrf.mxu0
        %v2935 = vadd.f32 0.0, %v2934
        %v2936 = vpop.f32.mrf.mxu0
        %v2937 = vadd.f32 0.0, %v2936
        %v2938 = vpop.f32.mrf.mxu0
        %v2939 = vadd.f32 0.0, %v2938
        %2940 = vmatprep.mubr.bf16.mxu0 0
        %2941 = vmatmul.mubr.bf16.gmra.mxu0 %v2836
        %v2942 = vpop.f32.mrf.mxu0
        %v2943 = vadd.f32 0.0, %v2942
        %v2944 = vpop.f32.mrf.mxu0
        %v2945 = vadd.f32 0.0, %v2944
        %v2946 = vpop.f32.mrf.mxu0
        %v2947 = vadd.f32 0.0, %v2946
        %v2948 = vpop.f32.mrf.mxu0
        %v2949 = vadd.f32 0.0, %v2948
        %2950 = vdwg.mxu0
        %2951 = vmatprep.subr.bf16.mxu0 0
        %2952 = vmatpush1.bf16.msra.mxu0 0
        %2953 = vmatprep.subr.bf16.mxu0 0
        %2954 = vmatpush1.bf16.msra.mxu0 0
        %2955 = vmatprep.subr.bf16.mxu0 0
        %2956 = vmatpush1.bf16.msra.mxu0 0
        %2957 = vmatprep.subr.bf16.mxu0 0
        %2958 = vmatpush1.bf16.msra.mxu0 0
        %2959 = vmatprep.subr.bf16.mxu0 0
        %2960 = vmatpush1.bf16.msra.mxu0 %v2772
        %2961 = vmatprep.subr.bf16.mxu0 0
        %2962 = vmatpush1.bf16.msra.mxu0 %v2769
        %2963 = vmatprep.subr.bf16.mxu0 0
        %2964 = vmatpush1.bf16.msra.mxu0 %v2766
        %2965 = vmatprep.subr.bf16.mxu0 0
        %2966 = vmatpush1.bf16.msra.mxu0 %v2763
        %2967 = vmatprep.subr.bf16.mxu0 0
        %2968 = vmatpush2.bf16.msra.mxu0 0
        %2969 = vmatprep.subr.bf16.mxu0 0
        %2970 = vmatpush2.bf16.msra.mxu0 0
        %2971 = vmatprep.subr.bf16.mxu0 0
        %2972 = vmatpush2.bf16.msra.mxu0 0
        %2973 = vmatprep.subr.bf16.mxu0 0
        %2974 = vmatpush2.bf16.msra.mxu0 0
        %2975 = vmatprep.subr.bf16.mxu0 0
        %2976 = vmatpush2.bf16.msra.mxu0 0
        %2977 = vmatprep.subr.bf16.mxu0 0
        %2978 = vmatpush2.bf16.msra.mxu0 0
        %2979 = vmatprep.subr.bf16.mxu0 0
        %2980 = vmatpush2.bf16.msra.mxu0 0
        %2981 = vmatprep.subr.bf16.mxu0 0
        %2982 = vmatpush2.bf16.msra.mxu0 0
        %2983 = vmatprep.mubr.bf16.mxu0 0
        %2984 = vmatmul.mubr.bf16.gmra.mxu0 %v2815
        %v2985 = vpop.f32.mrf.mxu0
        %v2986 = vadd.f32 0.0, %v2985
        %v2987 = vpop.f32.mrf.mxu0
        %v2988 = vpop.f32.mrf.mxu0
        %v2989 = vadd.f32 0.0, %v2988
        %v2990 = vpop.f32.mrf.mxu0
        %2991 = vmatprep.mubr.bf16.mxu0 0
        %2992 = vmatmul.mubr.bf16.gmra.mxu0 %v2818
        %v2993 = vpop.f32.mrf.mxu0
        %v2994 = vadd.f32 0.0, %v2993
        %v2995 = vpop.f32.mrf.mxu0
        %v2996 = vpop.f32.mrf.mxu0
        %v2997 = vadd.f32 0.0, %v2996
        %v2998 = vpop.f32.mrf.mxu0
        %2999 = vmatprep.mubr.bf16.mxu0 0
        %3000 = vmatmul.mubr.bf16.gmra.mxu0 %v2821
        %v3001 = vpop.f32.mrf.mxu0
        %v3002 = vadd.f32 0.0, %v3001
        %v3003 = vpop.f32.mrf.mxu0
        %v3004 = vpop.f32.mrf.mxu0
        %v3005 = vadd.f32 0.0, %v3004
        %v3006 = vpop.f32.mrf.mxu0
        %3007 = vmatprep.mubr.bf16.mxu0 0
        %3008 = vmatmul.mubr.bf16.gmra.mxu0 %v2824
        %v3009 = vpop.f32.mrf.mxu0
        %v3010 = vadd.f32 0.0, %v3009
        %v3011 = vpop.f32.mrf.mxu0
        %v3012 = vpop.f32.mrf.mxu0
        %v3013 = vadd.f32 0.0, %v3012
        %v3014 = vpop.f32.mrf.mxu0
        %3015 = vmatprep.mubr.bf16.mxu0 0
        %3016 = vmatmul.mubr.bf16.gmra.mxu0 %v2827
        %v3017 = vpop.f32.mrf.mxu0
        %v3018 = vadd.f32 0.0, %v3017
        %v3019 = vpop.f32.mrf.mxu0
        %v3020 = vpop.f32.mrf.mxu0
        %v3021 = vadd.f32 0.0, %v3020
        %v3022 = vpop.f32.mrf.mxu0
        %3023 = vmatprep.mubr.bf16.mxu0 0
        %3024 = vmatmul.mubr.bf16.gmra.mxu0 %v2830
        %v3025 = vpop.f32.mrf.mxu0
        %v3026 = vadd.f32 0.0, %v3025
        %v3027 = vpop.f32.mrf.mxu0
        %v3028 = vpop.f32.mrf.mxu0
        %v3029 = vadd.f32 0.0, %v3028
        %v3030 = vpop.f32.mrf.mxu0
        %3031 = vmatprep.mubr.bf16.mxu0 0
        %3032 = vmatmul.mubr.bf16.gmra.mxu0 %v2833
        %v3033 = vpop.f32.mrf.mxu0
        %v3034 = vadd.f32 0.0, %v3033
        %v3035 = vpop.f32.mrf.mxu0
        %v3036 = vpop.f32.mrf.mxu0
        %v3037 = vadd.f32 0.0, %v3036
        %v3038 = vpop.f32.mrf.mxu0
        %3039 = vmatprep.mubr.bf16.mxu0 0
        %3040 = vmatmul.mubr.bf16.gmra.mxu0 %v2836
        %v3041 = vpop.f32.mrf.mxu0
        %v3042 = vadd.f32 0.0, %v3041
        %v3043 = vpop.f32.mrf.mxu0
        %v3044 = vpop.f32.mrf.mxu0
        %v3045 = vadd.f32 0.0, %v3044
        %v3046 = vpop.f32.mrf.mxu0
        %3047 = vdwg.mxu0
        %v3064 = vunpack.c.l.b16 %v2716
        %v3065 = vunpack.c.l.b16 %v2717
        %v3066 = vunpack.c.l.b16 %v2718
        %v3067 = vunpack.c.l.b16 %v2719
        %v3068 = vunpack.c.l.b16 %v2720
        %v3069 = vunpack.c.l.b16 %v2721
        %v3070 = vunpack.c.l.b16 %v2722
        %v3071 = vunpack.c.l.b16 %v2723
        %v3072 = vunpack.c.l.b16 %v2724
        %v3073 = vunpack.c.l.b16 %v2725
        %v3074 = vunpack.c.l.b16 %v2726
        %v3075 = vunpack.c.l.b16 %v2727
        %v3076 = vunpack.c.l.b16 %v2728
        %v3077 = vunpack.c.l.b16 %v2729
        %v3078 = vunpack.c.l.b16 %v2730
        %v3079 = vunpack.c.l.b16 %v2731
        %v3080 = vpack.c.b16 %v3065, %v3064
        %v3081 = vpack.c.b16 %v3067, %v3066
        %v3082 = vpack.c.b16 %v3069, %v3068
        %v3083 = vpack.c.b16 %v3071, %v3070
        %v3084 = vpack.c.b16 %v3073, %v3072
        %v3085 = vpack.c.b16 %v3075, %v3074
        %v3086 = vpack.c.b16 %v3077, %v3076
        %v3087 = vpack.c.b16 %v3079, %v3078
        %v3089 = vsel %vm2813, %v3080, 0
        %v3092 = vsel %vm2813, %v3081, 0
        %v3095 = vsel %vm2813, %v3082, 0
        %v3098 = vsel %vm2813, %v3083, 0
        %v3101 = vsel %vm2813, %v3084, 0
        %v3104 = vsel %vm2813, %v3085, 0
        %v3107 = vsel %vm2813, %v3086, 0
        %v3110 = vsel %vm2813, %v3087, 0
        %3112 = vmatprep.subr.bf16.mxu0 0
        %3113 = vmatpush1.bf16.msra.mxu0 0
        %3114 = vmatprep.subr.bf16.mxu0 0
        %3115 = vmatpush1.bf16.msra.mxu0 0
        %3116 = vmatprep.subr.bf16.mxu0 0
        %3117 = vmatpush1.bf16.msra.mxu0 0
        %3118 = vmatprep.subr.bf16.mxu0 0
        %3119 = vmatpush1.bf16.msra.mxu0 0
        %3120 = vmatprep.subr.bf16.mxu0 %v2742
        %3121 = vmatpush1.bf16.msra.mxu0 %v2741
        %3122 = vmatprep.subr.bf16.mxu0 %v2739
        %3123 = vmatpush1.bf16.msra.mxu0 %v2738
        %3124 = vmatprep.subr.bf16.mxu0 %v2736
        %3125 = vmatpush1.bf16.msra.mxu0 %v2735
        %3126 = vmatprep.subr.bf16.mxu0 %v2733
        %3127 = vmatpush1.bf16.msra.mxu0 %v2732
        %3128 = vmatprep.subr.bf16.mxu0 0
        %3129 = vmatpush2.bf16.msra.mxu0 0
        %3130 = vmatprep.subr.bf16.mxu0 0
        %3131 = vmatpush2.bf16.msra.mxu0 0
        %3132 = vmatprep.subr.bf16.mxu0 0
        %3133 = vmatpush2.bf16.msra.mxu0 0
        %3134 = vmatprep.subr.bf16.mxu0 0
        %3135 = vmatpush2.bf16.msra.mxu0 0
        %3136 = vmatprep.subr.bf16.mxu0 0
        %3137 = vmatpush2.bf16.msra.mxu0 0
        %3138 = vmatprep.subr.bf16.mxu0 0
        %3139 = vmatpush2.bf16.msra.mxu0 0
        %3140 = vmatprep.subr.bf16.mxu0 0
        %3141 = vmatpush2.bf16.msra.mxu0 0
        %3142 = vmatprep.subr.bf16.mxu0 0
        %3143 = vmatpush2.bf16.msra.mxu0 0
        %3144 = vmatprep.mubr.bf16.mxu0 0
        %3145 = vmatmul.mubr.bf16.gmra.mxu0 %v3089
        %v3146 = vpop.f32.mrf.mxu0
        %v3147 = vadd.f32 %v2873, %v3146
        %v3148 = vpop.f32.mrf.mxu0
        %v3149 = vadd.f32 %v2875, %v3148
        %v3150 = vpop.f32.mrf.mxu0
        %v3151 = vadd.f32 %v2877, %v3150
        %v3152 = vpop.f32.mrf.mxu0
        %v3153 = vadd.f32 %v2879, %v3152
        %3154 = vmatprep.mubr.bf16.mxu0 0
        %3155 = vmatmul.mubr.bf16.gmra.mxu0 %v3092
        %v3156 = vpop.f32.mrf.mxu0
        %v3157 = vadd.f32 %v2883, %v3156
        %v3158 = vpop.f32.mrf.mxu0
        %v3159 = vadd.f32 %v2885, %v3158
        %v3160 = vpop.f32.mrf.mxu0
        %v3161 = vadd.f32 %v2887, %v3160
        %v3162 = vpop.f32.mrf.mxu0
        %v3163 = vadd.f32 %v2889, %v3162
        %3164 = vmatprep.mubr.bf16.mxu0 0
        %3165 = vmatmul.mubr.bf16.gmra.mxu0 %v3095
        %v3166 = vpop.f32.mrf.mxu0
        %v3167 = vadd.f32 %v2893, %v3166
        %v3168 = vpop.f32.mrf.mxu0
        %v3169 = vadd.f32 %v2895, %v3168
        %v3170 = vpop.f32.mrf.mxu0
        %v3171 = vadd.f32 %v2897, %v3170
        %v3172 = vpop.f32.mrf.mxu0
        %v3173 = vadd.f32 %v2899, %v3172
        %3174 = vmatprep.mubr.bf16.mxu0 0
        %3175 = vmatmul.mubr.bf16.gmra.mxu0 %v3098
        %v3176 = vpop.f32.mrf.mxu0
        %v3177 = vadd.f32 %v2903, %v3176
        %v3178 = vpop.f32.mrf.mxu0
        %v3179 = vadd.f32 %v2905, %v3178
        %v3180 = vpop.f32.mrf.mxu0
        %v3181 = vadd.f32 %v2907, %v3180
        %v3182 = vpop.f32.mrf.mxu0
        %v3183 = vadd.f32 %v2909, %v3182
        %3184 = vmatprep.mubr.bf16.mxu0 0
        %3185 = vmatmul.mubr.bf16.gmra.mxu0 %v3101
        %v3186 = vpop.f32.mrf.mxu0
        %v3187 = vadd.f32 %v2913, %v3186
        %v3188 = vpop.f32.mrf.mxu0
        %v3189 = vadd.f32 %v2915, %v3188
        %v3190 = vpop.f32.mrf.mxu0
        %v3191 = vadd.f32 %v2917, %v3190
        %v3192 = vpop.f32.mrf.mxu0
        %v3193 = vadd.f32 %v2919, %v3192
        %3194 = vmatprep.mubr.bf16.mxu0 0
        %3195 = vmatmul.mubr.bf16.gmra.mxu0 %v3104
        %v3196 = vpop.f32.mrf.mxu0
        %v3197 = vadd.f32 %v2923, %v3196
        %v3198 = vpop.f32.mrf.mxu0
        %v3199 = vadd.f32 %v2925, %v3198
        %v3200 = vpop.f32.mrf.mxu0
        %v3201 = vadd.f32 %v2927, %v3200
        %v3202 = vpop.f32.mrf.mxu0
        %v3203 = vadd.f32 %v2929, %v3202
        %3204 = vmatprep.mubr.bf16.mxu0 0
        %3205 = vmatmul.mubr.bf16.gmra.mxu0 %v3107
        %v3206 = vpop.f32.mrf.mxu0
        %v3207 = vadd.f32 %v2933, %v3206
        %v3208 = vpop.f32.mrf.mxu0
        %v3209 = vadd.f32 %v2935, %v3208
        %v3210 = vpop.f32.mrf.mxu0
        %v3211 = vadd.f32 %v2937, %v3210
        %v3212 = vpop.f32.mrf.mxu0
        %v3213 = vadd.f32 %v2939, %v3212
        %3214 = vmatprep.mubr.bf16.mxu0 0
        %3215 = vmatmul.mubr.bf16.gmra.mxu0 %v3110
        %v3216 = vpop.f32.mrf.mxu0
        %v3217 = vadd.f32 %v2943, %v3216
        %v3218 = vpop.f32.mrf.mxu0
        %v3219 = vadd.f32 %v2945, %v3218
        %v3220 = vpop.f32.mrf.mxu0
        %v3221 = vadd.f32 %v2947, %v3220
        %v3222 = vpop.f32.mrf.mxu0
        %v3223 = vadd.f32 %v2949, %v3222
        %3224 = vdwg.mxu0
        %3225 = vmatprep.subr.bf16.mxu0 0
        %3226 = vmatpush1.bf16.msra.mxu0 0
        %3227 = vmatprep.subr.bf16.mxu0 0
        %3228 = vmatpush1.bf16.msra.mxu0 0
        %3229 = vmatprep.subr.bf16.mxu0 0
        %3230 = vmatpush1.bf16.msra.mxu0 0
        %3231 = vmatprep.subr.bf16.mxu0 0
        %3232 = vmatpush1.bf16.msra.mxu0 0
        %3233 = vmatprep.subr.bf16.mxu0 0
        %3234 = vmatpush1.bf16.msra.mxu0 %v2743
        %3235 = vmatprep.subr.bf16.mxu0 0
        %3236 = vmatpush1.bf16.msra.mxu0 %v2740
        %3237 = vmatprep.subr.bf16.mxu0 0
        %3238 = vmatpush1.bf16.msra.mxu0 %v2737
        %3239 = vmatprep.subr.bf16.mxu0 0
        %3240 = vmatpush1.bf16.msra.mxu0 %v2734
        %3241 = vmatprep.subr.bf16.mxu0 0
        %3242 = vmatpush2.bf16.msra.mxu0 0
        %3243 = vmatprep.subr.bf16.mxu0 0
        %3244 = vmatpush2.bf16.msra.mxu0 0
        %3245 = vmatprep.subr.bf16.mxu0 0
        %3246 = vmatpush2.bf16.msra.mxu0 0
        %3247 = vmatprep.subr.bf16.mxu0 0
        %3248 = vmatpush2.bf16.msra.mxu0 0
        %3249 = vmatprep.subr.bf16.mxu0 0
        %3250 = vmatpush2.bf16.msra.mxu0 0
        %3251 = vmatprep.subr.bf16.mxu0 0
        %3252 = vmatpush2.bf16.msra.mxu0 0
        %3253 = vmatprep.subr.bf16.mxu0 0
        %3254 = vmatpush2.bf16.msra.mxu0 0
        %3255 = vmatprep.subr.bf16.mxu0 0
        %3256 = vmatpush2.bf16.msra.mxu0 0
        %3257 = vmatprep.mubr.bf16.mxu0 0
        %3258 = vmatmul.mubr.bf16.gmra.mxu0 %v3089
        %v3259 = vpop.f32.mrf.mxu0
        %v3260 = vadd.f32 %v2986, %v3259
        %v3261 = vpop.f32.mrf.mxu0
        %v3262 = vpop.f32.mrf.mxu0
        %v3263 = vadd.f32 %v2989, %v3262
        %v3264 = vpop.f32.mrf.mxu0
        %3265 = vmatprep.mubr.bf16.mxu0 0
        %3266 = vmatmul.mubr.bf16.gmra.mxu0 %v3092
        %v3267 = vpop.f32.mrf.mxu0
        %v3268 = vadd.f32 %v2994, %v3267
        %v3269 = vpop.f32.mrf.mxu0
        %v3270 = vpop.f32.mrf.mxu0
        %v3271 = vadd.f32 %v2997, %v3270
        %v3272 = vpop.f32.mrf.mxu0
        %3273 = vmatprep.mubr.bf16.mxu0 0
        %3274 = vmatmul.mubr.bf16.gmra.mxu0 %v3095
        %v3275 = vpop.f32.mrf.mxu0
        %v3276 = vadd.f32 %v3002, %v3275
        %v3277 = vpop.f32.mrf.mxu0
        %v3278 = vpop.f32.mrf.mxu0
        %v3279 = vadd.f32 %v3005, %v3278
        %v3280 = vpop.f32.mrf.mxu0
        %3281 = vmatprep.mubr.bf16.mxu0 0
        %3282 = vmatmul.mubr.bf16.gmra.mxu0 %v3098
        %v3283 = vpop.f32.mrf.mxu0
        %v3284 = vadd.f32 %v3010, %v3283
        %v3285 = vpop.f32.mrf.mxu0
        %v3286 = vpop.f32.mrf.mxu0
        %v3287 = vadd.f32 %v3013, %v3286
        %v3288 = vpop.f32.mrf.mxu0
        %3289 = vmatprep.mubr.bf16.mxu0 0
        %3290 = vmatmul.mubr.bf16.gmra.mxu0 %v3101
        %v3291 = vpop.f32.mrf.mxu0
        %v3292 = vadd.f32 %v3018, %v3291
        %v3293 = vpop.f32.mrf.mxu0
        %v3294 = vpop.f32.mrf.mxu0
        %v3295 = vadd.f32 %v3021, %v3294
        %v3296 = vpop.f32.mrf.mxu0
        %3297 = vmatprep.mubr.bf16.mxu0 0
        %3298 = vmatmul.mubr.bf16.gmra.mxu0 %v3104
        %v3299 = vpop.f32.mrf.mxu0
        %v3300 = vadd.f32 %v3026, %v3299
        %v3301 = vpop.f32.mrf.mxu0
        %v3302 = vpop.f32.mrf.mxu0
        %v3303 = vadd.f32 %v3029, %v3302
        %v3304 = vpop.f32.mrf.mxu0
        %3305 = vmatprep.mubr.bf16.mxu0 0
        %3306 = vmatmul.mubr.bf16.gmra.mxu0 %v3107
        %v3307 = vpop.f32.mrf.mxu0
        %v3308 = vadd.f32 %v3034, %v3307
        %v3309 = vpop.f32.mrf.mxu0
        %v3310 = vpop.f32.mrf.mxu0
        %v3311 = vadd.f32 %v3037, %v3310
        %v3312 = vpop.f32.mrf.mxu0
        %3313 = vmatprep.mubr.bf16.mxu0 0
        %3314 = vmatmul.mubr.bf16.gmra.mxu0 %v3110
        %v3315 = vpop.f32.mrf.mxu0
        %v3316 = vadd.f32 %v3042, %v3315
        %v3317 = vpop.f32.mrf.mxu0
        %v3318 = vpop.f32.mrf.mxu0
        %v3319 = vadd.f32 %v3045, %v3318
        %v3320 = vpop.f32.mrf.mxu0
        %3321 = vdwg.mxu0
        %s3322 = scalar_lea.vmem %s5, 128
        %v3323 = vld [vmem:[%s3322] sm:$0xf]
        %v3324 = vld [vmem:[%s3322 + $0x4] sm:$0xf]
        %v3325 = vld [vmem:[%s3322 + $0x8] sm:$0xf]
        %v3326 = vld [vmem:[%s3322 + $0xc] sm:$0xf]
        %v3327 = vld [vmem:[%s3322 + $0x10] sm:$0xf]
        %v3328 = vld [vmem:[%s3322 + $0x14] sm:$0xf]
        %v3329 = vld [vmem:[%s3322 + $0x18] sm:$0xf]
        %v3330 = vld [vmem:[%s3322 + $0x1c] sm:$0xf]
        %v3331 = vld [vmem:[%s3322 + $0x20] sm:$0xf]
        %v3332 = vld [vmem:[%s3322 + $0x24] sm:$0xf]
        %v3333 = vld [vmem:[%s3322 + $0x28] sm:$0xf]
        %v3334 = vld [vmem:[%s3322 + $0x2c] sm:$0xf]
        %v3335 = vld [vmem:[%s3322 + $0x30] sm:$0xf]
        %v3336 = vld [vmem:[%s3322 + $0x34] sm:$0xf]
        %v3337 = vld [vmem:[%s3322 + $0x38] sm:$0xf]
        %v3338 = vld [vmem:[%s3322 + $0x3c] sm:$0xf]
        %v3339 = vpack.c.bf16 %v2670, %v2668
        %v3340 = vpack.c.bf16 %v2671, %v2669
        %v3341 = vpack.c.bf16 %v2709, %v2708
        %v3342 = vpack.c.bf16 %v2674, %v2672
        %v3343 = vpack.c.bf16 %v2675, %v2673
        %v3344 = vpack.c.bf16 %v2711, %v2710
        %v3345 = vpack.c.bf16 %v2678, %v2676
        %v3346 = vpack.c.bf16 %v2679, %v2677
        %v3347 = vpack.c.bf16 %v2713, %v2712
        %v3348 = vpack.c.bf16 %v2682, %v2680
        %v3349 = vpack.c.bf16 %v2683, %v2681
        %v3350 = vpack.c.bf16 %v2715, %v2714
        %v3367 = vunpack.c.l.b16 %v3323
        %v3368 = vunpack.c.l.b16 %v3324
        %v3369 = vunpack.c.l.b16 %v3325
        %v3370 = vunpack.c.l.b16 %v3326
        %v3371 = vunpack.c.l.b16 %v3327
        %v3372 = vunpack.c.l.b16 %v3328
        %v3373 = vunpack.c.l.b16 %v3329
        %v3374 = vunpack.c.l.b16 %v3330
        %v3375 = vunpack.c.l.b16 %v3331
        %v3376 = vunpack.c.l.b16 %v3332
        %v3377 = vunpack.c.l.b16 %v3333
        %v3378 = vunpack.c.l.b16 %v3334
        %v3379 = vunpack.c.l.b16 %v3335
        %v3380 = vunpack.c.l.b16 %v3336
        %v3381 = vunpack.c.l.b16 %v3337
        %v3382 = vunpack.c.l.b16 %v3338
        %v3383 = vpack.c.b16 %v3368, %v3367
        %v3384 = vpack.c.b16 %v3370, %v3369
        %v3385 = vpack.c.b16 %v3372, %v3371
        %v3386 = vpack.c.b16 %v3374, %v3373
        %v3387 = vpack.c.b16 %v3376, %v3375
        %v3388 = vpack.c.b16 %v3378, %v3377
        %v3389 = vpack.c.b16 %v3380, %v3379
        %v3390 = vpack.c.b16 %v3382, %v3381
        %v3392 = vsel %vm2813, %v3383, 0
        %v3395 = vsel %vm2813, %v3384, 0
        %v3398 = vsel %vm2813, %v3385, 0
        %v3401 = vsel %vm2813, %v3386, 0
        %v3404 = vsel %vm2813, %v3387, 0
        %v3407 = vsel %vm2813, %v3388, 0
        %v3410 = vsel %vm2813, %v3389, 0
        %v3413 = vsel %vm2813, %v3390, 0
        %3415 = vmatprep.subr.bf16.mxu0 0
        %3416 = vmatpush1.bf16.msra.mxu0 0
        %3417 = vmatprep.subr.bf16.mxu0 0
        %3418 = vmatpush1.bf16.msra.mxu0 0
        %3419 = vmatprep.subr.bf16.mxu0 0
        %3420 = vmatpush1.bf16.msra.mxu0 0
        %3421 = vmatprep.subr.bf16.mxu0 0
        %3422 = vmatpush1.bf16.msra.mxu0 0
        %3423 = vmatprep.subr.bf16.mxu0 %v3349
        %3424 = vmatpush1.bf16.msra.mxu0 %v3348
        %3425 = vmatprep.subr.bf16.mxu0 %v3346
        %3426 = vmatpush1.bf16.msra.mxu0 %v3345
        %3427 = vmatprep.subr.bf16.mxu0 %v3343
        %3428 = vmatpush1.bf16.msra.mxu0 %v3342
        %3429 = vmatprep.subr.bf16.mxu0 %v3340
        %3430 = vmatpush1.bf16.msra.mxu0 %v3339
        %3431 = vmatprep.subr.bf16.mxu0 0
        %3432 = vmatpush2.bf16.msra.mxu0 0
        %3433 = vmatprep.subr.bf16.mxu0 0
        %3434 = vmatpush2.bf16.msra.mxu0 0
        %3435 = vmatprep.subr.bf16.mxu0 0
        %3436 = vmatpush2.bf16.msra.mxu0 0
        %3437 = vmatprep.subr.bf16.mxu0 0
        %3438 = vmatpush2.bf16.msra.mxu0 0
        %3439 = vmatprep.subr.bf16.mxu0 0
        %3440 = vmatpush2.bf16.msra.mxu0 0
        %3441 = vmatprep.subr.bf16.mxu0 0
        %3442 = vmatpush2.bf16.msra.mxu0 0
        %3443 = vmatprep.subr.bf16.mxu0 0
        %3444 = vmatpush2.bf16.msra.mxu0 0
        %3445 = vmatprep.subr.bf16.mxu0 0
        %3446 = vmatpush2.bf16.msra.mxu0 0
        %3447 = vmatprep.mubr.bf16.mxu0 0
        %3448 = vmatmul.mubr.bf16.gmra.mxu0 %v3392
        %v3449 = vpop.f32.mrf.mxu0
        %v3450 = vadd.f32 0.0, %v3449
        %v3451 = vpop.f32.mrf.mxu0
        %v3452 = vadd.f32 0.0, %v3451
        %v3453 = vpop.f32.mrf.mxu0
        %v3454 = vadd.f32 0.0, %v3453
        %v3455 = vpop.f32.mrf.mxu0
        %v3456 = vadd.f32 0.0, %v3455
        %3457 = vmatprep.mubr.bf16.mxu0 0
        %3458 = vmatmul.mubr.bf16.gmra.mxu0 %v3395
        %v3459 = vpop.f32.mrf.mxu0
        %v3460 = vadd.f32 0.0, %v3459
        %v3461 = vpop.f32.mrf.mxu0
        %v3462 = vadd.f32 0.0, %v3461
        %v3463 = vpop.f32.mrf.mxu0
        %v3464 = vadd.f32 0.0, %v3463
        %v3465 = vpop.f32.mrf.mxu0
        %v3466 = vadd.f32 0.0, %v3465
        %3467 = vmatprep.mubr.bf16.mxu0 0
        %3468 = vmatmul.mubr.bf16.gmra.mxu0 %v3398
        %v3469 = vpop.f32.mrf.mxu0
        %v3470 = vadd.f32 0.0, %v3469
        %v3471 = vpop.f32.mrf.mxu0
        %v3472 = vadd.f32 0.0, %v3471
        %v3473 = vpop.f32.mrf.mxu0
        %v3474 = vadd.f32 0.0, %v3473
        %v3475 = vpop.f32.mrf.mxu0
        %v3476 = vadd.f32 0.0, %v3475
        %3477 = vmatprep.mubr.bf16.mxu0 0
        %3478 = vmatmul.mubr.bf16.gmra.mxu0 %v3401
        %v3479 = vpop.f32.mrf.mxu0
        %v3480 = vadd.f32 0.0, %v3479
        %v3481 = vpop.f32.mrf.mxu0
        %v3482 = vadd.f32 0.0, %v3481
        %v3483 = vpop.f32.mrf.mxu0
        %v3484 = vadd.f32 0.0, %v3483
        %v3485 = vpop.f32.mrf.mxu0
        %v3486 = vadd.f32 0.0, %v3485
        %3487 = vmatprep.mubr.bf16.mxu0 0
        %3488 = vmatmul.mubr.bf16.gmra.mxu0 %v3404
        %v3489 = vpop.f32.mrf.mxu0
        %v3490 = vadd.f32 0.0, %v3489
        %v3491 = vpop.f32.mrf.mxu0
        %v3492 = vadd.f32 0.0, %v3491
        %v3493 = vpop.f32.mrf.mxu0
        %v3494 = vadd.f32 0.0, %v3493
        %v3495 = vpop.f32.mrf.mxu0
        %v3496 = vadd.f32 0.0, %v3495
        %3497 = vmatprep.mubr.bf16.mxu0 0
        %3498 = vmatmul.mubr.bf16.gmra.mxu0 %v3407
        %v3499 = vpop.f32.mrf.mxu0
        %v3500 = vadd.f32 0.0, %v3499
        %v3501 = vpop.f32.mrf.mxu0
        %v3502 = vadd.f32 0.0, %v3501
        %v3503 = vpop.f32.mrf.mxu0
        %v3504 = vadd.f32 0.0, %v3503
        %v3505 = vpop.f32.mrf.mxu0
        %v3506 = vadd.f32 0.0, %v3505
        %3507 = vmatprep.mubr.bf16.mxu0 0
        %3508 = vmatmul.mubr.bf16.gmra.mxu0 %v3410
        %v3509 = vpop.f32.mrf.mxu0
        %v3510 = vadd.f32 0.0, %v3509
        %v3511 = vpop.f32.mrf.mxu0
        %v3512 = vadd.f32 0.0, %v3511
        %v3513 = vpop.f32.mrf.mxu0
        %v3514 = vadd.f32 0.0, %v3513
        %v3515 = vpop.f32.mrf.mxu0
        %v3516 = vadd.f32 0.0, %v3515
        %3517 = vmatprep.mubr.bf16.mxu0 0
        %3518 = vmatmul.mubr.bf16.gmra.mxu0 %v3413
        %v3519 = vpop.f32.mrf.mxu0
        %v3520 = vadd.f32 0.0, %v3519
        %v3521 = vpop.f32.mrf.mxu0
        %v3522 = vadd.f32 0.0, %v3521
        %v3523 = vpop.f32.mrf.mxu0
        %v3524 = vadd.f32 0.0, %v3523
        %v3525 = vpop.f32.mrf.mxu0
        %v3526 = vadd.f32 0.0, %v3525
        %3527 = vdwg.mxu0
        %3528 = vmatprep.subr.bf16.mxu0 0
        %3529 = vmatpush1.bf16.msra.mxu0 0
        %3530 = vmatprep.subr.bf16.mxu0 0
        %3531 = vmatpush1.bf16.msra.mxu0 0
        %3532 = vmatprep.subr.bf16.mxu0 0
        %3533 = vmatpush1.bf16.msra.mxu0 0
        %3534 = vmatprep.subr.bf16.mxu0 0
        %3535 = vmatpush1.bf16.msra.mxu0 0
        %3536 = vmatprep.subr.bf16.mxu0 0
        %3537 = vmatpush1.bf16.msra.mxu0 %v3350
        %3538 = vmatprep.subr.bf16.mxu0 0
        %3539 = vmatpush1.bf16.msra.mxu0 %v3347
        %3540 = vmatprep.subr.bf16.mxu0 0
        %3541 = vmatpush1.bf16.msra.mxu0 %v3344
        %3542 = vmatprep.subr.bf16.mxu0 0
        %3543 = vmatpush1.bf16.msra.mxu0 %v3341
        %3544 = vmatprep.subr.bf16.mxu0 0
        %3545 = vmatpush2.bf16.msra.mxu0 0
        %3546 = vmatprep.subr.bf16.mxu0 0
        %3547 = vmatpush2.bf16.msra.mxu0 0
        %3548 = vmatprep.subr.bf16.mxu0 0
        %3549 = vmatpush2.bf16.msra.mxu0 0
        %3550 = vmatprep.subr.bf16.mxu0 0
        %3551 = vmatpush2.bf16.msra.mxu0 0
        %3552 = vmatprep.subr.bf16.mxu0 0
        %3553 = vmatpush2.bf16.msra.mxu0 0
        %3554 = vmatprep.subr.bf16.mxu0 0
        %3555 = vmatpush2.bf16.msra.mxu0 0
        %3556 = vmatprep.subr.bf16.mxu0 0
        %3557 = vmatpush2.bf16.msra.mxu0 0
        %3558 = vmatprep.subr.bf16.mxu0 0
        %3559 = vmatpush2.bf16.msra.mxu0 0
        %3560 = vmatprep.mubr.bf16.mxu0 0
        %3561 = vmatmul.mubr.bf16.gmra.mxu0 %v3392
        %v3562 = vpop.f32.mrf.mxu0
        %v3563 = vadd.f32 0.0, %v3562
        %v3564 = vpop.f32.mrf.mxu0
        %v3565 = vpop.f32.mrf.mxu0
        %v3566 = vadd.f32 0.0, %v3565
        %v3567 = vpop.f32.mrf.mxu0
        %3568 = vmatprep.mubr.bf16.mxu0 0
        %3569 = vmatmul.mubr.bf16.gmra.mxu0 %v3395
        %v3570 = vpop.f32.mrf.mxu0
        %v3571 = vadd.f32 0.0, %v3570
        %v3572 = vpop.f32.mrf.mxu0
        %v3573 = vpop.f32.mrf.mxu0
        %v3574 = vadd.f32 0.0, %v3573
        %v3575 = vpop.f32.mrf.mxu0
        %3576 = vmatprep.mubr.bf16.mxu0 0
        %3577 = vmatmul.mubr.bf16.gmra.mxu0 %v3398
        %v3578 = vpop.f32.mrf.mxu0
        %v3579 = vadd.f32 0.0, %v3578
        %v3580 = vpop.f32.mrf.mxu0
        %v3581 = vpop.f32.mrf.mxu0
        %v3582 = vadd.f32 0.0, %v3581
        %v3583 = vpop.f32.mrf.mxu0
        %3584 = vmatprep.mubr.bf16.mxu0 0
        %3585 = vmatmul.mubr.bf16.gmra.mxu0 %v3401
        %v3586 = vpop.f32.mrf.mxu0
        %v3587 = vadd.f32 0.0, %v3586
        %v3588 = vpop.f32.mrf.mxu0
        %v3589 = vpop.f32.mrf.mxu0
        %v3590 = vadd.f32 0.0, %v3589
        %v3591 = vpop.f32.mrf.mxu0
        %3592 = vmatprep.mubr.bf16.mxu0 0
        %3593 = vmatmul.mubr.bf16.gmra.mxu0 %v3404
        %v3594 = vpop.f32.mrf.mxu0
        %v3595 = vadd.f32 0.0, %v3594
        %v3596 = vpop.f32.mrf.mxu0
        %v3597 = vpop.f32.mrf.mxu0
        %v3598 = vadd.f32 0.0, %v3597
        %v3599 = vpop.f32.mrf.mxu0
        %3600 = vmatprep.mubr.bf16.mxu0 0
        %3601 = vmatmul.mubr.bf16.gmra.mxu0 %v3407
        %v3602 = vpop.f32.mrf.mxu0
        %v3603 = vadd.f32 0.0, %v3602
        %v3604 = vpop.f32.mrf.mxu0
        %v3605 = vpop.f32.mrf.mxu0
        %v3606 = vadd.f32 0.0, %v3605
        %v3607 = vpop.f32.mrf.mxu0
        %3608 = vmatprep.mubr.bf16.mxu0 0
        %3609 = vmatmul.mubr.bf16.gmra.mxu0 %v3410
        %v3610 = vpop.f32.mrf.mxu0
        %v3611 = vadd.f32 0.0, %v3610
        %v3612 = vpop.f32.mrf.mxu0
        %v3613 = vpop.f32.mrf.mxu0
        %v3614 = vadd.f32 0.0, %v3613
        %v3615 = vpop.f32.mrf.mxu0
        %3616 = vmatprep.mubr.bf16.mxu0 0
        %3617 = vmatmul.mubr.bf16.gmra.mxu0 %v3413
        %v3618 = vpop.f32.mrf.mxu0
        %v3619 = vadd.f32 0.0, %v3618
        %v3620 = vpop.f32.mrf.mxu0
        %v3621 = vpop.f32.mrf.mxu0
        %v3622 = vadd.f32 0.0, %v3621
        %v3623 = vpop.f32.mrf.mxu0
        %3624 = vdwg.mxu0
        %v3625 = vadd.f32 %v3147, %v3450
        %v3626 = vadd.f32 %v3149, %v3452
        %v3627 = vadd.f32 %v3260, %v3563
        %v3628 = vadd.f32 %v3151, %v3454
        %v3629 = vadd.f32 %v3153, %v3456
        %v3630 = vadd.f32 %v3263, %v3566
        %v3631 = vadd.f32 %v3157, %v3460
        %v3632 = vadd.f32 %v3159, %v3462
        %v3633 = vadd.f32 %v3268, %v3571
        %v3634 = vadd.f32 %v3161, %v3464
        %v3635 = vadd.f32 %v3163, %v3466
        %v3636 = vadd.f32 %v3271, %v3574
        %v3637 = vadd.f32 %v3167, %v3470
        %v3638 = vadd.f32 %v3169, %v3472
        %v3639 = vadd.f32 %v3276, %v3579
        %v3640 = vadd.f32 %v3171, %v3474
        %v3641 = vadd.f32 %v3173, %v3476
        %v3642 = vadd.f32 %v3279, %v3582
        %v3643 = vadd.f32 %v3177, %v3480
        %v3644 = vadd.f32 %v3179, %v3482
        %v3645 = vadd.f32 %v3284, %v3587
        %v3646 = vadd.f32 %v3181, %v3484
        %v3647 = vadd.f32 %v3183, %v3486
        %v3648 = vadd.f32 %v3287, %v3590
        %v3649 = vadd.f32 %v3187, %v3490
        %v3650 = vadd.f32 %v3189, %v3492
        %v3651 = vadd.f32 %v3292, %v3595
        %v3652 = vadd.f32 %v3191, %v3494
        %v3653 = vadd.f32 %v3193, %v3496
        %v3654 = vadd.f32 %v3295, %v3598
        %v3655 = vadd.f32 %v3197, %v3500
        %v3656 = vadd.f32 %v3199, %v3502
        %v3657 = vadd.f32 %v3300, %v3603
        %v3658 = vadd.f32 %v3201, %v3504
        %v3659 = vadd.f32 %v3203, %v3506
        %v3660 = vadd.f32 %v3303, %v3606
        %v3661 = vadd.f32 %v3207, %v3510
        %v3662 = vadd.f32 %v3209, %v3512
        %v3663 = vadd.f32 %v3308, %v3611
        %v3664 = vadd.f32 %v3211, %v3514
        %v3665 = vadd.f32 %v3213, %v3516
        %v3666 = vadd.f32 %v3311, %v3614
        %v3667 = vadd.f32 %v3217, %v3520
        %v3668 = vadd.f32 %v3219, %v3522
        %v3669 = vadd.f32 %v3316, %v3619
        %v3670 = vadd.f32 %v3221, %v3524
        %v3671 = vadd.f32 %v3223, %v3526
        %v3672 = vadd.f32 %v3319, %v3622
        %v3673 = vld [vmem:[%s6] sm:$0xff]
        %v3674 = vld [vmem:[%s6 + $0x8] sm:$0xff]
        %v3675 = vld [vmem:[%s6 + $0x10] sm:$0xff]
        %v3676 = vld [vmem:[%s6 + $0x18] sm:$0xff]
        %v3677 = vld [vmem:[%s6 + $0x20] sm:$0xff]
        %v3678 = vld [vmem:[%s6 + $0x28] sm:$0xff]
        %v3679 = vld [vmem:[%s6 + $0x30] sm:$0xff]
        %v3680 = vld [vmem:[%s6 + $0x38] sm:$0xff]
        %v3681 = vld [vmem:[%s6 + $0x40] sm:$0xff]
        %v3682 = vld [vmem:[%s6 + $0x48] sm:$0xff]
        %v3683 = vld [vmem:[%s6 + $0x50] sm:$0xff]
        %v3684 = vld [vmem:[%s6 + $0x58] sm:$0xff]
        %v3685 = vld [vmem:[%s6 + $0x60] sm:$0xff]
        %v3686 = vld [vmem:[%s6 + $0x68] sm:$0xff]
        %v3687 = vld [vmem:[%s6 + $0x70] sm:$0xff]
        %v3688 = vld [vmem:[%s6 + $0x78] sm:$0xff]
        %3690 = vset.pattern.permute.xlu0 0
        %3691 = vperm.xlu0 %3690, %v3673
        %v3692 = vpop.permute.xlu0 %3691
        %3695 = vset.pattern.permute.xlu0 0
        %3696 = vperm.xlu0 %3695, %v3674
        %v3697 = vpop.permute.xlu0 %3696
        %3700 = vset.pattern.permute.xlu0 0
        %3701 = vperm.xlu0 %3700, %v3675
        %v3702 = vpop.permute.xlu0 %3701
        %3705 = vset.pattern.permute.xlu0 0
        %3706 = vperm.xlu0 %3705, %v3676
        %v3707 = vpop.permute.xlu0 %3706
        %3710 = vset.pattern.permute.xlu0 0
        %3711 = vperm.xlu0 %3710, %v3677
        %v3712 = vpop.permute.xlu0 %3711
        %3715 = vset.pattern.permute.xlu0 0
        %3716 = vperm.xlu0 %3715, %v3678
        %v3717 = vpop.permute.xlu0 %3716
        %3720 = vset.pattern.permute.xlu0 0
        %3721 = vperm.xlu0 %3720, %v3679
        %v3722 = vpop.permute.xlu0 %3721
        %3725 = vset.pattern.permute.xlu0 0
        %3726 = vperm.xlu0 %3725, %v3680
        %v3727 = vpop.permute.xlu0 %3726
        %3730 = vset.pattern.permute.xlu0 0
        %3731 = vperm.xlu0 %3730, %v3681
        %v3732 = vpop.permute.xlu0 %3731
        %3735 = vset.pattern.permute.xlu0 0
        %3736 = vperm.xlu0 %3735, %v3682
        %v3737 = vpop.permute.xlu0 %3736
        %3740 = vset.pattern.permute.xlu0 0
        %3741 = vperm.xlu0 %3740, %v3683
        %v3742 = vpop.permute.xlu0 %3741
        %3745 = vset.pattern.permute.xlu0 0
        %3746 = vperm.xlu0 %3745, %v3684
        %v3747 = vpop.permute.xlu0 %3746
        %3750 = vset.pattern.permute.xlu0 0
        %3751 = vperm.xlu0 %3750, %v3685
        %v3752 = vpop.permute.xlu0 %3751
        %3755 = vset.pattern.permute.xlu0 0
        %3756 = vperm.xlu0 %3755, %v3686
        %v3757 = vpop.permute.xlu0 %3756
        %3760 = vset.pattern.permute.xlu0 0
        %3761 = vperm.xlu0 %3760, %v3687
        %v3762 = vpop.permute.xlu0 %3761
        %3765 = vset.pattern.permute.xlu0 0
        %3766 = vperm.xlu0 %3765, %v3688
        %v3767 = vpop.permute.xlu0 %3766
        %v3769 = vadd.f32 %v3625, %v3692
        %v3770 = vadd.f32 %v3626, %v3692
        %v3771 = vadd.f32 %v3627, %v3692
        %v3772 = vadd.f32 %v3628, %v3697
        %v3773 = vadd.f32 %v3629, %v3697
        %v3774 = vadd.f32 %v3630, %v3697
        %v3775 = vadd.f32 %v3631, %v3702
        %v3776 = vadd.f32 %v3632, %v3702
        %v3777 = vadd.f32 %v3633, %v3702
        %v3778 = vadd.f32 %v3634, %v3707
        %v3779 = vadd.f32 %v3635, %v3707
        %v3780 = vadd.f32 %v3636, %v3707
        %v3781 = vadd.f32 %v3637, %v3712
        %v3782 = vadd.f32 %v3638, %v3712
        %v3783 = vadd.f32 %v3639, %v3712
        %v3784 = vadd.f32 %v3640, %v3717
        %v3785 = vadd.f32 %v3641, %v3717
        %v3786 = vadd.f32 %v3642, %v3717
        %v3787 = vadd.f32 %v3643, %v3722
        %v3788 = vadd.f32 %v3644, %v3722
        %v3789 = vadd.f32 %v3645, %v3722
        %v3790 = vadd.f32 %v3646, %v3727
        %v3791 = vadd.f32 %v3647, %v3727
        %v3792 = vadd.f32 %v3648, %v3727
        %v3793 = vadd.f32 %v3649, %v3732
        %v3794 = vadd.f32 %v3650, %v3732
        %v3795 = vadd.f32 %v3651, %v3732
        %v3796 = vadd.f32 %v3652, %v3737
        %v3797 = vadd.f32 %v3653, %v3737
        %v3798 = vadd.f32 %v3654, %v3737
        %v3799 = vadd.f32 %v3655, %v3742
        %v3800 = vadd.f32 %v3656, %v3742
        %v3801 = vadd.f32 %v3657, %v3742
        %v3802 = vadd.f32 %v3658, %v3747
        %v3803 = vadd.f32 %v3659, %v3747
        %v3804 = vadd.f32 %v3660, %v3747
        %v3805 = vadd.f32 %v3661, %v3752
        %v3806 = vadd.f32 %v3662, %v3752
        %v3807 = vadd.f32 %v3663, %v3752
        %v3808 = vadd.f32 %v3664, %v3757
        %v3809 = vadd.f32 %v3665, %v3757
        %v3810 = vadd.f32 %v3666, %v3757
        %v3811 = vadd.f32 %v3667, %v3762
        %v3812 = vadd.f32 %v3668, %v3762
        %v3813 = vadd.f32 %v3669, %v3762
        %v3814 = vadd.f32 %v3670, %v3767
        %v3815 = vadd.f32 %v3671, %v3767
        %v3816 = vadd.f32 %v3672, %v3767
        %v3817 = vadd.f32 %v3769, %v1867
        %v3818 = vadd.f32 %v3770, %v1869
        %v3819 = vadd.f32 %v3771, %v2220
        %v3820 = vadd.f32 %v3772, %v1871
        %v3821 = vadd.f32 %v3773, %v1873
        %v3822 = vadd.f32 %v3774, %v2223
        %v3823 = vadd.f32 %v3775, %v1877
        %v3824 = vadd.f32 %v3776, %v1879
        %v3825 = vadd.f32 %v3777, %v2228
        %v3826 = vadd.f32 %v3778, %v1881
        %v3827 = vadd.f32 %v3779, %v1883
        %v3828 = vadd.f32 %v3780, %v2231
        %v3829 = vadd.f32 %v3781, %v1887
        %v3830 = vadd.f32 %v3782, %v1889
        %v3831 = vadd.f32 %v3783, %v2236
        %v3832 = vadd.f32 %v3784, %v1891
        %v3833 = vadd.f32 %v3785, %v1893
        %v3834 = vadd.f32 %v3786, %v2239
        %v3835 = vadd.f32 %v3787, %v1897
        %v3836 = vadd.f32 %v3788, %v1899
        %v3837 = vadd.f32 %v3789, %v2244
        %v3838 = vadd.f32 %v3790, %v1901
        %v3839 = vadd.f32 %v3791, %v1903
        %v3840 = vadd.f32 %v3792, %v2247
        %v3841 = vadd.f32 %v3793, %v1907
        %v3842 = vadd.f32 %v3794, %v1909
        %v3843 = vadd.f32 %v3795, %v2252
        %v3844 = vadd.f32 %v3796, %v1911
        %v3845 = vadd.f32 %v3797, %v1913
        %v3846 = vadd.f32 %v3798, %v2255
        %v3847 = vadd.f32 %v3799, %v1917
        %v3848 = vadd.f32 %v3800, %v1919
        %v3849 = vadd.f32 %v3801, %v2260
        %v3850 = vadd.f32 %v3802, %v1921
        %v3851 = vadd.f32 %v3803, %v1923
        %v3852 = vadd.f32 %v3804, %v2263
        %v3853 = vadd.f32 %v3805, %v1927
        %v3854 = vadd.f32 %v3806, %v1929
        %v3855 = vadd.f32 %v3807, %v2268
        %v3856 = vadd.f32 %v3808, %v1931
        %v3857 = vadd.f32 %v3809, %v1933
        %v3858 = vadd.f32 %v3810, %v2271
        %v3859 = vadd.f32 %v3811, %v1937
        %v3860 = vadd.f32 %v3812, %v1939
        %v3861 = vadd.f32 %v3813, %v2276
        %v3862 = vadd.f32 %v3814, %v1941
        %v3863 = vadd.f32 %v3815, %v1943
        %v3864 = vadd.f32 %v3816, %v2279
        %v3865 = vtanh.pop %v3817
        %v3866 = vtanh.pop %v3818
        %v3867 = vtanh.pop %v3819
        %v3868 = vtanh.pop %v3820
        %v3869 = vtanh.pop %v3821
        %v3870 = vtanh.pop %v3822
        %v3871 = vtanh.pop %v3823
        %v3872 = vtanh.pop %v3824
        %v3873 = vtanh.pop %v3825
        %v3874 = vtanh.pop %v3826
        %v3875 = vtanh.pop %v3827
        %v3876 = vtanh.pop %v3828
        %v3877 = vtanh.pop %v3829
        %v3878 = vtanh.pop %v3830
        %v3879 = vtanh.pop %v3831
        %v3880 = vtanh.pop %v3832
        %v3881 = vtanh.pop %v3833
        %v3882 = vtanh.pop %v3834
        %v3883 = vtanh.pop %v3835
        %v3884 = vtanh.pop %v3836
        %v3885 = vtanh.pop %v3837
        %v3886 = vtanh.pop %v3838
        %v3887 = vtanh.pop %v3839
        %v3888 = vtanh.pop %v3840
        %v3889 = vxor.u32 %v3841, 2147483648
        %v3890 = vxor.u32 %v3842, 2147483648
        %v3891 = vxor.u32 %v3843, 2147483648
        %v3892 = vxor.u32 %v3844, 2147483648
        %v3893 = vxor.u32 %v3845, 2147483648
        %v3894 = vxor.u32 %v3846, 2147483648
        %v3895 = vxor.u32 %v3847, 2147483648
        %v3896 = vxor.u32 %v3848, 2147483648
        %v3897 = vxor.u32 %v3849, 2147483648
        %v3898 = vxor.u32 %v3850, 2147483648
        %v3899 = vxor.u32 %v3851, 2147483648
        %v3900 = vxor.u32 %v3852, 2147483648
        %v3901 = vxor.u32 %v3853, 2147483648
        %v3902 = vxor.u32 %v3854, 2147483648
        %v3903 = vxor.u32 %v3855, 2147483648
        %v3904 = vxor.u32 %v3856, 2147483648
        %v3905 = vxor.u32 %v3857, 2147483648
        %v3906 = vxor.u32 %v3858, 2147483648
        %v3907 = vxor.u32 %v3859, 2147483648
        %v3908 = vxor.u32 %v3860, 2147483648
        %v3909 = vxor.u32 %v3861, 2147483648
        %v3910 = vxor.u32 %v3862, 2147483648
        %v3911 = vxor.u32 %v3863, 2147483648
        %v3912 = vxor.u32 %v3864, 2147483648
        %v3913 = vmul.f32 %v3889, 1.442695
        %v3914 = vpow.pop %v3913
        %v3915 = vmul.f32 %v3890, 1.442695
        %v3916 = vpow.pop %v3915
        %v3917 = vmul.f32 %v3891, 1.442695
        %v3918 = vpow.pop %v3917
        %v3919 = vmul.f32 %v3892, 1.442695
        %v3920 = vpow.pop %v3919
        %v3921 = vmul.f32 %v3893, 1.442695
        %v3922 = vpow.pop %v3921
        %v3923 = vmul.f32 %v3894, 1.442695
        %v3924 = vpow.pop %v3923
        %v3925 = vmul.f32 %v3895, 1.442695
        %v3926 = vpow.pop %v3925
        %v3927 = vmul.f32 %v3896, 1.442695
        %v3928 = vpow.pop %v3927
        %v3929 = vmul.f32 %v3897, 1.442695
        %v3930 = vpow.pop %v3929
        %v3931 = vmul.f32 %v3898, 1.442695
        %v3932 = vpow.pop %v3931
        %v3933 = vmul.f32 %v3899, 1.442695
        %v3934 = vpow.pop %v3933
        %v3935 = vmul.f32 %v3900, 1.442695
        %v3936 = vpow.pop %v3935
        %v3937 = vmul.f32 %v3901, 1.442695
        %v3938 = vpow.pop %v3937
        %v3939 = vmul.f32 %v3902, 1.442695
        %v3940 = vpow.pop %v3939
        %v3941 = vmul.f32 %v3903, 1.442695
        %v3942 = vpow.pop %v3941
        %v3943 = vmul.f32 %v3904, 1.442695
        %v3944 = vpow.pop %v3943
        %v3945 = vmul.f32 %v3905, 1.442695
        %v3946 = vpow.pop %v3945
        %v3947 = vmul.f32 %v3906, 1.442695
        %v3948 = vpow.pop %v3947
        %v3949 = vmul.f32 %v3907, 1.442695
        %v3950 = vpow.pop %v3949
        %v3951 = vmul.f32 %v3908, 1.442695
        %v3952 = vpow.pop %v3951
        %v3953 = vmul.f32 %v3909, 1.442695
        %v3954 = vpow.pop %v3953
        %v3955 = vmul.f32 %v3910, 1.442695
        %v3956 = vpow.pop %v3955
        %v3957 = vmul.f32 %v3911, 1.442695
        %v3958 = vpow.pop %v3957
        %v3959 = vmul.f32 %v3912, 1.442695
        %v3960 = vpow.pop %v3959
        %v3961 = vadd.f32 %v3914, 1.0
        %v3962 = vadd.f32 %v3916, 1.0
        %v3963 = vadd.f32 %v3918, 1.0
        %v3964 = vadd.f32 %v3920, 1.0
        %v3965 = vadd.f32 %v3922, 1.0
        %v3966 = vadd.f32 %v3924, 1.0
        %v3967 = vadd.f32 %v3926, 1.0
        %v3968 = vadd.f32 %v3928, 1.0
        %v3969 = vadd.f32 %v3930, 1.0
        %v3970 = vadd.f32 %v3932, 1.0
        %v3971 = vadd.f32 %v3934, 1.0
        %v3972 = vadd.f32 %v3936, 1.0
        %v3973 = vadd.f32 %v3938, 1.0
        %v3974 = vadd.f32 %v3940, 1.0
        %v3975 = vadd.f32 %v3942, 1.0
        %v3976 = vadd.f32 %v3944, 1.0
        %v3977 = vadd.f32 %v3946, 1.0
        %v3978 = vadd.f32 %v3948, 1.0
        %v3979 = vadd.f32 %v3950, 1.0
        %v3980 = vadd.f32 %v3952, 1.0
        %v3981 = vadd.f32 %v3954, 1.0
        %v3982 = vadd.f32 %v3956, 1.0
        %v3983 = vadd.f32 %v3958, 1.0
        %v3984 = vadd.f32 %v3960, 1.0
        %v3985 = vrcp.pop %v3961
        %v3986 = vmul.f32 1.0, %v3985
        %v3987 = vrcp.pop %v3962
        %v3988 = vmul.f32 1.0, %v3987
        %v3989 = vrcp.pop %v3963
        %v3990 = vmul.f32 1.0, %v3989
        %v3991 = vrcp.pop %v3964
        %v3992 = vmul.f32 1.0, %v3991
        %v3993 = vrcp.pop %v3965
        %v3994 = vmul.f32 1.0, %v3993
        %v3995 = vrcp.pop %v3966
        %v3996 = vmul.f32 1.0, %v3995
        %v3997 = vrcp.pop %v3967
        %v3998 = vmul.f32 1.0, %v3997
        %v3999 = vrcp.pop %v3968
        %v4000 = vmul.f32 1.0, %v3999
        %v4001 = vrcp.pop %v3969
        %v4002 = vmul.f32 1.0, %v4001
        %v4003 = vrcp.pop %v3970
        %v4004 = vmul.f32 1.0, %v4003
        %v4005 = vrcp.pop %v3971
        %v4006 = vmul.f32 1.0, %v4005
        %v4007 = vrcp.pop %v3972
        %v4008 = vmul.f32 1.0, %v4007
        %v4009 = vrcp.pop %v3973
        %v4010 = vmul.f32 1.0, %v4009
        %v4011 = vrcp.pop %v3974
        %v4012 = vmul.f32 1.0, %v4011
        %v4013 = vrcp.pop %v3975
        %v4014 = vmul.f32 1.0, %v4013
        %v4015 = vrcp.pop %v3976
        %v4016 = vmul.f32 1.0, %v4015
        %v4017 = vrcp.pop %v3977
        %v4018 = vmul.f32 1.0, %v4017
        %v4019 = vrcp.pop %v3978
        %v4020 = vmul.f32 1.0, %v4019
        %v4021 = vrcp.pop %v3979
        %v4022 = vmul.f32 1.0, %v4021
        %v4023 = vrcp.pop %v3980
        %v4024 = vmul.f32 1.0, %v4023
        %v4025 = vrcp.pop %v3981
        %v4026 = vmul.f32 1.0, %v4025
        %v4027 = vrcp.pop %v3982
        %v4028 = vmul.f32 1.0, %v4027
        %v4029 = vrcp.pop %v3983
        %v4030 = vmul.f32 1.0, %v4029
        %v4031 = vrcp.pop %v3984
        %v4032 = vmul.f32 1.0, %v4031
        %v4033 = vmul.f32 %v3865, %v3986
        %v4034 = vmul.f32 %v3866, %v3988
        %v4035 = vmul.f32 %v3867, %v3990
        %v4036 = vmul.f32 %v3868, %v3992
        %v4037 = vmul.f32 %v3869, %v3994
        %v4038 = vmul.f32 %v3870, %v3996
        %v4039 = vmul.f32 %v3871, %v3998
        %v4040 = vmul.f32 %v3872, %v4000
        %v4041 = vmul.f32 %v3873, %v4002
        %v4042 = vmul.f32 %v3874, %v4004
        %v4043 = vmul.f32 %v3875, %v4006
        %v4044 = vmul.f32 %v3876, %v4008
        %v4045 = vmul.f32 %v3877, %v4010
        %v4046 = vmul.f32 %v3878, %v4012
        %v4047 = vmul.f32 %v3879, %v4014
        %v4048 = vmul.f32 %v3880, %v4016
        %v4049 = vmul.f32 %v3881, %v4018
        %v4050 = vmul.f32 %v3882, %v4020
        %v4051 = vmul.f32 %v3883, %v4022
        %v4052 = vmul.f32 %v3884, %v4024
        %v4053 = vmul.f32 %v3885, %v4026
        %v4054 = vmul.f32 %v3886, %v4028
        %v4055 = vmul.f32 %v3887, %v4030
        %v4056 = vmul.f32 %v3888, %v4032
        %v4057 = vld [vmem:[%s9] sm:$0xf]
        %v4058 = vld [vmem:[%s9 + $0x4] sm:$0xf]
        %v4059 = vld [vmem:[%s9 + $0x8] sm:$0xf]
        %v4060 = vld [vmem:[%s9 + $0xc] sm:$0xf]
        %v4061 = vld [vmem:[%s9 + $0x10] sm:$0xf]
        %v4062 = vld [vmem:[%s9 + $0x14] sm:$0xf]
        %v4063 = vld [vmem:[%s9 + $0x18] sm:$0xf]
        %v4064 = vld [vmem:[%s9 + $0x1c] sm:$0xf]
        %v4065 = vld [vmem:[%s9 + $0x20] sm:$0xf]
        %v4066 = vld [vmem:[%s9 + $0x24] sm:$0xf]
        %v4067 = vld [vmem:[%s9 + $0x28] sm:$0xf]
        %v4068 = vld [vmem:[%s9 + $0x2c] sm:$0xf]
        %v4069 = vld [vmem:[%s9 + $0x30] sm:$0xf]
        %v4070 = vld [vmem:[%s9 + $0x34] sm:$0xf]
        %v4071 = vld [vmem:[%s9 + $0x38] sm:$0xf]
        %v4072 = vld [vmem:[%s9 + $0x3c] sm:$0xf]
        %v4073 = vpack.c.bf16 %v4036, %v4033
        %v4074 = vpack.c.bf16 %v4037, %v4034
        %v4075 = vpack.c.bf16 %v4038, %v4035
        %v4076 = vpack.c.bf16 %v4042, %v4039
        %v4077 = vpack.c.bf16 %v4043, %v4040
        %v4078 = vpack.c.bf16 %v4044, %v4041
        %v4079 = vpack.c.bf16 %v4048, %v4045
        %v4080 = vpack.c.bf16 %v4049, %v4046
        %v4081 = vpack.c.bf16 %v4050, %v4047
        %v4082 = vpack.c.bf16 %v4054, %v4051
        %v4083 = vpack.c.bf16 %v4055, %v4052
        %v4084 = vpack.c.bf16 %v4056, %v4053
        %v4085 = vld [vmem:[%s10] sm:$0xff]
        %v4086 = vld [vmem:[%s10 + $0x8] sm:$0xff]
        %v4087 = vld [vmem:[%s10 + $0x10] sm:$0xff]
        %v4088 = vld [vmem:[%s10 + $0x18] sm:$0xff]
        %v4089 = vld [vmem:[%s10 + $0x20] sm:$0xff]
        %v4090 = vld [vmem:[%s10 + $0x28] sm:$0xff]
        %v4091 = vld [vmem:[%s10 + $0x30] sm:$0xff]
        %v4092 = vld [vmem:[%s10 + $0x38] sm:$0xff]
        %v4093 = vld [vmem:[%s10 + $0x40] sm:$0xff]
        %v4094 = vld [vmem:[%s10 + $0x48] sm:$0xff]
        %v4095 = vld [vmem:[%s10 + $0x50] sm:$0xff]
        %v4096 = vld [vmem:[%s10 + $0x58] sm:$0xff]
        %v4097 = vld [vmem:[%s10 + $0x60] sm:$0xff]
        %v4098 = vld [vmem:[%s10 + $0x68] sm:$0xff]
        %v4099 = vld [vmem:[%s10 + $0x70] sm:$0xff]
        %v4100 = vld [vmem:[%s10 + $0x78] sm:$0xff]
        %4102 = vset.pattern.permute.xlu0 0
        %4103 = vperm.xlu0 %4102, %v4085
        %v4104 = vpop.permute.xlu0 %4103
        %4107 = vset.pattern.permute.xlu0 0
        %4108 = vperm.xlu0 %4107, %v4086
        %v4109 = vpop.permute.xlu0 %4108
        %4112 = vset.pattern.permute.xlu0 0
        %4113 = vperm.xlu0 %4112, %v4087
        %v4114 = vpop.permute.xlu0 %4113
        %4117 = vset.pattern.permute.xlu0 0
        %4118 = vperm.xlu0 %4117, %v4088
        %v4119 = vpop.permute.xlu0 %4118
        %4122 = vset.pattern.permute.xlu0 0
        %4123 = vperm.xlu0 %4122, %v4089
        %v4124 = vpop.permute.xlu0 %4123
        %4127 = vset.pattern.permute.xlu0 0
        %4128 = vperm.xlu0 %4127, %v4090
        %v4129 = vpop.permute.xlu0 %4128
        %4132 = vset.pattern.permute.xlu0 0
        %4133 = vperm.xlu0 %4132, %v4091
        %v4134 = vpop.permute.xlu0 %4133
        %4137 = vset.pattern.permute.xlu0 0
        %4138 = vperm.xlu0 %4137, %v4092
        %v4139 = vpop.permute.xlu0 %4138
        %4142 = vset.pattern.permute.xlu0 0
        %4143 = vperm.xlu0 %4142, %v4093
        %v4144 = vpop.permute.xlu0 %4143
        %4147 = vset.pattern.permute.xlu0 0
        %4148 = vperm.xlu0 %4147, %v4094
        %v4149 = vpop.permute.xlu0 %4148
        %4152 = vset.pattern.permute.xlu0 0
        %4153 = vperm.xlu0 %4152, %v4095
        %v4154 = vpop.permute.xlu0 %4153
        %4157 = vset.pattern.permute.xlu0 0
        %4158 = vperm.xlu0 %4157, %v4096
        %v4159 = vpop.permute.xlu0 %4158
        %4162 = vset.pattern.permute.xlu0 0
        %4163 = vperm.xlu0 %4162, %v4097
        %v4164 = vpop.permute.xlu0 %4163
        %4167 = vset.pattern.permute.xlu0 0
        %4168 = vperm.xlu0 %4167, %v4098
        %v4169 = vpop.permute.xlu0 %4168
        %4172 = vset.pattern.permute.xlu0 0
        %4173 = vperm.xlu0 %4172, %v4099
        %v4174 = vpop.permute.xlu0 %4173
        %4177 = vset.pattern.permute.xlu0 0
        %4178 = vperm.xlu0 %4177, %v4100
        %v4179 = vpop.permute.xlu0 %4178
        %v4197 = vunpack.c.l.b16 %v4057
        %v4198 = vunpack.c.l.b16 %v4058
        %v4199 = vunpack.c.l.b16 %v4059
        %v4200 = vunpack.c.l.b16 %v4060
        %v4201 = vunpack.c.l.b16 %v4061
        %v4202 = vunpack.c.l.b16 %v4062
        %v4203 = vunpack.c.l.b16 %v4063
        %v4204 = vunpack.c.l.b16 %v4064
        %v4205 = vunpack.c.l.b16 %v4065
        %v4206 = vunpack.c.l.b16 %v4066
        %v4207 = vunpack.c.l.b16 %v4067
        %v4208 = vunpack.c.l.b16 %v4068
        %v4209 = vunpack.c.l.b16 %v4069
        %v4210 = vunpack.c.l.b16 %v4070
        %v4211 = vunpack.c.l.b16 %v4071
        %v4212 = vunpack.c.l.b16 %v4072
        %v4213 = vpack.c.b16 %v4198, %v4197
        %v4214 = vpack.c.b16 %v4200, %v4199
        %v4215 = vpack.c.b16 %v4202, %v4201
        %v4216 = vpack.c.b16 %v4204, %v4203
        %v4217 = vpack.c.b16 %v4206, %v4205
        %v4218 = vpack.c.b16 %v4208, %v4207
        %v4219 = vpack.c.b16 %v4210, %v4209
        %v4220 = vpack.c.b16 %v4212, %v4211
        %v4222 = vsel %vm2813, %v4213, 0
        %v4225 = vsel %vm2813, %v4214, 0
        %v4228 = vsel %vm2813, %v4215, 0
        %v4231 = vsel %vm2813, %v4216, 0
        %v4234 = vsel %vm2813, %v4217, 0
        %v4237 = vsel %vm2813, %v4218, 0
        %v4240 = vsel %vm2813, %v4219, 0
        %v4243 = vsel %vm2813, %v4220, 0
        %4245 = vmatprep.subr.bf16.mxu0 0
        %4246 = vmatpush1.bf16.msra.mxu0 0
        %4247 = vmatprep.subr.bf16.mxu0 0
        %4248 = vmatpush1.bf16.msra.mxu0 0
        %4249 = vmatprep.subr.bf16.mxu0 0
        %4250 = vmatpush1.bf16.msra.mxu0 0
        %4251 = vmatprep.subr.bf16.mxu0 0
        %4252 = vmatpush1.bf16.msra.mxu0 0
        %4253 = vmatprep.subr.bf16.mxu0 %v4083
        %4254 = vmatpush1.bf16.msra.mxu0 %v4082
        %4255 = vmatprep.subr.bf16.mxu0 %v4080
        %4256 = vmatpush1.bf16.msra.mxu0 %v4079
        %4257 = vmatprep.subr.bf16.mxu0 %v4077
        %4258 = vmatpush1.bf16.msra.mxu0 %v4076
        %4259 = vmatprep.subr.bf16.mxu0 %v4074
        %4260 = vmatpush1.bf16.msra.mxu0 %v4073
        %4261 = vmatprep.subr.bf16.mxu0 0
        %4262 = vmatpush2.bf16.msra.mxu0 0
        %4263 = vmatprep.subr.bf16.mxu0 0
        %4264 = vmatpush2.bf16.msra.mxu0 0
        %4265 = vmatprep.subr.bf16.mxu0 0
        %4266 = vmatpush2.bf16.msra.mxu0 0
        %4267 = vmatprep.subr.bf16.mxu0 0
        %4268 = vmatpush2.bf16.msra.mxu0 0
        %4269 = vmatprep.subr.bf16.mxu0 0
        %4270 = vmatpush2.bf16.msra.mxu0 0
        %4271 = vmatprep.subr.bf16.mxu0 0
        %4272 = vmatpush2.bf16.msra.mxu0 0
        %4273 = vmatprep.subr.bf16.mxu0 0
        %4274 = vmatpush2.bf16.msra.mxu0 0
        %4275 = vmatprep.subr.bf16.mxu0 0
        %4276 = vmatpush2.bf16.msra.mxu0 0
        %4277 = vmatprep.mubr.bf16.mxu0 0
        %4278 = vmatmul.mubr.bf16.gmra.mxu0 %v4222
        %v4279 = vpop.f32.mrf.mxu0
        %v4280 = vadd.f32 %v4104, %v4279
        %v4281 = vpop.f32.mrf.mxu0
        %v4282 = vadd.f32 %v4104, %v4281
        %v4283 = vpop.f32.mrf.mxu0
        %v4284 = vadd.f32 %v4109, %v4283
        %v4285 = vpop.f32.mrf.mxu0
        %v4286 = vadd.f32 %v4109, %v4285
        %4287 = vmatprep.mubr.bf16.mxu0 0
        %4288 = vmatmul.mubr.bf16.gmra.mxu0 %v4225
        %v4289 = vpop.f32.mrf.mxu0
        %v4290 = vadd.f32 %v4114, %v4289
        %v4291 = vpop.f32.mrf.mxu0
        %v4292 = vadd.f32 %v4114, %v4291
        %v4293 = vpop.f32.mrf.mxu0
        %v4294 = vadd.f32 %v4119, %v4293
        %v4295 = vpop.f32.mrf.mxu0
        %v4296 = vadd.f32 %v4119, %v4295
        %4297 = vmatprep.mubr.bf16.mxu0 0
        %4298 = vmatmul.mubr.bf16.gmra.mxu0 %v4228
        %v4299 = vpop.f32.mrf.mxu0
        %v4300 = vadd.f32 %v4124, %v4299
        %v4301 = vpop.f32.mrf.mxu0
        %v4302 = vadd.f32 %v4124, %v4301
        %v4303 = vpop.f32.mrf.mxu0
        %v4304 = vadd.f32 %v4129, %v4303
        %v4305 = vpop.f32.mrf.mxu0
        %v4306 = vadd.f32 %v4129, %v4305
        %4307 = vmatprep.mubr.bf16.mxu0 0
        %4308 = vmatmul.mubr.bf16.gmra.mxu0 %v4231
        %v4309 = vpop.f32.mrf.mxu0
        %v4310 = vadd.f32 %v4134, %v4309
        %v4311 = vpop.f32.mrf.mxu0
        %v4312 = vadd.f32 %v4134, %v4311
        %v4313 = vpop.f32.mrf.mxu0
        %v4314 = vadd.f32 %v4139, %v4313
        %v4315 = vpop.f32.mrf.mxu0
        %v4316 = vadd.f32 %v4139, %v4315
        %4317 = vmatprep.mubr.bf16.mxu0 0
        %4318 = vmatmul.mubr.bf16.gmra.mxu0 %v4234
        %v4319 = vpop.f32.mrf.mxu0
        %v4320 = vadd.f32 %v4144, %v4319
        %v4321 = vpop.f32.mrf.mxu0
        %v4322 = vadd.f32 %v4144, %v4321
        %v4323 = vpop.f32.mrf.mxu0
        %v4324 = vadd.f32 %v4149, %v4323
        %v4325 = vpop.f32.mrf.mxu0
        %v4326 = vadd.f32 %v4149, %v4325
        %4327 = vmatprep.mubr.bf16.mxu0 0
        %4328 = vmatmul.mubr.bf16.gmra.mxu0 %v4237
        %v4329 = vpop.f32.mrf.mxu0
        %v4330 = vadd.f32 %v4154, %v4329
        %v4331 = vpop.f32.mrf.mxu0
        %v4332 = vadd.f32 %v4154, %v4331
        %v4333 = vpop.f32.mrf.mxu0
        %v4334 = vadd.f32 %v4159, %v4333
        %v4335 = vpop.f32.mrf.mxu0
        %v4336 = vadd.f32 %v4159, %v4335
        %4337 = vmatprep.mubr.bf16.mxu0 0
        %4338 = vmatmul.mubr.bf16.gmra.mxu0 %v4240
        %v4339 = vpop.f32.mrf.mxu0
        %v4340 = vadd.f32 %v4164, %v4339
        %v4341 = vpop.f32.mrf.mxu0
        %v4342 = vadd.f32 %v4164, %v4341
        %v4343 = vpop.f32.mrf.mxu0
        %v4344 = vadd.f32 %v4169, %v4343
        %v4345 = vpop.f32.mrf.mxu0
        %v4346 = vadd.f32 %v4169, %v4345
        %4347 = vmatprep.mubr.bf16.mxu0 0
        %4348 = vmatmul.mubr.bf16.gmra.mxu0 %v4243
        %v4349 = vpop.f32.mrf.mxu0
        %v4350 = vadd.f32 %v4174, %v4349
        %v4351 = vpop.f32.mrf.mxu0
        %v4352 = vadd.f32 %v4174, %v4351
        %v4353 = vpop.f32.mrf.mxu0
        %v4354 = vadd.f32 %v4179, %v4353
        %v4355 = vpop.f32.mrf.mxu0
        %v4356 = vadd.f32 %v4179, %v4355
        %4357 = vdwg.mxu0
        %4358 = vmatprep.subr.bf16.mxu0 0
        %4359 = vmatpush1.bf16.msra.mxu0 0
        %4360 = vmatprep.subr.bf16.mxu0 0
        %4361 = vmatpush1.bf16.msra.mxu0 0
        %4362 = vmatprep.subr.bf16.mxu0 0
        %4363 = vmatpush1.bf16.msra.mxu0 0
        %4364 = vmatprep.subr.bf16.mxu0 0
        %4365 = vmatpush1.bf16.msra.mxu0 0
        %4366 = vmatprep.subr.bf16.mxu0 0
        %4367 = vmatpush1.bf16.msra.mxu0 %v4084
        %4368 = vmatprep.subr.bf16.mxu0 0
        %4369 = vmatpush1.bf16.msra.mxu0 %v4081
        %4370 = vmatprep.subr.bf16.mxu0 0
        %4371 = vmatpush1.bf16.msra.mxu0 %v4078
        %4372 = vmatprep.subr.bf16.mxu0 0
        %4373 = vmatpush1.bf16.msra.mxu0 %v4075
        %4374 = vmatprep.subr.bf16.mxu0 0
        %4375 = vmatpush2.bf16.msra.mxu0 0
        %4376 = vmatprep.subr.bf16.mxu0 0
        %4377 = vmatpush2.bf16.msra.mxu0 0
        %4378 = vmatprep.subr.bf16.mxu0 0
        %4379 = vmatpush2.bf16.msra.mxu0 0
        %4380 = vmatprep.subr.bf16.mxu0 0
        %4381 = vmatpush2.bf16.msra.mxu0 0
        %4382 = vmatprep.subr.bf16.mxu0 0
        %4383 = vmatpush2.bf16.msra.mxu0 0
        %4384 = vmatprep.subr.bf16.mxu0 0
        %4385 = vmatpush2.bf16.msra.mxu0 0
        %4386 = vmatprep.subr.bf16.mxu0 0
        %4387 = vmatpush2.bf16.msra.mxu0 0
        %4388 = vmatprep.subr.bf16.mxu0 0
        %4389 = vmatpush2.bf16.msra.mxu0 0
        %4390 = vmatprep.mubr.bf16.mxu0 0
        %4391 = vmatmul.mubr.bf16.gmra.mxu0 %v4222
        %v4392 = vpop.f32.mrf.mxu0
        %v4393 = vadd.f32 %v4104, %v4392
        %v4394 = vpop.f32.mrf.mxu0
        %v4395 = vpop.f32.mrf.mxu0
        %v4396 = vadd.f32 %v4109, %v4395
        %v4397 = vpop.f32.mrf.mxu0
        %4398 = vmatprep.mubr.bf16.mxu0 0
        %4399 = vmatmul.mubr.bf16.gmra.mxu0 %v4225
        %v4400 = vpop.f32.mrf.mxu0
        %v4401 = vadd.f32 %v4114, %v4400
        %v4402 = vpop.f32.mrf.mxu0
        %v4403 = vpop.f32.mrf.mxu0
        %v4404 = vadd.f32 %v4119, %v4403
        %v4405 = vpop.f32.mrf.mxu0
        %4406 = vmatprep.mubr.bf16.mxu0 0
        %4407 = vmatmul.mubr.bf16.gmra.mxu0 %v4228
        %v4408 = vpop.f32.mrf.mxu0
        %v4409 = vadd.f32 %v4124, %v4408
        %v4410 = vpop.f32.mrf.mxu0
        %v4411 = vpop.f32.mrf.mxu0
        %v4412 = vadd.f32 %v4129, %v4411
        %v4413 = vpop.f32.mrf.mxu0
        %4414 = vmatprep.mubr.bf16.mxu0 0
        %4415 = vmatmul.mubr.bf16.gmra.mxu0 %v4231
        %v4416 = vpop.f32.mrf.mxu0
        %v4417 = vadd.f32 %v4134, %v4416
        %v4418 = vpop.f32.mrf.mxu0
        %v4419 = vpop.f32.mrf.mxu0
        %v4420 = vadd.f32 %v4139, %v4419
        %v4421 = vpop.f32.mrf.mxu0
        %4422 = vmatprep.mubr.bf16.mxu0 0
        %4423 = vmatmul.mubr.bf16.gmra.mxu0 %v4234
        %v4424 = vpop.f32.mrf.mxu0
        %v4425 = vadd.f32 %v4144, %v4424
        %v4426 = vpop.f32.mrf.mxu0
        %v4427 = vpop.f32.mrf.mxu0
        %v4428 = vadd.f32 %v4149, %v4427
        %v4429 = vpop.f32.mrf.mxu0
        %4430 = vmatprep.mubr.bf16.mxu0 0
        %4431 = vmatmul.mubr.bf16.gmra.mxu0 %v4237
        %v4432 = vpop.f32.mrf.mxu0
        %v4433 = vadd.f32 %v4154, %v4432
        %v4434 = vpop.f32.mrf.mxu0
        %v4435 = vpop.f32.mrf.mxu0
        %v4436 = vadd.f32 %v4159, %v4435
        %v4437 = vpop.f32.mrf.mxu0
        %4438 = vmatprep.mubr.bf16.mxu0 0
        %4439 = vmatmul.mubr.bf16.gmra.mxu0 %v4240
        %v4440 = vpop.f32.mrf.mxu0
        %v4441 = vadd.f32 %v4164, %v4440
        %v4442 = vpop.f32.mrf.mxu0
        %v4443 = vpop.f32.mrf.mxu0
        %v4444 = vadd.f32 %v4169, %v4443
        %v4445 = vpop.f32.mrf.mxu0
        %4446 = vmatprep.mubr.bf16.mxu0 0
        %4447 = vmatmul.mubr.bf16.gmra.mxu0 %v4243
        %v4448 = vpop.f32.mrf.mxu0
        %v4449 = vadd.f32 %v4174, %v4448
        %v4450 = vpop.f32.mrf.mxu0
        %v4451 = vpop.f32.mrf.mxu0
        %v4452 = vadd.f32 %v4179, %v4451
        %v4453 = vpop.f32.mrf.mxu0
        %4454 = vdwg.mxu0
        %v4455 = vadd.f32 %v896, %v4280
        %v4456 = vadd.f32 %v898, %v4282
        %v4457 = vadd.f32 %v1009, %v4393
        %v4458 = vadd.f32 %v902, %v4284
        %v4459 = vadd.f32 %v904, %v4286
        %v4460 = vadd.f32 %v1014, %v4396
        %v4461 = vadd.f32 %v908, %v4290
        %v4462 = vadd.f32 %v910, %v4292
        %v4463 = vadd.f32 %v1019, %v4401
        %v4464 = vadd.f32 %v914, %v4294
        %v4465 = vadd.f32 %v916, %v4296
        %v4466 = vadd.f32 %v1024, %v4404
        %v4467 = vadd.f32 %v920, %v4300
        %v4468 = vadd.f32 %v922, %v4302
        %v4469 = vadd.f32 %v1029, %v4409
        %v4470 = vadd.f32 %v926, %v4304
        %v4471 = vadd.f32 %v928, %v4306
        %v4472 = vadd.f32 %v1034, %v4412
        %v4473 = vadd.f32 %v932, %v4310
        %v4474 = vadd.f32 %v934, %v4312
        %v4475 = vadd.f32 %v1039, %v4417
        %v4476 = vadd.f32 %v938, %v4314
        %v4477 = vadd.f32 %v940, %v4316
        %v4478 = vadd.f32 %v1044, %v4420
        %v4479 = vadd.f32 %v4320, 0.0
        %v4480 = vadd.f32 %v4322, 0.0
        %v4481 = vadd.f32 %v4425, 0.0
        %v4482 = vadd.f32 %v4324, 0.0
        %v4483 = vadd.f32 %v4326, 0.0
        %v4484 = vadd.f32 %v4428, 0.0
        %v4485 = vadd.f32 %v4330, 0.0
        %v4486 = vadd.f32 %v4332, 0.0
        %v4487 = vadd.f32 %v4433, 0.0
        %v4488 = vadd.f32 %v4334, 0.0
        %v4489 = vadd.f32 %v4336, 0.0
        %v4490 = vadd.f32 %v4436, 0.0
        %v4491 = vadd.f32 %v4340, 0.0
        %v4492 = vadd.f32 %v4342, 0.0
        %v4493 = vadd.f32 %v4441, 0.0
        %v4494 = vadd.f32 %v4344, 0.0
        %v4495 = vadd.f32 %v4346, 0.0
        %v4496 = vadd.f32 %v4444, 0.0
        %v4497 = vadd.f32 %v4350, 0.0
        %v4498 = vadd.f32 %v4352, 0.0
        %v4499 = vadd.f32 %v4449, 0.0
        %v4500 = vadd.f32 %v4354, 0.0
        %v4501 = vadd.f32 %v4356, 0.0
        %v4502 = vadd.f32 %v4452, 0.0
        %v4503 = vmul.f32 %v4455, %v735
        %v4504 = vmul.f32 %v4456, %v736
        %v4505 = vmul.f32 %v4457, %v737
        %v4506 = vmul.f32 %v4458, %v735
        %v4507 = vmul.f32 %v4459, %v736
        %v4508 = vmul.f32 %v4460, %v737
        %v4509 = vmul.f32 %v4461, %v735
        %v4510 = vmul.f32 %v4462, %v736
        %v4511 = vmul.f32 %v4463, %v737
        %v4512 = vmul.f32 %v4464, %v735
        %v4513 = vmul.f32 %v4465, %v736
        %v4514 = vmul.f32 %v4466, %v737
        %v4515 = vmul.f32 %v4467, %v735
        %v4516 = vmul.f32 %v4468, %v736
        %v4517 = vmul.f32 %v4469, %v737
        %v4518 = vmul.f32 %v4470, %v735
        %v4519 = vmul.f32 %v4471, %v736
        %v4520 = vmul.f32 %v4472, %v737
        %v4521 = vmul.f32 %v4473, %v735
        %v4522 = vmul.f32 %v4474, %v736
        %v4523 = vmul.f32 %v4475, %v737
        %v4524 = vmul.f32 %v4476, %v735
        %v4525 = vmul.f32 %v4477, %v736
        %v4526 = vmul.f32 %v4478, %v737
        %4551 = vrot.lane.b32.xlu0 %v4503, 2
        %v4552 = vpop.permute.xlu0 %4551
        %4553 = vrot.lane.b32.xlu0 %v4504, 2
        %v4554 = vpop.permute.xlu0 %4553
        %4555 = vrot.lane.b32.xlu0 %v4505, 2
        %v4556 = vpop.permute.xlu0 %4555
        %4557 = vrot.lane.b32.xlu0 %v4506, 2
        %v4558 = vpop.permute.xlu0 %4557
        %4559 = vrot.lane.b32.xlu0 %v4507, 2
        %v4560 = vpop.permute.xlu0 %4559
        %4561 = vrot.lane.b32.xlu0 %v4508, 2
        %v4562 = vpop.permute.xlu0 %4561
        %4563 = vrot.lane.b32.xlu0 %v4509, 2
        %v4564 = vpop.permute.xlu0 %4563
        %4565 = vrot.lane.b32.xlu0 %v4510, 2
        %v4566 = vpop.permute.xlu0 %4565
        %4567 = vrot.lane.b32.xlu0 %v4511, 2
        %v4568 = vpop.permute.xlu0 %4567
        %4569 = vrot.lane.b32.xlu0 %v4512, 2
        %v4570 = vpop.permute.xlu0 %4569
        %4571 = vrot.lane.b32.xlu0 %v4513, 2
        %v4572 = vpop.permute.xlu0 %4571
        %4573 = vrot.lane.b32.xlu0 %v4514, 2
        %v4574 = vpop.permute.xlu0 %4573
        %4575 = vrot.lane.b32.xlu0 %v4515, 2
        %v4576 = vpop.permute.xlu0 %4575
        %4577 = vrot.lane.b32.xlu0 %v4516, 2
        %v4578 = vpop.permute.xlu0 %4577
        %4579 = vrot.lane.b32.xlu0 %v4517, 2
        %v4580 = vpop.permute.xlu0 %4579
        %4581 = vrot.lane.b32.xlu0 %v4518, 2
        %v4582 = vpop.permute.xlu0 %4581
        %4583 = vrot.lane.b32.xlu0 %v4519, 2
        %v4584 = vpop.permute.xlu0 %4583
        %4585 = vrot.lane.b32.xlu0 %v4520, 2
        %v4586 = vpop.permute.xlu0 %4585
        %4587 = vrot.lane.b32.xlu0 %v4521, 2
        %v4588 = vpop.permute.xlu0 %4587
        %4589 = vrot.lane.b32.xlu0 %v4522, 2
        %v4590 = vpop.permute.xlu0 %4589
        %4591 = vrot.lane.b32.xlu0 %v4523, 2
        %v4592 = vpop.permute.xlu0 %4591
        %4593 = vrot.lane.b32.xlu0 %v4524, 2
        %v4594 = vpop.permute.xlu0 %4593
        %4595 = vrot.lane.b32.xlu0 %v4525, 2
        %v4596 = vpop.permute.xlu0 %4595
        %4597 = vrot.lane.b32.xlu0 %v4526, 2
        %v4598 = vpop.permute.xlu0 %4597
        %vm4599 = vcmask 15360
        %v4600 = vsel %vm4599, %v4552, %v4554
        %v4601 = vsel %vm4599, %v4554, %v4556
        %v4602 = vsel %vm4599, %v4558, %v4560
        %v4603 = vsel %vm4599, %v4560, %v4562
        %v4604 = vsel %vm4599, %v4564, %v4566
        %v4605 = vsel %vm4599, %v4566, %v4568
        %v4606 = vsel %vm4599, %v4570, %v4572
        %v4607 = vsel %vm4599, %v4572, %v4574
        %v4608 = vsel %vm4599, %v4576, %v4578
        %v4609 = vsel %vm4599, %v4578, %v4580
        %v4610 = vsel %vm4599, %v4582, %v4584
        %v4611 = vsel %vm4599, %v4584, %v4586
        %v4612 = vsel %vm4599, %v4588, %v4590
        %v4613 = vsel %vm4599, %v4590, %v4592
        %v4614 = vsel %vm4599, %v4594, %v4596
        %v4615 = vsel %vm4599, %v4596, %v4598
        %v4640 = vsel %vm4599, 0.0, %v4552
        %v4641 = vsel %vm4599, 0.0, %v4558
        %v4642 = vsel %vm4599, 0.0, %v4564
        %v4643 = vsel %vm4599, 0.0, %v4570
        %v4644 = vsel %vm4599, 0.0, %v4576
        %v4645 = vsel %vm4599, 0.0, %v4582
        %v4646 = vsel %vm4599, 0.0, %v4588
        %v4647 = vsel %vm4599, 0.0, %v4594
        %4648 = vrot.lane.b32.xlu0 %v4503, 126
        %v4649 = vpop.permute.xlu0 %4648
        %4650 = vrot.lane.b32.xlu0 %v4504, 126
        %v4651 = vpop.permute.xlu0 %4650
        %4652 = vrot.lane.b32.xlu0 %v4505, 126
        %v4653 = vpop.permute.xlu0 %4652
        %4654 = vrot.lane.b32.xlu0 %v4506, 126
        %v4655 = vpop.permute.xlu0 %4654
        %4656 = vrot.lane.b32.xlu0 %v4507, 126
        %v4657 = vpop.permute.xlu0 %4656
        %4658 = vrot.lane.b32.xlu0 %v4508, 126
        %v4659 = vpop.permute.xlu0 %4658
        %4660 = vrot.lane.b32.xlu0 %v4509, 126
        %v4661 = vpop.permute.xlu0 %4660
        %4662 = vrot.lane.b32.xlu0 %v4510, 126
        %v4663 = vpop.permute.xlu0 %4662
        %4664 = vrot.lane.b32.xlu0 %v4511, 126
        %v4665 = vpop.permute.xlu0 %4664
        %4666 = vrot.lane.b32.xlu0 %v4512, 126
        %v4667 = vpop.permute.xlu0 %4666
        %4668 = vrot.lane.b32.xlu0 %v4513, 126
        %v4669 = vpop.permute.xlu0 %4668
        %4670 = vrot.lane.b32.xlu0 %v4514, 126
        %v4671 = vpop.permute.xlu0 %4670
        %4672 = vrot.lane.b32.xlu0 %v4515, 126
        %v4673 = vpop.permute.xlu0 %4672
        %4674 = vrot.lane.b32.xlu0 %v4516, 126
        %v4675 = vpop.permute.xlu0 %4674
        %4676 = vrot.lane.b32.xlu0 %v4517, 126
        %v4677 = vpop.permute.xlu0 %4676
        %4678 = vrot.lane.b32.xlu0 %v4518, 126
        %v4679 = vpop.permute.xlu0 %4678
        %4680 = vrot.lane.b32.xlu0 %v4519, 126
        %v4681 = vpop.permute.xlu0 %4680
        %4682 = vrot.lane.b32.xlu0 %v4520, 126
        %v4683 = vpop.permute.xlu0 %4682
        %4684 = vrot.lane.b32.xlu0 %v4521, 126
        %v4685 = vpop.permute.xlu0 %4684
        %4686 = vrot.lane.b32.xlu0 %v4522, 126
        %v4687 = vpop.permute.xlu0 %4686
        %4688 = vrot.lane.b32.xlu0 %v4523, 126
        %v4689 = vpop.permute.xlu0 %4688
        %4690 = vrot.lane.b32.xlu0 %v4524, 126
        %v4691 = vpop.permute.xlu0 %4690
        %4692 = vrot.lane.b32.xlu0 %v4525, 126
        %v4693 = vpop.permute.xlu0 %4692
        %4694 = vrot.lane.b32.xlu0 %v4526, 126
        %v4695 = vpop.permute.xlu0 %4694
        %vm4696 = vcmask 1031168
        %v4697 = vsel %vm4696, %v4649, %v4651
        %v4698 = vsel %vm4696, %v4651, %v4653
        %v4699 = vsel %vm4696, %v4655, %v4657
        %v4700 = vsel %vm4696, %v4657, %v4659
        %v4701 = vsel %vm4696, %v4661, %v4663
        %v4702 = vsel %vm4696, %v4663, %v4665
        %v4703 = vsel %vm4696, %v4667, %v4669
        %v4704 = vsel %vm4696, %v4669, %v4671
        %v4705 = vsel %vm4696, %v4673, %v4675
        %v4706 = vsel %vm4696, %v4675, %v4677
        %v4707 = vsel %vm4696, %v4679, %v4681
        %v4708 = vsel %vm4696, %v4681, %v4683
        %v4709 = vsel %vm4696, %v4685, %v4687
        %v4710 = vsel %vm4696, %v4687, %v4689
        %v4711 = vsel %vm4696, %v4691, %v4693
        %v4712 = vsel %vm4696, %v4693, %v4695
        %v4737 = vsel %vm4696, %v4653, 0.0
        %v4738 = vsel %vm4696, %v4659, 0.0
        %v4739 = vsel %vm4696, %v4665, 0.0
        %v4740 = vsel %vm4696, %v4671, 0.0
        %v4741 = vsel %vm4696, %v4677, 0.0
        %v4742 = vsel %vm4696, %v4683, 0.0
        %v4743 = vsel %vm4696, %v4689, 0.0
        %v4744 = vsel %vm4696, %v4695, 0.0
        %s4745 = scalar_lea.vmem %s5, 192
        %v4746 = vld [vmem:[%s4745] sm:$0xf]
        %v4747 = vld [vmem:[%s4745 + $0x4] sm:$0xf]
        %v4748 = vld [vmem:[%s4745 + $0x8] sm:$0xf]
        %v4749 = vld [vmem:[%s4745 + $0xc] sm:$0xf]
        %v4750 = vld [vmem:[%s4745 + $0x10] sm:$0xf]
        %v4751 = vld [vmem:[%s4745 + $0x14] sm:$0xf]
        %v4752 = vld [vmem:[%s4745 + $0x18] sm:$0xf]
        %v4753 = vld [vmem:[%s4745 + $0x1c] sm:$0xf]
        %v4754 = vld [vmem:[%s4745 + $0x20] sm:$0xf]
        %v4755 = vld [vmem:[%s4745 + $0x24] sm:$0xf]
        %v4756 = vld [vmem:[%s4745 + $0x28] sm:$0xf]
        %v4757 = vld [vmem:[%s4745 + $0x2c] sm:$0xf]
        %v4758 = vld [vmem:[%s4745 + $0x30] sm:$0xf]
        %v4759 = vld [vmem:[%s4745 + $0x34] sm:$0xf]
        %v4760 = vld [vmem:[%s4745 + $0x38] sm:$0xf]
        %v4761 = vld [vmem:[%s4745 + $0x3c] sm:$0xf]
        %v4762 = vpack.c.bf16 %v4641, %v4640
        %v4763 = vpack.c.bf16 %v4602, %v4600
        %v4764 = vpack.c.bf16 %v4603, %v4601
        %v4765 = vpack.c.bf16 %v4643, %v4642
        %v4766 = vpack.c.bf16 %v4606, %v4604
        %v4767 = vpack.c.bf16 %v4607, %v4605
        %v4768 = vpack.c.bf16 %v4645, %v4644
        %v4769 = vpack.c.bf16 %v4610, %v4608
        %v4770 = vpack.c.bf16 %v4611, %v4609
        %v4771 = vpack.c.bf16 %v4647, %v4646
        %v4772 = vpack.c.bf16 %v4614, %v4612
        %v4773 = vpack.c.bf16 %v4615, %v4613
        %s4774 = scalar_lea.vmem %s5, 256
        %v4775 = vld [vmem:[%s4774] sm:$0xf]
        %v4776 = vld [vmem:[%s4774 + $0x4] sm:$0xf]
        %v4777 = vld [vmem:[%s4774 + $0x8] sm:$0xf]
        %v4778 = vld [vmem:[%s4774 + $0xc] sm:$0xf]
        %v4779 = vld [vmem:[%s4774 + $0x10] sm:$0xf]
        %v4780 = vld [vmem:[%s4774 + $0x14] sm:$0xf]
        %v4781 = vld [vmem:[%s4774 + $0x18] sm:$0xf]
        %v4782 = vld [vmem:[%s4774 + $0x1c] sm:$0xf]
        %v4783 = vld [vmem:[%s4774 + $0x20] sm:$0xf]
        %v4784 = vld [vmem:[%s4774 + $0x24] sm:$0xf]
        %v4785 = vld [vmem:[%s4774 + $0x28] sm:$0xf]
        %v4786 = vld [vmem:[%s4774 + $0x2c] sm:$0xf]
        %v4787 = vld [vmem:[%s4774 + $0x30] sm:$0xf]
        %v4788 = vld [vmem:[%s4774 + $0x34] sm:$0xf]
        %v4789 = vld [vmem:[%s4774 + $0x38] sm:$0xf]
        %v4790 = vld [vmem:[%s4774 + $0x3c] sm:$0xf]
        %v4791 = vpack.c.bf16 %v4506, %v4503
        %v4792 = vpack.c.bf16 %v4507, %v4504
        %v4793 = vpack.c.bf16 %v4508, %v4505
        %v4794 = vpack.c.bf16 %v4512, %v4509
        %v4795 = vpack.c.bf16 %v4513, %v4510
        %v4796 = vpack.c.bf16 %v4514, %v4511
        %v4797 = vpack.c.bf16 %v4518, %v4515
        %v4798 = vpack.c.bf16 %v4519, %v4516
        %v4799 = vpack.c.bf16 %v4520, %v4517
        %v4800 = vpack.c.bf16 %v4524, %v4521
        %v4801 = vpack.c.bf16 %v4525, %v4522
        %v4802 = vpack.c.bf16 %v4526, %v4523
        %v4819 = vunpack.c.l.b16 %v4775
        %v4820 = vunpack.c.l.b16 %v4776
        %v4821 = vunpack.c.l.b16 %v4777
        %v4822 = vunpack.c.l.b16 %v4778
        %v4823 = vunpack.c.l.b16 %v4779
        %v4824 = vunpack.c.l.b16 %v4780
        %v4825 = vunpack.c.l.b16 %v4781
        %v4826 = vunpack.c.l.b16 %v4782
        %v4827 = vunpack.c.l.b16 %v4783
        %v4828 = vunpack.c.l.b16 %v4784
        %v4829 = vunpack.c.l.b16 %v4785
        %v4830 = vunpack.c.l.b16 %v4786
        %v4831 = vunpack.c.l.b16 %v4787
        %v4832 = vunpack.c.l.b16 %v4788
        %v4833 = vunpack.c.l.b16 %v4789
        %v4834 = vunpack.c.l.b16 %v4790
        %v4835 = vpack.c.b16 %v4820, %v4819
        %v4836 = vpack.c.b16 %v4822, %v4821
        %v4837 = vpack.c.b16 %v4824, %v4823
        %v4838 = vpack.c.b16 %v4826, %v4825
        %v4839 = vpack.c.b16 %v4828, %v4827
        %v4840 = vpack.c.b16 %v4830, %v4829
        %v4841 = vpack.c.b16 %v4832, %v4831
        %v4842 = vpack.c.b16 %v4834, %v4833
        %v4844 = vsel %vm2813, %v4835, 0
        %v4847 = vsel %vm2813, %v4836, 0
        %v4850 = vsel %vm2813, %v4837, 0
        %v4853 = vsel %vm2813, %v4838, 0
        %v4856 = vsel %vm2813, %v4839, 0
        %v4859 = vsel %vm2813, %v4840, 0
        %v4862 = vsel %vm2813, %v4841, 0
        %v4865 = vsel %vm2813, %v4842, 0
        %4867 = vmatprep.subr.bf16.mxu0 0
        %4868 = vmatpush1.bf16.msra.mxu0 0
        %4869 = vmatprep.subr.bf16.mxu0 0
        %4870 = vmatpush1.bf16.msra.mxu0 0
        %4871 = vmatprep.subr.bf16.mxu0 0
        %4872 = vmatpush1.bf16.msra.mxu0 0
        %4873 = vmatprep.subr.bf16.mxu0 0
        %4874 = vmatpush1.bf16.msra.mxu0 0
        %4875 = vmatprep.subr.bf16.mxu0 %v4801
        %4876 = vmatpush1.bf16.msra.mxu0 %v4800
        %4877 = vmatprep.subr.bf16.mxu0 %v4798
        %4878 = vmatpush1.bf16.msra.mxu0 %v4797
        %4879 = vmatprep.subr.bf16.mxu0 %v4795
        %4880 = vmatpush1.bf16.msra.mxu0 %v4794
        %4881 = vmatprep.subr.bf16.mxu0 %v4792
        %4882 = vmatpush1.bf16.msra.mxu0 %v4791
        %4883 = vmatprep.subr.bf16.mxu0 0
        %4884 = vmatpush2.bf16.msra.mxu0 0
        %4885 = vmatprep.subr.bf16.mxu0 0
        %4886 = vmatpush2.bf16.msra.mxu0 0
        %4887 = vmatprep.subr.bf16.mxu0 0
        %4888 = vmatpush2.bf16.msra.mxu0 0
        %4889 = vmatprep.subr.bf16.mxu0 0
        %4890 = vmatpush2.bf16.msra.mxu0 0
        %4891 = vmatprep.subr.bf16.mxu0 0
        %4892 = vmatpush2.bf16.msra.mxu0 0
        %4893 = vmatprep.subr.bf16.mxu0 0
        %4894 = vmatpush2.bf16.msra.mxu0 0
        %4895 = vmatprep.subr.bf16.mxu0 0
        %4896 = vmatpush2.bf16.msra.mxu0 0
        %4897 = vmatprep.subr.bf16.mxu0 0
        %4898 = vmatpush2.bf16.msra.mxu0 0
        %4899 = vmatprep.mubr.bf16.mxu0 0
        %4900 = vmatmul.mubr.bf16.gmra.mxu0 %v4844
        %v4901 = vpop.f32.mrf.mxu0
        %v4902 = vadd.f32 0.0, %v4901
        %v4903 = vpop.f32.mrf.mxu0
        %v4904 = vadd.f32 0.0, %v4903
        %v4905 = vpop.f32.mrf.mxu0
        %v4906 = vadd.f32 0.0, %v4905
        %v4907 = vpop.f32.mrf.mxu0
        %v4908 = vadd.f32 0.0, %v4907
        %4909 = vmatprep.mubr.bf16.mxu0 0
        %4910 = vmatmul.mubr.bf16.gmra.mxu0 %v4847
        %v4911 = vpop.f32.mrf.mxu0
        %v4912 = vadd.f32 0.0, %v4911
        %v4913 = vpop.f32.mrf.mxu0
        %v4914 = vadd.f32 0.0, %v4913
        %v4915 = vpop.f32.mrf.mxu0
        %v4916 = vadd.f32 0.0, %v4915
        %v4917 = vpop.f32.mrf.mxu0
        %v4918 = vadd.f32 0.0, %v4917
        %4919 = vmatprep.mubr.bf16.mxu0 0
        %4920 = vmatmul.mubr.bf16.gmra.mxu0 %v4850
        %v4921 = vpop.f32.mrf.mxu0
        %v4922 = vadd.f32 0.0, %v4921
        %v4923 = vpop.f32.mrf.mxu0
        %v4924 = vadd.f32 0.0, %v4923
        %v4925 = vpop.f32.mrf.mxu0
        %v4926 = vadd.f32 0.0, %v4925
        %v4927 = vpop.f32.mrf.mxu0
        %v4928 = vadd.f32 0.0, %v4927
        %4929 = vmatprep.mubr.bf16.mxu0 0
        %4930 = vmatmul.mubr.bf16.gmra.mxu0 %v4853
        %v4931 = vpop.f32.mrf.mxu0
        %v4932 = vadd.f32 0.0, %v4931
        %v4933 = vpop.f32.mrf.mxu0
        %v4934 = vadd.f32 0.0, %v4933
        %v4935 = vpop.f32.mrf.mxu0
        %v4936 = vadd.f32 0.0, %v4935
        %v4937 = vpop.f32.mrf.mxu0
        %v4938 = vadd.f32 0.0, %v4937
        %4939 = vmatprep.mubr.bf16.mxu0 0
        %4940 = vmatmul.mubr.bf16.gmra.mxu0 %v4856
        %v4941 = vpop.f32.mrf.mxu0
        %v4942 = vadd.f32 0.0, %v4941
        %v4943 = vpop.f32.mrf.mxu0
        %v4944 = vadd.f32 0.0, %v4943
        %v4945 = vpop.f32.mrf.mxu0
        %v4946 = vadd.f32 0.0, %v4945
        %v4947 = vpop.f32.mrf.mxu0
        %v4948 = vadd.f32 0.0, %v4947
        %4949 = vmatprep.mubr.bf16.mxu0 0
        %4950 = vmatmul.mubr.bf16.gmra.mxu0 %v4859
        %v4951 = vpop.f32.mrf.mxu0
        %v4952 = vadd.f32 0.0, %v4951
        %v4953 = vpop.f32.mrf.mxu0
        %v4954 = vadd.f32 0.0, %v4953
        %v4955 = vpop.f32.mrf.mxu0
        %v4956 = vadd.f32 0.0, %v4955
        %v4957 = vpop.f32.mrf.mxu0
        %v4958 = vadd.f32 0.0, %v4957
        %4959 = vmatprep.mubr.bf16.mxu0 0
        %4960 = vmatmul.mubr.bf16.gmra.mxu0 %v4862
        %v4961 = vpop.f32.mrf.mxu0
        %v4962 = vadd.f32 0.0, %v4961
        %v4963 = vpop.f32.mrf.mxu0
        %v4964 = vadd.f32 0.0, %v4963
        %v4965 = vpop.f32.mrf.mxu0
        %v4966 = vadd.f32 0.0, %v4965
        %v4967 = vpop.f32.mrf.mxu0
        %v4968 = vadd.f32 0.0, %v4967
        %4969 = vmatprep.mubr.bf16.mxu0 0
        %4970 = vmatmul.mubr.bf16.gmra.mxu0 %v4865
        %v4971 = vpop.f32.mrf.mxu0
        %v4972 = vadd.f32 0.0, %v4971
        %v4973 = vpop.f32.mrf.mxu0
        %v4974 = vadd.f32 0.0, %v4973
        %v4975 = vpop.f32.mrf.mxu0
        %v4976 = vadd.f32 0.0, %v4975
        %v4977 = vpop.f32.mrf.mxu0
        %v4978 = vadd.f32 0.0, %v4977
        %4979 = vdwg.mxu0
        %4980 = vmatprep.subr.bf16.mxu0 0
        %4981 = vmatpush1.bf16.msra.mxu0 0
        %4982 = vmatprep.subr.bf16.mxu0 0
        %4983 = vmatpush1.bf16.msra.mxu0 0
        %4984 = vmatprep.subr.bf16.mxu0 0
        %4985 = vmatpush1.bf16.msra.mxu0 0
        %4986 = vmatprep.subr.bf16.mxu0 0
        %4987 = vmatpush1.bf16.msra.mxu0 0
        %4988 = vmatprep.subr.bf16.mxu0 0
        %4989 = vmatpush1.bf16.msra.mxu0 %v4802
        %4990 = vmatprep.subr.bf16.mxu0 0
        %4991 = vmatpush1.bf16.msra.mxu0 %v4799
        %4992 = vmatprep.subr.bf16.mxu0 0
        %4993 = vmatpush1.bf16.msra.mxu0 %v4796
        %4994 = vmatprep.subr.bf16.mxu0 0
        %4995 = vmatpush1.bf16.msra.mxu0 %v4793
        %4996 = vmatprep.subr.bf16.mxu0 0
        %4997 = vmatpush2.bf16.msra.mxu0 0
        %4998 = vmatprep.subr.bf16.mxu0 0
        %4999 = vmatpush2.bf16.msra.mxu0 0
        %5000 = vmatprep.subr.bf16.mxu0 0
        %5001 = vmatpush2.bf16.msra.mxu0 0
        %5002 = vmatprep.subr.bf16.mxu0 0
        %5003 = vmatpush2.bf16.msra.mxu0 0
        %5004 = vmatprep.subr.bf16.mxu0 0
        %5005 = vmatpush2.bf16.msra.mxu0 0
        %5006 = vmatprep.subr.bf16.mxu0 0
        %5007 = vmatpush2.bf16.msra.mxu0 0
        %5008 = vmatprep.subr.bf16.mxu0 0
        %5009 = vmatpush2.bf16.msra.mxu0 0
        %5010 = vmatprep.subr.bf16.mxu0 0
        %5011 = vmatpush2.bf16.msra.mxu0 0
        %5012 = vmatprep.mubr.bf16.mxu0 0
        %5013 = vmatmul.mubr.bf16.gmra.mxu0 %v4844
        %v5014 = vpop.f32.mrf.mxu0
        %v5015 = vadd.f32 0.0, %v5014
        %v5016 = vpop.f32.mrf.mxu0
        %v5017 = vpop.f32.mrf.mxu0
        %v5018 = vadd.f32 0.0, %v5017
        %v5019 = vpop.f32.mrf.mxu0
        %5020 = vmatprep.mubr.bf16.mxu0 0
        %5021 = vmatmul.mubr.bf16.gmra.mxu0 %v4847
        %v5022 = vpop.f32.mrf.mxu0
        %v5023 = vadd.f32 0.0, %v5022
        %v5024 = vpop.f32.mrf.mxu0
        %v5025 = vpop.f32.mrf.mxu0
        %v5026 = vadd.f32 0.0, %v5025
        %v5027 = vpop.f32.mrf.mxu0
        %5028 = vmatprep.mubr.bf16.mxu0 0
        %5029 = vmatmul.mubr.bf16.gmra.mxu0 %v4850
        %v5030 = vpop.f32.mrf.mxu0
        %v5031 = vadd.f32 0.0, %v5030
        %v5032 = vpop.f32.mrf.mxu0
        %v5033 = vpop.f32.mrf.mxu0
        %v5034 = vadd.f32 0.0, %v5033
        %v5035 = vpop.f32.mrf.mxu0
        %5036 = vmatprep.mubr.bf16.mxu0 0
        %5037 = vmatmul.mubr.bf16.gmra.mxu0 %v4853
        %v5038 = vpop.f32.mrf.mxu0
        %v5039 = vadd.f32 0.0, %v5038
        %v5040 = vpop.f32.mrf.mxu0
        %v5041 = vpop.f32.mrf.mxu0
        %v5042 = vadd.f32 0.0, %v5041
        %v5043 = vpop.f32.mrf.mxu0
        %5044 = vmatprep.mubr.bf16.mxu0 0
        %5045 = vmatmul.mubr.bf16.gmra.mxu0 %v4856
        %v5046 = vpop.f32.mrf.mxu0
        %v5047 = vadd.f32 0.0, %v5046
        %v5048 = vpop.f32.mrf.mxu0
        %v5049 = vpop.f32.mrf.mxu0
        %v5050 = vadd.f32 0.0, %v5049
        %v5051 = vpop.f32.mrf.mxu0
        %5052 = vmatprep.mubr.bf16.mxu0 0
        %5053 = vmatmul.mubr.bf16.gmra.mxu0 %v4859
        %v5054 = vpop.f32.mrf.mxu0
        %v5055 = vadd.f32 0.0, %v5054
        %v5056 = vpop.f32.mrf.mxu0
        %v5057 = vpop.f32.mrf.mxu0
        %v5058 = vadd.f32 0.0, %v5057
        %v5059 = vpop.f32.mrf.mxu0
        %5060 = vmatprep.mubr.bf16.mxu0 0
        %5061 = vmatmul.mubr.bf16.gmra.mxu0 %v4862
        %v5062 = vpop.f32.mrf.mxu0
        %v5063 = vadd.f32 0.0, %v5062
        %v5064 = vpop.f32.mrf.mxu0
        %v5065 = vpop.f32.mrf.mxu0
        %v5066 = vadd.f32 0.0, %v5065
        %v5067 = vpop.f32.mrf.mxu0
        %5068 = vmatprep.mubr.bf16.mxu0 0
        %5069 = vmatmul.mubr.bf16.gmra.mxu0 %v4865
        %v5070 = vpop.f32.mrf.mxu0
        %v5071 = vadd.f32 0.0, %v5070
        %v5072 = vpop.f32.mrf.mxu0
        %v5073 = vpop.f32.mrf.mxu0
        %v5074 = vadd.f32 0.0, %v5073
        %v5075 = vpop.f32.mrf.mxu0
        %5076 = vdwg.mxu0
        %v5093 = vunpack.c.l.b16 %v4746
        %v5094 = vunpack.c.l.b16 %v4747
        %v5095 = vunpack.c.l.b16 %v4748
        %v5096 = vunpack.c.l.b16 %v4749
        %v5097 = vunpack.c.l.b16 %v4750
        %v5098 = vunpack.c.l.b16 %v4751
        %v5099 = vunpack.c.l.b16 %v4752
        %v5100 = vunpack.c.l.b16 %v4753
        %v5101 = vunpack.c.l.b16 %v4754
        %v5102 = vunpack.c.l.b16 %v4755
        %v5103 = vunpack.c.l.b16 %v4756
        %v5104 = vunpack.c.l.b16 %v4757
        %v5105 = vunpack.c.l.b16 %v4758
        %v5106 = vunpack.c.l.b16 %v4759
        %v5107 = vunpack.c.l.b16 %v4760
        %v5108 = vunpack.c.l.b16 %v4761
        %v5109 = vpack.c.b16 %v5094, %v5093
        %v5110 = vpack.c.b16 %v5096, %v5095
        %v5111 = vpack.c.b16 %v5098, %v5097
        %v5112 = vpack.c.b16 %v5100, %v5099
        %v5113 = vpack.c.b16 %v5102, %v5101
        %v5114 = vpack.c.b16 %v5104, %v5103
        %v5115 = vpack.c.b16 %v5106, %v5105
        %v5116 = vpack.c.b16 %v5108, %v5107
        %v5118 = vsel %vm2813, %v5109, 0
        %v5121 = vsel %vm2813, %v5110, 0
        %v5124 = vsel %vm2813, %v5111, 0
        %v5127 = vsel %vm2813, %v5112, 0
        %v5130 = vsel %vm2813, %v5113, 0
        %v5133 = vsel %vm2813, %v5114, 0
        %v5136 = vsel %vm2813, %v5115, 0
        %v5139 = vsel %vm2813, %v5116, 0
        %5141 = vmatprep.subr.bf16.mxu0 0
        %5142 = vmatpush1.bf16.msra.mxu0 0
        %5143 = vmatprep.subr.bf16.mxu0 0
        %5144 = vmatpush1.bf16.msra.mxu0 0
        %5145 = vmatprep.subr.bf16.mxu0 0
        %5146 = vmatpush1.bf16.msra.mxu0 0
        %5147 = vmatprep.subr.bf16.mxu0 0
        %5148 = vmatpush1.bf16.msra.mxu0 0
        %5149 = vmatprep.subr.bf16.mxu0 %v4772
        %5150 = vmatpush1.bf16.msra.mxu0 %v4771
        %5151 = vmatprep.subr.bf16.mxu0 %v4769
        %5152 = vmatpush1.bf16.msra.mxu0 %v4768
        %5153 = vmatprep.subr.bf16.mxu0 %v4766
        %5154 = vmatpush1.bf16.msra.mxu0 %v4765
        %5155 = vmatprep.subr.bf16.mxu0 %v4763
        %5156 = vmatpush1.bf16.msra.mxu0 %v4762
        %5157 = vmatprep.subr.bf16.mxu0 0
        %5158 = vmatpush2.bf16.msra.mxu0 0
        %5159 = vmatprep.subr.bf16.mxu0 0
        %5160 = vmatpush2.bf16.msra.mxu0 0
        %5161 = vmatprep.subr.bf16.mxu0 0
        %5162 = vmatpush2.bf16.msra.mxu0 0
        %5163 = vmatprep.subr.bf16.mxu0 0
        %5164 = vmatpush2.bf16.msra.mxu0 0
        %5165 = vmatprep.subr.bf16.mxu0 0
        %5166 = vmatpush2.bf16.msra.mxu0 0
        %5167 = vmatprep.subr.bf16.mxu0 0
        %5168 = vmatpush2.bf16.msra.mxu0 0
        %5169 = vmatprep.subr.bf16.mxu0 0
        %5170 = vmatpush2.bf16.msra.mxu0 0
        %5171 = vmatprep.subr.bf16.mxu0 0
        %5172 = vmatpush2.bf16.msra.mxu0 0
        %5173 = vmatprep.mubr.bf16.mxu0 0
        %5174 = vmatmul.mubr.bf16.gmra.mxu0 %v5118
        %v5175 = vpop.f32.mrf.mxu0
        %v5176 = vadd.f32 %v4902, %v5175
        %v5177 = vpop.f32.mrf.mxu0
        %v5178 = vadd.f32 %v4904, %v5177
        %v5179 = vpop.f32.mrf.mxu0
        %v5180 = vadd.f32 %v4906, %v5179
        %v5181 = vpop.f32.mrf.mxu0
        %v5182 = vadd.f32 %v4908, %v5181
        %5183 = vmatprep.mubr.bf16.mxu0 0
        %5184 = vmatmul.mubr.bf16.gmra.mxu0 %v5121
        %v5185 = vpop.f32.mrf.mxu0
        %v5186 = vadd.f32 %v4912, %v5185
        %v5187 = vpop.f32.mrf.mxu0
        %v5188 = vadd.f32 %v4914, %v5187
        %v5189 = vpop.f32.mrf.mxu0
        %v5190 = vadd.f32 %v4916, %v5189
        %v5191 = vpop.f32.mrf.mxu0
        %v5192 = vadd.f32 %v4918, %v5191
        %5193 = vmatprep.mubr.bf16.mxu0 0
        %5194 = vmatmul.mubr.bf16.gmra.mxu0 %v5124
        %v5195 = vpop.f32.mrf.mxu0
        %v5196 = vadd.f32 %v4922, %v5195
        %v5197 = vpop.f32.mrf.mxu0
        %v5198 = vadd.f32 %v4924, %v5197
        %v5199 = vpop.f32.mrf.mxu0
        %v5200 = vadd.f32 %v4926, %v5199
        %v5201 = vpop.f32.mrf.mxu0
        %v5202 = vadd.f32 %v4928, %v5201
        %5203 = vmatprep.mubr.bf16.mxu0 0
        %5204 = vmatmul.mubr.bf16.gmra.mxu0 %v5127
        %v5205 = vpop.f32.mrf.mxu0
        %v5206 = vadd.f32 %v4932, %v5205
        %v5207 = vpop.f32.mrf.mxu0
        %v5208 = vadd.f32 %v4934, %v5207
        %v5209 = vpop.f32.mrf.mxu0
        %v5210 = vadd.f32 %v4936, %v5209
        %v5211 = vpop.f32.mrf.mxu0
        %v5212 = vadd.f32 %v4938, %v5211
        %5213 = vmatprep.mubr.bf16.mxu0 0
        %5214 = vmatmul.mubr.bf16.gmra.mxu0 %v5130
        %v5215 = vpop.f32.mrf.mxu0
        %v5216 = vadd.f32 %v4942, %v5215
        %v5217 = vpop.f32.mrf.mxu0
        %v5218 = vadd.f32 %v4944, %v5217
        %v5219 = vpop.f32.mrf.mxu0
        %v5220 = vadd.f32 %v4946, %v5219
        %v5221 = vpop.f32.mrf.mxu0
        %v5222 = vadd.f32 %v4948, %v5221
        %5223 = vmatprep.mubr.bf16.mxu0 0
        %5224 = vmatmul.mubr.bf16.gmra.mxu0 %v5133
        %v5225 = vpop.f32.mrf.mxu0
        %v5226 = vadd.f32 %v4952, %v5225
        %v5227 = vpop.f32.mrf.mxu0
        %v5228 = vadd.f32 %v4954, %v5227
        %v5229 = vpop.f32.mrf.mxu0
        %v5230 = vadd.f32 %v4956, %v5229
        %v5231 = vpop.f32.mrf.mxu0
        %v5232 = vadd.f32 %v4958, %v5231
        %5233 = vmatprep.mubr.bf16.mxu0 0
        %5234 = vmatmul.mubr.bf16.gmra.mxu0 %v5136
        %v5235 = vpop.f32.mrf.mxu0
        %v5236 = vadd.f32 %v4962, %v5235
        %v5237 = vpop.f32.mrf.mxu0
        %v5238 = vadd.f32 %v4964, %v5237
        %v5239 = vpop.f32.mrf.mxu0
        %v5240 = vadd.f32 %v4966, %v5239
        %v5241 = vpop.f32.mrf.mxu0
        %v5242 = vadd.f32 %v4968, %v5241
        %5243 = vmatprep.mubr.bf16.mxu0 0
        %5244 = vmatmul.mubr.bf16.gmra.mxu0 %v5139
        %v5245 = vpop.f32.mrf.mxu0
        %v5246 = vadd.f32 %v4972, %v5245
        %v5247 = vpop.f32.mrf.mxu0
        %v5248 = vadd.f32 %v4974, %v5247
        %v5249 = vpop.f32.mrf.mxu0
        %v5250 = vadd.f32 %v4976, %v5249
        %v5251 = vpop.f32.mrf.mxu0
        %v5252 = vadd.f32 %v4978, %v5251
        %5253 = vdwg.mxu0
        %5254 = vmatprep.subr.bf16.mxu0 0
        %5255 = vmatpush1.bf16.msra.mxu0 0
        %5256 = vmatprep.subr.bf16.mxu0 0
        %5257 = vmatpush1.bf16.msra.mxu0 0
        %5258 = vmatprep.subr.bf16.mxu0 0
        %5259 = vmatpush1.bf16.msra.mxu0 0
        %5260 = vmatprep.subr.bf16.mxu0 0
        %5261 = vmatpush1.bf16.msra.mxu0 0
        %5262 = vmatprep.subr.bf16.mxu0 0
        %5263 = vmatpush1.bf16.msra.mxu0 %v4773
        %5264 = vmatprep.subr.bf16.mxu0 0
        %5265 = vmatpush1.bf16.msra.mxu0 %v4770
        %5266 = vmatprep.subr.bf16.mxu0 0
        %5267 = vmatpush1.bf16.msra.mxu0 %v4767
        %5268 = vmatprep.subr.bf16.mxu0 0
        %5269 = vmatpush1.bf16.msra.mxu0 %v4764
        %5270 = vmatprep.subr.bf16.mxu0 0
        %5271 = vmatpush2.bf16.msra.mxu0 0
        %5272 = vmatprep.subr.bf16.mxu0 0
        %5273 = vmatpush2.bf16.msra.mxu0 0
        %5274 = vmatprep.subr.bf16.mxu0 0
        %5275 = vmatpush2.bf16.msra.mxu0 0
        %5276 = vmatprep.subr.bf16.mxu0 0
        %5277 = vmatpush2.bf16.msra.mxu0 0
        %5278 = vmatprep.subr.bf16.mxu0 0
        %5279 = vmatpush2.bf16.msra.mxu0 0
        %5280 = vmatprep.subr.bf16.mxu0 0
        %5281 = vmatpush2.bf16.msra.mxu0 0
        %5282 = vmatprep.subr.bf16.mxu0 0
        %5283 = vmatpush2.bf16.msra.mxu0 0
        %5284 = vmatprep.subr.bf16.mxu0 0
        %5285 = vmatpush2.bf16.msra.mxu0 0
        %5286 = vmatprep.mubr.bf16.mxu0 0
        %5287 = vmatmul.mubr.bf16.gmra.mxu0 %v5118
        %v5288 = vpop.f32.mrf.mxu0
        %v5289 = vadd.f32 %v5015, %v5288
        %v5290 = vpop.f32.mrf.mxu0
        %v5291 = vpop.f32.mrf.mxu0
        %v5292 = vadd.f32 %v5018, %v5291
        %v5293 = vpop.f32.mrf.mxu0
        %5294 = vmatprep.mubr.bf16.mxu0 0
        %5295 = vmatmul.mubr.bf16.gmra.mxu0 %v5121
        %v5296 = vpop.f32.mrf.mxu0
        %v5297 = vadd.f32 %v5023, %v5296
        %v5298 = vpop.f32.mrf.mxu0
        %v5299 = vpop.f32.mrf.mxu0
        %v5300 = vadd.f32 %v5026, %v5299
        %v5301 = vpop.f32.mrf.mxu0
        %5302 = vmatprep.mubr.bf16.mxu0 0
        %5303 = vmatmul.mubr.bf16.gmra.mxu0 %v5124
        %v5304 = vpop.f32.mrf.mxu0
        %v5305 = vadd.f32 %v5031, %v5304
        %v5306 = vpop.f32.mrf.mxu0
        %v5307 = vpop.f32.mrf.mxu0
        %v5308 = vadd.f32 %v5034, %v5307
        %v5309 = vpop.f32.mrf.mxu0
        %5310 = vmatprep.mubr.bf16.mxu0 0
        %5311 = vmatmul.mubr.bf16.gmra.mxu0 %v5127
        %v5312 = vpop.f32.mrf.mxu0
        %v5313 = vadd.f32 %v5039, %v5312
        %v5314 = vpop.f32.mrf.mxu0
        %v5315 = vpop.f32.mrf.mxu0
        %v5316 = vadd.f32 %v5042, %v5315
        %v5317 = vpop.f32.mrf.mxu0
        %5318 = vmatprep.mubr.bf16.mxu0 0
        %5319 = vmatmul.mubr.bf16.gmra.mxu0 %v5130
        %v5320 = vpop.f32.mrf.mxu0
        %v5321 = vadd.f32 %v5047, %v5320
        %v5322 = vpop.f32.mrf.mxu0
        %v5323 = vpop.f32.mrf.mxu0
        %v5324 = vadd.f32 %v5050, %v5323
        %v5325 = vpop.f32.mrf.mxu0
        %5326 = vmatprep.mubr.bf16.mxu0 0
        %5327 = vmatmul.mubr.bf16.gmra.mxu0 %v5133
        %v5328 = vpop.f32.mrf.mxu0
        %v5329 = vadd.f32 %v5055, %v5328
        %v5330 = vpop.f32.mrf.mxu0
        %v5331 = vpop.f32.mrf.mxu0
        %v5332 = vadd.f32 %v5058, %v5331
        %v5333 = vpop.f32.mrf.mxu0
        %5334 = vmatprep.mubr.bf16.mxu0 0
        %5335 = vmatmul.mubr.bf16.gmra.mxu0 %v5136
        %v5336 = vpop.f32.mrf.mxu0
        %v5337 = vadd.f32 %v5063, %v5336
        %v5338 = vpop.f32.mrf.mxu0
        %v5339 = vpop.f32.mrf.mxu0
        %v5340 = vadd.f32 %v5066, %v5339
        %v5341 = vpop.f32.mrf.mxu0
        %5342 = vmatprep.mubr.bf16.mxu0 0
        %5343 = vmatmul.mubr.bf16.gmra.mxu0 %v5139
        %v5344 = vpop.f32.mrf.mxu0
        %v5345 = vadd.f32 %v5071, %v5344
        %v5346 = vpop.f32.mrf.mxu0
        %v5347 = vpop.f32.mrf.mxu0
        %v5348 = vadd.f32 %v5074, %v5347
        %v5349 = vpop.f32.mrf.mxu0
        %5350 = vdwg.mxu0
        %s5351 = scalar_lea.vmem %s5, 320
        %v5352 = vld [vmem:[%s5351] sm:$0xf]
        %v5353 = vld [vmem:[%s5351 + $0x4] sm:$0xf]
        %v5354 = vld [vmem:[%s5351 + $0x8] sm:$0xf]
        %v5355 = vld [vmem:[%s5351 + $0xc] sm:$0xf]
        %v5356 = vld [vmem:[%s5351 + $0x10] sm:$0xf]
        %v5357 = vld [vmem:[%s5351 + $0x14] sm:$0xf]
        %v5358 = vld [vmem:[%s5351 + $0x18] sm:$0xf]
        %v5359 = vld [vmem:[%s5351 + $0x1c] sm:$0xf]
        %v5360 = vld [vmem:[%s5351 + $0x20] sm:$0xf]
        %v5361 = vld [vmem:[%s5351 + $0x24] sm:$0xf]
        %v5362 = vld [vmem:[%s5351 + $0x28] sm:$0xf]
        %v5363 = vld [vmem:[%s5351 + $0x2c] sm:$0xf]
        %v5364 = vld [vmem:[%s5351 + $0x30] sm:$0xf]
        %v5365 = vld [vmem:[%s5351 + $0x34] sm:$0xf]
        %v5366 = vld [vmem:[%s5351 + $0x38] sm:$0xf]
        %v5367 = vld [vmem:[%s5351 + $0x3c] sm:$0xf]
        %v5368 = vpack.c.bf16 %v4699, %v4697
        %v5369 = vpack.c.bf16 %v4700, %v4698
        %v5370 = vpack.c.bf16 %v4738, %v4737
        %v5371 = vpack.c.bf16 %v4703, %v4701
        %v5372 = vpack.c.bf16 %v4704, %v4702
        %v5373 = vpack.c.bf16 %v4740, %v4739
        %v5374 = vpack.c.bf16 %v4707, %v4705
        %v5375 = vpack.c.bf16 %v4708, %v4706
        %v5376 = vpack.c.bf16 %v4742, %v4741
        %v5377 = vpack.c.bf16 %v4711, %v4709
        %v5378 = vpack.c.bf16 %v4712, %v4710
        %v5379 = vpack.c.bf16 %v4744, %v4743
        %v5396 = vunpack.c.l.b16 %v5352
        %v5397 = vunpack.c.l.b16 %v5353
        %v5398 = vunpack.c.l.b16 %v5354
        %v5399 = vunpack.c.l.b16 %v5355
        %v5400 = vunpack.c.l.b16 %v5356
        %v5401 = vunpack.c.l.b16 %v5357
        %v5402 = vunpack.c.l.b16 %v5358
        %v5403 = vunpack.c.l.b16 %v5359
        %v5404 = vunpack.c.l.b16 %v5360
        %v5405 = vunpack.c.l.b16 %v5361
        %v5406 = vunpack.c.l.b16 %v5362
        %v5407 = vunpack.c.l.b16 %v5363
        %v5408 = vunpack.c.l.b16 %v5364
        %v5409 = vunpack.c.l.b16 %v5365
        %v5410 = vunpack.c.l.b16 %v5366
        %v5411 = vunpack.c.l.b16 %v5367
        %v5412 = vpack.c.b16 %v5397, %v5396
        %v5413 = vpack.c.b16 %v5399, %v5398
        %v5414 = vpack.c.b16 %v5401, %v5400
        %v5415 = vpack.c.b16 %v5403, %v5402
        %v5416 = vpack.c.b16 %v5405, %v5404
        %v5417 = vpack.c.b16 %v5407, %v5406
        %v5418 = vpack.c.b16 %v5409, %v5408
        %v5419 = vpack.c.b16 %v5411, %v5410
        %v5421 = vsel %vm2813, %v5412, 0
        %v5424 = vsel %vm2813, %v5413, 0
        %v5427 = vsel %vm2813, %v5414, 0
        %v5430 = vsel %vm2813, %v5415, 0
        %v5433 = vsel %vm2813, %v5416, 0
        %v5436 = vsel %vm2813, %v5417, 0
        %v5439 = vsel %vm2813, %v5418, 0
        %v5442 = vsel %vm2813, %v5419, 0
        %5444 = vmatprep.subr.bf16.mxu0 0
        %5445 = vmatpush1.bf16.msra.mxu0 0
        %5446 = vmatprep.subr.bf16.mxu0 0
        %5447 = vmatpush1.bf16.msra.mxu0 0
        %5448 = vmatprep.subr.bf16.mxu0 0
        %5449 = vmatpush1.bf16.msra.mxu0 0
        %5450 = vmatprep.subr.bf16.mxu0 0
        %5451 = vmatpush1.bf16.msra.mxu0 0
        %5452 = vmatprep.subr.bf16.mxu0 %v5378
        %5453 = vmatpush1.bf16.msra.mxu0 %v5377
        %5454 = vmatprep.subr.bf16.mxu0 %v5375
        %5455 = vmatpush1.bf16.msra.mxu0 %v5374
        %5456 = vmatprep.subr.bf16.mxu0 %v5372
        %5457 = vmatpush1.bf16.msra.mxu0 %v5371
        %5458 = vmatprep.subr.bf16.mxu0 %v5369
        %5459 = vmatpush1.bf16.msra.mxu0 %v5368
        %5460 = vmatprep.subr.bf16.mxu0 0
        %5461 = vmatpush2.bf16.msra.mxu0 0
        %5462 = vmatprep.subr.bf16.mxu0 0
        %5463 = vmatpush2.bf16.msra.mxu0 0
        %5464 = vmatprep.subr.bf16.mxu0 0
        %5465 = vmatpush2.bf16.msra.mxu0 0
        %5466 = vmatprep.subr.bf16.mxu0 0
        %5467 = vmatpush2.bf16.msra.mxu0 0
        %5468 = vmatprep.subr.bf16.mxu0 0
        %5469 = vmatpush2.bf16.msra.mxu0 0
        %5470 = vmatprep.subr.bf16.mxu0 0
        %5471 = vmatpush2.bf16.msra.mxu0 0
        %5472 = vmatprep.subr.bf16.mxu0 0
        %5473 = vmatpush2.bf16.msra.mxu0 0
        %5474 = vmatprep.subr.bf16.mxu0 0
        %5475 = vmatpush2.bf16.msra.mxu0 0
        %5476 = vmatprep.mubr.bf16.mxu0 0
        %5477 = vmatmul.mubr.bf16.gmra.mxu0 %v5421
        %v5478 = vpop.f32.mrf.mxu0
        %v5479 = vadd.f32 0.0, %v5478
        %v5480 = vpop.f32.mrf.mxu0
        %v5481 = vadd.f32 0.0, %v5480
        %v5482 = vpop.f32.mrf.mxu0
        %v5483 = vadd.f32 0.0, %v5482
        %v5484 = vpop.f32.mrf.mxu0
        %v5485 = vadd.f32 0.0, %v5484
        %5486 = vmatprep.mubr.bf16.mxu0 0
        %5487 = vmatmul.mubr.bf16.gmra.mxu0 %v5424
        %v5488 = vpop.f32.mrf.mxu0
        %v5489 = vadd.f32 0.0, %v5488
        %v5490 = vpop.f32.mrf.mxu0
        %v5491 = vadd.f32 0.0, %v5490
        %v5492 = vpop.f32.mrf.mxu0
        %v5493 = vadd.f32 0.0, %v5492
        %v5494 = vpop.f32.mrf.mxu0
        %v5495 = vadd.f32 0.0, %v5494
        %5496 = vmatprep.mubr.bf16.mxu0 0
        %5497 = vmatmul.mubr.bf16.gmra.mxu0 %v5427
        %v5498 = vpop.f32.mrf.mxu0
        %v5499 = vadd.f32 0.0, %v5498
        %v5500 = vpop.f32.mrf.mxu0
        %v5501 = vadd.f32 0.0, %v5500
        %v5502 = vpop.f32.mrf.mxu0
        %v5503 = vadd.f32 0.0, %v5502
        %v5504 = vpop.f32.mrf.mxu0
        %v5505 = vadd.f32 0.0, %v5504
        %5506 = vmatprep.mubr.bf16.mxu0 0
        %5507 = vmatmul.mubr.bf16.gmra.mxu0 %v5430
        %v5508 = vpop.f32.mrf.mxu0
        %v5509 = vadd.f32 0.0, %v5508
        %v5510 = vpop.f32.mrf.mxu0
        %v5511 = vadd.f32 0.0, %v5510
        %v5512 = vpop.f32.mrf.mxu0
        %v5513 = vadd.f32 0.0, %v5512
        %v5514 = vpop.f32.mrf.mxu0
        %v5515 = vadd.f32 0.0, %v5514
        %5516 = vmatprep.mubr.bf16.mxu0 0
        %5517 = vmatmul.mubr.bf16.gmra.mxu0 %v5433
        %v5518 = vpop.f32.mrf.mxu0
        %v5519 = vadd.f32 0.0, %v5518
        %v5520 = vpop.f32.mrf.mxu0
        %v5521 = vadd.f32 0.0, %v5520
        %v5522 = vpop.f32.mrf.mxu0
        %v5523 = vadd.f32 0.0, %v5522
        %v5524 = vpop.f32.mrf.mxu0
        %v5525 = vadd.f32 0.0, %v5524
        %5526 = vmatprep.mubr.bf16.mxu0 0
        %5527 = vmatmul.mubr.bf16.gmra.mxu0 %v5436
        %v5528 = vpop.f32.mrf.mxu0
        %v5529 = vadd.f32 0.0, %v5528
        %v5530 = vpop.f32.mrf.mxu0
        %v5531 = vadd.f32 0.0, %v5530
        %v5532 = vpop.f32.mrf.mxu0
        %v5533 = vadd.f32 0.0, %v5532
        %v5534 = vpop.f32.mrf.mxu0
        %v5535 = vadd.f32 0.0, %v5534
        %5536 = vmatprep.mubr.bf16.mxu0 0
        %5537 = vmatmul.mubr.bf16.gmra.mxu0 %v5439
        %v5538 = vpop.f32.mrf.mxu0
        %v5539 = vadd.f32 0.0, %v5538
        %v5540 = vpop.f32.mrf.mxu0
        %v5541 = vadd.f32 0.0, %v5540
        %v5542 = vpop.f32.mrf.mxu0
        %v5543 = vadd.f32 0.0, %v5542
        %v5544 = vpop.f32.mrf.mxu0
        %v5545 = vadd.f32 0.0, %v5544
        %5546 = vmatprep.mubr.bf16.mxu0 0
        %5547 = vmatmul.mubr.bf16.gmra.mxu0 %v5442
        %v5548 = vpop.f32.mrf.mxu0
        %v5549 = vadd.f32 0.0, %v5548
        %v5550 = vpop.f32.mrf.mxu0
        %v5551 = vadd.f32 0.0, %v5550
        %v5552 = vpop.f32.mrf.mxu0
        %v5553 = vadd.f32 0.0, %v5552
        %v5554 = vpop.f32.mrf.mxu0
        %v5555 = vadd.f32 0.0, %v5554
        %5556 = vdwg.mxu0
        %5557 = vmatprep.subr.bf16.mxu0 0
        %5558 = vmatpush1.bf16.msra.mxu0 0
        %5559 = vmatprep.subr.bf16.mxu0 0
        %5560 = vmatpush1.bf16.msra.mxu0 0
        %5561 = vmatprep.subr.bf16.mxu0 0
        %5562 = vmatpush1.bf16.msra.mxu0 0
        %5563 = vmatprep.subr.bf16.mxu0 0
        %5564 = vmatpush1.bf16.msra.mxu0 0
        %5565 = vmatprep.subr.bf16.mxu0 0
        %5566 = vmatpush1.bf16.msra.mxu0 %v5379
        %5567 = vmatprep.subr.bf16.mxu0 0
        %5568 = vmatpush1.bf16.msra.mxu0 %v5376
        %5569 = vmatprep.subr.bf16.mxu0 0
        %5570 = vmatpush1.bf16.msra.mxu0 %v5373
        %5571 = vmatprep.subr.bf16.mxu0 0
        %5572 = vmatpush1.bf16.msra.mxu0 %v5370
        %5573 = vmatprep.subr.bf16.mxu0 0
        %5574 = vmatpush2.bf16.msra.mxu0 0
        %5575 = vmatprep.subr.bf16.mxu0 0
        %5576 = vmatpush2.bf16.msra.mxu0 0
        %5577 = vmatprep.subr.bf16.mxu0 0
        %5578 = vmatpush2.bf16.msra.mxu0 0
        %5579 = vmatprep.subr.bf16.mxu0 0
        %5580 = vmatpush2.bf16.msra.mxu0 0
        %5581 = vmatprep.subr.bf16.mxu0 0
        %5582 = vmatpush2.bf16.msra.mxu0 0
        %5583 = vmatprep.subr.bf16.mxu0 0
        %5584 = vmatpush2.bf16.msra.mxu0 0
        %5585 = vmatprep.subr.bf16.mxu0 0
        %5586 = vmatpush2.bf16.msra.mxu0 0
        %5587 = vmatprep.subr.bf16.mxu0 0
        %5588 = vmatpush2.bf16.msra.mxu0 0
        %5589 = vmatprep.mubr.bf16.mxu0 0
        %5590 = vmatmul.mubr.bf16.gmra.mxu0 %v5421
        %v5591 = vpop.f32.mrf.mxu0
        %v5592 = vadd.f32 0.0, %v5591
        %v5593 = vpop.f32.mrf.mxu0
        %v5594 = vpop.f32.mrf.mxu0
        %v5595 = vadd.f32 0.0, %v5594
        %v5596 = vpop.f32.mrf.mxu0
        %5597 = vmatprep.mubr.bf16.mxu0 0
        %5598 = vmatmul.mubr.bf16.gmra.mxu0 %v5424
        %v5599 = vpop.f32.mrf.mxu0
        %v5600 = vadd.f32 0.0, %v5599
        %v5601 = vpop.f32.mrf.mxu0
        %v5602 = vpop.f32.mrf.mxu0
        %v5603 = vadd.f32 0.0, %v5602
        %v5604 = vpop.f32.mrf.mxu0
        %5605 = vmatprep.mubr.bf16.mxu0 0
        %5606 = vmatmul.mubr.bf16.gmra.mxu0 %v5427
        %v5607 = vpop.f32.mrf.mxu0
        %v5608 = vadd.f32 0.0, %v5607
        %v5609 = vpop.f32.mrf.mxu0
        %v5610 = vpop.f32.mrf.mxu0
        %v5611 = vadd.f32 0.0, %v5610
        %v5612 = vpop.f32.mrf.mxu0
        %5613 = vmatprep.mubr.bf16.mxu0 0
        %5614 = vmatmul.mubr.bf16.gmra.mxu0 %v5430
        %v5615 = vpop.f32.mrf.mxu0
        %v5616 = vadd.f32 0.0, %v5615
        %v5617 = vpop.f32.mrf.mxu0
        %v5618 = vpop.f32.mrf.mxu0
        %v5619 = vadd.f32 0.0, %v5618
        %v5620 = vpop.f32.mrf.mxu0
        %5621 = vmatprep.mubr.bf16.mxu0 0
        %5622 = vmatmul.mubr.bf16.gmra.mxu0 %v5433
        %v5623 = vpop.f32.mrf.mxu0
        %v5624 = vadd.f32 0.0, %v5623
        %v5625 = vpop.f32.mrf.mxu0
        %v5626 = vpop.f32.mrf.mxu0
        %v5627 = vadd.f32 0.0, %v5626
        %v5628 = vpop.f32.mrf.mxu0
        %5629 = vmatprep.mubr.bf16.mxu0 0
        %5630 = vmatmul.mubr.bf16.gmra.mxu0 %v5436
        %v5631 = vpop.f32.mrf.mxu0
        %v5632 = vadd.f32 0.0, %v5631
        %v5633 = vpop.f32.mrf.mxu0
        %v5634 = vpop.f32.mrf.mxu0
        %v5635 = vadd.f32 0.0, %v5634
        %v5636 = vpop.f32.mrf.mxu0
        %5637 = vmatprep.mubr.bf16.mxu0 0
        %5638 = vmatmul.mubr.bf16.gmra.mxu0 %v5439
        %v5639 = vpop.f32.mrf.mxu0
        %v5640 = vadd.f32 0.0, %v5639
        %v5641 = vpop.f32.mrf.mxu0
        %v5642 = vpop.f32.mrf.mxu0
        %v5643 = vadd.f32 0.0, %v5642
        %v5644 = vpop.f32.mrf.mxu0
        %5645 = vmatprep.mubr.bf16.mxu0 0
        %5646 = vmatmul.mubr.bf16.gmra.mxu0 %v5442
        %v5647 = vpop.f32.mrf.mxu0
        %v5648 = vadd.f32 0.0, %v5647
        %v5649 = vpop.f32.mrf.mxu0
        %v5650 = vpop.f32.mrf.mxu0
        %v5651 = vadd.f32 0.0, %v5650
        %v5652 = vpop.f32.mrf.mxu0
        %5653 = vdwg.mxu0
        %v5654 = vadd.f32 %v5176, %v5479
        %v5655 = vadd.f32 %v5178, %v5481
        %v5656 = vadd.f32 %v5289, %v5592
        %v5657 = vadd.f32 %v5180, %v5483
        %v5658 = vadd.f32 %v5182, %v5485
        %v5659 = vadd.f32 %v5292, %v5595
        %v5660 = vadd.f32 %v5186, %v5489
        %v5661 = vadd.f32 %v5188, %v5491
        %v5662 = vadd.f32 %v5297, %v5600
        %v5663 = vadd.f32 %v5190, %v5493
        %v5664 = vadd.f32 %v5192, %v5495
        %v5665 = vadd.f32 %v5300, %v5603
        %v5666 = vadd.f32 %v5196, %v5499
        %v5667 = vadd.f32 %v5198, %v5501
        %v5668 = vadd.f32 %v5305, %v5608
        %v5669 = vadd.f32 %v5200, %v5503
        %v5670 = vadd.f32 %v5202, %v5505
        %v5671 = vadd.f32 %v5308, %v5611
        %v5672 = vadd.f32 %v5206, %v5509
        %v5673 = vadd.f32 %v5208, %v5511
        %v5674 = vadd.f32 %v5313, %v5616
        %v5675 = vadd.f32 %v5210, %v5513
        %v5676 = vadd.f32 %v5212, %v5515
        %v5677 = vadd.f32 %v5316, %v5619
        %v5678 = vadd.f32 %v5216, %v5519
        %v5679 = vadd.f32 %v5218, %v5521
        %v5680 = vadd.f32 %v5321, %v5624
        %v5681 = vadd.f32 %v5220, %v5523
        %v5682 = vadd.f32 %v5222, %v5525
        %v5683 = vadd.f32 %v5324, %v5627
        %v5684 = vadd.f32 %v5226, %v5529
        %v5685 = vadd.f32 %v5228, %v5531
        %v5686 = vadd.f32 %v5329, %v5632
        %v5687 = vadd.f32 %v5230, %v5533
        %v5688 = vadd.f32 %v5232, %v5535
        %v5689 = vadd.f32 %v5332, %v5635
        %v5690 = vadd.f32 %v5236, %v5539
        %v5691 = vadd.f32 %v5238, %v5541
        %v5692 = vadd.f32 %v5337, %v5640
        %v5693 = vadd.f32 %v5240, %v5543
        %v5694 = vadd.f32 %v5242, %v5545
        %v5695 = vadd.f32 %v5340, %v5643
        %v5696 = vadd.f32 %v5246, %v5549
        %v5697 = vadd.f32 %v5248, %v5551
        %v5698 = vadd.f32 %v5345, %v5648
        %v5699 = vadd.f32 %v5250, %v5553
        %v5700 = vadd.f32 %v5252, %v5555
        %v5701 = vadd.f32 %v5348, %v5651
        %s5702 = scalar_lea.vmem %s6, 128
        %v5703 = vld [vmem:[%s5702] sm:$0xff]
        %v5704 = vld [vmem:[%s5702 + $0x8] sm:$0xff]
        %v5705 = vld [vmem:[%s5702 + $0x10] sm:$0xff]
        %v5706 = vld [vmem:[%s5702 + $0x18] sm:$0xff]
        %v5707 = vld [vmem:[%s5702 + $0x20] sm:$0xff]
        %v5708 = vld [vmem:[%s5702 + $0x28] sm:$0xff]
        %v5709 = vld [vmem:[%s5702 + $0x30] sm:$0xff]
        %v5710 = vld [vmem:[%s5702 + $0x38] sm:$0xff]
        %v5711 = vld [vmem:[%s5702 + $0x40] sm:$0xff]
        %v5712 = vld [vmem:[%s5702 + $0x48] sm:$0xff]
        %v5713 = vld [vmem:[%s5702 + $0x50] sm:$0xff]
        %v5714 = vld [vmem:[%s5702 + $0x58] sm:$0xff]
        %v5715 = vld [vmem:[%s5702 + $0x60] sm:$0xff]
        %v5716 = vld [vmem:[%s5702 + $0x68] sm:$0xff]
        %v5717 = vld [vmem:[%s5702 + $0x70] sm:$0xff]
        %v5718 = vld [vmem:[%s5702 + $0x78] sm:$0xff]
        %5720 = vset.pattern.permute.xlu0 0
        %5721 = vperm.xlu0 %5720, %v5703
        %v5722 = vpop.permute.xlu0 %5721
        %5725 = vset.pattern.permute.xlu0 0
        %5726 = vperm.xlu0 %5725, %v5704
        %v5727 = vpop.permute.xlu0 %5726
        %5730 = vset.pattern.permute.xlu0 0
        %5731 = vperm.xlu0 %5730, %v5705
        %v5732 = vpop.permute.xlu0 %5731
        %5735 = vset.pattern.permute.xlu0 0
        %5736 = vperm.xlu0 %5735, %v5706
        %v5737 = vpop.permute.xlu0 %5736
        %5740 = vset.pattern.permute.xlu0 0
        %5741 = vperm.xlu0 %5740, %v5707
        %v5742 = vpop.permute.xlu0 %5741
        %5745 = vset.pattern.permute.xlu0 0
        %5746 = vperm.xlu0 %5745, %v5708
        %v5747 = vpop.permute.xlu0 %5746
        %5750 = vset.pattern.permute.xlu0 0
        %5751 = vperm.xlu0 %5750, %v5709
        %v5752 = vpop.permute.xlu0 %5751
        %5755 = vset.pattern.permute.xlu0 0
        %5756 = vperm.xlu0 %5755, %v5710
        %v5757 = vpop.permute.xlu0 %5756
        %5760 = vset.pattern.permute.xlu0 0
        %5761 = vperm.xlu0 %5760, %v5711
        %v5762 = vpop.permute.xlu0 %5761
        %5765 = vset.pattern.permute.xlu0 0
        %5766 = vperm.xlu0 %5765, %v5712
        %v5767 = vpop.permute.xlu0 %5766
        %5770 = vset.pattern.permute.xlu0 0
        %5771 = vperm.xlu0 %5770, %v5713
        %v5772 = vpop.permute.xlu0 %5771
        %5775 = vset.pattern.permute.xlu0 0
        %5776 = vperm.xlu0 %5775, %v5714
        %v5777 = vpop.permute.xlu0 %5776
        %5780 = vset.pattern.permute.xlu0 0
        %5781 = vperm.xlu0 %5780, %v5715
        %v5782 = vpop.permute.xlu0 %5781
        %5785 = vset.pattern.permute.xlu0 0
        %5786 = vperm.xlu0 %5785, %v5716
        %v5787 = vpop.permute.xlu0 %5786
        %5790 = vset.pattern.permute.xlu0 0
        %5791 = vperm.xlu0 %5790, %v5717
        %v5792 = vpop.permute.xlu0 %5791
        %5795 = vset.pattern.permute.xlu0 0
        %5796 = vperm.xlu0 %5795, %v5718
        %v5797 = vpop.permute.xlu0 %5796
        %v5799 = vadd.f32 %v5654, %v5722
        %v5800 = vadd.f32 %v5655, %v5722
        %v5801 = vadd.f32 %v5656, %v5722
        %v5802 = vadd.f32 %v5657, %v5727
        %v5803 = vadd.f32 %v5658, %v5727
        %v5804 = vadd.f32 %v5659, %v5727
        %v5805 = vadd.f32 %v5660, %v5732
        %v5806 = vadd.f32 %v5661, %v5732
        %v5807 = vadd.f32 %v5662, %v5732
        %v5808 = vadd.f32 %v5663, %v5737
        %v5809 = vadd.f32 %v5664, %v5737
        %v5810 = vadd.f32 %v5665, %v5737
        %v5811 = vadd.f32 %v5666, %v5742
        %v5812 = vadd.f32 %v5667, %v5742
        %v5813 = vadd.f32 %v5668, %v5742
        %v5814 = vadd.f32 %v5669, %v5747
        %v5815 = vadd.f32 %v5670, %v5747
        %v5816 = vadd.f32 %v5671, %v5747
        %v5817 = vadd.f32 %v5672, %v5752
        %v5818 = vadd.f32 %v5673, %v5752
        %v5819 = vadd.f32 %v5674, %v5752
        %v5820 = vadd.f32 %v5675, %v5757
        %v5821 = vadd.f32 %v5676, %v5757
        %v5822 = vadd.f32 %v5677, %v5757
        %v5823 = vadd.f32 %v5678, %v5762
        %v5824 = vadd.f32 %v5679, %v5762
        %v5825 = vadd.f32 %v5680, %v5762
        %v5826 = vadd.f32 %v5681, %v5767
        %v5827 = vadd.f32 %v5682, %v5767
        %v5828 = vadd.f32 %v5683, %v5767
        %v5829 = vadd.f32 %v5684, %v5772
        %v5830 = vadd.f32 %v5685, %v5772
        %v5831 = vadd.f32 %v5686, %v5772
        %v5832 = vadd.f32 %v5687, %v5777
        %v5833 = vadd.f32 %v5688, %v5777
        %v5834 = vadd.f32 %v5689, %v5777
        %v5835 = vadd.f32 %v5690, %v5782
        %v5836 = vadd.f32 %v5691, %v5782
        %v5837 = vadd.f32 %v5692, %v5782
        %v5838 = vadd.f32 %v5693, %v5787
        %v5839 = vadd.f32 %v5694, %v5787
        %v5840 = vadd.f32 %v5695, %v5787
        %v5841 = vadd.f32 %v5696, %v5792
        %v5842 = vadd.f32 %v5697, %v5792
        %v5843 = vadd.f32 %v5698, %v5792
        %v5844 = vadd.f32 %v5699, %v5797
        %v5845 = vadd.f32 %v5700, %v5797
        %v5846 = vadd.f32 %v5701, %v5797
        %v5847 = vadd.f32 %v5799, %v1947
        %v5848 = vadd.f32 %v5800, %v1949
        %v5849 = vadd.f32 %v5801, %v2284
        %v5850 = vadd.f32 %v5802, %v1951
        %v5851 = vadd.f32 %v5803, %v1953
        %v5852 = vadd.f32 %v5804, %v2287
        %v5853 = vadd.f32 %v5805, %v1957
        %v5854 = vadd.f32 %v5806, %v1959
        %v5855 = vadd.f32 %v5807, %v2292
        %v5856 = vadd.f32 %v5808, %v1961
        %v5857 = vadd.f32 %v5809, %v1963
        %v5858 = vadd.f32 %v5810, %v2295
        %v5859 = vadd.f32 %v5811, %v1967
        %v5860 = vadd.f32 %v5812, %v1969
        %v5861 = vadd.f32 %v5813, %v2300
        %v5862 = vadd.f32 %v5814, %v1971
        %v5863 = vadd.f32 %v5815, %v1973
        %v5864 = vadd.f32 %v5816, %v2303
        %v5865 = vadd.f32 %v5817, %v1977
        %v5866 = vadd.f32 %v5818, %v1979
        %v5867 = vadd.f32 %v5819, %v2308
        %v5868 = vadd.f32 %v5820, %v1981
        %v5869 = vadd.f32 %v5821, %v1983
        %v5870 = vadd.f32 %v5822, %v2311
        %v5871 = vadd.f32 %v5823, %v1987
        %v5872 = vadd.f32 %v5824, %v1989
        %v5873 = vadd.f32 %v5825, %v2316
        %v5874 = vadd.f32 %v5826, %v1991
        %v5875 = vadd.f32 %v5827, %v1993
        %v5876 = vadd.f32 %v5828, %v2319
        %v5877 = vadd.f32 %v5829, %v1997
        %v5878 = vadd.f32 %v5830, %v1999
        %v5879 = vadd.f32 %v5831, %v2324
        %v5880 = vadd.f32 %v5832, %v2001
        %v5881 = vadd.f32 %v5833, %v2003
        %v5882 = vadd.f32 %v5834, %v2327
        %v5883 = vadd.f32 %v5835, %v2007
        %v5884 = vadd.f32 %v5836, %v2009
        %v5885 = vadd.f32 %v5837, %v2332
        %v5886 = vadd.f32 %v5838, %v2011
        %v5887 = vadd.f32 %v5839, %v2013
        %v5888 = vadd.f32 %v5840, %v2335
        %v5889 = vadd.f32 %v5841, %v2017
        %v5890 = vadd.f32 %v5842, %v2019
        %v5891 = vadd.f32 %v5843, %v2340
        %v5892 = vadd.f32 %v5844, %v2021
        %v5893 = vadd.f32 %v5845, %v2023
        %v5894 = vadd.f32 %v5846, %v2343
        %v5895 = vtanh.pop %v5847
        %v5896 = vtanh.pop %v5848
        %v5897 = vtanh.pop %v5849
        %v5898 = vtanh.pop %v5850
        %v5899 = vtanh.pop %v5851
        %v5900 = vtanh.pop %v5852
        %v5901 = vtanh.pop %v5853
        %v5902 = vtanh.pop %v5854
        %v5903 = vtanh.pop %v5855
        %v5904 = vtanh.pop %v5856
        %v5905 = vtanh.pop %v5857
        %v5906 = vtanh.pop %v5858
        %v5907 = vtanh.pop %v5859
        %v5908 = vtanh.pop %v5860
        %v5909 = vtanh.pop %v5861
        %v5910 = vtanh.pop %v5862
        %v5911 = vtanh.pop %v5863
        %v5912 = vtanh.pop %v5864
        %v5913 = vtanh.pop %v5865
        %v5914 = vtanh.pop %v5866
        %v5915 = vtanh.pop %v5867
        %v5916 = vtanh.pop %v5868
        %v5917 = vtanh.pop %v5869
        %v5918 = vtanh.pop %v5870
        %v5919 = vxor.u32 %v5871, 2147483648
        %v5920 = vxor.u32 %v5872, 2147483648
        %v5921 = vxor.u32 %v5873, 2147483648
        %v5922 = vxor.u32 %v5874, 2147483648
        %v5923 = vxor.u32 %v5875, 2147483648
        %v5924 = vxor.u32 %v5876, 2147483648
        %v5925 = vxor.u32 %v5877, 2147483648
        %v5926 = vxor.u32 %v5878, 2147483648
        %v5927 = vxor.u32 %v5879, 2147483648
        %v5928 = vxor.u32 %v5880, 2147483648
        %v5929 = vxor.u32 %v5881, 2147483648
        %v5930 = vxor.u32 %v5882, 2147483648
        %v5931 = vxor.u32 %v5883, 2147483648
        %v5932 = vxor.u32 %v5884, 2147483648
        %v5933 = vxor.u32 %v5885, 2147483648
        %v5934 = vxor.u32 %v5886, 2147483648
        %v5935 = vxor.u32 %v5887, 2147483648
        %v5936 = vxor.u32 %v5888, 2147483648
        %v5937 = vxor.u32 %v5889, 2147483648
        %v5938 = vxor.u32 %v5890, 2147483648
        %v5939 = vxor.u32 %v5891, 2147483648
        %v5940 = vxor.u32 %v5892, 2147483648
        %v5941 = vxor.u32 %v5893, 2147483648
        %v5942 = vxor.u32 %v5894, 2147483648
        %v5943 = vmul.f32 %v5919, 1.442695
        %v5944 = vpow.pop %v5943
        %v5945 = vmul.f32 %v5920, 1.442695
        %v5946 = vpow.pop %v5945
        %v5947 = vmul.f32 %v5921, 1.442695
        %v5948 = vpow.pop %v5947
        %v5949 = vmul.f32 %v5922, 1.442695
        %v5950 = vpow.pop %v5949
        %v5951 = vmul.f32 %v5923, 1.442695
        %v5952 = vpow.pop %v5951
        %v5953 = vmul.f32 %v5924, 1.442695
        %v5954 = vpow.pop %v5953
        %v5955 = vmul.f32 %v5925, 1.442695
        %v5956 = vpow.pop %v5955
        %v5957 = vmul.f32 %v5926, 1.442695
        %v5958 = vpow.pop %v5957
        %v5959 = vmul.f32 %v5927, 1.442695
        %v5960 = vpow.pop %v5959
        %v5961 = vmul.f32 %v5928, 1.442695
        %v5962 = vpow.pop %v5961
        %v5963 = vmul.f32 %v5929, 1.442695
        %v5964 = vpow.pop %v5963
        %v5965 = vmul.f32 %v5930, 1.442695
        %v5966 = vpow.pop %v5965
        %v5967 = vmul.f32 %v5931, 1.442695
        %v5968 = vpow.pop %v5967
        %v5969 = vmul.f32 %v5932, 1.442695
        %v5970 = vpow.pop %v5969
        %v5971 = vmul.f32 %v5933, 1.442695
        %v5972 = vpow.pop %v5971
        %v5973 = vmul.f32 %v5934, 1.442695
        %v5974 = vpow.pop %v5973
        %v5975 = vmul.f32 %v5935, 1.442695
        %v5976 = vpow.pop %v5975
        %v5977 = vmul.f32 %v5936, 1.442695
        %v5978 = vpow.pop %v5977
        %v5979 = vmul.f32 %v5937, 1.442695
        %v5980 = vpow.pop %v5979
        %v5981 = vmul.f32 %v5938, 1.442695
        %v5982 = vpow.pop %v5981
        %v5983 = vmul.f32 %v5939, 1.442695
        %v5984 = vpow.pop %v5983
        %v5985 = vmul.f32 %v5940, 1.442695
        %v5986 = vpow.pop %v5985
        %v5987 = vmul.f32 %v5941, 1.442695
        %v5988 = vpow.pop %v5987
        %v5989 = vmul.f32 %v5942, 1.442695
        %v5990 = vpow.pop %v5989
        %v5991 = vadd.f32 %v5944, 1.0
        %v5992 = vadd.f32 %v5946, 1.0
        %v5993 = vadd.f32 %v5948, 1.0
        %v5994 = vadd.f32 %v5950, 1.0
        %v5995 = vadd.f32 %v5952, 1.0
        %v5996 = vadd.f32 %v5954, 1.0
        %v5997 = vadd.f32 %v5956, 1.0
        %v5998 = vadd.f32 %v5958, 1.0
        %v5999 = vadd.f32 %v5960, 1.0
        %v6000 = vadd.f32 %v5962, 1.0
        %v6001 = vadd.f32 %v5964, 1.0
        %v6002 = vadd.f32 %v5966, 1.0
        %v6003 = vadd.f32 %v5968, 1.0
        %v6004 = vadd.f32 %v5970, 1.0
        %v6005 = vadd.f32 %v5972, 1.0
        %v6006 = vadd.f32 %v5974, 1.0
        %v6007 = vadd.f32 %v5976, 1.0
        %v6008 = vadd.f32 %v5978, 1.0
        %v6009 = vadd.f32 %v5980, 1.0
        %v6010 = vadd.f32 %v5982, 1.0
        %v6011 = vadd.f32 %v5984, 1.0
        %v6012 = vadd.f32 %v5986, 1.0
        %v6013 = vadd.f32 %v5988, 1.0
        %v6014 = vadd.f32 %v5990, 1.0
        %v6015 = vrcp.pop %v5991
        %v6016 = vmul.f32 1.0, %v6015
        %v6017 = vrcp.pop %v5992
        %v6018 = vmul.f32 1.0, %v6017
        %v6019 = vrcp.pop %v5993
        %v6020 = vmul.f32 1.0, %v6019
        %v6021 = vrcp.pop %v5994
        %v6022 = vmul.f32 1.0, %v6021
        %v6023 = vrcp.pop %v5995
        %v6024 = vmul.f32 1.0, %v6023
        %v6025 = vrcp.pop %v5996
        %v6026 = vmul.f32 1.0, %v6025
        %v6027 = vrcp.pop %v5997
        %v6028 = vmul.f32 1.0, %v6027
        %v6029 = vrcp.pop %v5998
        %v6030 = vmul.f32 1.0, %v6029
        %v6031 = vrcp.pop %v5999
        %v6032 = vmul.f32 1.0, %v6031
        %v6033 = vrcp.pop %v6000
        %v6034 = vmul.f32 1.0, %v6033
        %v6035 = vrcp.pop %v6001
        %v6036 = vmul.f32 1.0, %v6035
        %v6037 = vrcp.pop %v6002
        %v6038 = vmul.f32 1.0, %v6037
        %v6039 = vrcp.pop %v6003
        %v6040 = vmul.f32 1.0, %v6039
        %v6041 = vrcp.pop %v6004
        %v6042 = vmul.f32 1.0, %v6041
        %v6043 = vrcp.pop %v6005
        %v6044 = vmul.f32 1.0, %v6043
        %v6045 = vrcp.pop %v6006
        %v6046 = vmul.f32 1.0, %v6045
        %v6047 = vrcp.pop %v6007
        %v6048 = vmul.f32 1.0, %v6047
        %v6049 = vrcp.pop %v6008
        %v6050 = vmul.f32 1.0, %v6049
        %v6051 = vrcp.pop %v6009
        %v6052 = vmul.f32 1.0, %v6051
        %v6053 = vrcp.pop %v6010
        %v6054 = vmul.f32 1.0, %v6053
        %v6055 = vrcp.pop %v6011
        %v6056 = vmul.f32 1.0, %v6055
        %v6057 = vrcp.pop %v6012
        %v6058 = vmul.f32 1.0, %v6057
        %v6059 = vrcp.pop %v6013
        %v6060 = vmul.f32 1.0, %v6059
        %v6061 = vrcp.pop %v6014
        %v6062 = vmul.f32 1.0, %v6061
        %v6063 = vmul.f32 %v5895, %v6016
        %v6064 = vmul.f32 %v5896, %v6018
        %v6065 = vmul.f32 %v5897, %v6020
        %v6066 = vmul.f32 %v5898, %v6022
        %v6067 = vmul.f32 %v5899, %v6024
        %v6068 = vmul.f32 %v5900, %v6026
        %v6069 = vmul.f32 %v5901, %v6028
        %v6070 = vmul.f32 %v5902, %v6030
        %v6071 = vmul.f32 %v5903, %v6032
        %v6072 = vmul.f32 %v5904, %v6034
        %v6073 = vmul.f32 %v5905, %v6036
        %v6074 = vmul.f32 %v5906, %v6038
        %v6075 = vmul.f32 %v5907, %v6040
        %v6076 = vmul.f32 %v5908, %v6042
        %v6077 = vmul.f32 %v5909, %v6044
        %v6078 = vmul.f32 %v5910, %v6046
        %v6079 = vmul.f32 %v5911, %v6048
        %v6080 = vmul.f32 %v5912, %v6050
        %v6081 = vmul.f32 %v5913, %v6052
        %v6082 = vmul.f32 %v5914, %v6054
        %v6083 = vmul.f32 %v5915, %v6056
        %v6084 = vmul.f32 %v5916, %v6058
        %v6085 = vmul.f32 %v5917, %v6060
        %v6086 = vmul.f32 %v5918, %v6062
        %s6087 = scalar_lea.vmem %s9, 64
        %v6088 = vld [vmem:[%s6087] sm:$0xf]
        %v6089 = vld [vmem:[%s6087 + $0x4] sm:$0xf]
        %v6090 = vld [vmem:[%s6087 + $0x8] sm:$0xf]
        %v6091 = vld [vmem:[%s6087 + $0xc] sm:$0xf]
        %v6092 = vld [vmem:[%s6087 + $0x10] sm:$0xf]
        %v6093 = vld [vmem:[%s6087 + $0x14] sm:$0xf]
        %v6094 = vld [vmem:[%s6087 + $0x18] sm:$0xf]
        %v6095 = vld [vmem:[%s6087 + $0x1c] sm:$0xf]
        %v6096 = vld [vmem:[%s6087 + $0x20] sm:$0xf]
        %v6097 = vld [vmem:[%s6087 + $0x24] sm:$0xf]
        %v6098 = vld [vmem:[%s6087 + $0x28] sm:$0xf]
        %v6099 = vld [vmem:[%s6087 + $0x2c] sm:$0xf]
        %v6100 = vld [vmem:[%s6087 + $0x30] sm:$0xf]
        %v6101 = vld [vmem:[%s6087 + $0x34] sm:$0xf]
        %v6102 = vld [vmem:[%s6087 + $0x38] sm:$0xf]
        %v6103 = vld [vmem:[%s6087 + $0x3c] sm:$0xf]
        %v6104 = vpack.c.bf16 %v6066, %v6063
        %v6105 = vpack.c.bf16 %v6067, %v6064
        %v6106 = vpack.c.bf16 %v6068, %v6065
        %v6107 = vpack.c.bf16 %v6072, %v6069
        %v6108 = vpack.c.bf16 %v6073, %v6070
        %v6109 = vpack.c.bf16 %v6074, %v6071
        %v6110 = vpack.c.bf16 %v6078, %v6075
        %v6111 = vpack.c.bf16 %v6079, %v6076
        %v6112 = vpack.c.bf16 %v6080, %v6077
        %v6113 = vpack.c.bf16 %v6084, %v6081
        %v6114 = vpack.c.bf16 %v6085, %v6082
        %v6115 = vpack.c.bf16 %v6086, %v6083
        %s6116 = scalar_lea.vmem %s10, 128
        %v6117 = vld [vmem:[%s6116] sm:$0xff]
        %v6118 = vld [vmem:[%s6116 + $0x8] sm:$0xff]
        %v6119 = vld [vmem:[%s6116 + $0x10] sm:$0xff]
        %v6120 = vld [vmem:[%s6116 + $0x18] sm:$0xff]
        %v6121 = vld [vmem:[%s6116 + $0x20] sm:$0xff]
        %v6122 = vld [vmem:[%s6116 + $0x28] sm:$0xff]
        %v6123 = vld [vmem:[%s6116 + $0x30] sm:$0xff]
        %v6124 = vld [vmem:[%s6116 + $0x38] sm:$0xff]
        %v6125 = vld [vmem:[%s6116 + $0x40] sm:$0xff]
        %v6126 = vld [vmem:[%s6116 + $0x48] sm:$0xff]
        %v6127 = vld [vmem:[%s6116 + $0x50] sm:$0xff]
        %v6128 = vld [vmem:[%s6116 + $0x58] sm:$0xff]
        %v6129 = vld [vmem:[%s6116 + $0x60] sm:$0xff]
        %v6130 = vld [vmem:[%s6116 + $0x68] sm:$0xff]
        %v6131 = vld [vmem:[%s6116 + $0x70] sm:$0xff]
        %v6132 = vld [vmem:[%s6116 + $0x78] sm:$0xff]
        %6134 = vset.pattern.permute.xlu0 0
        %6135 = vperm.xlu0 %6134, %v6117
        %v6136 = vpop.permute.xlu0 %6135
        %6139 = vset.pattern.permute.xlu0 0
        %6140 = vperm.xlu0 %6139, %v6118
        %v6141 = vpop.permute.xlu0 %6140
        %6144 = vset.pattern.permute.xlu0 0
        %6145 = vperm.xlu0 %6144, %v6119
        %v6146 = vpop.permute.xlu0 %6145
        %6149 = vset.pattern.permute.xlu0 0
        %6150 = vperm.xlu0 %6149, %v6120
        %v6151 = vpop.permute.xlu0 %6150
        %6154 = vset.pattern.permute.xlu0 0
        %6155 = vperm.xlu0 %6154, %v6121
        %v6156 = vpop.permute.xlu0 %6155
        %6159 = vset.pattern.permute.xlu0 0
        %6160 = vperm.xlu0 %6159, %v6122
        %v6161 = vpop.permute.xlu0 %6160
        %6164 = vset.pattern.permute.xlu0 0
        %6165 = vperm.xlu0 %6164, %v6123
        %v6166 = vpop.permute.xlu0 %6165
        %6169 = vset.pattern.permute.xlu0 0
        %6170 = vperm.xlu0 %6169, %v6124
        %v6171 = vpop.permute.xlu0 %6170
        %6174 = vset.pattern.permute.xlu0 0
        %6175 = vperm.xlu0 %6174, %v6125
        %v6176 = vpop.permute.xlu0 %6175
        %6179 = vset.pattern.permute.xlu0 0
        %6180 = vperm.xlu0 %6179, %v6126
        %v6181 = vpop.permute.xlu0 %6180
        %6184 = vset.pattern.permute.xlu0 0
        %6185 = vperm.xlu0 %6184, %v6127
        %v6186 = vpop.permute.xlu0 %6185
        %6189 = vset.pattern.permute.xlu0 0
        %6190 = vperm.xlu0 %6189, %v6128
        %v6191 = vpop.permute.xlu0 %6190
        %6194 = vset.pattern.permute.xlu0 0
        %6195 = vperm.xlu0 %6194, %v6129
        %v6196 = vpop.permute.xlu0 %6195
        %6199 = vset.pattern.permute.xlu0 0
        %6200 = vperm.xlu0 %6199, %v6130
        %v6201 = vpop.permute.xlu0 %6200
        %6204 = vset.pattern.permute.xlu0 0
        %6205 = vperm.xlu0 %6204, %v6131
        %v6206 = vpop.permute.xlu0 %6205
        %6209 = vset.pattern.permute.xlu0 0
        %6210 = vperm.xlu0 %6209, %v6132
        %v6211 = vpop.permute.xlu0 %6210
        %v6229 = vunpack.c.l.b16 %v6088
        %v6230 = vunpack.c.l.b16 %v6089
        %v6231 = vunpack.c.l.b16 %v6090
        %v6232 = vunpack.c.l.b16 %v6091
        %v6233 = vunpack.c.l.b16 %v6092
        %v6234 = vunpack.c.l.b16 %v6093
        %v6235 = vunpack.c.l.b16 %v6094
        %v6236 = vunpack.c.l.b16 %v6095
        %v6237 = vunpack.c.l.b16 %v6096
        %v6238 = vunpack.c.l.b16 %v6097
        %v6239 = vunpack.c.l.b16 %v6098
        %v6240 = vunpack.c.l.b16 %v6099
        %v6241 = vunpack.c.l.b16 %v6100
        %v6242 = vunpack.c.l.b16 %v6101
        %v6243 = vunpack.c.l.b16 %v6102
        %v6244 = vunpack.c.l.b16 %v6103
        %v6245 = vpack.c.b16 %v6230, %v6229
        %v6246 = vpack.c.b16 %v6232, %v6231
        %v6247 = vpack.c.b16 %v6234, %v6233
        %v6248 = vpack.c.b16 %v6236, %v6235
        %v6249 = vpack.c.b16 %v6238, %v6237
        %v6250 = vpack.c.b16 %v6240, %v6239
        %v6251 = vpack.c.b16 %v6242, %v6241
        %v6252 = vpack.c.b16 %v6244, %v6243
        %v6254 = vsel %vm2813, %v6245, 0
        %v6257 = vsel %vm2813, %v6246, 0
        %v6260 = vsel %vm2813, %v6247, 0
        %v6263 = vsel %vm2813, %v6248, 0
        %v6266 = vsel %vm2813, %v6249, 0
        %v6269 = vsel %vm2813, %v6250, 0
        %v6272 = vsel %vm2813, %v6251, 0
        %v6275 = vsel %vm2813, %v6252, 0
        %6277 = vmatprep.subr.bf16.mxu0 0
        %6278 = vmatpush1.bf16.msra.mxu0 0
        %6279 = vmatprep.subr.bf16.mxu0 0
        %6280 = vmatpush1.bf16.msra.mxu0 0
        %6281 = vmatprep.subr.bf16.mxu0 0
        %6282 = vmatpush1.bf16.msra.mxu0 0
        %6283 = vmatprep.subr.bf16.mxu0 0
        %6284 = vmatpush1.bf16.msra.mxu0 0
        %6285 = vmatprep.subr.bf16.mxu0 %v6114
        %6286 = vmatpush1.bf16.msra.mxu0 %v6113
        %6287 = vmatprep.subr.bf16.mxu0 %v6111
        %6288 = vmatpush1.bf16.msra.mxu0 %v6110
        %6289 = vmatprep.subr.bf16.mxu0 %v6108
        %6290 = vmatpush1.bf16.msra.mxu0 %v6107
        %6291 = vmatprep.subr.bf16.mxu0 %v6105
        %6292 = vmatpush1.bf16.msra.mxu0 %v6104
        %6293 = vmatprep.subr.bf16.mxu0 0
        %6294 = vmatpush2.bf16.msra.mxu0 0
        %6295 = vmatprep.subr.bf16.mxu0 0
        %6296 = vmatpush2.bf16.msra.mxu0 0
        %6297 = vmatprep.subr.bf16.mxu0 0
        %6298 = vmatpush2.bf16.msra.mxu0 0
        %6299 = vmatprep.subr.bf16.mxu0 0
        %6300 = vmatpush2.bf16.msra.mxu0 0
        %6301 = vmatprep.subr.bf16.mxu0 0
        %6302 = vmatpush2.bf16.msra.mxu0 0
        %6303 = vmatprep.subr.bf16.mxu0 0
        %6304 = vmatpush2.bf16.msra.mxu0 0
        %6305 = vmatprep.subr.bf16.mxu0 0
        %6306 = vmatpush2.bf16.msra.mxu0 0
        %6307 = vmatprep.subr.bf16.mxu0 0
        %6308 = vmatpush2.bf16.msra.mxu0 0
        %6309 = vmatprep.mubr.bf16.mxu0 0
        %6310 = vmatmul.mubr.bf16.gmra.mxu0 %v6254
        %v6311 = vpop.f32.mrf.mxu0
        %v6312 = vadd.f32 %v6136, %v6311
        %v6313 = vpop.f32.mrf.mxu0
        %v6314 = vadd.f32 %v6136, %v6313
        %v6315 = vpop.f32.mrf.mxu0
        %v6316 = vadd.f32 %v6141, %v6315
        %v6317 = vpop.f32.mrf.mxu0
        %v6318 = vadd.f32 %v6141, %v6317
        %6319 = vmatprep.mubr.bf16.mxu0 0
        %6320 = vmatmul.mubr.bf16.gmra.mxu0 %v6257
        %v6321 = vpop.f32.mrf.mxu0
        %v6322 = vadd.f32 %v6146, %v6321
        %v6323 = vpop.f32.mrf.mxu0
        %v6324 = vadd.f32 %v6146, %v6323
        %v6325 = vpop.f32.mrf.mxu0
        %v6326 = vadd.f32 %v6151, %v6325
        %v6327 = vpop.f32.mrf.mxu0
        %v6328 = vadd.f32 %v6151, %v6327
        %6329 = vmatprep.mubr.bf16.mxu0 0
        %6330 = vmatmul.mubr.bf16.gmra.mxu0 %v6260
        %v6331 = vpop.f32.mrf.mxu0
        %v6332 = vadd.f32 %v6156, %v6331
        %v6333 = vpop.f32.mrf.mxu0
        %v6334 = vadd.f32 %v6156, %v6333
        %v6335 = vpop.f32.mrf.mxu0
        %v6336 = vadd.f32 %v6161, %v6335
        %v6337 = vpop.f32.mrf.mxu0
        %v6338 = vadd.f32 %v6161, %v6337
        %6339 = vmatprep.mubr.bf16.mxu0 0
        %6340 = vmatmul.mubr.bf16.gmra.mxu0 %v6263
        %v6341 = vpop.f32.mrf.mxu0
        %v6342 = vadd.f32 %v6166, %v6341
        %v6343 = vpop.f32.mrf.mxu0
        %v6344 = vadd.f32 %v6166, %v6343
        %v6345 = vpop.f32.mrf.mxu0
        %v6346 = vadd.f32 %v6171, %v6345
        %v6347 = vpop.f32.mrf.mxu0
        %v6348 = vadd.f32 %v6171, %v6347
        %6349 = vmatprep.mubr.bf16.mxu0 0
        %6350 = vmatmul.mubr.bf16.gmra.mxu0 %v6266
        %v6351 = vpop.f32.mrf.mxu0
        %v6352 = vadd.f32 %v6176, %v6351
        %v6353 = vpop.f32.mrf.mxu0
        %v6354 = vadd.f32 %v6176, %v6353
        %v6355 = vpop.f32.mrf.mxu0
        %v6356 = vadd.f32 %v6181, %v6355
        %v6357 = vpop.f32.mrf.mxu0
        %v6358 = vadd.f32 %v6181, %v6357
        %6359 = vmatprep.mubr.bf16.mxu0 0
        %6360 = vmatmul.mubr.bf16.gmra.mxu0 %v6269
        %v6361 = vpop.f32.mrf.mxu0
        %v6362 = vadd.f32 %v6186, %v6361
        %v6363 = vpop.f32.mrf.mxu0
        %v6364 = vadd.f32 %v6186, %v6363
        %v6365 = vpop.f32.mrf.mxu0
        %v6366 = vadd.f32 %v6191, %v6365
        %v6367 = vpop.f32.mrf.mxu0
        %v6368 = vadd.f32 %v6191, %v6367
        %6369 = vmatprep.mubr.bf16.mxu0 0
        %6370 = vmatmul.mubr.bf16.gmra.mxu0 %v6272
        %v6371 = vpop.f32.mrf.mxu0
        %v6372 = vadd.f32 %v6196, %v6371
        %v6373 = vpop.f32.mrf.mxu0
        %v6374 = vadd.f32 %v6196, %v6373
        %v6375 = vpop.f32.mrf.mxu0
        %v6376 = vadd.f32 %v6201, %v6375
        %v6377 = vpop.f32.mrf.mxu0
        %v6378 = vadd.f32 %v6201, %v6377
        %6379 = vmatprep.mubr.bf16.mxu0 0
        %6380 = vmatmul.mubr.bf16.gmra.mxu0 %v6275
        %v6381 = vpop.f32.mrf.mxu0
        %v6382 = vadd.f32 %v6206, %v6381
        %v6383 = vpop.f32.mrf.mxu0
        %v6384 = vadd.f32 %v6206, %v6383
        %v6385 = vpop.f32.mrf.mxu0
        %v6386 = vadd.f32 %v6211, %v6385
        %v6387 = vpop.f32.mrf.mxu0
        %v6388 = vadd.f32 %v6211, %v6387
        %6389 = vdwg.mxu0
        %6390 = vmatprep.subr.bf16.mxu0 0
        %6391 = vmatpush1.bf16.msra.mxu0 0
        %6392 = vmatprep.subr.bf16.mxu0 0
        %6393 = vmatpush1.bf16.msra.mxu0 0
        %6394 = vmatprep.subr.bf16.mxu0 0
        %6395 = vmatpush1.bf16.msra.mxu0 0
        %6396 = vmatprep.subr.bf16.mxu0 0
        %6397 = vmatpush1.bf16.msra.mxu0 0
        %6398 = vmatprep.subr.bf16.mxu0 0
        %6399 = vmatpush1.bf16.msra.mxu0 %v6115
        %6400 = vmatprep.subr.bf16.mxu0 0
        %6401 = vmatpush1.bf16.msra.mxu0 %v6112
        %6402 = vmatprep.subr.bf16.mxu0 0
        %6403 = vmatpush1.bf16.msra.mxu0 %v6109
        %6404 = vmatprep.subr.bf16.mxu0 0
        %6405 = vmatpush1.bf16.msra.mxu0 %v6106
        %6406 = vmatprep.subr.bf16.mxu0 0
        %6407 = vmatpush2.bf16.msra.mxu0 0
        %6408 = vmatprep.subr.bf16.mxu0 0
        %6409 = vmatpush2.bf16.msra.mxu0 0
        %6410 = vmatprep.subr.bf16.mxu0 0
        %6411 = vmatpush2.bf16.msra.mxu0 0
        %6412 = vmatprep.subr.bf16.mxu0 0
        %6413 = vmatpush2.bf16.msra.mxu0 0
        %6414 = vmatprep.subr.bf16.mxu0 0
        %6415 = vmatpush2.bf16.msra.mxu0 0
        %6416 = vmatprep.subr.bf16.mxu0 0
        %6417 = vmatpush2.bf16.msra.mxu0 0
        %6418 = vmatprep.subr.bf16.mxu0 0
        %6419 = vmatpush2.bf16.msra.mxu0 0
        %6420 = vmatprep.subr.bf16.mxu0 0
        %6421 = vmatpush2.bf16.msra.mxu0 0
        %6422 = vmatprep.mubr.bf16.mxu0 0
        %6423 = vmatmul.mubr.bf16.gmra.mxu0 %v6254
        %v6424 = vpop.f32.mrf.mxu0
        %v6425 = vadd.f32 %v6136, %v6424
        %v6426 = vpop.f32.mrf.mxu0
        %v6427 = vpop.f32.mrf.mxu0
        %v6428 = vadd.f32 %v6141, %v6427
        %v6429 = vpop.f32.mrf.mxu0
        %6430 = vmatprep.mubr.bf16.mxu0 0
        %6431 = vmatmul.mubr.bf16.gmra.mxu0 %v6257
        %v6432 = vpop.f32.mrf.mxu0
        %v6433 = vadd.f32 %v6146, %v6432
        %v6434 = vpop.f32.mrf.mxu0
        %v6435 = vpop.f32.mrf.mxu0
        %v6436 = vadd.f32 %v6151, %v6435
        %v6437 = vpop.f32.mrf.mxu0
        %6438 = vmatprep.mubr.bf16.mxu0 0
        %6439 = vmatmul.mubr.bf16.gmra.mxu0 %v6260
        %v6440 = vpop.f32.mrf.mxu0
        %v6441 = vadd.f32 %v6156, %v6440
        %v6442 = vpop.f32.mrf.mxu0
        %v6443 = vpop.f32.mrf.mxu0
        %v6444 = vadd.f32 %v6161, %v6443
        %v6445 = vpop.f32.mrf.mxu0
        %6446 = vmatprep.mubr.bf16.mxu0 0
        %6447 = vmatmul.mubr.bf16.gmra.mxu0 %v6263
        %v6448 = vpop.f32.mrf.mxu0
        %v6449 = vadd.f32 %v6166, %v6448
        %v6450 = vpop.f32.mrf.mxu0
        %v6451 = vpop.f32.mrf.mxu0
        %v6452 = vadd.f32 %v6171, %v6451
        %v6453 = vpop.f32.mrf.mxu0
        %6454 = vmatprep.mubr.bf16.mxu0 0
        %6455 = vmatmul.mubr.bf16.gmra.mxu0 %v6266
        %v6456 = vpop.f32.mrf.mxu0
        %v6457 = vadd.f32 %v6176, %v6456
        %v6458 = vpop.f32.mrf.mxu0
        %v6459 = vpop.f32.mrf.mxu0
        %v6460 = vadd.f32 %v6181, %v6459
        %v6461 = vpop.f32.mrf.mxu0
        %6462 = vmatprep.mubr.bf16.mxu0 0
        %6463 = vmatmul.mubr.bf16.gmra.mxu0 %v6269
        %v6464 = vpop.f32.mrf.mxu0
        %v6465 = vadd.f32 %v6186, %v6464
        %v6466 = vpop.f32.mrf.mxu0
        %v6467 = vpop.f32.mrf.mxu0
        %v6468 = vadd.f32 %v6191, %v6467
        %v6469 = vpop.f32.mrf.mxu0
        %6470 = vmatprep.mubr.bf16.mxu0 0
        %6471 = vmatmul.mubr.bf16.gmra.mxu0 %v6272
        %v6472 = vpop.f32.mrf.mxu0
        %v6473 = vadd.f32 %v6196, %v6472
        %v6474 = vpop.f32.mrf.mxu0
        %v6475 = vpop.f32.mrf.mxu0
        %v6476 = vadd.f32 %v6201, %v6475
        %v6477 = vpop.f32.mrf.mxu0
        %6478 = vmatprep.mubr.bf16.mxu0 0
        %6479 = vmatmul.mubr.bf16.gmra.mxu0 %v6275
        %v6480 = vpop.f32.mrf.mxu0
        %v6481 = vadd.f32 %v6206, %v6480
        %v6482 = vpop.f32.mrf.mxu0
        %v6483 = vpop.f32.mrf.mxu0
        %v6484 = vadd.f32 %v6211, %v6483
        %v6485 = vpop.f32.mrf.mxu0
        %6486 = vdwg.mxu0
        %v6487 = vadd.f32 %v4455, %v6312
        %v6488 = vadd.f32 %v4456, %v6314
        %v6489 = vadd.f32 %v4457, %v6425
        %v6490 = vadd.f32 %v4458, %v6316
        %v6491 = vadd.f32 %v4459, %v6318
        %v6492 = vadd.f32 %v4460, %v6428
        %v6493 = vadd.f32 %v4461, %v6322
        %v6494 = vadd.f32 %v4462, %v6324
        %v6495 = vadd.f32 %v4463, %v6433
        %v6496 = vadd.f32 %v4464, %v6326
        %v6497 = vadd.f32 %v4465, %v6328
        %v6498 = vadd.f32 %v4466, %v6436
        %v6499 = vadd.f32 %v4467, %v6332
        %v6500 = vadd.f32 %v4468, %v6334
        %v6501 = vadd.f32 %v4469, %v6441
        %v6502 = vadd.f32 %v4470, %v6336
        %v6503 = vadd.f32 %v4471, %v6338
        %v6504 = vadd.f32 %v4472, %v6444
        %v6505 = vadd.f32 %v4473, %v6342
        %v6506 = vadd.f32 %v4474, %v6344
        %v6507 = vadd.f32 %v4475, %v6449
        %v6508 = vadd.f32 %v4476, %v6346
        %v6509 = vadd.f32 %v4477, %v6348
        %v6510 = vadd.f32 %v4478, %v6452
        %v6511 = vadd.f32 %v4479, %v6352
        %v6512 = vadd.f32 %v4480, %v6354
        %v6513 = vadd.f32 %v4481, %v6457
        %v6514 = vadd.f32 %v4482, %v6356
        %v6515 = vadd.f32 %v4483, %v6358
        %v6516 = vadd.f32 %v4484, %v6460
        %v6517 = vadd.f32 %v4485, %v6362
        %v6518 = vadd.f32 %v4486, %v6364
        %v6519 = vadd.f32 %v4487, %v6465
        %v6520 = vadd.f32 %v4488, %v6366
        %v6521 = vadd.f32 %v4489, %v6368
        %v6522 = vadd.f32 %v4490, %v6468
        %v6523 = vadd.f32 %v4491, %v6372
        %v6524 = vadd.f32 %v4492, %v6374
        %v6525 = vadd.f32 %v4493, %v6473
        %v6526 = vadd.f32 %v4494, %v6376
        %v6527 = vadd.f32 %v4495, %v6378
        %v6528 = vadd.f32 %v4496, %v6476
        %v6529 = vadd.f32 %v4497, %v6382
        %v6530 = vadd.f32 %v4498, %v6384
        %v6531 = vadd.f32 %v4499, %v6481
        %v6532 = vadd.f32 %v4500, %v6386
        %v6533 = vadd.f32 %v4501, %v6388
        %v6534 = vadd.f32 %v4502, %v6484
        %v6535 = vmul.f32 %v6487, %v735
        %v6536 = vmul.f32 %v6488, %v736
        %v6537 = vmul.f32 %v6489, %v737
        %v6538 = vmul.f32 %v6490, %v735
        %v6539 = vmul.f32 %v6491, %v736
        %v6540 = vmul.f32 %v6492, %v737
        %v6541 = vmul.f32 %v6493, %v735
        %v6542 = vmul.f32 %v6494, %v736
        %v6543 = vmul.f32 %v6495, %v737
        %v6544 = vmul.f32 %v6496, %v735
        %v6545 = vmul.f32 %v6497, %v736
        %v6546 = vmul.f32 %v6498, %v737
        %v6547 = vmul.f32 %v6499, %v735
        %v6548 = vmul.f32 %v6500, %v736
        %v6549 = vmul.f32 %v6501, %v737
        %v6550 = vmul.f32 %v6502, %v735
        %v6551 = vmul.f32 %v6503, %v736
        %v6552 = vmul.f32 %v6504, %v737
        %v6553 = vmul.f32 %v6505, %v735
        %v6554 = vmul.f32 %v6506, %v736
        %v6555 = vmul.f32 %v6507, %v737
        %v6556 = vmul.f32 %v6508, %v735
        %v6557 = vmul.f32 %v6509, %v736
        %v6558 = vmul.f32 %v6510, %v737
        %6583 = vrot.lane.b32.xlu0 %v6535, 4
        %v6584 = vpop.permute.xlu0 %6583
        %6585 = vrot.lane.b32.xlu0 %v6536, 4
        %v6586 = vpop.permute.xlu0 %6585
        %6587 = vrot.lane.b32.xlu0 %v6537, 4
        %v6588 = vpop.permute.xlu0 %6587
        %6589 = vrot.lane.b32.xlu0 %v6538, 4
        %v6590 = vpop.permute.xlu0 %6589
        %6591 = vrot.lane.b32.xlu0 %v6539, 4
        %v6592 = vpop.permute.xlu0 %6591
        %6593 = vrot.lane.b32.xlu0 %v6540, 4
        %v6594 = vpop.permute.xlu0 %6593
        %6595 = vrot.lane.b32.xlu0 %v6541, 4
        %v6596 = vpop.permute.xlu0 %6595
        %6597 = vrot.lane.b32.xlu0 %v6542, 4
        %v6598 = vpop.permute.xlu0 %6597
        %6599 = vrot.lane.b32.xlu0 %v6543, 4
        %v6600 = vpop.permute.xlu0 %6599
        %6601 = vrot.lane.b32.xlu0 %v6544, 4
        %v6602 = vpop.permute.xlu0 %6601
        %6603 = vrot.lane.b32.xlu0 %v6545, 4
        %v6604 = vpop.permute.xlu0 %6603
        %6605 = vrot.lane.b32.xlu0 %v6546, 4
        %v6606 = vpop.permute.xlu0 %6605
        %6607 = vrot.lane.b32.xlu0 %v6547, 4
        %v6608 = vpop.permute.xlu0 %6607
        %6609 = vrot.lane.b32.xlu0 %v6548, 4
        %v6610 = vpop.permute.xlu0 %6609
        %6611 = vrot.lane.b32.xlu0 %v6549, 4
        %v6612 = vpop.permute.xlu0 %6611
        %6613 = vrot.lane.b32.xlu0 %v6550, 4
        %v6614 = vpop.permute.xlu0 %6613
        %6615 = vrot.lane.b32.xlu0 %v6551, 4
        %v6616 = vpop.permute.xlu0 %6615
        %6617 = vrot.lane.b32.xlu0 %v6552, 4
        %v6618 = vpop.permute.xlu0 %6617
        %6619 = vrot.lane.b32.xlu0 %v6553, 4
        %v6620 = vpop.permute.xlu0 %6619
        %6621 = vrot.lane.b32.xlu0 %v6554, 4
        %v6622 = vpop.permute.xlu0 %6621
        %6623 = vrot.lane.b32.xlu0 %v6555, 4
        %v6624 = vpop.permute.xlu0 %6623
        %6625 = vrot.lane.b32.xlu0 %v6556, 4
        %v6626 = vpop.permute.xlu0 %6625
        %6627 = vrot.lane.b32.xlu0 %v6557, 4
        %v6628 = vpop.permute.xlu0 %6627
        %6629 = vrot.lane.b32.xlu0 %v6558, 4
        %v6630 = vpop.permute.xlu0 %6629
        %v6631 = vsel %vm794, %v6584, %v6586
        %v6632 = vsel %vm794, %v6586, %v6588
        %v6633 = vsel %vm794, %v6590, %v6592
        %v6634 = vsel %vm794, %v6592, %v6594
        %v6635 = vsel %vm794, %v6596, %v6598
        %v6636 = vsel %vm794, %v6598, %v6600
        %v6637 = vsel %vm794, %v6602, %v6604
        %v6638 = vsel %vm794, %v6604, %v6606
        %v6639 = vsel %vm794, %v6608, %v6610
        %v6640 = vsel %vm794, %v6610, %v6612
        %v6641 = vsel %vm794, %v6614, %v6616
        %v6642 = vsel %vm794, %v6616, %v6618
        %v6643 = vsel %vm794, %v6620, %v6622
        %v6644 = vsel %vm794, %v6622, %v6624
        %v6645 = vsel %vm794, %v6626, %v6628
        %v6646 = vsel %vm794, %v6628, %v6630
        %v6671 = vsel %vm794, 0.0, %v6584
        %v6672 = vsel %vm794, 0.0, %v6590
        %v6673 = vsel %vm794, 0.0, %v6596
        %v6674 = vsel %vm794, 0.0, %v6602
        %v6675 = vsel %vm794, 0.0, %v6608
        %v6676 = vsel %vm794, 0.0, %v6614
        %v6677 = vsel %vm794, 0.0, %v6620
        %v6678 = vsel %vm794, 0.0, %v6626
        %6679 = vrot.lane.b32.xlu0 %v6535, 124
        %v6680 = vpop.permute.xlu0 %6679
        %6681 = vrot.lane.b32.xlu0 %v6536, 124
        %v6682 = vpop.permute.xlu0 %6681
        %6683 = vrot.lane.b32.xlu0 %v6537, 124
        %v6684 = vpop.permute.xlu0 %6683
        %6685 = vrot.lane.b32.xlu0 %v6538, 124
        %v6686 = vpop.permute.xlu0 %6685
        %6687 = vrot.lane.b32.xlu0 %v6539, 124
        %v6688 = vpop.permute.xlu0 %6687
        %6689 = vrot.lane.b32.xlu0 %v6540, 124
        %v6690 = vpop.permute.xlu0 %6689
        %6691 = vrot.lane.b32.xlu0 %v6541, 124
        %v6692 = vpop.permute.xlu0 %6691
        %6693 = vrot.lane.b32.xlu0 %v6542, 124
        %v6694 = vpop.permute.xlu0 %6693
        %6695 = vrot.lane.b32.xlu0 %v6543, 124
        %v6696 = vpop.permute.xlu0 %6695
        %6697 = vrot.lane.b32.xlu0 %v6544, 124
        %v6698 = vpop.permute.xlu0 %6697
        %6699 = vrot.lane.b32.xlu0 %v6545, 124
        %v6700 = vpop.permute.xlu0 %6699
        %6701 = vrot.lane.b32.xlu0 %v6546, 124
        %v6702 = vpop.permute.xlu0 %6701
        %6703 = vrot.lane.b32.xlu0 %v6547, 124
        %v6704 = vpop.permute.xlu0 %6703
        %6705 = vrot.lane.b32.xlu0 %v6548, 124
        %v6706 = vpop.permute.xlu0 %6705
        %6707 = vrot.lane.b32.xlu0 %v6549, 124
        %v6708 = vpop.permute.xlu0 %6707
        %6709 = vrot.lane.b32.xlu0 %v6550, 124
        %v6710 = vpop.permute.xlu0 %6709
        %6711 = vrot.lane.b32.xlu0 %v6551, 124
        %v6712 = vpop.permute.xlu0 %6711
        %6713 = vrot.lane.b32.xlu0 %v6552, 124
        %v6714 = vpop.permute.xlu0 %6713
        %6715 = vrot.lane.b32.xlu0 %v6553, 124
        %v6716 = vpop.permute.xlu0 %6715
        %6717 = vrot.lane.b32.xlu0 %v6554, 124
        %v6718 = vpop.permute.xlu0 %6717
        %6719 = vrot.lane.b32.xlu0 %v6555, 124
        %v6720 = vpop.permute.xlu0 %6719
        %6721 = vrot.lane.b32.xlu0 %v6556, 124
        %v6722 = vpop.permute.xlu0 %6721
        %6723 = vrot.lane.b32.xlu0 %v6557, 124
        %v6724 = vpop.permute.xlu0 %6723
        %6725 = vrot.lane.b32.xlu0 %v6558, 124
        %v6726 = vpop.permute.xlu0 %6725
        %vm6727 = vcmask 1014784
        %v6728 = vsel %vm6727, %v6680, %v6682
        %v6729 = vsel %vm6727, %v6682, %v6684
        %v6730 = vsel %vm6727, %v6686, %v6688
        %v6731 = vsel %vm6727, %v6688, %v6690
        %v6732 = vsel %vm6727, %v6692, %v6694
        %v6733 = vsel %vm6727, %v6694, %v6696
        %v6734 = vsel %vm6727, %v6698, %v6700
        %v6735 = vsel %vm6727, %v6700, %v6702
        %v6736 = vsel %vm6727, %v6704, %v6706
        %v6737 = vsel %vm6727, %v6706, %v6708
        %v6738 = vsel %vm6727, %v6710, %v6712
        %v6739 = vsel %vm6727, %v6712, %v6714
        %v6740 = vsel %vm6727, %v6716, %v6718
        %v6741 = vsel %vm6727, %v6718, %v6720
        %v6742 = vsel %vm6727, %v6722, %v6724
        %v6743 = vsel %vm6727, %v6724, %v6726
        %v6768 = vsel %vm6727, %v6684, 0.0
        %v6769 = vsel %vm6727, %v6690, 0.0
        %v6770 = vsel %vm6727, %v6696, 0.0
        %v6771 = vsel %vm6727, %v6702, 0.0
        %v6772 = vsel %vm6727, %v6708, 0.0
        %v6773 = vsel %vm6727, %v6714, 0.0
        %v6774 = vsel %vm6727, %v6720, 0.0
        %v6775 = vsel %vm6727, %v6726, 0.0
        %s6776 = scalar_lea.vmem %s5, 384
        %v6777 = vld [vmem:[%s6776] sm:$0xf]
        %v6778 = vld [vmem:[%s6776 + $0x4] sm:$0xf]
        %v6779 = vld [vmem:[%s6776 + $0x8] sm:$0xf]
        %v6780 = vld [vmem:[%s6776 + $0xc] sm:$0xf]
        %v6781 = vld [vmem:[%s6776 + $0x10] sm:$0xf]
        %v6782 = vld [vmem:[%s6776 + $0x14] sm:$0xf]
        %v6783 = vld [vmem:[%s6776 + $0x18] sm:$0xf]
        %v6784 = vld [vmem:[%s6776 + $0x1c] sm:$0xf]
        %v6785 = vld [vmem:[%s6776 + $0x20] sm:$0xf]
        %v6786 = vld [vmem:[%s6776 + $0x24] sm:$0xf]
        %v6787 = vld [vmem:[%s6776 + $0x28] sm:$0xf]
        %v6788 = vld [vmem:[%s6776 + $0x2c] sm:$0xf]
        %v6789 = vld [vmem:[%s6776 + $0x30] sm:$0xf]
        %v6790 = vld [vmem:[%s6776 + $0x34] sm:$0xf]
        %v6791 = vld [vmem:[%s6776 + $0x38] sm:$0xf]
        %v6792 = vld [vmem:[%s6776 + $0x3c] sm:$0xf]
        %v6793 = vpack.c.bf16 %v6672, %v6671
        %v6794 = vpack.c.bf16 %v6633, %v6631
        %v6795 = vpack.c.bf16 %v6634, %v6632
        %v6796 = vpack.c.bf16 %v6674, %v6673
        %v6797 = vpack.c.bf16 %v6637, %v6635
        %v6798 = vpack.c.bf16 %v6638, %v6636
        %v6799 = vpack.c.bf16 %v6676, %v6675
        %v6800 = vpack.c.bf16 %v6641, %v6639
        %v6801 = vpack.c.bf16 %v6642, %v6640
        %v6802 = vpack.c.bf16 %v6678, %v6677
        %v6803 = vpack.c.bf16 %v6645, %v6643
        %v6804 = vpack.c.bf16 %v6646, %v6644
        %s6805 = scalar_lea.vmem %s5, 448
        %v6806 = vld [vmem:[%s6805] sm:$0xf]
        %v6807 = vld [vmem:[%s6805 + $0x4] sm:$0xf]
        %v6808 = vld [vmem:[%s6805 + $0x8] sm:$0xf]
        %v6809 = vld [vmem:[%s6805 + $0xc] sm:$0xf]
        %v6810 = vld [vmem:[%s6805 + $0x10] sm:$0xf]
        %v6811 = vld [vmem:[%s6805 + $0x14] sm:$0xf]
        %v6812 = vld [vmem:[%s6805 + $0x18] sm:$0xf]
        %v6813 = vld [vmem:[%s6805 + $0x1c] sm:$0xf]
        %v6814 = vld [vmem:[%s6805 + $0x20] sm:$0xf]
        %v6815 = vld [vmem:[%s6805 + $0x24] sm:$0xf]
        %v6816 = vld [vmem:[%s6805 + $0x28] sm:$0xf]
        %v6817 = vld [vmem:[%s6805 + $0x2c] sm:$0xf]
        %v6818 = vld [vmem:[%s6805 + $0x30] sm:$0xf]
        %v6819 = vld [vmem:[%s6805 + $0x34] sm:$0xf]
        %v6820 = vld [vmem:[%s6805 + $0x38] sm:$0xf]
        %v6821 = vld [vmem:[%s6805 + $0x3c] sm:$0xf]
        %v6822 = vpack.c.bf16 %v6538, %v6535
        %v6823 = vpack.c.bf16 %v6539, %v6536
        %v6824 = vpack.c.bf16 %v6540, %v6537
        %v6825 = vpack.c.bf16 %v6544, %v6541
        %v6826 = vpack.c.bf16 %v6545, %v6542
        %v6827 = vpack.c.bf16 %v6546, %v6543
        %v6828 = vpack.c.bf16 %v6550, %v6547
        %v6829 = vpack.c.bf16 %v6551, %v6548
        %v6830 = vpack.c.bf16 %v6552, %v6549
        %v6831 = vpack.c.bf16 %v6556, %v6553
        %v6832 = vpack.c.bf16 %v6557, %v6554
        %v6833 = vpack.c.bf16 %v6558, %v6555
        %v6850 = vunpack.c.l.b16 %v6806
        %v6851 = vunpack.c.l.b16 %v6807
        %v6852 = vunpack.c.l.b16 %v6808
        %v6853 = vunpack.c.l.b16 %v6809
        %v6854 = vunpack.c.l.b16 %v6810
        %v6855 = vunpack.c.l.b16 %v6811
        %v6856 = vunpack.c.l.b16 %v6812
        %v6857 = vunpack.c.l.b16 %v6813
        %v6858 = vunpack.c.l.b16 %v6814
        %v6859 = vunpack.c.l.b16 %v6815
        %v6860 = vunpack.c.l.b16 %v6816
        %v6861 = vunpack.c.l.b16 %v6817
        %v6862 = vunpack.c.l.b16 %v6818
        %v6863 = vunpack.c.l.b16 %v6819
        %v6864 = vunpack.c.l.b16 %v6820
        %v6865 = vunpack.c.l.b16 %v6821
        %v6866 = vpack.c.b16 %v6851, %v6850
        %v6867 = vpack.c.b16 %v6853, %v6852
        %v6868 = vpack.c.b16 %v6855, %v6854
        %v6869 = vpack.c.b16 %v6857, %v6856
        %v6870 = vpack.c.b16 %v6859, %v6858
        %v6871 = vpack.c.b16 %v6861, %v6860
        %v6872 = vpack.c.b16 %v6863, %v6862
        %v6873 = vpack.c.b16 %v6865, %v6864
        %v6875 = vsel %vm2813, %v6866, 0
        %v6878 = vsel %vm2813, %v6867, 0
        %v6881 = vsel %vm2813, %v6868, 0
        %v6884 = vsel %vm2813, %v6869, 0
        %v6887 = vsel %vm2813, %v6870, 0
        %v6890 = vsel %vm2813, %v6871, 0
        %v6893 = vsel %vm2813, %v6872, 0
        %v6896 = vsel %vm2813, %v6873, 0
        %6898 = vmatprep.subr.bf16.mxu0 0
        %6899 = vmatpush1.bf16.msra.mxu0 0
        %6900 = vmatprep.subr.bf16.mxu0 0
        %6901 = vmatpush1.bf16.msra.mxu0 0
        %6902 = vmatprep.subr.bf16.mxu0 0
        %6903 = vmatpush1.bf16.msra.mxu0 0
        %6904 = vmatprep.subr.bf16.mxu0 0
        %6905 = vmatpush1.bf16.msra.mxu0 0
        %6906 = vmatprep.subr.bf16.mxu0 %v6832
        %6907 = vmatpush1.bf16.msra.mxu0 %v6831
        %6908 = vmatprep.subr.bf16.mxu0 %v6829
        %6909 = vmatpush1.bf16.msra.mxu0 %v6828
        %6910 = vmatprep.subr.bf16.mxu0 %v6826
        %6911 = vmatpush1.bf16.msra.mxu0 %v6825
        %6912 = vmatprep.subr.bf16.mxu0 %v6823
        %6913 = vmatpush1.bf16.msra.mxu0 %v6822
        %6914 = vmatprep.subr.bf16.mxu0 0
        %6915 = vmatpush2.bf16.msra.mxu0 0
        %6916 = vmatprep.subr.bf16.mxu0 0
        %6917 = vmatpush2.bf16.msra.mxu0 0
        %6918 = vmatprep.subr.bf16.mxu0 0
        %6919 = vmatpush2.bf16.msra.mxu0 0
        %6920 = vmatprep.subr.bf16.mxu0 0
        %6921 = vmatpush2.bf16.msra.mxu0 0
        %6922 = vmatprep.subr.bf16.mxu0 0
        %6923 = vmatpush2.bf16.msra.mxu0 0
        %6924 = vmatprep.subr.bf16.mxu0 0
        %6925 = vmatpush2.bf16.msra.mxu0 0
        %6926 = vmatprep.subr.bf16.mxu0 0
        %6927 = vmatpush2.bf16.msra.mxu0 0
        %6928 = vmatprep.subr.bf16.mxu0 0
        %6929 = vmatpush2.bf16.msra.mxu0 0
        %6930 = vmatprep.mubr.bf16.mxu0 0
        %6931 = vmatmul.mubr.bf16.gmra.mxu0 %v6875
        %v6932 = vpop.f32.mrf.mxu0
        %v6933 = vadd.f32 0.0, %v6932
        %v6934 = vpop.f32.mrf.mxu0
        %v6935 = vadd.f32 0.0, %v6934
        %v6936 = vpop.f32.mrf.mxu0
        %v6937 = vadd.f32 0.0, %v6936
        %v6938 = vpop.f32.mrf.mxu0
        %v6939 = vadd.f32 0.0, %v6938
        %6940 = vmatprep.mubr.bf16.mxu0 0
        %6941 = vmatmul.mubr.bf16.gmra.mxu0 %v6878
        %v6942 = vpop.f32.mrf.mxu0
        %v6943 = vadd.f32 0.0, %v6942
        %v6944 = vpop.f32.mrf.mxu0
        %v6945 = vadd.f32 0.0, %v6944
        %v6946 = vpop.f32.mrf.mxu0
        %v6947 = vadd.f32 0.0, %v6946
        %v6948 = vpop.f32.mrf.mxu0
        %v6949 = vadd.f32 0.0, %v6948
        %6950 = vmatprep.mubr.bf16.mxu0 0
        %6951 = vmatmul.mubr.bf16.gmra.mxu0 %v6881
        %v6952 = vpop.f32.mrf.mxu0
        %v6953 = vadd.f32 0.0, %v6952
        %v6954 = vpop.f32.mrf.mxu0
        %v6955 = vadd.f32 0.0, %v6954
        %v6956 = vpop.f32.mrf.mxu0
        %v6957 = vadd.f32 0.0, %v6956
        %v6958 = vpop.f32.mrf.mxu0
        %v6959 = vadd.f32 0.0, %v6958
        %6960 = vmatprep.mubr.bf16.mxu0 0
        %6961 = vmatmul.mubr.bf16.gmra.mxu0 %v6884
        %v6962 = vpop.f32.mrf.mxu0
        %v6963 = vadd.f32 0.0, %v6962
        %v6964 = vpop.f32.mrf.mxu0
        %v6965 = vadd.f32 0.0, %v6964
        %v6966 = vpop.f32.mrf.mxu0
        %v6967 = vadd.f32 0.0, %v6966
        %v6968 = vpop.f32.mrf.mxu0
        %v6969 = vadd.f32 0.0, %v6968
        %6970 = vmatprep.mubr.bf16.mxu0 0
        %6971 = vmatmul.mubr.bf16.gmra.mxu0 %v6887
        %v6972 = vpop.f32.mrf.mxu0
        %v6973 = vadd.f32 0.0, %v6972
        %v6974 = vpop.f32.mrf.mxu0
        %v6975 = vadd.f32 0.0, %v6974
        %v6976 = vpop.f32.mrf.mxu0
        %v6977 = vadd.f32 0.0, %v6976
        %v6978 = vpop.f32.mrf.mxu0
        %v6979 = vadd.f32 0.0, %v6978
        %6980 = vmatprep.mubr.bf16.mxu0 0
        %6981 = vmatmul.mubr.bf16.gmra.mxu0 %v6890
        %v6982 = vpop.f32.mrf.mxu0
        %v6983 = vadd.f32 0.0, %v6982
        %v6984 = vpop.f32.mrf.mxu0
        %v6985 = vadd.f32 0.0, %v6984
        %v6986 = vpop.f32.mrf.mxu0
        %v6987 = vadd.f32 0.0, %v6986
        %v6988 = vpop.f32.mrf.mxu0
        %v6989 = vadd.f32 0.0, %v6988
        %6990 = vmatprep.mubr.bf16.mxu0 0
        %6991 = vmatmul.mubr.bf16.gmra.mxu0 %v6893
        %v6992 = vpop.f32.mrf.mxu0
        %v6993 = vadd.f32 0.0, %v6992
        %v6994 = vpop.f32.mrf.mxu0
        %v6995 = vadd.f32 0.0, %v6994
        %v6996 = vpop.f32.mrf.mxu0
        %v6997 = vadd.f32 0.0, %v6996
        %v6998 = vpop.f32.mrf.mxu0
        %v6999 = vadd.f32 0.0, %v6998
        %7000 = vmatprep.mubr.bf16.mxu0 0
        %7001 = vmatmul.mubr.bf16.gmra.mxu0 %v6896
        %v7002 = vpop.f32.mrf.mxu0
        %v7003 = vadd.f32 0.0, %v7002
        %v7004 = vpop.f32.mrf.mxu0
        %v7005 = vadd.f32 0.0, %v7004
        %v7006 = vpop.f32.mrf.mxu0
        %v7007 = vadd.f32 0.0, %v7006
        %v7008 = vpop.f32.mrf.mxu0
        %v7009 = vadd.f32 0.0, %v7008
        %7010 = vdwg.mxu0
        %7011 = vmatprep.subr.bf16.mxu0 0
        %7012 = vmatpush1.bf16.msra.mxu0 0
        %7013 = vmatprep.subr.bf16.mxu0 0
        %7014 = vmatpush1.bf16.msra.mxu0 0
        %7015 = vmatprep.subr.bf16.mxu0 0
        %7016 = vmatpush1.bf16.msra.mxu0 0
        %7017 = vmatprep.subr.bf16.mxu0 0
        %7018 = vmatpush1.bf16.msra.mxu0 0
        %7019 = vmatprep.subr.bf16.mxu0 0
        %7020 = vmatpush1.bf16.msra.mxu0 %v6833
        %7021 = vmatprep.subr.bf16.mxu0 0
        %7022 = vmatpush1.bf16.msra.mxu0 %v6830
        %7023 = vmatprep.subr.bf16.mxu0 0
        %7024 = vmatpush1.bf16.msra.mxu0 %v6827
        %7025 = vmatprep.subr.bf16.mxu0 0
        %7026 = vmatpush1.bf16.msra.mxu0 %v6824
        %7027 = vmatprep.subr.bf16.mxu0 0
        %7028 = vmatpush2.bf16.msra.mxu0 0
        %7029 = vmatprep.subr.bf16.mxu0 0
        %7030 = vmatpush2.bf16.msra.mxu0 0
        %7031 = vmatprep.subr.bf16.mxu0 0
        %7032 = vmatpush2.bf16.msra.mxu0 0
        %7033 = vmatprep.subr.bf16.mxu0 0
        %7034 = vmatpush2.bf16.msra.mxu0 0
        %7035 = vmatprep.subr.bf16.mxu0 0
        %7036 = vmatpush2.bf16.msra.mxu0 0
        %7037 = vmatprep.subr.bf16.mxu0 0
        %7038 = vmatpush2.bf16.msra.mxu0 0
        %7039 = vmatprep.subr.bf16.mxu0 0
        %7040 = vmatpush2.bf16.msra.mxu0 0
        %7041 = vmatprep.subr.bf16.mxu0 0
        %7042 = vmatpush2.bf16.msra.mxu0 0
        %7043 = vmatprep.mubr.bf16.mxu0 0
        %7044 = vmatmul.mubr.bf16.gmra.mxu0 %v6875
        %v7045 = vpop.f32.mrf.mxu0
        %v7046 = vadd.f32 0.0, %v7045
        %v7047 = vpop.f32.mrf.mxu0
        %v7048 = vpop.f32.mrf.mxu0
        %v7049 = vadd.f32 0.0, %v7048
        %v7050 = vpop.f32.mrf.mxu0
        %7051 = vmatprep.mubr.bf16.mxu0 0
        %7052 = vmatmul.mubr.bf16.gmra.mxu0 %v6878
        %v7053 = vpop.f32.mrf.mxu0
        %v7054 = vadd.f32 0.0, %v7053
        %v7055 = vpop.f32.mrf.mxu0
        %v7056 = vpop.f32.mrf.mxu0
        %v7057 = vadd.f32 0.0, %v7056
        %v7058 = vpop.f32.mrf.mxu0
        %7059 = vmatprep.mubr.bf16.mxu0 0
        %7060 = vmatmul.mubr.bf16.gmra.mxu0 %v6881
        %v7061 = vpop.f32.mrf.mxu0
        %v7062 = vadd.f32 0.0, %v7061
        %v7063 = vpop.f32.mrf.mxu0
        %v7064 = vpop.f32.mrf.mxu0
        %v7065 = vadd.f32 0.0, %v7064
        %v7066 = vpop.f32.mrf.mxu0
        %7067 = vmatprep.mubr.bf16.mxu0 0
        %7068 = vmatmul.mubr.bf16.gmra.mxu0 %v6884
        %v7069 = vpop.f32.mrf.mxu0
        %v7070 = vadd.f32 0.0, %v7069
        %v7071 = vpop.f32.mrf.mxu0
        %v7072 = vpop.f32.mrf.mxu0
        %v7073 = vadd.f32 0.0, %v7072
        %v7074 = vpop.f32.mrf.mxu0
        %7075 = vmatprep.mubr.bf16.mxu0 0
        %7076 = vmatmul.mubr.bf16.gmra.mxu0 %v6887
        %v7077 = vpop.f32.mrf.mxu0
        %v7078 = vadd.f32 0.0, %v7077
        %v7079 = vpop.f32.mrf.mxu0
        %v7080 = vpop.f32.mrf.mxu0
        %v7081 = vadd.f32 0.0, %v7080
        %v7082 = vpop.f32.mrf.mxu0
        %7083 = vmatprep.mubr.bf16.mxu0 0
        %7084 = vmatmul.mubr.bf16.gmra.mxu0 %v6890
        %v7085 = vpop.f32.mrf.mxu0
        %v7086 = vadd.f32 0.0, %v7085
        %v7087 = vpop.f32.mrf.mxu0
        %v7088 = vpop.f32.mrf.mxu0
        %v7089 = vadd.f32 0.0, %v7088
        %v7090 = vpop.f32.mrf.mxu0
        %7091 = vmatprep.mubr.bf16.mxu0 0
        %7092 = vmatmul.mubr.bf16.gmra.mxu0 %v6893
        %v7093 = vpop.f32.mrf.mxu0
        %v7094 = vadd.f32 0.0, %v7093
        %v7095 = vpop.f32.mrf.mxu0
        %v7096 = vpop.f32.mrf.mxu0
        %v7097 = vadd.f32 0.0, %v7096
        %v7098 = vpop.f32.mrf.mxu0
        %7099 = vmatprep.mubr.bf16.mxu0 0
        %7100 = vmatmul.mubr.bf16.gmra.mxu0 %v6896
        %v7101 = vpop.f32.mrf.mxu0
        %v7102 = vadd.f32 0.0, %v7101
        %v7103 = vpop.f32.mrf.mxu0
        %v7104 = vpop.f32.mrf.mxu0
        %v7105 = vadd.f32 0.0, %v7104
        %v7106 = vpop.f32.mrf.mxu0
        %7107 = vdwg.mxu0
        %v7124 = vunpack.c.l.b16 %v6777
        %v7125 = vunpack.c.l.b16 %v6778
        %v7126 = vunpack.c.l.b16 %v6779
        %v7127 = vunpack.c.l.b16 %v6780
        %v7128 = vunpack.c.l.b16 %v6781
        %v7129 = vunpack.c.l.b16 %v6782
        %v7130 = vunpack.c.l.b16 %v6783
        %v7131 = vunpack.c.l.b16 %v6784
        %v7132 = vunpack.c.l.b16 %v6785
        %v7133 = vunpack.c.l.b16 %v6786
        %v7134 = vunpack.c.l.b16 %v6787
        %v7135 = vunpack.c.l.b16 %v6788
        %v7136 = vunpack.c.l.b16 %v6789
        %v7137 = vunpack.c.l.b16 %v6790
        %v7138 = vunpack.c.l.b16 %v6791
        %v7139 = vunpack.c.l.b16 %v6792
        %v7140 = vpack.c.b16 %v7125, %v7124
        %v7141 = vpack.c.b16 %v7127, %v7126
        %v7142 = vpack.c.b16 %v7129, %v7128
        %v7143 = vpack.c.b16 %v7131, %v7130
        %v7144 = vpack.c.b16 %v7133, %v7132
        %v7145 = vpack.c.b16 %v7135, %v7134
        %v7146 = vpack.c.b16 %v7137, %v7136
        %v7147 = vpack.c.b16 %v7139, %v7138
        %v7149 = vsel %vm2813, %v7140, 0
        %v7152 = vsel %vm2813, %v7141, 0
        %v7155 = vsel %vm2813, %v7142, 0
        %v7158 = vsel %vm2813, %v7143, 0
        %v7161 = vsel %vm2813, %v7144, 0
        %v7164 = vsel %vm2813, %v7145, 0
        %v7167 = vsel %vm2813, %v7146, 0
        %v7170 = vsel %vm2813, %v7147, 0
        %7172 = vmatprep.subr.bf16.mxu0 0
        %7173 = vmatpush1.bf16.msra.mxu0 0
        %7174 = vmatprep.subr.bf16.mxu0 0
        %7175 = vmatpush1.bf16.msra.mxu0 0
        %7176 = vmatprep.subr.bf16.mxu0 0
        %7177 = vmatpush1.bf16.msra.mxu0 0
        %7178 = vmatprep.subr.bf16.mxu0 0
        %7179 = vmatpush1.bf16.msra.mxu0 0
        %7180 = vmatprep.subr.bf16.mxu0 %v6803
        %7181 = vmatpush1.bf16.msra.mxu0 %v6802
        %7182 = vmatprep.subr.bf16.mxu0 %v6800
        %7183 = vmatpush1.bf16.msra.mxu0 %v6799
        %7184 = vmatprep.subr.bf16.mxu0 %v6797
        %7185 = vmatpush1.bf16.msra.mxu0 %v6796
        %7186 = vmatprep.subr.bf16.mxu0 %v6794
        %7187 = vmatpush1.bf16.msra.mxu0 %v6793
        %7188 = vmatprep.subr.bf16.mxu0 0
        %7189 = vmatpush2.bf16.msra.mxu0 0
        %7190 = vmatprep.subr.bf16.mxu0 0
        %7191 = vmatpush2.bf16.msra.mxu0 0
        %7192 = vmatprep.subr.bf16.mxu0 0
        %7193 = vmatpush2.bf16.msra.mxu0 0
        %7194 = vmatprep.subr.bf16.mxu0 0
        %7195 = vmatpush2.bf16.msra.mxu0 0
        %7196 = vmatprep.subr.bf16.mxu0 0
        %7197 = vmatpush2.bf16.msra.mxu0 0
        %7198 = vmatprep.subr.bf16.mxu0 0
        %7199 = vmatpush2.bf16.msra.mxu0 0
        %7200 = vmatprep.subr.bf16.mxu0 0
        %7201 = vmatpush2.bf16.msra.mxu0 0
        %7202 = vmatprep.subr.bf16.mxu0 0
        %7203 = vmatpush2.bf16.msra.mxu0 0
        %7204 = vmatprep.mubr.bf16.mxu0 0
        %7205 = vmatmul.mubr.bf16.gmra.mxu0 %v7149
        %v7206 = vpop.f32.mrf.mxu0
        %v7207 = vadd.f32 %v6933, %v7206
        %v7208 = vpop.f32.mrf.mxu0
        %v7209 = vadd.f32 %v6935, %v7208
        %v7210 = vpop.f32.mrf.mxu0
        %v7211 = vadd.f32 %v6937, %v7210
        %v7212 = vpop.f32.mrf.mxu0
        %v7213 = vadd.f32 %v6939, %v7212
        %7214 = vmatprep.mubr.bf16.mxu0 0
        %7215 = vmatmul.mubr.bf16.gmra.mxu0 %v7152
        %v7216 = vpop.f32.mrf.mxu0
        %v7217 = vadd.f32 %v6943, %v7216
        %v7218 = vpop.f32.mrf.mxu0
        %v7219 = vadd.f32 %v6945, %v7218
        %v7220 = vpop.f32.mrf.mxu0
        %v7221 = vadd.f32 %v6947, %v7220
        %v7222 = vpop.f32.mrf.mxu0
        %v7223 = vadd.f32 %v6949, %v7222
        %7224 = vmatprep.mubr.bf16.mxu0 0
        %7225 = vmatmul.mubr.bf16.gmra.mxu0 %v7155
        %v7226 = vpop.f32.mrf.mxu0
        %v7227 = vadd.f32 %v6953, %v7226
        %v7228 = vpop.f32.mrf.mxu0
        %v7229 = vadd.f32 %v6955, %v7228
        %v7230 = vpop.f32.mrf.mxu0
        %v7231 = vadd.f32 %v6957, %v7230
        %v7232 = vpop.f32.mrf.mxu0
        %v7233 = vadd.f32 %v6959, %v7232
        %7234 = vmatprep.mubr.bf16.mxu0 0
        %7235 = vmatmul.mubr.bf16.gmra.mxu0 %v7158
        %v7236 = vpop.f32.mrf.mxu0
        %v7237 = vadd.f32 %v6963, %v7236
        %v7238 = vpop.f32.mrf.mxu0
        %v7239 = vadd.f32 %v6965, %v7238
        %v7240 = vpop.f32.mrf.mxu0
        %v7241 = vadd.f32 %v6967, %v7240
        %v7242 = vpop.f32.mrf.mxu0
        %v7243 = vadd.f32 %v6969, %v7242
        %7244 = vmatprep.mubr.bf16.mxu0 0
        %7245 = vmatmul.mubr.bf16.gmra.mxu0 %v7161
        %v7246 = vpop.f32.mrf.mxu0
        %v7247 = vadd.f32 %v6973, %v7246
        %v7248 = vpop.f32.mrf.mxu0
        %v7249 = vadd.f32 %v6975, %v7248
        %v7250 = vpop.f32.mrf.mxu0
        %v7251 = vadd.f32 %v6977, %v7250
        %v7252 = vpop.f32.mrf.mxu0
        %v7253 = vadd.f32 %v6979, %v7252
        %7254 = vmatprep.mubr.bf16.mxu0 0
        %7255 = vmatmul.mubr.bf16.gmra.mxu0 %v7164
        %v7256 = vpop.f32.mrf.mxu0
        %v7257 = vadd.f32 %v6983, %v7256
        %v7258 = vpop.f32.mrf.mxu0
        %v7259 = vadd.f32 %v6985, %v7258
        %v7260 = vpop.f32.mrf.mxu0
        %v7261 = vadd.f32 %v6987, %v7260
        %v7262 = vpop.f32.mrf.mxu0
        %v7263 = vadd.f32 %v6989, %v7262
        %7264 = vmatprep.mubr.bf16.mxu0 0
        %7265 = vmatmul.mubr.bf16.gmra.mxu0 %v7167
        %v7266 = vpop.f32.mrf.mxu0
        %v7267 = vadd.f32 %v6993, %v7266
        %v7268 = vpop.f32.mrf.mxu0
        %v7269 = vadd.f32 %v6995, %v7268
        %v7270 = vpop.f32.mrf.mxu0
        %v7271 = vadd.f32 %v6997, %v7270
        %v7272 = vpop.f32.mrf.mxu0
        %v7273 = vadd.f32 %v6999, %v7272
        %7274 = vmatprep.mubr.bf16.mxu0 0
        %7275 = vmatmul.mubr.bf16.gmra.mxu0 %v7170
        %v7276 = vpop.f32.mrf.mxu0
        %v7277 = vadd.f32 %v7003, %v7276
        %v7278 = vpop.f32.mrf.mxu0
        %v7279 = vadd.f32 %v7005, %v7278
        %v7280 = vpop.f32.mrf.mxu0
        %v7281 = vadd.f32 %v7007, %v7280
        %v7282 = vpop.f32.mrf.mxu0
        %v7283 = vadd.f32 %v7009, %v7282
        %7284 = vdwg.mxu0
        %7285 = vmatprep.subr.bf16.mxu0 0
        %7286 = vmatpush1.bf16.msra.mxu0 0
        %7287 = vmatprep.subr.bf16.mxu0 0
        %7288 = vmatpush1.bf16.msra.mxu0 0
        %7289 = vmatprep.subr.bf16.mxu0 0
        %7290 = vmatpush1.bf16.msra.mxu0 0
        %7291 = vmatprep.subr.bf16.mxu0 0
        %7292 = vmatpush1.bf16.msra.mxu0 0
        %7293 = vmatprep.subr.bf16.mxu0 0
        %7294 = vmatpush1.bf16.msra.mxu0 %v6804
        %7295 = vmatprep.subr.bf16.mxu0 0
        %7296 = vmatpush1.bf16.msra.mxu0 %v6801
        %7297 = vmatprep.subr.bf16.mxu0 0
        %7298 = vmatpush1.bf16.msra.mxu0 %v6798
        %7299 = vmatprep.subr.bf16.mxu0 0
        %7300 = vmatpush1.bf16.msra.mxu0 %v6795
        %7301 = vmatprep.subr.bf16.mxu0 0
        %7302 = vmatpush2.bf16.msra.mxu0 0
        %7303 = vmatprep.subr.bf16.mxu0 0
        %7304 = vmatpush2.bf16.msra.mxu0 0
        %7305 = vmatprep.subr.bf16.mxu0 0
        %7306 = vmatpush2.bf16.msra.mxu0 0
        %7307 = vmatprep.subr.bf16.mxu0 0
        %7308 = vmatpush2.bf16.msra.mxu0 0
        %7309 = vmatprep.subr.bf16.mxu0 0
        %7310 = vmatpush2.bf16.msra.mxu0 0
        %7311 = vmatprep.subr.bf16.mxu0 0
        %7312 = vmatpush2.bf16.msra.mxu0 0
        %7313 = vmatprep.subr.bf16.mxu0 0
        %7314 = vmatpush2.bf16.msra.mxu0 0
        %7315 = vmatprep.subr.bf16.mxu0 0
        %7316 = vmatpush2.bf16.msra.mxu0 0
        %7317 = vmatprep.mubr.bf16.mxu0 0
        %7318 = vmatmul.mubr.bf16.gmra.mxu0 %v7149
        %v7319 = vpop.f32.mrf.mxu0
        %v7320 = vadd.f32 %v7046, %v7319
        %v7321 = vpop.f32.mrf.mxu0
        %v7322 = vpop.f32.mrf.mxu0
        %v7323 = vadd.f32 %v7049, %v7322
        %v7324 = vpop.f32.mrf.mxu0
        %7325 = vmatprep.mubr.bf16.mxu0 0
        %7326 = vmatmul.mubr.bf16.gmra.mxu0 %v7152
        %v7327 = vpop.f32.mrf.mxu0
        %v7328 = vadd.f32 %v7054, %v7327
        %v7329 = vpop.f32.mrf.mxu0
        %v7330 = vpop.f32.mrf.mxu0
        %v7331 = vadd.f32 %v7057, %v7330
        %v7332 = vpop.f32.mrf.mxu0
        %7333 = vmatprep.mubr.bf16.mxu0 0
        %7334 = vmatmul.mubr.bf16.gmra.mxu0 %v7155
        %v7335 = vpop.f32.mrf.mxu0
        %v7336 = vadd.f32 %v7062, %v7335
        %v7337 = vpop.f32.mrf.mxu0
        %v7338 = vpop.f32.mrf.mxu0
        %v7339 = vadd.f32 %v7065, %v7338
        %v7340 = vpop.f32.mrf.mxu0
        %7341 = vmatprep.mubr.bf16.mxu0 0
        %7342 = vmatmul.mubr.bf16.gmra.mxu0 %v7158
        %v7343 = vpop.f32.mrf.mxu0
        %v7344 = vadd.f32 %v7070, %v7343
        %v7345 = vpop.f32.mrf.mxu0
        %v7346 = vpop.f32.mrf.mxu0
        %v7347 = vadd.f32 %v7073, %v7346
        %v7348 = vpop.f32.mrf.mxu0
        %7349 = vmatprep.mubr.bf16.mxu0 0
        %7350 = vmatmul.mubr.bf16.gmra.mxu0 %v7161
        %v7351 = vpop.f32.mrf.mxu0
        %v7352 = vadd.f32 %v7078, %v7351
        %v7353 = vpop.f32.mrf.mxu0
        %v7354 = vpop.f32.mrf.mxu0
        %v7355 = vadd.f32 %v7081, %v7354
        %v7356 = vpop.f32.mrf.mxu0
        %7357 = vmatprep.mubr.bf16.mxu0 0
        %7358 = vmatmul.mubr.bf16.gmra.mxu0 %v7164
        %v7359 = vpop.f32.mrf.mxu0
        %v7360 = vadd.f32 %v7086, %v7359
        %v7361 = vpop.f32.mrf.mxu0
        %v7362 = vpop.f32.mrf.mxu0
        %v7363 = vadd.f32 %v7089, %v7362
        %v7364 = vpop.f32.mrf.mxu0
        %7365 = vmatprep.mubr.bf16.mxu0 0
        %7366 = vmatmul.mubr.bf16.gmra.mxu0 %v7167
        %v7367 = vpop.f32.mrf.mxu0
        %v7368 = vadd.f32 %v7094, %v7367
        %v7369 = vpop.f32.mrf.mxu0
        %v7370 = vpop.f32.mrf.mxu0
        %v7371 = vadd.f32 %v7097, %v7370
        %v7372 = vpop.f32.mrf.mxu0
        %7373 = vmatprep.mubr.bf16.mxu0 0
        %7374 = vmatmul.mubr.bf16.gmra.mxu0 %v7170
        %v7375 = vpop.f32.mrf.mxu0
        %v7376 = vadd.f32 %v7102, %v7375
        %v7377 = vpop.f32.mrf.mxu0
        %v7378 = vpop.f32.mrf.mxu0
        %v7379 = vadd.f32 %v7105, %v7378
        %v7380 = vpop.f32.mrf.mxu0
        %7381 = vdwg.mxu0
        %s7382 = scalar_lea.vmem %s5, 512
        %v7383 = vld [vmem:[%s7382] sm:$0xf]
        %v7384 = vld [vmem:[%s7382 + $0x4] sm:$0xf]
        %v7385 = vld [vmem:[%s7382 + $0x8] sm:$0xf]
        %v7386 = vld [vmem:[%s7382 + $0xc] sm:$0xf]
        %v7387 = vld [vmem:[%s7382 + $0x10] sm:$0xf]
        %v7388 = vld [vmem:[%s7382 + $0x14] sm:$0xf]
        %v7389 = vld [vmem:[%s7382 + $0x18] sm:$0xf]
        %v7390 = vld [vmem:[%s7382 + $0x1c] sm:$0xf]
        %v7391 = vld [vmem:[%s7382 + $0x20] sm:$0xf]
        %v7392 = vld [vmem:[%s7382 + $0x24] sm:$0xf]
        %v7393 = vld [vmem:[%s7382 + $0x28] sm:$0xf]
        %v7394 = vld [vmem:[%s7382 + $0x2c] sm:$0xf]
        %v7395 = vld [vmem:[%s7382 + $0x30] sm:$0xf]
        %v7396 = vld [vmem:[%s7382 + $0x34] sm:$0xf]
        %v7397 = vld [vmem:[%s7382 + $0x38] sm:$0xf]
        %v7398 = vld [vmem:[%s7382 + $0x3c] sm:$0xf]
        %v7399 = vpack.c.bf16 %v6730, %v6728
        %v7400 = vpack.c.bf16 %v6731, %v6729
        %v7401 = vpack.c.bf16 %v6769, %v6768
        %v7402 = vpack.c.bf16 %v6734, %v6732
        %v7403 = vpack.c.bf16 %v6735, %v6733
        %v7404 = vpack.c.bf16 %v6771, %v6770
        %v7405 = vpack.c.bf16 %v6738, %v6736
        %v7406 = vpack.c.bf16 %v6739, %v6737
        %v7407 = vpack.c.bf16 %v6773, %v6772
        %v7408 = vpack.c.bf16 %v6742, %v6740
        %v7409 = vpack.c.bf16 %v6743, %v6741
        %v7410 = vpack.c.bf16 %v6775, %v6774
        %v7427 = vunpack.c.l.b16 %v7383
        %v7428 = vunpack.c.l.b16 %v7384
        %v7429 = vunpack.c.l.b16 %v7385
        %v7430 = vunpack.c.l.b16 %v7386
        %v7431 = vunpack.c.l.b16 %v7387
        %v7432 = vunpack.c.l.b16 %v7388
        %v7433 = vunpack.c.l.b16 %v7389
        %v7434 = vunpack.c.l.b16 %v7390
        %v7435 = vunpack.c.l.b16 %v7391
        %v7436 = vunpack.c.l.b16 %v7392
        %v7437 = vunpack.c.l.b16 %v7393
        %v7438 = vunpack.c.l.b16 %v7394
        %v7439 = vunpack.c.l.b16 %v7395
        %v7440 = vunpack.c.l.b16 %v7396
        %v7441 = vunpack.c.l.b16 %v7397
        %v7442 = vunpack.c.l.b16 %v7398
        %v7443 = vpack.c.b16 %v7428, %v7427
        %v7444 = vpack.c.b16 %v7430, %v7429
        %v7445 = vpack.c.b16 %v7432, %v7431
        %v7446 = vpack.c.b16 %v7434, %v7433
        %v7447 = vpack.c.b16 %v7436, %v7435
        %v7448 = vpack.c.b16 %v7438, %v7437
        %v7449 = vpack.c.b16 %v7440, %v7439
        %v7450 = vpack.c.b16 %v7442, %v7441
        %v7452 = vsel %vm2813, %v7443, 0
        %v7455 = vsel %vm2813, %v7444, 0
        %v7458 = vsel %vm2813, %v7445, 0
        %v7461 = vsel %vm2813, %v7446, 0
        %v7464 = vsel %vm2813, %v7447, 0
        %v7467 = vsel %vm2813, %v7448, 0
        %v7470 = vsel %vm2813, %v7449, 0
        %v7473 = vsel %vm2813, %v7450, 0
        %7475 = vmatprep.subr.bf16.mxu0 0
        %7476 = vmatpush1.bf16.msra.mxu0 0
        %7477 = vmatprep.subr.bf16.mxu0 0
        %7478 = vmatpush1.bf16.msra.mxu0 0
        %7479 = vmatprep.subr.bf16.mxu0 0
        %7480 = vmatpush1.bf16.msra.mxu0 0
        %7481 = vmatprep.subr.bf16.mxu0 0
        %7482 = vmatpush1.bf16.msra.mxu0 0
        %7483 = vmatprep.subr.bf16.mxu0 %v7409
        %7484 = vmatpush1.bf16.msra.mxu0 %v7408
        %7485 = vmatprep.subr.bf16.mxu0 %v7406
        %7486 = vmatpush1.bf16.msra.mxu0 %v7405
        %7487 = vmatprep.subr.bf16.mxu0 %v7403
        %7488 = vmatpush1.bf16.msra.mxu0 %v7402
        %7489 = vmatprep.subr.bf16.mxu0 %v7400
        %7490 = vmatpush1.bf16.msra.mxu0 %v7399
        %7491 = vmatprep.subr.bf16.mxu0 0
        %7492 = vmatpush2.bf16.msra.mxu0 0
        %7493 = vmatprep.subr.bf16.mxu0 0
        %7494 = vmatpush2.bf16.msra.mxu0 0
        %7495 = vmatprep.subr.bf16.mxu0 0
        %7496 = vmatpush2.bf16.msra.mxu0 0
        %7497 = vmatprep.subr.bf16.mxu0 0
        %7498 = vmatpush2.bf16.msra.mxu0 0
        %7499 = vmatprep.subr.bf16.mxu0 0
        %7500 = vmatpush2.bf16.msra.mxu0 0
        %7501 = vmatprep.subr.bf16.mxu0 0
        %7502 = vmatpush2.bf16.msra.mxu0 0
        %7503 = vmatprep.subr.bf16.mxu0 0
        %7504 = vmatpush2.bf16.msra.mxu0 0
        %7505 = vmatprep.subr.bf16.mxu0 0
        %7506 = vmatpush2.bf16.msra.mxu0 0
        %7507 = vmatprep.mubr.bf16.mxu0 0
        %7508 = vmatmul.mubr.bf16.gmra.mxu0 %v7452
        %v7509 = vpop.f32.mrf.mxu0
        %v7510 = vadd.f32 0.0, %v7509
        %v7511 = vpop.f32.mrf.mxu0
        %v7512 = vadd.f32 0.0, %v7511
        %v7513 = vpop.f32.mrf.mxu0
        %v7514 = vadd.f32 0.0, %v7513
        %v7515 = vpop.f32.mrf.mxu0
        %v7516 = vadd.f32 0.0, %v7515
        %7517 = vmatprep.mubr.bf16.mxu0 0
        %7518 = vmatmul.mubr.bf16.gmra.mxu0 %v7455
        %v7519 = vpop.f32.mrf.mxu0
        %v7520 = vadd.f32 0.0, %v7519
        %v7521 = vpop.f32.mrf.mxu0
        %v7522 = vadd.f32 0.0, %v7521
        %v7523 = vpop.f32.mrf.mxu0
        %v7524 = vadd.f32 0.0, %v7523
        %v7525 = vpop.f32.mrf.mxu0
        %v7526 = vadd.f32 0.0, %v7525
        %7527 = vmatprep.mubr.bf16.mxu0 0
        %7528 = vmatmul.mubr.bf16.gmra.mxu0 %v7458
        %v7529 = vpop.f32.mrf.mxu0
        %v7530 = vadd.f32 0.0, %v7529
        %v7531 = vpop.f32.mrf.mxu0
        %v7532 = vadd.f32 0.0, %v7531
        %v7533 = vpop.f32.mrf.mxu0
        %v7534 = vadd.f32 0.0, %v7533
        %v7535 = vpop.f32.mrf.mxu0
        %v7536 = vadd.f32 0.0, %v7535
        %7537 = vmatprep.mubr.bf16.mxu0 0
        %7538 = vmatmul.mubr.bf16.gmra.mxu0 %v7461
        %v7539 = vpop.f32.mrf.mxu0
        %v7540 = vadd.f32 0.0, %v7539
        %v7541 = vpop.f32.mrf.mxu0
        %v7542 = vadd.f32 0.0, %v7541
        %v7543 = vpop.f32.mrf.mxu0
        %v7544 = vadd.f32 0.0, %v7543
        %v7545 = vpop.f32.mrf.mxu0
        %v7546 = vadd.f32 0.0, %v7545
        %7547 = vmatprep.mubr.bf16.mxu0 0
        %7548 = vmatmul.mubr.bf16.gmra.mxu0 %v7464
        %v7549 = vpop.f32.mrf.mxu0
        %v7550 = vadd.f32 0.0, %v7549
        %v7551 = vpop.f32.mrf.mxu0
        %v7552 = vadd.f32 0.0, %v7551
        %v7553 = vpop.f32.mrf.mxu0
        %v7554 = vadd.f32 0.0, %v7553
        %v7555 = vpop.f32.mrf.mxu0
        %v7556 = vadd.f32 0.0, %v7555
        %7557 = vmatprep.mubr.bf16.mxu0 0
        %7558 = vmatmul.mubr.bf16.gmra.mxu0 %v7467
        %v7559 = vpop.f32.mrf.mxu0
        %v7560 = vadd.f32 0.0, %v7559
        %v7561 = vpop.f32.mrf.mxu0
        %v7562 = vadd.f32 0.0, %v7561
        %v7563 = vpop.f32.mrf.mxu0
        %v7564 = vadd.f32 0.0, %v7563
        %v7565 = vpop.f32.mrf.mxu0
        %v7566 = vadd.f32 0.0, %v7565
        %7567 = vmatprep.mubr.bf16.mxu0 0
        %7568 = vmatmul.mubr.bf16.gmra.mxu0 %v7470
        %v7569 = vpop.f32.mrf.mxu0
        %v7570 = vadd.f32 0.0, %v7569
        %v7571 = vpop.f32.mrf.mxu0
        %v7572 = vadd.f32 0.0, %v7571
        %v7573 = vpop.f32.mrf.mxu0
        %v7574 = vadd.f32 0.0, %v7573
        %v7575 = vpop.f32.mrf.mxu0
        %v7576 = vadd.f32 0.0, %v7575
        %7577 = vmatprep.mubr.bf16.mxu0 0
        %7578 = vmatmul.mubr.bf16.gmra.mxu0 %v7473
        %v7579 = vpop.f32.mrf.mxu0
        %v7580 = vadd.f32 0.0, %v7579
        %v7581 = vpop.f32.mrf.mxu0
        %v7582 = vadd.f32 0.0, %v7581
        %v7583 = vpop.f32.mrf.mxu0
        %v7584 = vadd.f32 0.0, %v7583
        %v7585 = vpop.f32.mrf.mxu0
        %v7586 = vadd.f32 0.0, %v7585
        %7587 = vdwg.mxu0
        %7588 = vmatprep.subr.bf16.mxu0 0
        %7589 = vmatpush1.bf16.msra.mxu0 0
        %7590 = vmatprep.subr.bf16.mxu0 0
        %7591 = vmatpush1.bf16.msra.mxu0 0
        %7592 = vmatprep.subr.bf16.mxu0 0
        %7593 = vmatpush1.bf16.msra.mxu0 0
        %7594 = vmatprep.subr.bf16.mxu0 0
        %7595 = vmatpush1.bf16.msra.mxu0 0
        %7596 = vmatprep.subr.bf16.mxu0 0
        %7597 = vmatpush1.bf16.msra.mxu0 %v7410
        %7598 = vmatprep.subr.bf16.mxu0 0
        %7599 = vmatpush1.bf16.msra.mxu0 %v7407
        %7600 = vmatprep.subr.bf16.mxu0 0
        %7601 = vmatpush1.bf16.msra.mxu0 %v7404
        %7602 = vmatprep.subr.bf16.mxu0 0
        %7603 = vmatpush1.bf16.msra.mxu0 %v7401
        %7604 = vmatprep.subr.bf16.mxu0 0
        %7605 = vmatpush2.bf16.msra.mxu0 0
        %7606 = vmatprep.subr.bf16.mxu0 0
        %7607 = vmatpush2.bf16.msra.mxu0 0
        %7608 = vmatprep.subr.bf16.mxu0 0
        %7609 = vmatpush2.bf16.msra.mxu0 0
        %7610 = vmatprep.subr.bf16.mxu0 0
        %7611 = vmatpush2.bf16.msra.mxu0 0
        %7612 = vmatprep.subr.bf16.mxu0 0
        %7613 = vmatpush2.bf16.msra.mxu0 0
        %7614 = vmatprep.subr.bf16.mxu0 0
        %7615 = vmatpush2.bf16.msra.mxu0 0
        %7616 = vmatprep.subr.bf16.mxu0 0
        %7617 = vmatpush2.bf16.msra.mxu0 0
        %7618 = vmatprep.subr.bf16.mxu0 0
        %7619 = vmatpush2.bf16.msra.mxu0 0
        %7620 = vmatprep.mubr.bf16.mxu0 0
        %7621 = vmatmul.mubr.bf16.gmra.mxu0 %v7452
        %v7622 = vpop.f32.mrf.mxu0
        %v7623 = vadd.f32 0.0, %v7622
        %v7624 = vpop.f32.mrf.mxu0
        %v7625 = vpop.f32.mrf.mxu0
        %v7626 = vadd.f32 0.0, %v7625
        %v7627 = vpop.f32.mrf.mxu0
        %7628 = vmatprep.mubr.bf16.mxu0 0
        %7629 = vmatmul.mubr.bf16.gmra.mxu0 %v7455
        %v7630 = vpop.f32.mrf.mxu0
        %v7631 = vadd.f32 0.0, %v7630
        %v7632 = vpop.f32.mrf.mxu0
        %v7633 = vpop.f32.mrf.mxu0
        %v7634 = vadd.f32 0.0, %v7633
        %v7635 = vpop.f32.mrf.mxu0
        %7636 = vmatprep.mubr.bf16.mxu0 0
        %7637 = vmatmul.mubr.bf16.gmra.mxu0 %v7458
        %v7638 = vpop.f32.mrf.mxu0
        %v7639 = vadd.f32 0.0, %v7638
        %v7640 = vpop.f32.mrf.mxu0
        %v7641 = vpop.f32.mrf.mxu0
        %v7642 = vadd.f32 0.0, %v7641
        %v7643 = vpop.f32.mrf.mxu0
        %7644 = vmatprep.mubr.bf16.mxu0 0
        %7645 = vmatmul.mubr.bf16.gmra.mxu0 %v7461
        %v7646 = vpop.f32.mrf.mxu0
        %v7647 = vadd.f32 0.0, %v7646
        %v7648 = vpop.f32.mrf.mxu0
        %v7649 = vpop.f32.mrf.mxu0
        %v7650 = vadd.f32 0.0, %v7649
        %v7651 = vpop.f32.mrf.mxu0
        %7652 = vmatprep.mubr.bf16.mxu0 0
        %7653 = vmatmul.mubr.bf16.gmra.mxu0 %v7464
        %v7654 = vpop.f32.mrf.mxu0
        %v7655 = vadd.f32 0.0, %v7654
        %v7656 = vpop.f32.mrf.mxu0
        %v7657 = vpop.f32.mrf.mxu0
        %v7658 = vadd.f32 0.0, %v7657
        %v7659 = vpop.f32.mrf.mxu0
        %7660 = vmatprep.mubr.bf16.mxu0 0
        %7661 = vmatmul.mubr.bf16.gmra.mxu0 %v7467
        %v7662 = vpop.f32.mrf.mxu0
        %v7663 = vadd.f32 0.0, %v7662
        %v7664 = vpop.f32.mrf.mxu0
        %v7665 = vpop.f32.mrf.mxu0
        %v7666 = vadd.f32 0.0, %v7665
        %v7667 = vpop.f32.mrf.mxu0
        %7668 = vmatprep.mubr.bf16.mxu0 0
        %7669 = vmatmul.mubr.bf16.gmra.mxu0 %v7470
        %v7670 = vpop.f32.mrf.mxu0
        %v7671 = vadd.f32 0.0, %v7670
        %v7672 = vpop.f32.mrf.mxu0
        %v7673 = vpop.f32.mrf.mxu0
        %v7674 = vadd.f32 0.0, %v7673
        %v7675 = vpop.f32.mrf.mxu0
        %7676 = vmatprep.mubr.bf16.mxu0 0
        %7677 = vmatmul.mubr.bf16.gmra.mxu0 %v7473
        %v7678 = vpop.f32.mrf.mxu0
        %v7679 = vadd.f32 0.0, %v7678
        %v7680 = vpop.f32.mrf.mxu0
        %v7681 = vpop.f32.mrf.mxu0
        %v7682 = vadd.f32 0.0, %v7681
        %v7683 = vpop.f32.mrf.mxu0
        %7684 = vdwg.mxu0
        %v7685 = vadd.f32 %v7207, %v7510
        %v7686 = vadd.f32 %v7209, %v7512
        %v7687 = vadd.f32 %v7320, %v7623
        %v7688 = vadd.f32 %v7211, %v7514
        %v7689 = vadd.f32 %v7213, %v7516
        %v7690 = vadd.f32 %v7323, %v7626
        %v7691 = vadd.f32 %v7217, %v7520
        %v7692 = vadd.f32 %v7219, %v7522
        %v7693 = vadd.f32 %v7328, %v7631
        %v7694 = vadd.f32 %v7221, %v7524
        %v7695 = vadd.f32 %v7223, %v7526
        %v7696 = vadd.f32 %v7331, %v7634
        %v7697 = vadd.f32 %v7227, %v7530
        %v7698 = vadd.f32 %v7229, %v7532
        %v7699 = vadd.f32 %v7336, %v7639
        %v7700 = vadd.f32 %v7231, %v7534
        %v7701 = vadd.f32 %v7233, %v7536
        %v7702 = vadd.f32 %v7339, %v7642
        %v7703 = vadd.f32 %v7237, %v7540
        %v7704 = vadd.f32 %v7239, %v7542
        %v7705 = vadd.f32 %v7344, %v7647
        %v7706 = vadd.f32 %v7241, %v7544
        %v7707 = vadd.f32 %v7243, %v7546
        %v7708 = vadd.f32 %v7347, %v7650
        %v7709 = vadd.f32 %v7247, %v7550
        %v7710 = vadd.f32 %v7249, %v7552
        %v7711 = vadd.f32 %v7352, %v7655
        %v7712 = vadd.f32 %v7251, %v7554
        %v7713 = vadd.f32 %v7253, %v7556
        %v7714 = vadd.f32 %v7355, %v7658
        %v7715 = vadd.f32 %v7257, %v7560
        %v7716 = vadd.f32 %v7259, %v7562
        %v7717 = vadd.f32 %v7360, %v7663
        %v7718 = vadd.f32 %v7261, %v7564
        %v7719 = vadd.f32 %v7263, %v7566
        %v7720 = vadd.f32 %v7363, %v7666
        %v7721 = vadd.f32 %v7267, %v7570
        %v7722 = vadd.f32 %v7269, %v7572
        %v7723 = vadd.f32 %v7368, %v7671
        %v7724 = vadd.f32 %v7271, %v7574
        %v7725 = vadd.f32 %v7273, %v7576
        %v7726 = vadd.f32 %v7371, %v7674
        %v7727 = vadd.f32 %v7277, %v7580
        %v7728 = vadd.f32 %v7279, %v7582
        %v7729 = vadd.f32 %v7376, %v7679
        %v7730 = vadd.f32 %v7281, %v7584
        %v7731 = vadd.f32 %v7283, %v7586
        %v7732 = vadd.f32 %v7379, %v7682
        %s7733 = scalar_lea.vmem %s6, 256
        %v7734 = vld [vmem:[%s7733] sm:$0xff]
        %v7735 = vld [vmem:[%s7733 + $0x8] sm:$0xff]
        %v7736 = vld [vmem:[%s7733 + $0x10] sm:$0xff]
        %v7737 = vld [vmem:[%s7733 + $0x18] sm:$0xff]
        %v7738 = vld [vmem:[%s7733 + $0x20] sm:$0xff]
        %v7739 = vld [vmem:[%s7733 + $0x28] sm:$0xff]
        %v7740 = vld [vmem:[%s7733 + $0x30] sm:$0xff]
        %v7741 = vld [vmem:[%s7733 + $0x38] sm:$0xff]
        %v7742 = vld [vmem:[%s7733 + $0x40] sm:$0xff]
        %v7743 = vld [vmem:[%s7733 + $0x48] sm:$0xff]
        %v7744 = vld [vmem:[%s7733 + $0x50] sm:$0xff]
        %v7745 = vld [vmem:[%s7733 + $0x58] sm:$0xff]
        %v7746 = vld [vmem:[%s7733 + $0x60] sm:$0xff]
        %v7747 = vld [vmem:[%s7733 + $0x68] sm:$0xff]
        %v7748 = vld [vmem:[%s7733 + $0x70] sm:$0xff]
        %v7749 = vld [vmem:[%s7733 + $0x78] sm:$0xff]
        %7751 = vset.pattern.permute.xlu0 0
        %7752 = vperm.xlu0 %7751, %v7734
        %v7753 = vpop.permute.xlu0 %7752
        %7756 = vset.pattern.permute.xlu0 0
        %7757 = vperm.xlu0 %7756, %v7735
        %v7758 = vpop.permute.xlu0 %7757
        %7761 = vset.pattern.permute.xlu0 0
        %7762 = vperm.xlu0 %7761, %v7736
        %v7763 = vpop.permute.xlu0 %7762
        %7766 = vset.pattern.permute.xlu0 0
        %7767 = vperm.xlu0 %7766, %v7737
        %v7768 = vpop.permute.xlu0 %7767
        %7771 = vset.pattern.permute.xlu0 0
        %7772 = vperm.xlu0 %7771, %v7738
        %v7773 = vpop.permute.xlu0 %7772
        %7776 = vset.pattern.permute.xlu0 0
        %7777 = vperm.xlu0 %7776, %v7739
        %v7778 = vpop.permute.xlu0 %7777
        %7781 = vset.pattern.permute.xlu0 0
        %7782 = vperm.xlu0 %7781, %v7740
        %v7783 = vpop.permute.xlu0 %7782
        %7786 = vset.pattern.permute.xlu0 0
        %7787 = vperm.xlu0 %7786, %v7741
        %v7788 = vpop.permute.xlu0 %7787
        %7791 = vset.pattern.permute.xlu0 0
        %7792 = vperm.xlu0 %7791, %v7742
        %v7793 = vpop.permute.xlu0 %7792
        %7796 = vset.pattern.permute.xlu0 0
        %7797 = vperm.xlu0 %7796, %v7743
        %v7798 = vpop.permute.xlu0 %7797
        %7801 = vset.pattern.permute.xlu0 0
        %7802 = vperm.xlu0 %7801, %v7744
        %v7803 = vpop.permute.xlu0 %7802
        %7806 = vset.pattern.permute.xlu0 0
        %7807 = vperm.xlu0 %7806, %v7745
        %v7808 = vpop.permute.xlu0 %7807
        %7811 = vset.pattern.permute.xlu0 0
        %7812 = vperm.xlu0 %7811, %v7746
        %v7813 = vpop.permute.xlu0 %7812
        %7816 = vset.pattern.permute.xlu0 0
        %7817 = vperm.xlu0 %7816, %v7747
        %v7818 = vpop.permute.xlu0 %7817
        %7821 = vset.pattern.permute.xlu0 0
        %7822 = vperm.xlu0 %7821, %v7748
        %v7823 = vpop.permute.xlu0 %7822
        %7826 = vset.pattern.permute.xlu0 0
        %7827 = vperm.xlu0 %7826, %v7749
        %v7828 = vpop.permute.xlu0 %7827
        %v7830 = vadd.f32 %v7685, %v7753
        %v7831 = vadd.f32 %v7686, %v7753
        %v7832 = vadd.f32 %v7687, %v7753
        %v7833 = vadd.f32 %v7688, %v7758
        %v7834 = vadd.f32 %v7689, %v7758
        %v7835 = vadd.f32 %v7690, %v7758
        %v7836 = vadd.f32 %v7691, %v7763
        %v7837 = vadd.f32 %v7692, %v7763
        %v7838 = vadd.f32 %v7693, %v7763
        %v7839 = vadd.f32 %v7694, %v7768
        %v7840 = vadd.f32 %v7695, %v7768
        %v7841 = vadd.f32 %v7696, %v7768
        %v7842 = vadd.f32 %v7697, %v7773
        %v7843 = vadd.f32 %v7698, %v7773
        %v7844 = vadd.f32 %v7699, %v7773
        %v7845 = vadd.f32 %v7700, %v7778
        %v7846 = vadd.f32 %v7701, %v7778
        %v7847 = vadd.f32 %v7702, %v7778
        %v7848 = vadd.f32 %v7703, %v7783
        %v7849 = vadd.f32 %v7704, %v7783
        %v7850 = vadd.f32 %v7705, %v7783
        %v7851 = vadd.f32 %v7706, %v7788
        %v7852 = vadd.f32 %v7707, %v7788
        %v7853 = vadd.f32 %v7708, %v7788
        %v7854 = vadd.f32 %v7709, %v7793
        %v7855 = vadd.f32 %v7710, %v7793
        %v7856 = vadd.f32 %v7711, %v7793
        %v7857 = vadd.f32 %v7712, %v7798
        %v7858 = vadd.f32 %v7713, %v7798
        %v7859 = vadd.f32 %v7714, %v7798
        %v7860 = vadd.f32 %v7715, %v7803
        %v7861 = vadd.f32 %v7716, %v7803
        %v7862 = vadd.f32 %v7717, %v7803
        %v7863 = vadd.f32 %v7718, %v7808
        %v7864 = vadd.f32 %v7719, %v7808
        %v7865 = vadd.f32 %v7720, %v7808
        %v7866 = vadd.f32 %v7721, %v7813
        %v7867 = vadd.f32 %v7722, %v7813
        %v7868 = vadd.f32 %v7723, %v7813
        %v7869 = vadd.f32 %v7724, %v7818
        %v7870 = vadd.f32 %v7725, %v7818
        %v7871 = vadd.f32 %v7726, %v7818
        %v7872 = vadd.f32 %v7727, %v7823
        %v7873 = vadd.f32 %v7728, %v7823
        %v7874 = vadd.f32 %v7729, %v7823
        %v7875 = vadd.f32 %v7730, %v7828
        %v7876 = vadd.f32 %v7731, %v7828
        %v7877 = vadd.f32 %v7732, %v7828
        %v7878 = vadd.f32 %v7830, %v2027
        %v7879 = vadd.f32 %v7831, %v2029
        %v7880 = vadd.f32 %v7832, %v2348
        %v7881 = vadd.f32 %v7833, %v2031
        %v7882 = vadd.f32 %v7834, %v2033
        %v7883 = vadd.f32 %v7835, %v2351
        %v7884 = vadd.f32 %v7836, %v2037
        %v7885 = vadd.f32 %v7837, %v2039
        %v7886 = vadd.f32 %v7838, %v2356
        %v7887 = vadd.f32 %v7839, %v2041
        %v7888 = vadd.f32 %v7840, %v2043
        %v7889 = vadd.f32 %v7841, %v2359
        %v7890 = vadd.f32 %v7842, %v2047
        %v7891 = vadd.f32 %v7843, %v2049
        %v7892 = vadd.f32 %v7844, %v2364
        %v7893 = vadd.f32 %v7845, %v2051
        %v7894 = vadd.f32 %v7846, %v2053
        %v7895 = vadd.f32 %v7847, %v2367
        %v7896 = vadd.f32 %v7848, %v2057
        %v7897 = vadd.f32 %v7849, %v2059
        %v7898 = vadd.f32 %v7850, %v2372
        %v7899 = vadd.f32 %v7851, %v2061
        %v7900 = vadd.f32 %v7852, %v2063
        %v7901 = vadd.f32 %v7853, %v2375
        %v7902 = vadd.f32 %v7854, %v2067
        %v7903 = vadd.f32 %v7855, %v2069
        %v7904 = vadd.f32 %v7856, %v2380
        %v7905 = vadd.f32 %v7857, %v2071
        %v7906 = vadd.f32 %v7858, %v2073
        %v7907 = vadd.f32 %v7859, %v2383
        %v7908 = vadd.f32 %v7860, %v2077
        %v7909 = vadd.f32 %v7861, %v2079
        %v7910 = vadd.f32 %v7862, %v2388
        %v7911 = vadd.f32 %v7863, %v2081
        %v7912 = vadd.f32 %v7864, %v2083
        %v7913 = vadd.f32 %v7865, %v2391
        %v7914 = vadd.f32 %v7866, %v2087
        %v7915 = vadd.f32 %v7867, %v2089
        %v7916 = vadd.f32 %v7868, %v2396
        %v7917 = vadd.f32 %v7869, %v2091
        %v7918 = vadd.f32 %v7870, %v2093
        %v7919 = vadd.f32 %v7871, %v2399
        %v7920 = vadd.f32 %v7872, %v2097
        %v7921 = vadd.f32 %v7873, %v2099
        %v7922 = vadd.f32 %v7874, %v2404
        %v7923 = vadd.f32 %v7875, %v2101
        %v7924 = vadd.f32 %v7876, %v2103
        %v7925 = vadd.f32 %v7877, %v2407
        %v7926 = vtanh.pop %v7878
        %v7927 = vtanh.pop %v7879
        %v7928 = vtanh.pop %v7880
        %v7929 = vtanh.pop %v7881
        %v7930 = vtanh.pop %v7882
        %v7931 = vtanh.pop %v7883
        %v7932 = vtanh.pop %v7884
        %v7933 = vtanh.pop %v7885
        %v7934 = vtanh.pop %v7886
        %v7935 = vtanh.pop %v7887
        %v7936 = vtanh.pop %v7888
        %v7937 = vtanh.pop %v7889
        %v7938 = vtanh.pop %v7890
        %v7939 = vtanh.pop %v7891
        %v7940 = vtanh.pop %v7892
        %v7941 = vtanh.pop %v7893
        %v7942 = vtanh.pop %v7894
        %v7943 = vtanh.pop %v7895
        %v7944 = vtanh.pop %v7896
        %v7945 = vtanh.pop %v7897
        %v7946 = vtanh.pop %v7898
        %v7947 = vtanh.pop %v7899
        %v7948 = vtanh.pop %v7900
        %v7949 = vtanh.pop %v7901
        %v7950 = vxor.u32 %v7902, 2147483648
        %v7951 = vxor.u32 %v7903, 2147483648
        %v7952 = vxor.u32 %v7904, 2147483648
        %v7953 = vxor.u32 %v7905, 2147483648
        %v7954 = vxor.u32 %v7906, 2147483648
        %v7955 = vxor.u32 %v7907, 2147483648
        %v7956 = vxor.u32 %v7908, 2147483648
        %v7957 = vxor.u32 %v7909, 2147483648
        %v7958 = vxor.u32 %v7910, 2147483648
        %v7959 = vxor.u32 %v7911, 2147483648
        %v7960 = vxor.u32 %v7912, 2147483648
        %v7961 = vxor.u32 %v7913, 2147483648
        %v7962 = vxor.u32 %v7914, 2147483648
        %v7963 = vxor.u32 %v7915, 2147483648
        %v7964 = vxor.u32 %v7916, 2147483648
        %v7965 = vxor.u32 %v7917, 2147483648
        %v7966 = vxor.u32 %v7918, 2147483648
        %v7967 = vxor.u32 %v7919, 2147483648
        %v7968 = vxor.u32 %v7920, 2147483648
        %v7969 = vxor.u32 %v7921, 2147483648
        %v7970 = vxor.u32 %v7922, 2147483648
        %v7971 = vxor.u32 %v7923, 2147483648
        %v7972 = vxor.u32 %v7924, 2147483648
        %v7973 = vxor.u32 %v7925, 2147483648
        %v7974 = vmul.f32 %v7950, 1.442695
        %v7975 = vpow.pop %v7974
        %v7976 = vmul.f32 %v7951, 1.442695
        %v7977 = vpow.pop %v7976
        %v7978 = vmul.f32 %v7952, 1.442695
        %v7979 = vpow.pop %v7978
        %v7980 = vmul.f32 %v7953, 1.442695
        %v7981 = vpow.pop %v7980
        %v7982 = vmul.f32 %v7954, 1.442695
        %v7983 = vpow.pop %v7982
        %v7984 = vmul.f32 %v7955, 1.442695
        %v7985 = vpow.pop %v7984
        %v7986 = vmul.f32 %v7956, 1.442695
        %v7987 = vpow.pop %v7986
        %v7988 = vmul.f32 %v7957, 1.442695
        %v7989 = vpow.pop %v7988
        %v7990 = vmul.f32 %v7958, 1.442695
        %v7991 = vpow.pop %v7990
        %v7992 = vmul.f32 %v7959, 1.442695
        %v7993 = vpow.pop %v7992
        %v7994 = vmul.f32 %v7960, 1.442695
        %v7995 = vpow.pop %v7994
        %v7996 = vmul.f32 %v7961, 1.442695
        %v7997 = vpow.pop %v7996
        %v7998 = vmul.f32 %v7962, 1.442695
        %v7999 = vpow.pop %v7998
        %v8000 = vmul.f32 %v7963, 1.442695
        %v8001 = vpow.pop %v8000
        %v8002 = vmul.f32 %v7964, 1.442695
        %v8003 = vpow.pop %v8002
        %v8004 = vmul.f32 %v7965, 1.442695
        %v8005 = vpow.pop %v8004
        %v8006 = vmul.f32 %v7966, 1.442695
        %v8007 = vpow.pop %v8006
        %v8008 = vmul.f32 %v7967, 1.442695
        %v8009 = vpow.pop %v8008
        %v8010 = vmul.f32 %v7968, 1.442695
        %v8011 = vpow.pop %v8010
        %v8012 = vmul.f32 %v7969, 1.442695
        %v8013 = vpow.pop %v8012
        %v8014 = vmul.f32 %v7970, 1.442695
        %v8015 = vpow.pop %v8014
        %v8016 = vmul.f32 %v7971, 1.442695
        %v8017 = vpow.pop %v8016
        %v8018 = vmul.f32 %v7972, 1.442695
        %v8019 = vpow.pop %v8018
        %v8020 = vmul.f32 %v7973, 1.442695
        %v8021 = vpow.pop %v8020
        %v8022 = vadd.f32 %v7975, 1.0
        %v8023 = vadd.f32 %v7977, 1.0
        %v8024 = vadd.f32 %v7979, 1.0
        %v8025 = vadd.f32 %v7981, 1.0
        %v8026 = vadd.f32 %v7983, 1.0
        %v8027 = vadd.f32 %v7985, 1.0
        %v8028 = vadd.f32 %v7987, 1.0
        %v8029 = vadd.f32 %v7989, 1.0
        %v8030 = vadd.f32 %v7991, 1.0
        %v8031 = vadd.f32 %v7993, 1.0
        %v8032 = vadd.f32 %v7995, 1.0
        %v8033 = vadd.f32 %v7997, 1.0
        %v8034 = vadd.f32 %v7999, 1.0
        %v8035 = vadd.f32 %v8001, 1.0
        %v8036 = vadd.f32 %v8003, 1.0
        %v8037 = vadd.f32 %v8005, 1.0
        %v8038 = vadd.f32 %v8007, 1.0
        %v8039 = vadd.f32 %v8009, 1.0
        %v8040 = vadd.f32 %v8011, 1.0
        %v8041 = vadd.f32 %v8013, 1.0
        %v8042 = vadd.f32 %v8015, 1.0
        %v8043 = vadd.f32 %v8017, 1.0
        %v8044 = vadd.f32 %v8019, 1.0
        %v8045 = vadd.f32 %v8021, 1.0
        %v8046 = vrcp.pop %v8022
        %v8047 = vmul.f32 1.0, %v8046
        %v8048 = vrcp.pop %v8023
        %v8049 = vmul.f32 1.0, %v8048
        %v8050 = vrcp.pop %v8024
        %v8051 = vmul.f32 1.0, %v8050
        %v8052 = vrcp.pop %v8025
        %v8053 = vmul.f32 1.0, %v8052
        %v8054 = vrcp.pop %v8026
        %v8055 = vmul.f32 1.0, %v8054
        %v8056 = vrcp.pop %v8027
        %v8057 = vmul.f32 1.0, %v8056
        %v8058 = vrcp.pop %v8028
        %v8059 = vmul.f32 1.0, %v8058
        %v8060 = vrcp.pop %v8029
        %v8061 = vmul.f32 1.0, %v8060
        %v8062 = vrcp.pop %v8030
        %v8063 = vmul.f32 1.0, %v8062
        %v8064 = vrcp.pop %v8031
        %v8065 = vmul.f32 1.0, %v8064
        %v8066 = vrcp.pop %v8032
        %v8067 = vmul.f32 1.0, %v8066
        %v8068 = vrcp.pop %v8033
        %v8069 = vmul.f32 1.0, %v8068
        %v8070 = vrcp.pop %v8034
        %v8071 = vmul.f32 1.0, %v8070
        %v8072 = vrcp.pop %v8035
        %v8073 = vmul.f32 1.0, %v8072
        %v8074 = vrcp.pop %v8036
        %v8075 = vmul.f32 1.0, %v8074
        %v8076 = vrcp.pop %v8037
        %v8077 = vmul.f32 1.0, %v8076
        %v8078 = vrcp.pop %v8038
        %v8079 = vmul.f32 1.0, %v8078
        %v8080 = vrcp.pop %v8039
        %v8081 = vmul.f32 1.0, %v8080
        %v8082 = vrcp.pop %v8040
        %v8083 = vmul.f32 1.0, %v8082
        %v8084 = vrcp.pop %v8041
        %v8085 = vmul.f32 1.0, %v8084
        %v8086 = vrcp.pop %v8042
        %v8087 = vmul.f32 1.0, %v8086
        %v8088 = vrcp.pop %v8043
        %v8089 = vmul.f32 1.0, %v8088
        %v8090 = vrcp.pop %v8044
        %v8091 = vmul.f32 1.0, %v8090
        %v8092 = vrcp.pop %v8045
        %v8093 = vmul.f32 1.0, %v8092
        %v8094 = vmul.f32 %v7926, %v8047
        %v8095 = vmul.f32 %v7927, %v8049
        %v8096 = vmul.f32 %v7928, %v8051
        %v8097 = vmul.f32 %v7929, %v8053
        %v8098 = vmul.f32 %v7930, %v8055
        %v8099 = vmul.f32 %v7931, %v8057
        %v8100 = vmul.f32 %v7932, %v8059
        %v8101 = vmul.f32 %v7933, %v8061
        %v8102 = vmul.f32 %v7934, %v8063
        %v8103 = vmul.f32 %v7935, %v8065
        %v8104 = vmul.f32 %v7936, %v8067
        %v8105 = vmul.f32 %v7937, %v8069
        %v8106 = vmul.f32 %v7938, %v8071
        %v8107 = vmul.f32 %v7939, %v8073
        %v8108 = vmul.f32 %v7940, %v8075
        %v8109 = vmul.f32 %v7941, %v8077
        %v8110 = vmul.f32 %v7942, %v8079
        %v8111 = vmul.f32 %v7943, %v8081
        %v8112 = vmul.f32 %v7944, %v8083
        %v8113 = vmul.f32 %v7945, %v8085
        %v8114 = vmul.f32 %v7946, %v8087
        %v8115 = vmul.f32 %v7947, %v8089
        %v8116 = vmul.f32 %v7948, %v8091
        %v8117 = vmul.f32 %v7949, %v8093
        %s8118 = scalar_lea.vmem %s9, 128
        %v8119 = vld [vmem:[%s8118] sm:$0xf]
        %v8120 = vld [vmem:[%s8118 + $0x4] sm:$0xf]
        %v8121 = vld [vmem:[%s8118 + $0x8] sm:$0xf]
        %v8122 = vld [vmem:[%s8118 + $0xc] sm:$0xf]
        %v8123 = vld [vmem:[%s8118 + $0x10] sm:$0xf]
        %v8124 = vld [vmem:[%s8118 + $0x14] sm:$0xf]
        %v8125 = vld [vmem:[%s8118 + $0x18] sm:$0xf]
        %v8126 = vld [vmem:[%s8118 + $0x1c] sm:$0xf]
        %v8127 = vld [vmem:[%s8118 + $0x20] sm:$0xf]
        %v8128 = vld [vmem:[%s8118 + $0x24] sm:$0xf]
        %v8129 = vld [vmem:[%s8118 + $0x28] sm:$0xf]
        %v8130 = vld [vmem:[%s8118 + $0x2c] sm:$0xf]
        %v8131 = vld [vmem:[%s8118 + $0x30] sm:$0xf]
        %v8132 = vld [vmem:[%s8118 + $0x34] sm:$0xf]
        %v8133 = vld [vmem:[%s8118 + $0x38] sm:$0xf]
        %v8134 = vld [vmem:[%s8118 + $0x3c] sm:$0xf]
        %v8135 = vpack.c.bf16 %v8097, %v8094
        %v8136 = vpack.c.bf16 %v8098, %v8095
        %v8137 = vpack.c.bf16 %v8099, %v8096
        %v8138 = vpack.c.bf16 %v8103, %v8100
        %v8139 = vpack.c.bf16 %v8104, %v8101
        %v8140 = vpack.c.bf16 %v8105, %v8102
        %v8141 = vpack.c.bf16 %v8109, %v8106
        %v8142 = vpack.c.bf16 %v8110, %v8107
        %v8143 = vpack.c.bf16 %v8111, %v8108
        %v8144 = vpack.c.bf16 %v8115, %v8112
        %v8145 = vpack.c.bf16 %v8116, %v8113
        %v8146 = vpack.c.bf16 %v8117, %v8114
        %s8147 = scalar_lea.vmem %s10, 256
        %v8148 = vld [vmem:[%s8147] sm:$0xff]
        %v8149 = vld [vmem:[%s8147 + $0x8] sm:$0xff]
        %v8150 = vld [vmem:[%s8147 + $0x10] sm:$0xff]
        %v8151 = vld [vmem:[%s8147 + $0x18] sm:$0xff]
        %v8152 = vld [vmem:[%s8147 + $0x20] sm:$0xff]
        %v8153 = vld [vmem:[%s8147 + $0x28] sm:$0xff]
        %v8154 = vld [vmem:[%s8147 + $0x30] sm:$0xff]
        %v8155 = vld [vmem:[%s8147 + $0x38] sm:$0xff]
        %v8156 = vld [vmem:[%s8147 + $0x40] sm:$0xff]
        %v8157 = vld [vmem:[%s8147 + $0x48] sm:$0xff]
        %v8158 = vld [vmem:[%s8147 + $0x50] sm:$0xff]
        %v8159 = vld [vmem:[%s8147 + $0x58] sm:$0xff]
        %v8160 = vld [vmem:[%s8147 + $0x60] sm:$0xff]
        %v8161 = vld [vmem:[%s8147 + $0x68] sm:$0xff]
        %v8162 = vld [vmem:[%s8147 + $0x70] sm:$0xff]
        %v8163 = vld [vmem:[%s8147 + $0x78] sm:$0xff]
        %8165 = vset.pattern.permute.xlu0 0
        %8166 = vperm.xlu0 %8165, %v8148
        %v8167 = vpop.permute.xlu0 %8166
        %8170 = vset.pattern.permute.xlu0 0
        %8171 = vperm.xlu0 %8170, %v8149
        %v8172 = vpop.permute.xlu0 %8171
        %8175 = vset.pattern.permute.xlu0 0
        %8176 = vperm.xlu0 %8175, %v8150
        %v8177 = vpop.permute.xlu0 %8176
        %8180 = vset.pattern.permute.xlu0 0
        %8181 = vperm.xlu0 %8180, %v8151
        %v8182 = vpop.permute.xlu0 %8181
        %8185 = vset.pattern.permute.xlu0 0
        %8186 = vperm.xlu0 %8185, %v8152
        %v8187 = vpop.permute.xlu0 %8186
        %8190 = vset.pattern.permute.xlu0 0
        %8191 = vperm.xlu0 %8190, %v8153
        %v8192 = vpop.permute.xlu0 %8191
        %8195 = vset.pattern.permute.xlu0 0
        %8196 = vperm.xlu0 %8195, %v8154
        %v8197 = vpop.permute.xlu0 %8196
        %8200 = vset.pattern.permute.xlu0 0
        %8201 = vperm.xlu0 %8200, %v8155
        %v8202 = vpop.permute.xlu0 %8201
        %8205 = vset.pattern.permute.xlu0 0
        %8206 = vperm.xlu0 %8205, %v8156
        %v8207 = vpop.permute.xlu0 %8206
        %8210 = vset.pattern.permute.xlu0 0
        %8211 = vperm.xlu0 %8210, %v8157
        %v8212 = vpop.permute.xlu0 %8211
        %8215 = vset.pattern.permute.xlu0 0
        %8216 = vperm.xlu0 %8215, %v8158
        %v8217 = vpop.permute.xlu0 %8216
        %8220 = vset.pattern.permute.xlu0 0
        %8221 = vperm.xlu0 %8220, %v8159
        %v8222 = vpop.permute.xlu0 %8221
        %8225 = vset.pattern.permute.xlu0 0
        %8226 = vperm.xlu0 %8225, %v8160
        %v8227 = vpop.permute.xlu0 %8226
        %8230 = vset.pattern.permute.xlu0 0
        %8231 = vperm.xlu0 %8230, %v8161
        %v8232 = vpop.permute.xlu0 %8231
        %8235 = vset.pattern.permute.xlu0 0
        %8236 = vperm.xlu0 %8235, %v8162
        %v8237 = vpop.permute.xlu0 %8236
        %8240 = vset.pattern.permute.xlu0 0
        %8241 = vperm.xlu0 %8240, %v8163
        %v8242 = vpop.permute.xlu0 %8241
        %v8260 = vunpack.c.l.b16 %v8119
        %v8261 = vunpack.c.l.b16 %v8120
        %v8262 = vunpack.c.l.b16 %v8121
        %v8263 = vunpack.c.l.b16 %v8122
        %v8264 = vunpack.c.l.b16 %v8123
        %v8265 = vunpack.c.l.b16 %v8124
        %v8266 = vunpack.c.l.b16 %v8125
        %v8267 = vunpack.c.l.b16 %v8126
        %v8268 = vunpack.c.l.b16 %v8127
        %v8269 = vunpack.c.l.b16 %v8128
        %v8270 = vunpack.c.l.b16 %v8129
        %v8271 = vunpack.c.l.b16 %v8130
        %v8272 = vunpack.c.l.b16 %v8131
        %v8273 = vunpack.c.l.b16 %v8132
        %v8274 = vunpack.c.l.b16 %v8133
        %v8275 = vunpack.c.l.b16 %v8134
        %v8276 = vpack.c.b16 %v8261, %v8260
        %v8277 = vpack.c.b16 %v8263, %v8262
        %v8278 = vpack.c.b16 %v8265, %v8264
        %v8279 = vpack.c.b16 %v8267, %v8266
        %v8280 = vpack.c.b16 %v8269, %v8268
        %v8281 = vpack.c.b16 %v8271, %v8270
        %v8282 = vpack.c.b16 %v8273, %v8272
        %v8283 = vpack.c.b16 %v8275, %v8274
        %v8285 = vsel %vm2813, %v8276, 0
        %v8288 = vsel %vm2813, %v8277, 0
        %v8291 = vsel %vm2813, %v8278, 0
        %v8294 = vsel %vm2813, %v8279, 0
        %v8297 = vsel %vm2813, %v8280, 0
        %v8300 = vsel %vm2813, %v8281, 0
        %v8303 = vsel %vm2813, %v8282, 0
        %v8306 = vsel %vm2813, %v8283, 0
        %8308 = vmatprep.subr.bf16.mxu0 0
        %8309 = vmatpush1.bf16.msra.mxu0 0
        %8310 = vmatprep.subr.bf16.mxu0 0
        %8311 = vmatpush1.bf16.msra.mxu0 0
        %8312 = vmatprep.subr.bf16.mxu0 0
        %8313 = vmatpush1.bf16.msra.mxu0 0
        %8314 = vmatprep.subr.bf16.mxu0 0
        %8315 = vmatpush1.bf16.msra.mxu0 0
        %8316 = vmatprep.subr.bf16.mxu0 %v8145
        %8317 = vmatpush1.bf16.msra.mxu0 %v8144
        %8318 = vmatprep.subr.bf16.mxu0 %v8142
        %8319 = vmatpush1.bf16.msra.mxu0 %v8141
        %8320 = vmatprep.subr.bf16.mxu0 %v8139
        %8321 = vmatpush1.bf16.msra.mxu0 %v8138
        %8322 = vmatprep.subr.bf16.mxu0 %v8136
        %8323 = vmatpush1.bf16.msra.mxu0 %v8135
        %8324 = vmatprep.subr.bf16.mxu0 0
        %8325 = vmatpush2.bf16.msra.mxu0 0
        %8326 = vmatprep.subr.bf16.mxu0 0
        %8327 = vmatpush2.bf16.msra.mxu0 0
        %8328 = vmatprep.subr.bf16.mxu0 0
        %8329 = vmatpush2.bf16.msra.mxu0 0
        %8330 = vmatprep.subr.bf16.mxu0 0
        %8331 = vmatpush2.bf16.msra.mxu0 0
        %8332 = vmatprep.subr.bf16.mxu0 0
        %8333 = vmatpush2.bf16.msra.mxu0 0
        %8334 = vmatprep.subr.bf16.mxu0 0
        %8335 = vmatpush2.bf16.msra.mxu0 0
        %8336 = vmatprep.subr.bf16.mxu0 0
        %8337 = vmatpush2.bf16.msra.mxu0 0
        %8338 = vmatprep.subr.bf16.mxu0 0
        %8339 = vmatpush2.bf16.msra.mxu0 0
        %8340 = vmatprep.mubr.bf16.mxu0 0
        %8341 = vmatmul.mubr.bf16.gmra.mxu0 %v8285
        %v8342 = vpop.f32.mrf.mxu0
        %v8343 = vadd.f32 %v8167, %v8342
        %v8344 = vpop.f32.mrf.mxu0
        %v8345 = vadd.f32 %v8167, %v8344
        %v8346 = vpop.f32.mrf.mxu0
        %v8347 = vadd.f32 %v8172, %v8346
        %v8348 = vpop.f32.mrf.mxu0
        %v8349 = vadd.f32 %v8172, %v8348
        %8350 = vmatprep.mubr.bf16.mxu0 0
        %8351 = vmatmul.mubr.bf16.gmra.mxu0 %v8288
        %v8352 = vpop.f32.mrf.mxu0
        %v8353 = vadd.f32 %v8177, %v8352
        %v8354 = vpop.f32.mrf.mxu0
        %v8355 = vadd.f32 %v8177, %v8354
        %v8356 = vpop.f32.mrf.mxu0
        %v8357 = vadd.f32 %v8182, %v8356
        %v8358 = vpop.f32.mrf.mxu0
        %v8359 = vadd.f32 %v8182, %v8358
        %8360 = vmatprep.mubr.bf16.mxu0 0
        %8361 = vmatmul.mubr.bf16.gmra.mxu0 %v8291
        %v8362 = vpop.f32.mrf.mxu0
        %v8363 = vadd.f32 %v8187, %v8362
        %v8364 = vpop.f32.mrf.mxu0
        %v8365 = vadd.f32 %v8187, %v8364
        %v8366 = vpop.f32.mrf.mxu0
        %v8367 = vadd.f32 %v8192, %v8366
        %v8368 = vpop.f32.mrf.mxu0
        %v8369 = vadd.f32 %v8192, %v8368
        %8370 = vmatprep.mubr.bf16.mxu0 0
        %8371 = vmatmul.mubr.bf16.gmra.mxu0 %v8294
        %v8372 = vpop.f32.mrf.mxu0
        %v8373 = vadd.f32 %v8197, %v8372
        %v8374 = vpop.f32.mrf.mxu0
        %v8375 = vadd.f32 %v8197, %v8374
        %v8376 = vpop.f32.mrf.mxu0
        %v8377 = vadd.f32 %v8202, %v8376
        %v8378 = vpop.f32.mrf.mxu0
        %v8379 = vadd.f32 %v8202, %v8378
        %8380 = vmatprep.mubr.bf16.mxu0 0
        %8381 = vmatmul.mubr.bf16.gmra.mxu0 %v8297
        %v8382 = vpop.f32.mrf.mxu0
        %v8383 = vadd.f32 %v8207, %v8382
        %v8384 = vpop.f32.mrf.mxu0
        %v8385 = vadd.f32 %v8207, %v8384
        %v8386 = vpop.f32.mrf.mxu0
        %v8387 = vadd.f32 %v8212, %v8386
        %v8388 = vpop.f32.mrf.mxu0
        %v8389 = vadd.f32 %v8212, %v8388
        %8390 = vmatprep.mubr.bf16.mxu0 0
        %8391 = vmatmul.mubr.bf16.gmra.mxu0 %v8300
        %v8392 = vpop.f32.mrf.mxu0
        %v8393 = vadd.f32 %v8217, %v8392
        %v8394 = vpop.f32.mrf.mxu0
        %v8395 = vadd.f32 %v8217, %v8394
        %v8396 = vpop.f32.mrf.mxu0
        %v8397 = vadd.f32 %v8222, %v8396
        %v8398 = vpop.f32.mrf.mxu0
        %v8399 = vadd.f32 %v8222, %v8398
        %8400 = vmatprep.mubr.bf16.mxu0 0
        %8401 = vmatmul.mubr.bf16.gmra.mxu0 %v8303
        %v8402 = vpop.f32.mrf.mxu0
        %v8403 = vadd.f32 %v8227, %v8402
        %v8404 = vpop.f32.mrf.mxu0
        %v8405 = vadd.f32 %v8227, %v8404
        %v8406 = vpop.f32.mrf.mxu0
        %v8407 = vadd.f32 %v8232, %v8406
        %v8408 = vpop.f32.mrf.mxu0
        %v8409 = vadd.f32 %v8232, %v8408
        %8410 = vmatprep.mubr.bf16.mxu0 0
        %8411 = vmatmul.mubr.bf16.gmra.mxu0 %v8306
        %v8412 = vpop.f32.mrf.mxu0
        %v8413 = vadd.f32 %v8237, %v8412
        %v8414 = vpop.f32.mrf.mxu0
        %v8415 = vadd.f32 %v8237, %v8414
        %v8416 = vpop.f32.mrf.mxu0
        %v8417 = vadd.f32 %v8242, %v8416
        %v8418 = vpop.f32.mrf.mxu0
        %v8419 = vadd.f32 %v8242, %v8418
        %8420 = vdwg.mxu0
        %8421 = vmatprep.subr.bf16.mxu0 0
        %8422 = vmatpush1.bf16.msra.mxu0 0
        %8423 = vmatprep.subr.bf16.mxu0 0
        %8424 = vmatpush1.bf16.msra.mxu0 0
        %8425 = vmatprep.subr.bf16.mxu0 0
        %8426 = vmatpush1.bf16.msra.mxu0 0
        %8427 = vmatprep.subr.bf16.mxu0 0
        %8428 = vmatpush1.bf16.msra.mxu0 0
        %8429 = vmatprep.subr.bf16.mxu0 0
        %8430 = vmatpush1.bf16.msra.mxu0 %v8146
        %8431 = vmatprep.subr.bf16.mxu0 0
        %8432 = vmatpush1.bf16.msra.mxu0 %v8143
        %8433 = vmatprep.subr.bf16.mxu0 0
        %8434 = vmatpush1.bf16.msra.mxu0 %v8140
        %8435 = vmatprep.subr.bf16.mxu0 0
        %8436 = vmatpush1.bf16.msra.mxu0 %v8137
        %8437 = vmatprep.subr.bf16.mxu0 0
        %8438 = vmatpush2.bf16.msra.mxu0 0
        %8439 = vmatprep.subr.bf16.mxu0 0
        %8440 = vmatpush2.bf16.msra.mxu0 0
        %8441 = vmatprep.subr.bf16.mxu0 0
        %8442 = vmatpush2.bf16.msra.mxu0 0
        %8443 = vmatprep.subr.bf16.mxu0 0
        %8444 = vmatpush2.bf16.msra.mxu0 0
        %8445 = vmatprep.subr.bf16.mxu0 0
        %8446 = vmatpush2.bf16.msra.mxu0 0
        %8447 = vmatprep.subr.bf16.mxu0 0
        %8448 = vmatpush2.bf16.msra.mxu0 0
        %8449 = vmatprep.subr.bf16.mxu0 0
        %8450 = vmatpush2.bf16.msra.mxu0 0
        %8451 = vmatprep.subr.bf16.mxu0 0
        %8452 = vmatpush2.bf16.msra.mxu0 0
        %8453 = vmatprep.mubr.bf16.mxu0 0
        %8454 = vmatmul.mubr.bf16.gmra.mxu0 %v8285
        %v8455 = vpop.f32.mrf.mxu0
        %v8456 = vadd.f32 %v8167, %v8455
        %v8457 = vpop.f32.mrf.mxu0
        %v8458 = vpop.f32.mrf.mxu0
        %v8459 = vadd.f32 %v8172, %v8458
        %v8460 = vpop.f32.mrf.mxu0
        %8461 = vmatprep.mubr.bf16.mxu0 0
        %8462 = vmatmul.mubr.bf16.gmra.mxu0 %v8288
        %v8463 = vpop.f32.mrf.mxu0
        %v8464 = vadd.f32 %v8177, %v8463
        %v8465 = vpop.f32.mrf.mxu0
        %v8466 = vpop.f32.mrf.mxu0
        %v8467 = vadd.f32 %v8182, %v8466
        %v8468 = vpop.f32.mrf.mxu0
        %8469 = vmatprep.mubr.bf16.mxu0 0
        %8470 = vmatmul.mubr.bf16.gmra.mxu0 %v8291
        %v8471 = vpop.f32.mrf.mxu0
        %v8472 = vadd.f32 %v8187, %v8471
        %v8473 = vpop.f32.mrf.mxu0
        %v8474 = vpop.f32.mrf.mxu0
        %v8475 = vadd.f32 %v8192, %v8474
        %v8476 = vpop.f32.mrf.mxu0
        %8477 = vmatprep.mubr.bf16.mxu0 0
        %8478 = vmatmul.mubr.bf16.gmra.mxu0 %v8294
        %v8479 = vpop.f32.mrf.mxu0
        %v8480 = vadd.f32 %v8197, %v8479
        %v8481 = vpop.f32.mrf.mxu0
        %v8482 = vpop.f32.mrf.mxu0
        %v8483 = vadd.f32 %v8202, %v8482
        %v8484 = vpop.f32.mrf.mxu0
        %8485 = vmatprep.mubr.bf16.mxu0 0
        %8486 = vmatmul.mubr.bf16.gmra.mxu0 %v8297
        %v8487 = vpop.f32.mrf.mxu0
        %v8488 = vadd.f32 %v8207, %v8487
        %v8489 = vpop.f32.mrf.mxu0
        %v8490 = vpop.f32.mrf.mxu0
        %v8491 = vadd.f32 %v8212, %v8490
        %v8492 = vpop.f32.mrf.mxu0
        %8493 = vmatprep.mubr.bf16.mxu0 0
        %8494 = vmatmul.mubr.bf16.gmra.mxu0 %v8300
        %v8495 = vpop.f32.mrf.mxu0
        %v8496 = vadd.f32 %v8217, %v8495
        %v8497 = vpop.f32.mrf.mxu0
        %v8498 = vpop.f32.mrf.mxu0
        %v8499 = vadd.f32 %v8222, %v8498
        %v8500 = vpop.f32.mrf.mxu0
        %8501 = vmatprep.mubr.bf16.mxu0 0
        %8502 = vmatmul.mubr.bf16.gmra.mxu0 %v8303
        %v8503 = vpop.f32.mrf.mxu0
        %v8504 = vadd.f32 %v8227, %v8503
        %v8505 = vpop.f32.mrf.mxu0
        %v8506 = vpop.f32.mrf.mxu0
        %v8507 = vadd.f32 %v8232, %v8506
        %v8508 = vpop.f32.mrf.mxu0
        %8509 = vmatprep.mubr.bf16.mxu0 0
        %8510 = vmatmul.mubr.bf16.gmra.mxu0 %v8306
        %v8511 = vpop.f32.mrf.mxu0
        %v8512 = vadd.f32 %v8237, %v8511
        %v8513 = vpop.f32.mrf.mxu0
        %v8514 = vpop.f32.mrf.mxu0
        %v8515 = vadd.f32 %v8242, %v8514
        %v8516 = vpop.f32.mrf.mxu0
        %8517 = vdwg.mxu0
        %v8518 = vadd.f32 %v6487, %v8343
        %v8519 = vadd.f32 %v6488, %v8345
        %v8520 = vadd.f32 %v6489, %v8456
        %v8521 = vadd.f32 %v6490, %v8347
        %v8522 = vadd.f32 %v6491, %v8349
        %v8523 = vadd.f32 %v6492, %v8459
        %v8524 = vadd.f32 %v6493, %v8353
        %v8525 = vadd.f32 %v6494, %v8355
        %v8526 = vadd.f32 %v6495, %v8464
        %v8527 = vadd.f32 %v6496, %v8357
        %v8528 = vadd.f32 %v6497, %v8359
        %v8529 = vadd.f32 %v6498, %v8467
        %v8530 = vadd.f32 %v6499, %v8363
        %v8531 = vadd.f32 %v6500, %v8365
        %v8532 = vadd.f32 %v6501, %v8472
        %v8533 = vadd.f32 %v6502, %v8367
        %v8534 = vadd.f32 %v6503, %v8369
        %v8535 = vadd.f32 %v6504, %v8475
        %v8536 = vadd.f32 %v6505, %v8373
        %v8537 = vadd.f32 %v6506, %v8375
        %v8538 = vadd.f32 %v6507, %v8480
        %v8539 = vadd.f32 %v6508, %v8377
        %v8540 = vadd.f32 %v6509, %v8379
        %v8541 = vadd.f32 %v6510, %v8483
        %v8542 = vadd.f32 %v6511, %v8383
        %v8543 = vadd.f32 %v6512, %v8385
        %v8544 = vadd.f32 %v6513, %v8488
        %v8545 = vadd.f32 %v6514, %v8387
        %v8546 = vadd.f32 %v6515, %v8389
        %v8547 = vadd.f32 %v6516, %v8491
        %v8548 = vadd.f32 %v6517, %v8393
        %v8549 = vadd.f32 %v6518, %v8395
        %v8550 = vadd.f32 %v6519, %v8496
        %v8551 = vadd.f32 %v6520, %v8397
        %v8552 = vadd.f32 %v6521, %v8399
        %v8553 = vadd.f32 %v6522, %v8499
        %v8554 = vadd.f32 %v6523, %v8403
        %v8555 = vadd.f32 %v6524, %v8405
        %v8556 = vadd.f32 %v6525, %v8504
        %v8557 = vadd.f32 %v6526, %v8407
        %v8558 = vadd.f32 %v6527, %v8409
        %v8559 = vadd.f32 %v6528, %v8507
        %v8560 = vadd.f32 %v6529, %v8413
        %v8561 = vadd.f32 %v6530, %v8415
        %v8562 = vadd.f32 %v6531, %v8512
        %v8563 = vadd.f32 %v6532, %v8417
        %v8564 = vadd.f32 %v6533, %v8419
        %v8565 = vadd.f32 %v6534, %v8515
        %v8566 = vmul.f32 %v8518, %v735
        %v8567 = vmul.f32 %v8519, %v736
        %v8568 = vmul.f32 %v8520, %v737
        %v8569 = vmul.f32 %v8521, %v735
        %v8570 = vmul.f32 %v8522, %v736
        %v8571 = vmul.f32 %v8523, %v737
        %v8572 = vmul.f32 %v8524, %v735
        %v8573 = vmul.f32 %v8525, %v736
        %v8574 = vmul.f32 %v8526, %v737
        %v8575 = vmul.f32 %v8527, %v735
        %v8576 = vmul.f32 %v8528, %v736
        %v8577 = vmul.f32 %v8529, %v737
        %v8578 = vmul.f32 %v8530, %v735
        %v8579 = vmul.f32 %v8531, %v736
        %v8580 = vmul.f32 %v8532, %v737
        %v8581 = vmul.f32 %v8533, %v735
        %v8582 = vmul.f32 %v8534, %v736
        %v8583 = vmul.f32 %v8535, %v737
        %v8584 = vmul.f32 %v8536, %v735
        %v8585 = vmul.f32 %v8537, %v736
        %v8586 = vmul.f32 %v8538, %v737
        %v8587 = vmul.f32 %v8539, %v735
        %v8588 = vmul.f32 %v8540, %v736
        %v8589 = vmul.f32 %v8541, %v737
        %8614 = vrot.lane.b32.xlu0 %v8566, 8
        %v8615 = vpop.permute.xlu0 %8614
        %8616 = vrot.lane.b32.xlu0 %v8567, 8
        %v8617 = vpop.permute.xlu0 %8616
        %8618 = vrot.lane.b32.xlu0 %v8568, 8
        %v8619 = vpop.permute.xlu0 %8618
        %8620 = vrot.lane.b32.xlu0 %v8569, 8
        %v8621 = vpop.permute.xlu0 %8620
        %8622 = vrot.lane.b32.xlu0 %v8570, 8
        %v8623 = vpop.permute.xlu0 %8622
        %8624 = vrot.lane.b32.xlu0 %v8571, 8
        %v8625 = vpop.permute.xlu0 %8624
        %8626 = vrot.lane.b32.xlu0 %v8572, 8
        %v8627 = vpop.permute.xlu0 %8626
        %8628 = vrot.lane.b32.xlu0 %v8573, 8
        %v8629 = vpop.permute.xlu0 %8628
        %8630 = vrot.lane.b32.xlu0 %v8574, 8
        %v8631 = vpop.permute.xlu0 %8630
        %8632 = vrot.lane.b32.xlu0 %v8575, 8
        %v8633 = vpop.permute.xlu0 %8632
        %8634 = vrot.lane.b32.xlu0 %v8576, 8
        %v8635 = vpop.permute.xlu0 %8634
        %8636 = vrot.lane.b32.xlu0 %v8577, 8
        %v8637 = vpop.permute.xlu0 %8636
        %8638 = vrot.lane.b32.xlu0 %v8578, 8
        %v8639 = vpop.permute.xlu0 %8638
        %8640 = vrot.lane.b32.xlu0 %v8579, 8
        %v8641 = vpop.permute.xlu0 %8640
        %8642 = vrot.lane.b32.xlu0 %v8580, 8
        %v8643 = vpop.permute.xlu0 %8642
        %8644 = vrot.lane.b32.xlu0 %v8581, 8
        %v8645 = vpop.permute.xlu0 %8644
        %8646 = vrot.lane.b32.xlu0 %v8582, 8
        %v8647 = vpop.permute.xlu0 %8646
        %8648 = vrot.lane.b32.xlu0 %v8583, 8
        %v8649 = vpop.permute.xlu0 %8648
        %8650 = vrot.lane.b32.xlu0 %v8584, 8
        %v8651 = vpop.permute.xlu0 %8650
        %8652 = vrot.lane.b32.xlu0 %v8585, 8
        %v8653 = vpop.permute.xlu0 %8652
        %8654 = vrot.lane.b32.xlu0 %v8586, 8
        %v8655 = vpop.permute.xlu0 %8654
        %8656 = vrot.lane.b32.xlu0 %v8587, 8
        %v8657 = vpop.permute.xlu0 %8656
        %8658 = vrot.lane.b32.xlu0 %v8588, 8
        %v8659 = vpop.permute.xlu0 %8658
        %8660 = vrot.lane.b32.xlu0 %v8589, 8
        %v8661 = vpop.permute.xlu0 %8660
        %v8662 = vsel %vm568, %v8615, %v8617
        %v8663 = vsel %vm568, %v8617, %v8619
        %v8664 = vsel %vm568, %v8621, %v8623
        %v8665 = vsel %vm568, %v8623, %v8625
        %v8666 = vsel %vm568, %v8627, %v8629
        %v8667 = vsel %vm568, %v8629, %v8631
        %v8668 = vsel %vm568, %v8633, %v8635
        %v8669 = vsel %vm568, %v8635, %v8637
        %v8670 = vsel %vm568, %v8639, %v8641
        %v8671 = vsel %vm568, %v8641, %v8643
        %v8672 = vsel %vm568, %v8645, %v8647
        %v8673 = vsel %vm568, %v8647, %v8649
        %v8674 = vsel %vm568, %v8651, %v8653
        %v8675 = vsel %vm568, %v8653, %v8655
        %v8676 = vsel %vm568, %v8657, %v8659
        %v8677 = vsel %vm568, %v8659, %v8661
        %v8702 = vsel %vm568, 0.0, %v8615
        %v8703 = vsel %vm568, 0.0, %v8621
        %v8704 = vsel %vm568, 0.0, %v8627
        %v8705 = vsel %vm568, 0.0, %v8633
        %v8706 = vsel %vm568, 0.0, %v8639
        %v8707 = vsel %vm568, 0.0, %v8645
        %v8708 = vsel %vm568, 0.0, %v8651
        %v8709 = vsel %vm568, 0.0, %v8657
        %8710 = vrot.lane.b32.xlu0 %v8566, 120
        %v8711 = vpop.permute.xlu0 %8710
        %8712 = vrot.lane.b32.xlu0 %v8567, 120
        %v8713 = vpop.permute.xlu0 %8712
        %8714 = vrot.lane.b32.xlu0 %v8568, 120
        %v8715 = vpop.permute.xlu0 %8714
        %8716 = vrot.lane.b32.xlu0 %v8569, 120
        %v8717 = vpop.permute.xlu0 %8716
        %8718 = vrot.lane.b32.xlu0 %v8570, 120
        %v8719 = vpop.permute.xlu0 %8718
        %8720 = vrot.lane.b32.xlu0 %v8571, 120
        %v8721 = vpop.permute.xlu0 %8720
        %8722 = vrot.lane.b32.xlu0 %v8572, 120
        %v8723 = vpop.permute.xlu0 %8722
        %8724 = vrot.lane.b32.xlu0 %v8573, 120
        %v8725 = vpop.permute.xlu0 %8724
        %8726 = vrot.lane.b32.xlu0 %v8574, 120
        %v8727 = vpop.permute.xlu0 %8726
        %8728 = vrot.lane.b32.xlu0 %v8575, 120
        %v8729 = vpop.permute.xlu0 %8728
        %8730 = vrot.lane.b32.xlu0 %v8576, 120
        %v8731 = vpop.permute.xlu0 %8730
        %8732 = vrot.lane.b32.xlu0 %v8577, 120
        %v8733 = vpop.permute.xlu0 %8732
        %8734 = vrot.lane.b32.xlu0 %v8578, 120
        %v8735 = vpop.permute.xlu0 %8734
        %8736 = vrot.lane.b32.xlu0 %v8579, 120
        %v8737 = vpop.permute.xlu0 %8736
        %8738 = vrot.lane.b32.xlu0 %v8580, 120
        %v8739 = vpop.permute.xlu0 %8738
        %8740 = vrot.lane.b32.xlu0 %v8581, 120
        %v8741 = vpop.permute.xlu0 %8740
        %8742 = vrot.lane.b32.xlu0 %v8582, 120
        %v8743 = vpop.permute.xlu0 %8742
        %8744 = vrot.lane.b32.xlu0 %v8583, 120
        %v8745 = vpop.permute.xlu0 %8744
        %8746 = vrot.lane.b32.xlu0 %v8584, 120
        %v8747 = vpop.permute.xlu0 %8746
        %8748 = vrot.lane.b32.xlu0 %v8585, 120
        %v8749 = vpop.permute.xlu0 %8748
        %8750 = vrot.lane.b32.xlu0 %v8586, 120
        %v8751 = vpop.permute.xlu0 %8750
        %8752 = vrot.lane.b32.xlu0 %v8587, 120
        %v8753 = vpop.permute.xlu0 %8752
        %8754 = vrot.lane.b32.xlu0 %v8588, 120
        %v8755 = vpop.permute.xlu0 %8754
        %8756 = vrot.lane.b32.xlu0 %v8589, 120
        %v8757 = vpop.permute.xlu0 %8756
        %vm8758 = vcmask 982016
        %v8759 = vsel %vm8758, %v8711, %v8713
        %v8760 = vsel %vm8758, %v8713, %v8715
        %v8761 = vsel %vm8758, %v8717, %v8719
        %v8762 = vsel %vm8758, %v8719, %v8721
        %v8763 = vsel %vm8758, %v8723, %v8725
        %v8764 = vsel %vm8758, %v8725, %v8727
        %v8765 = vsel %vm8758, %v8729, %v8731
        %v8766 = vsel %vm8758, %v8731, %v8733
        %v8767 = vsel %vm8758, %v8735, %v8737
        %v8768 = vsel %vm8758, %v8737, %v8739
        %v8769 = vsel %vm8758, %v8741, %v8743
        %v8770 = vsel %vm8758, %v8743, %v8745
        %v8771 = vsel %vm8758, %v8747, %v8749
        %v8772 = vsel %vm8758, %v8749, %v8751
        %v8773 = vsel %vm8758, %v8753, %v8755
        %v8774 = vsel %vm8758, %v8755, %v8757
        %v8799 = vsel %vm8758, %v8715, 0.0
        %v8800 = vsel %vm8758, %v8721, 0.0
        %v8801 = vsel %vm8758, %v8727, 0.0
        %v8802 = vsel %vm8758, %v8733, 0.0
        %v8803 = vsel %vm8758, %v8739, 0.0
        %v8804 = vsel %vm8758, %v8745, 0.0
        %v8805 = vsel %vm8758, %v8751, 0.0
        %v8806 = vsel %vm8758, %v8757, 0.0
        %s8807 = scalar_lea.vmem %s5, 576
        %v8808 = vld [vmem:[%s8807] sm:$0xf]
        %v8809 = vld [vmem:[%s8807 + $0x4] sm:$0xf]
        %v8810 = vld [vmem:[%s8807 + $0x8] sm:$0xf]
        %v8811 = vld [vmem:[%s8807 + $0xc] sm:$0xf]
        %v8812 = vld [vmem:[%s8807 + $0x10] sm:$0xf]
        %v8813 = vld [vmem:[%s8807 + $0x14] sm:$0xf]
        %v8814 = vld [vmem:[%s8807 + $0x18] sm:$0xf]
        %v8815 = vld [vmem:[%s8807 + $0x1c] sm:$0xf]
        %v8816 = vld [vmem:[%s8807 + $0x20] sm:$0xf]
        %v8817 = vld [vmem:[%s8807 + $0x24] sm:$0xf]
        %v8818 = vld [vmem:[%s8807 + $0x28] sm:$0xf]
        %v8819 = vld [vmem:[%s8807 + $0x2c] sm:$0xf]
        %v8820 = vld [vmem:[%s8807 + $0x30] sm:$0xf]
        %v8821 = vld [vmem:[%s8807 + $0x34] sm:$0xf]
        %v8822 = vld [vmem:[%s8807 + $0x38] sm:$0xf]
        %v8823 = vld [vmem:[%s8807 + $0x3c] sm:$0xf]
        %v8824 = vpack.c.bf16 %v8703, %v8702
        %v8825 = vpack.c.bf16 %v8664, %v8662
        %v8826 = vpack.c.bf16 %v8665, %v8663
        %v8827 = vpack.c.bf16 %v8705, %v8704
        %v8828 = vpack.c.bf16 %v8668, %v8666
        %v8829 = vpack.c.bf16 %v8669, %v8667
        %v8830 = vpack.c.bf16 %v8707, %v8706
        %v8831 = vpack.c.bf16 %v8672, %v8670
        %v8832 = vpack.c.bf16 %v8673, %v8671
        %v8833 = vpack.c.bf16 %v8709, %v8708
        %v8834 = vpack.c.bf16 %v8676, %v8674
        %v8835 = vpack.c.bf16 %v8677, %v8675
        %s8836 = scalar_lea.vmem %s5, 640
        %v8837 = vld [vmem:[%s8836] sm:$0xf]
        %v8838 = vld [vmem:[%s8836 + $0x4] sm:$0xf]
        %v8839 = vld [vmem:[%s8836 + $0x8] sm:$0xf]
        %v8840 = vld [vmem:[%s8836 + $0xc] sm:$0xf]
        %v8841 = vld [vmem:[%s8836 + $0x10] sm:$0xf]
        %v8842 = vld [vmem:[%s8836 + $0x14] sm:$0xf]
        %v8843 = vld [vmem:[%s8836 + $0x18] sm:$0xf]
        %v8844 = vld [vmem:[%s8836 + $0x1c] sm:$0xf]
        %v8845 = vld [vmem:[%s8836 + $0x20] sm:$0xf]
        %v8846 = vld [vmem:[%s8836 + $0x24] sm:$0xf]
        %v8847 = vld [vmem:[%s8836 + $0x28] sm:$0xf]
        %v8848 = vld [vmem:[%s8836 + $0x2c] sm:$0xf]
        %v8849 = vld [vmem:[%s8836 + $0x30] sm:$0xf]
        %v8850 = vld [vmem:[%s8836 + $0x34] sm:$0xf]
        %v8851 = vld [vmem:[%s8836 + $0x38] sm:$0xf]
        %v8852 = vld [vmem:[%s8836 + $0x3c] sm:$0xf]
        %v8853 = vpack.c.bf16 %v8569, %v8566
        %v8854 = vpack.c.bf16 %v8570, %v8567
        %v8855 = vpack.c.bf16 %v8571, %v8568
        %v8856 = vpack.c.bf16 %v8575, %v8572
        %v8857 = vpack.c.bf16 %v8576, %v8573
        %v8858 = vpack.c.bf16 %v8577, %v8574
        %v8859 = vpack.c.bf16 %v8581, %v8578
        %v8860 = vpack.c.bf16 %v8582, %v8579
        %v8861 = vpack.c.bf16 %v8583, %v8580
        %v8862 = vpack.c.bf16 %v8587, %v8584
        %v8863 = vpack.c.bf16 %v8588, %v8585
        %v8864 = vpack.c.bf16 %v8589, %v8586
        %v8881 = vunpack.c.l.b16 %v8837
        %v8882 = vunpack.c.l.b16 %v8838
        %v8883 = vunpack.c.l.b16 %v8839
        %v8884 = vunpack.c.l.b16 %v8840
        %v8885 = vunpack.c.l.b16 %v8841
        %v8886 = vunpack.c.l.b16 %v8842
        %v8887 = vunpack.c.l.b16 %v8843
        %v8888 = vunpack.c.l.b16 %v8844
        %v8889 = vunpack.c.l.b16 %v8845
        %v8890 = vunpack.c.l.b16 %v8846
        %v8891 = vunpack.c.l.b16 %v8847
        %v8892 = vunpack.c.l.b16 %v8848
        %v8893 = vunpack.c.l.b16 %v8849
        %v8894 = vunpack.c.l.b16 %v8850
        %v8895 = vunpack.c.l.b16 %v8851
        %v8896 = vunpack.c.l.b16 %v8852
        %v8897 = vpack.c.b16 %v8882, %v8881
        %v8898 = vpack.c.b16 %v8884, %v8883
        %v8899 = vpack.c.b16 %v8886, %v8885
        %v8900 = vpack.c.b16 %v8888, %v8887
        %v8901 = vpack.c.b16 %v8890, %v8889
        %v8902 = vpack.c.b16 %v8892, %v8891
        %v8903 = vpack.c.b16 %v8894, %v8893
        %v8904 = vpack.c.b16 %v8896, %v8895
        %v8906 = vsel %vm2813, %v8897, 0
        %v8909 = vsel %vm2813, %v8898, 0
        %v8912 = vsel %vm2813, %v8899, 0
        %v8915 = vsel %vm2813, %v8900, 0
        %v8918 = vsel %vm2813, %v8901, 0
        %v8921 = vsel %vm2813, %v8902, 0
        %v8924 = vsel %vm2813, %v8903, 0
        %v8927 = vsel %vm2813, %v8904, 0
        %8929 = vmatprep.subr.bf16.mxu0 0
        %8930 = vmatpush1.bf16.msra.mxu0 0
        %8931 = vmatprep.subr.bf16.mxu0 0
        %8932 = vmatpush1.bf16.msra.mxu0 0
        %8933 = vmatprep.subr.bf16.mxu0 0
        %8934 = vmatpush1.bf16.msra.mxu0 0
        %8935 = vmatprep.subr.bf16.mxu0 0
        %8936 = vmatpush1.bf16.msra.mxu0 0
        %8937 = vmatprep.subr.bf16.mxu0 %v8863
        %8938 = vmatpush1.bf16.msra.mxu0 %v8862
        %8939 = vmatprep.subr.bf16.mxu0 %v8860
        %8940 = vmatpush1.bf16.msra.mxu0 %v8859
        %8941 = vmatprep.subr.bf16.mxu0 %v8857
        %8942 = vmatpush1.bf16.msra.mxu0 %v8856
        %8943 = vmatprep.subr.bf16.mxu0 %v8854
        %8944 = vmatpush1.bf16.msra.mxu0 %v8853
        %8945 = vmatprep.subr.bf16.mxu0 0
        %8946 = vmatpush2.bf16.msra.mxu0 0
        %8947 = vmatprep.subr.bf16.mxu0 0
        %8948 = vmatpush2.bf16.msra.mxu0 0
        %8949 = vmatprep.subr.bf16.mxu0 0
        %8950 = vmatpush2.bf16.msra.mxu0 0
        %8951 = vmatprep.subr.bf16.mxu0 0
        %8952 = vmatpush2.bf16.msra.mxu0 0
        %8953 = vmatprep.subr.bf16.mxu0 0
        %8954 = vmatpush2.bf16.msra.mxu0 0
        %8955 = vmatprep.subr.bf16.mxu0 0
        %8956 = vmatpush2.bf16.msra.mxu0 0
        %8957 = vmatprep.subr.bf16.mxu0 0
        %8958 = vmatpush2.bf16.msra.mxu0 0
        %8959 = vmatprep.subr.bf16.mxu0 0
        %8960 = vmatpush2.bf16.msra.mxu0 0
        %8961 = vmatprep.mubr.bf16.mxu0 0
        %8962 = vmatmul.mubr.bf16.gmra.mxu0 %v8906
        %v8963 = vpop.f32.mrf.mxu0
        %v8964 = vadd.f32 0.0, %v8963
        %v8965 = vpop.f32.mrf.mxu0
        %v8966 = vadd.f32 0.0, %v8965
        %v8967 = vpop.f32.mrf.mxu0
        %v8968 = vadd.f32 0.0, %v8967
        %v8969 = vpop.f32.mrf.mxu0
        %v8970 = vadd.f32 0.0, %v8969
        %8971 = vmatprep.mubr.bf16.mxu0 0
        %8972 = vmatmul.mubr.bf16.gmra.mxu0 %v8909
        %v8973 = vpop.f32.mrf.mxu0
        %v8974 = vadd.f32 0.0, %v8973
        %v8975 = vpop.f32.mrf.mxu0
        %v8976 = vadd.f32 0.0, %v8975
        %v8977 = vpop.f32.mrf.mxu0
        %v8978 = vadd.f32 0.0, %v8977
        %v8979 = vpop.f32.mrf.mxu0
        %v8980 = vadd.f32 0.0, %v8979
        %8981 = vmatprep.mubr.bf16.mxu0 0
        %8982 = vmatmul.mubr.bf16.gmra.mxu0 %v8912
        %v8983 = vpop.f32.mrf.mxu0
        %v8984 = vadd.f32 0.0, %v8983
        %v8985 = vpop.f32.mrf.mxu0
        %v8986 = vadd.f32 0.0, %v8985
        %v8987 = vpop.f32.mrf.mxu0
        %v8988 = vadd.f32 0.0, %v8987
        %v8989 = vpop.f32.mrf.mxu0
        %v8990 = vadd.f32 0.0, %v8989
        %8991 = vmatprep.mubr.bf16.mxu0 0
        %8992 = vmatmul.mubr.bf16.gmra.mxu0 %v8915
        %v8993 = vpop.f32.mrf.mxu0
        %v8994 = vadd.f32 0.0, %v8993
        %v8995 = vpop.f32.mrf.mxu0
        %v8996 = vadd.f32 0.0, %v8995
        %v8997 = vpop.f32.mrf.mxu0
        %v8998 = vadd.f32 0.0, %v8997
        %v8999 = vpop.f32.mrf.mxu0
        %v9000 = vadd.f32 0.0, %v8999
        %9001 = vmatprep.mubr.bf16.mxu0 0
        %9002 = vmatmul.mubr.bf16.gmra.mxu0 %v8918
        %v9003 = vpop.f32.mrf.mxu0
        %v9004 = vadd.f32 0.0, %v9003
        %v9005 = vpop.f32.mrf.mxu0
        %v9006 = vadd.f32 0.0, %v9005
        %v9007 = vpop.f32.mrf.mxu0
        %v9008 = vadd.f32 0.0, %v9007
        %v9009 = vpop.f32.mrf.mxu0
        %v9010 = vadd.f32 0.0, %v9009
        %9011 = vmatprep.mubr.bf16.mxu0 0
        %9012 = vmatmul.mubr.bf16.gmra.mxu0 %v8921
        %v9013 = vpop.f32.mrf.mxu0
        %v9014 = vadd.f32 0.0, %v9013
        %v9015 = vpop.f32.mrf.mxu0
        %v9016 = vadd.f32 0.0, %v9015
        %v9017 = vpop.f32.mrf.mxu0
        %v9018 = vadd.f32 0.0, %v9017
        %v9019 = vpop.f32.mrf.mxu0
        %v9020 = vadd.f32 0.0, %v9019
        %9021 = vmatprep.mubr.bf16.mxu0 0
        %9022 = vmatmul.mubr.bf16.gmra.mxu0 %v8924
        %v9023 = vpop.f32.mrf.mxu0
        %v9024 = vadd.f32 0.0, %v9023
        %v9025 = vpop.f32.mrf.mxu0
        %v9026 = vadd.f32 0.0, %v9025
        %v9027 = vpop.f32.mrf.mxu0
        %v9028 = vadd.f32 0.0, %v9027
        %v9029 = vpop.f32.mrf.mxu0
        %v9030 = vadd.f32 0.0, %v9029
        %9031 = vmatprep.mubr.bf16.mxu0 0
        %9032 = vmatmul.mubr.bf16.gmra.mxu0 %v8927
        %v9033 = vpop.f32.mrf.mxu0
        %v9034 = vadd.f32 0.0, %v9033
        %v9035 = vpop.f32.mrf.mxu0
        %v9036 = vadd.f32 0.0, %v9035
        %v9037 = vpop.f32.mrf.mxu0
        %v9038 = vadd.f32 0.0, %v9037
        %v9039 = vpop.f32.mrf.mxu0
        %v9040 = vadd.f32 0.0, %v9039
        %9041 = vdwg.mxu0
        %9042 = vmatprep.subr.bf16.mxu0 0
        %9043 = vmatpush1.bf16.msra.mxu0 0
        %9044 = vmatprep.subr.bf16.mxu0 0
        %9045 = vmatpush1.bf16.msra.mxu0 0
        %9046 = vmatprep.subr.bf16.mxu0 0
        %9047 = vmatpush1.bf16.msra.mxu0 0
        %9048 = vmatprep.subr.bf16.mxu0 0
        %9049 = vmatpush1.bf16.msra.mxu0 0
        %9050 = vmatprep.subr.bf16.mxu0 0
        %9051 = vmatpush1.bf16.msra.mxu0 %v8864
        %9052 = vmatprep.subr.bf16.mxu0 0
        %9053 = vmatpush1.bf16.msra.mxu0 %v8861
        %9054 = vmatprep.subr.bf16.mxu0 0
        %9055 = vmatpush1.bf16.msra.mxu0 %v8858
        %9056 = vmatprep.subr.bf16.mxu0 0
        %9057 = vmatpush1.bf16.msra.mxu0 %v8855
        %9058 = vmatprep.subr.bf16.mxu0 0
        %9059 = vmatpush2.bf16.msra.mxu0 0
        %9060 = vmatprep.subr.bf16.mxu0 0
        %9061 = vmatpush2.bf16.msra.mxu0 0
        %9062 = vmatprep.subr.bf16.mxu0 0
        %9063 = vmatpush2.bf16.msra.mxu0 0
        %9064 = vmatprep.subr.bf16.mxu0 0
        %9065 = vmatpush2.bf16.msra.mxu0 0
        %9066 = vmatprep.subr.bf16.mxu0 0
        %9067 = vmatpush2.bf16.msra.mxu0 0
        %9068 = vmatprep.subr.bf16.mxu0 0
        %9069 = vmatpush2.bf16.msra.mxu0 0
        %9070 = vmatprep.subr.bf16.mxu0 0
        %9071 = vmatpush2.bf16.msra.mxu0 0
        %9072 = vmatprep.subr.bf16.mxu0 0
        %9073 = vmatpush2.bf16.msra.mxu0 0
        %9074 = vmatprep.mubr.bf16.mxu0 0
        %9075 = vmatmul.mubr.bf16.gmra.mxu0 %v8906
        %v9076 = vpop.f32.mrf.mxu0
        %v9077 = vadd.f32 0.0, %v9076
        %v9078 = vpop.f32.mrf.mxu0
        %v9079 = vpop.f32.mrf.mxu0
        %v9080 = vadd.f32 0.0, %v9079
        %v9081 = vpop.f32.mrf.mxu0
        %9082 = vmatprep.mubr.bf16.mxu0 0
        %9083 = vmatmul.mubr.bf16.gmra.mxu0 %v8909
        %v9084 = vpop.f32.mrf.mxu0
        %v9085 = vadd.f32 0.0, %v9084
        %v9086 = vpop.f32.mrf.mxu0
        %v9087 = vpop.f32.mrf.mxu0
        %v9088 = vadd.f32 0.0, %v9087
        %v9089 = vpop.f32.mrf.mxu0
        %9090 = vmatprep.mubr.bf16.mxu0 0
        %9091 = vmatmul.mubr.bf16.gmra.mxu0 %v8912
        %v9092 = vpop.f32.mrf.mxu0
        %v9093 = vadd.f32 0.0, %v9092
        %v9094 = vpop.f32.mrf.mxu0
        %v9095 = vpop.f32.mrf.mxu0
        %v9096 = vadd.f32 0.0, %v9095
        %v9097 = vpop.f32.mrf.mxu0
        %9098 = vmatprep.mubr.bf16.mxu0 0
        %9099 = vmatmul.mubr.bf16.gmra.mxu0 %v8915
        %v9100 = vpop.f32.mrf.mxu0
        %v9101 = vadd.f32 0.0, %v9100
        %v9102 = vpop.f32.mrf.mxu0
        %v9103 = vpop.f32.mrf.mxu0
        %v9104 = vadd.f32 0.0, %v9103
        %v9105 = vpop.f32.mrf.mxu0
        %9106 = vmatprep.mubr.bf16.mxu0 0
        %9107 = vmatmul.mubr.bf16.gmra.mxu0 %v8918
        %v9108 = vpop.f32.mrf.mxu0
        %v9109 = vadd.f32 0.0, %v9108
        %v9110 = vpop.f32.mrf.mxu0
        %v9111 = vpop.f32.mrf.mxu0
        %v9112 = vadd.f32 0.0, %v9111
        %v9113 = vpop.f32.mrf.mxu0
        %9114 = vmatprep.mubr.bf16.mxu0 0
        %9115 = vmatmul.mubr.bf16.gmra.mxu0 %v8921
        %v9116 = vpop.f32.mrf.mxu0
        %v9117 = vadd.f32 0.0, %v9116
        %v9118 = vpop.f32.mrf.mxu0
        %v9119 = vpop.f32.mrf.mxu0
        %v9120 = vadd.f32 0.0, %v9119
        %v9121 = vpop.f32.mrf.mxu0
        %9122 = vmatprep.mubr.bf16.mxu0 0
        %9123 = vmatmul.mubr.bf16.gmra.mxu0 %v8924
        %v9124 = vpop.f32.mrf.mxu0
        %v9125 = vadd.f32 0.0, %v9124
        %v9126 = vpop.f32.mrf.mxu0
        %v9127 = vpop.f32.mrf.mxu0
        %v9128 = vadd.f32 0.0, %v9127
        %v9129 = vpop.f32.mrf.mxu0
        %9130 = vmatprep.mubr.bf16.mxu0 0
        %9131 = vmatmul.mubr.bf16.gmra.mxu0 %v8927
        %v9132 = vpop.f32.mrf.mxu0
        %v9133 = vadd.f32 0.0, %v9132
        %v9134 = vpop.f32.mrf.mxu0
        %v9135 = vpop.f32.mrf.mxu0
        %v9136 = vadd.f32 0.0, %v9135
        %v9137 = vpop.f32.mrf.mxu0
        %9138 = vdwg.mxu0
        %v9155 = vunpack.c.l.b16 %v8808
        %v9156 = vunpack.c.l.b16 %v8809
        %v9157 = vunpack.c.l.b16 %v8810
        %v9158 = vunpack.c.l.b16 %v8811
        %v9159 = vunpack.c.l.b16 %v8812
        %v9160 = vunpack.c.l.b16 %v8813
        %v9161 = vunpack.c.l.b16 %v8814
        %v9162 = vunpack.c.l.b16 %v8815
        %v9163 = vunpack.c.l.b16 %v8816
        %v9164 = vunpack.c.l.b16 %v8817
        %v9165 = vunpack.c.l.b16 %v8818
        %v9166 = vunpack.c.l.b16 %v8819
        %v9167 = vunpack.c.l.b16 %v8820
        %v9168 = vunpack.c.l.b16 %v8821
        %v9169 = vunpack.c.l.b16 %v8822
        %v9170 = vunpack.c.l.b16 %v8823
        %v9171 = vpack.c.b16 %v9156, %v9155
        %v9172 = vpack.c.b16 %v9158, %v9157
        %v9173 = vpack.c.b16 %v9160, %v9159
        %v9174 = vpack.c.b16 %v9162, %v9161
        %v9175 = vpack.c.b16 %v9164, %v9163
        %v9176 = vpack.c.b16 %v9166, %v9165
        %v9177 = vpack.c.b16 %v9168, %v9167
        %v9178 = vpack.c.b16 %v9170, %v9169
        %v9180 = vsel %vm2813, %v9171, 0
        %v9183 = vsel %vm2813, %v9172, 0
        %v9186 = vsel %vm2813, %v9173, 0
        %v9189 = vsel %vm2813, %v9174, 0
        %v9192 = vsel %vm2813, %v9175, 0
        %v9195 = vsel %vm2813, %v9176, 0
        %v9198 = vsel %vm2813, %v9177, 0
        %v9201 = vsel %vm2813, %v9178, 0
        %9203 = vmatprep.subr.bf16.mxu0 0
        %9204 = vmatpush1.bf16.msra.mxu0 0
        %9205 = vmatprep.subr.bf16.mxu0 0
        %9206 = vmatpush1.bf16.msra.mxu0 0
        %9207 = vmatprep.subr.bf16.mxu0 0
        %9208 = vmatpush1.bf16.msra.mxu0 0
        %9209 = vmatprep.subr.bf16.mxu0 0
        %9210 = vmatpush1.bf16.msra.mxu0 0
        %9211 = vmatprep.subr.bf16.mxu0 %v8834
        %9212 = vmatpush1.bf16.msra.mxu0 %v8833
        %9213 = vmatprep.subr.bf16.mxu0 %v8831
        %9214 = vmatpush1.bf16.msra.mxu0 %v8830
        %9215 = vmatprep.subr.bf16.mxu0 %v8828
        %9216 = vmatpush1.bf16.msra.mxu0 %v8827
        %9217 = vmatprep.subr.bf16.mxu0 %v8825
        %9218 = vmatpush1.bf16.msra.mxu0 %v8824
        %9219 = vmatprep.subr.bf16.mxu0 0
        %9220 = vmatpush2.bf16.msra.mxu0 0
        %9221 = vmatprep.subr.bf16.mxu0 0
        %9222 = vmatpush2.bf16.msra.mxu0 0
        %9223 = vmatprep.subr.bf16.mxu0 0
        %9224 = vmatpush2.bf16.msra.mxu0 0
        %9225 = vmatprep.subr.bf16.mxu0 0
        %9226 = vmatpush2.bf16.msra.mxu0 0
        %9227 = vmatprep.subr.bf16.mxu0 0
        %9228 = vmatpush2.bf16.msra.mxu0 0
        %9229 = vmatprep.subr.bf16.mxu0 0
        %9230 = vmatpush2.bf16.msra.mxu0 0
        %9231 = vmatprep.subr.bf16.mxu0 0
        %9232 = vmatpush2.bf16.msra.mxu0 0
        %9233 = vmatprep.subr.bf16.mxu0 0
        %9234 = vmatpush2.bf16.msra.mxu0 0
        %9235 = vmatprep.mubr.bf16.mxu0 0
        %9236 = vmatmul.mubr.bf16.gmra.mxu0 %v9180
        %v9237 = vpop.f32.mrf.mxu0
        %v9238 = vadd.f32 %v8964, %v9237
        %v9239 = vpop.f32.mrf.mxu0
        %v9240 = vadd.f32 %v8966, %v9239
        %v9241 = vpop.f32.mrf.mxu0
        %v9242 = vadd.f32 %v8968, %v9241
        %v9243 = vpop.f32.mrf.mxu0
        %v9244 = vadd.f32 %v8970, %v9243
        %9245 = vmatprep.mubr.bf16.mxu0 0
        %9246 = vmatmul.mubr.bf16.gmra.mxu0 %v9183
        %v9247 = vpop.f32.mrf.mxu0
        %v9248 = vadd.f32 %v8974, %v9247
        %v9249 = vpop.f32.mrf.mxu0
        %v9250 = vadd.f32 %v8976, %v9249
        %v9251 = vpop.f32.mrf.mxu0
        %v9252 = vadd.f32 %v8978, %v9251
        %v9253 = vpop.f32.mrf.mxu0
        %v9254 = vadd.f32 %v8980, %v9253
        %9255 = vmatprep.mubr.bf16.mxu0 0
        %9256 = vmatmul.mubr.bf16.gmra.mxu0 %v9186
        %v9257 = vpop.f32.mrf.mxu0
        %v9258 = vadd.f32 %v8984, %v9257
        %v9259 = vpop.f32.mrf.mxu0
        %v9260 = vadd.f32 %v8986, %v9259
        %v9261 = vpop.f32.mrf.mxu0
        %v9262 = vadd.f32 %v8988, %v9261
        %v9263 = vpop.f32.mrf.mxu0
        %v9264 = vadd.f32 %v8990, %v9263
        %9265 = vmatprep.mubr.bf16.mxu0 0
        %9266 = vmatmul.mubr.bf16.gmra.mxu0 %v9189
        %v9267 = vpop.f32.mrf.mxu0
        %v9268 = vadd.f32 %v8994, %v9267
        %v9269 = vpop.f32.mrf.mxu0
        %v9270 = vadd.f32 %v8996, %v9269
        %v9271 = vpop.f32.mrf.mxu0
        %v9272 = vadd.f32 %v8998, %v9271
        %v9273 = vpop.f32.mrf.mxu0
        %v9274 = vadd.f32 %v9000, %v9273
        %9275 = vmatprep.mubr.bf16.mxu0 0
        %9276 = vmatmul.mubr.bf16.gmra.mxu0 %v9192
        %v9277 = vpop.f32.mrf.mxu0
        %v9278 = vadd.f32 %v9004, %v9277
        %v9279 = vpop.f32.mrf.mxu0
        %v9280 = vadd.f32 %v9006, %v9279
        %v9281 = vpop.f32.mrf.mxu0
        %v9282 = vadd.f32 %v9008, %v9281
        %v9283 = vpop.f32.mrf.mxu0
        %v9284 = vadd.f32 %v9010, %v9283
        %9285 = vmatprep.mubr.bf16.mxu0 0
        %9286 = vmatmul.mubr.bf16.gmra.mxu0 %v9195
        %v9287 = vpop.f32.mrf.mxu0
        %v9288 = vadd.f32 %v9014, %v9287
        %v9289 = vpop.f32.mrf.mxu0
        %v9290 = vadd.f32 %v9016, %v9289
        %v9291 = vpop.f32.mrf.mxu0
        %v9292 = vadd.f32 %v9018, %v9291
        %v9293 = vpop.f32.mrf.mxu0
        %v9294 = vadd.f32 %v9020, %v9293
        %9295 = vmatprep.mubr.bf16.mxu0 0
        %9296 = vmatmul.mubr.bf16.gmra.mxu0 %v9198
        %v9297 = vpop.f32.mrf.mxu0
        %v9298 = vadd.f32 %v9024, %v9297
        %v9299 = vpop.f32.mrf.mxu0
        %v9300 = vadd.f32 %v9026, %v9299
        %v9301 = vpop.f32.mrf.mxu0
        %v9302 = vadd.f32 %v9028, %v9301
        %v9303 = vpop.f32.mrf.mxu0
        %v9304 = vadd.f32 %v9030, %v9303
        %9305 = vmatprep.mubr.bf16.mxu0 0
        %9306 = vmatmul.mubr.bf16.gmra.mxu0 %v9201
        %v9307 = vpop.f32.mrf.mxu0
        %v9308 = vadd.f32 %v9034, %v9307
        %v9309 = vpop.f32.mrf.mxu0
        %v9310 = vadd.f32 %v9036, %v9309
        %v9311 = vpop.f32.mrf.mxu0
        %v9312 = vadd.f32 %v9038, %v9311
        %v9313 = vpop.f32.mrf.mxu0
        %v9314 = vadd.f32 %v9040, %v9313
        %9315 = vdwg.mxu0
        %9316 = vmatprep.subr.bf16.mxu0 0
        %9317 = vmatpush1.bf16.msra.mxu0 0
        %9318 = vmatprep.subr.bf16.mxu0 0
        %9319 = vmatpush1.bf16.msra.mxu0 0
        %9320 = vmatprep.subr.bf16.mxu0 0
        %9321 = vmatpush1.bf16.msra.mxu0 0
        %9322 = vmatprep.subr.bf16.mxu0 0
        %9323 = vmatpush1.bf16.msra.mxu0 0
        %9324 = vmatprep.subr.bf16.mxu0 0
        %9325 = vmatpush1.bf16.msra.mxu0 %v8835
        %9326 = vmatprep.subr.bf16.mxu0 0
        %9327 = vmatpush1.bf16.msra.mxu0 %v8832
        %9328 = vmatprep.subr.bf16.mxu0 0
        %9329 = vmatpush1.bf16.msra.mxu0 %v8829
        %9330 = vmatprep.subr.bf16.mxu0 0
        %9331 = vmatpush1.bf16.msra.mxu0 %v8826
        %9332 = vmatprep.subr.bf16.mxu0 0
        %9333 = vmatpush2.bf16.msra.mxu0 0
        %9334 = vmatprep.subr.bf16.mxu0 0
        %9335 = vmatpush2.bf16.msra.mxu0 0
        %9336 = vmatprep.subr.bf16.mxu0 0
        %9337 = vmatpush2.bf16.msra.mxu0 0
        %9338 = vmatprep.subr.bf16.mxu0 0
        %9339 = vmatpush2.bf16.msra.mxu0 0
        %9340 = vmatprep.subr.bf16.mxu0 0
        %9341 = vmatpush2.bf16.msra.mxu0 0
        %9342 = vmatprep.subr.bf16.mxu0 0
        %9343 = vmatpush2.bf16.msra.mxu0 0
        %9344 = vmatprep.subr.bf16.mxu0 0
        %9345 = vmatpush2.bf16.msra.mxu0 0
        %9346 = vmatprep.subr.bf16.mxu0 0
        %9347 = vmatpush2.bf16.msra.mxu0 0
        %9348 = vmatprep.mubr.bf16.mxu0 0
        %9349 = vmatmul.mubr.bf16.gmra.mxu0 %v9180
        %v9350 = vpop.f32.mrf.mxu0
        %v9351 = vadd.f32 %v9077, %v9350
        %v9352 = vpop.f32.mrf.mxu0
        %v9353 = vpop.f32.mrf.mxu0
        %v9354 = vadd.f32 %v9080, %v9353
        %v9355 = vpop.f32.mrf.mxu0
        %9356 = vmatprep.mubr.bf16.mxu0 0
        %9357 = vmatmul.mubr.bf16.gmra.mxu0 %v9183
        %v9358 = vpop.f32.mrf.mxu0
        %v9359 = vadd.f32 %v9085, %v9358
        %v9360 = vpop.f32.mrf.mxu0
        %v9361 = vpop.f32.mrf.mxu0
        %v9362 = vadd.f32 %v9088, %v9361
        %v9363 = vpop.f32.mrf.mxu0
        %9364 = vmatprep.mubr.bf16.mxu0 0
        %9365 = vmatmul.mubr.bf16.gmra.mxu0 %v9186
        %v9366 = vpop.f32.mrf.mxu0
        %v9367 = vadd.f32 %v9093, %v9366
        %v9368 = vpop.f32.mrf.mxu0
        %v9369 = vpop.f32.mrf.mxu0
        %v9370 = vadd.f32 %v9096, %v9369
        %v9371 = vpop.f32.mrf.mxu0
        %9372 = vmatprep.mubr.bf16.mxu0 0
        %9373 = vmatmul.mubr.bf16.gmra.mxu0 %v9189
        %v9374 = vpop.f32.mrf.mxu0
        %v9375 = vadd.f32 %v9101, %v9374
        %v9376 = vpop.f32.mrf.mxu0
        %v9377 = vpop.f32.mrf.mxu0
        %v9378 = vadd.f32 %v9104, %v9377
        %v9379 = vpop.f32.mrf.mxu0
        %9380 = vmatprep.mubr.bf16.mxu0 0
        %9381 = vmatmul.mubr.bf16.gmra.mxu0 %v9192
        %v9382 = vpop.f32.mrf.mxu0
        %v9383 = vadd.f32 %v9109, %v9382
        %v9384 = vpop.f32.mrf.mxu0
        %v9385 = vpop.f32.mrf.mxu0
        %v9386 = vadd.f32 %v9112, %v9385
        %v9387 = vpop.f32.mrf.mxu0
        %9388 = vmatprep.mubr.bf16.mxu0 0
        %9389 = vmatmul.mubr.bf16.gmra.mxu0 %v9195
        %v9390 = vpop.f32.mrf.mxu0
        %v9391 = vadd.f32 %v9117, %v9390
        %v9392 = vpop.f32.mrf.mxu0
        %v9393 = vpop.f32.mrf.mxu0
        %v9394 = vadd.f32 %v9120, %v9393
        %v9395 = vpop.f32.mrf.mxu0
        %9396 = vmatprep.mubr.bf16.mxu0 0
        %9397 = vmatmul.mubr.bf16.gmra.mxu0 %v9198
        %v9398 = vpop.f32.mrf.mxu0
        %v9399 = vadd.f32 %v9125, %v9398
        %v9400 = vpop.f32.mrf.mxu0
        %v9401 = vpop.f32.mrf.mxu0
        %v9402 = vadd.f32 %v9128, %v9401
        %v9403 = vpop.f32.mrf.mxu0
        %9404 = vmatprep.mubr.bf16.mxu0 0
        %9405 = vmatmul.mubr.bf16.gmra.mxu0 %v9201
        %v9406 = vpop.f32.mrf.mxu0
        %v9407 = vadd.f32 %v9133, %v9406
        %v9408 = vpop.f32.mrf.mxu0
        %v9409 = vpop.f32.mrf.mxu0
        %v9410 = vadd.f32 %v9136, %v9409
        %v9411 = vpop.f32.mrf.mxu0
        %9412 = vdwg.mxu0
        %s9413 = scalar_lea.vmem %s5, 704
        %v9414 = vld [vmem:[%s9413] sm:$0xf]
        %v9415 = vld [vmem:[%s9413 + $0x4] sm:$0xf]
        %v9416 = vld [vmem:[%s9413 + $0x8] sm:$0xf]
        %v9417 = vld [vmem:[%s9413 + $0xc] sm:$0xf]
        %v9418 = vld [vmem:[%s9413 + $0x10] sm:$0xf]
        %v9419 = vld [vmem:[%s9413 + $0x14] sm:$0xf]
        %v9420 = vld [vmem:[%s9413 + $0x18] sm:$0xf]
        %v9421 = vld [vmem:[%s9413 + $0x1c] sm:$0xf]
        %v9422 = vld [vmem:[%s9413 + $0x20] sm:$0xf]
        %v9423 = vld [vmem:[%s9413 + $0x24] sm:$0xf]
        %v9424 = vld [vmem:[%s9413 + $0x28] sm:$0xf]
        %v9425 = vld [vmem:[%s9413 + $0x2c] sm:$0xf]
        %v9426 = vld [vmem:[%s9413 + $0x30] sm:$0xf]
        %v9427 = vld [vmem:[%s9413 + $0x34] sm:$0xf]
        %v9428 = vld [vmem:[%s9413 + $0x38] sm:$0xf]
        %v9429 = vld [vmem:[%s9413 + $0x3c] sm:$0xf]
        %v9430 = vpack.c.bf16 %v8761, %v8759
        %v9431 = vpack.c.bf16 %v8762, %v8760
        %v9432 = vpack.c.bf16 %v8800, %v8799
        %v9433 = vpack.c.bf16 %v8765, %v8763
        %v9434 = vpack.c.bf16 %v8766, %v8764
        %v9435 = vpack.c.bf16 %v8802, %v8801
        %v9436 = vpack.c.bf16 %v8769, %v8767
        %v9437 = vpack.c.bf16 %v8770, %v8768
        %v9438 = vpack.c.bf16 %v8804, %v8803
        %v9439 = vpack.c.bf16 %v8773, %v8771
        %v9440 = vpack.c.bf16 %v8774, %v8772
        %v9441 = vpack.c.bf16 %v8806, %v8805
        %v9458 = vunpack.c.l.b16 %v9414
        %v9459 = vunpack.c.l.b16 %v9415
        %v9460 = vunpack.c.l.b16 %v9416
        %v9461 = vunpack.c.l.b16 %v9417
        %v9462 = vunpack.c.l.b16 %v9418
        %v9463 = vunpack.c.l.b16 %v9419
        %v9464 = vunpack.c.l.b16 %v9420
        %v9465 = vunpack.c.l.b16 %v9421
        %v9466 = vunpack.c.l.b16 %v9422
        %v9467 = vunpack.c.l.b16 %v9423
        %v9468 = vunpack.c.l.b16 %v9424
        %v9469 = vunpack.c.l.b16 %v9425
        %v9470 = vunpack.c.l.b16 %v9426
        %v9471 = vunpack.c.l.b16 %v9427
        %v9472 = vunpack.c.l.b16 %v9428
        %v9473 = vunpack.c.l.b16 %v9429
        %v9474 = vpack.c.b16 %v9459, %v9458
        %v9475 = vpack.c.b16 %v9461, %v9460
        %v9476 = vpack.c.b16 %v9463, %v9462
        %v9477 = vpack.c.b16 %v9465, %v9464
        %v9478 = vpack.c.b16 %v9467, %v9466
        %v9479 = vpack.c.b16 %v9469, %v9468
        %v9480 = vpack.c.b16 %v9471, %v9470
        %v9481 = vpack.c.b16 %v9473, %v9472
        %v9483 = vsel %vm2813, %v9474, 0
        %v9486 = vsel %vm2813, %v9475, 0
        %v9489 = vsel %vm2813, %v9476, 0
        %v9492 = vsel %vm2813, %v9477, 0
        %v9495 = vsel %vm2813, %v9478, 0
        %v9498 = vsel %vm2813, %v9479, 0
        %v9501 = vsel %vm2813, %v9480, 0
        %v9504 = vsel %vm2813, %v9481, 0
        %9506 = vmatprep.subr.bf16.mxu0 0
        %9507 = vmatpush1.bf16.msra.mxu0 0
        %9508 = vmatprep.subr.bf16.mxu0 0
        %9509 = vmatpush1.bf16.msra.mxu0 0
        %9510 = vmatprep.subr.bf16.mxu0 0
        %9511 = vmatpush1.bf16.msra.mxu0 0
        %9512 = vmatprep.subr.bf16.mxu0 0
        %9513 = vmatpush1.bf16.msra.mxu0 0
        %9514 = vmatprep.subr.bf16.mxu0 %v9440
        %9515 = vmatpush1.bf16.msra.mxu0 %v9439
        %9516 = vmatprep.subr.bf16.mxu0 %v9437
        %9517 = vmatpush1.bf16.msra.mxu0 %v9436
        %9518 = vmatprep.subr.bf16.mxu0 %v9434
        %9519 = vmatpush1.bf16.msra.mxu0 %v9433
        %9520 = vmatprep.subr.bf16.mxu0 %v9431
        %9521 = vmatpush1.bf16.msra.mxu0 %v9430
        %9522 = vmatprep.subr.bf16.mxu0 0
        %9523 = vmatpush2.bf16.msra.mxu0 0
        %9524 = vmatprep.subr.bf16.mxu0 0
        %9525 = vmatpush2.bf16.msra.mxu0 0
        %9526 = vmatprep.subr.bf16.mxu0 0
        %9527 = vmatpush2.bf16.msra.mxu0 0
        %9528 = vmatprep.subr.bf16.mxu0 0
        %9529 = vmatpush2.bf16.msra.mxu0 0
        %9530 = vmatprep.subr.bf16.mxu0 0
        %9531 = vmatpush2.bf16.msra.mxu0 0
        %9532 = vmatprep.subr.bf16.mxu0 0
        %9533 = vmatpush2.bf16.msra.mxu0 0
        %9534 = vmatprep.subr.bf16.mxu0 0
        %9535 = vmatpush2.bf16.msra.mxu0 0
        %9536 = vmatprep.subr.bf16.mxu0 0
        %9537 = vmatpush2.bf16.msra.mxu0 0
        %9538 = vmatprep.mubr.bf16.mxu0 0
        %9539 = vmatmul.mubr.bf16.gmra.mxu0 %v9483
        %v9540 = vpop.f32.mrf.mxu0
        %v9541 = vadd.f32 0.0, %v9540
        %v9542 = vpop.f32.mrf.mxu0
        %v9543 = vadd.f32 0.0, %v9542
        %v9544 = vpop.f32.mrf.mxu0
        %v9545 = vadd.f32 0.0, %v9544
        %v9546 = vpop.f32.mrf.mxu0
        %v9547 = vadd.f32 0.0, %v9546
        %9548 = vmatprep.mubr.bf16.mxu0 0
        %9549 = vmatmul.mubr.bf16.gmra.mxu0 %v9486
        %v9550 = vpop.f32.mrf.mxu0
        %v9551 = vadd.f32 0.0, %v9550
        %v9552 = vpop.f32.mrf.mxu0
        %v9553 = vadd.f32 0.0, %v9552
        %v9554 = vpop.f32.mrf.mxu0
        %v9555 = vadd.f32 0.0, %v9554
        %v9556 = vpop.f32.mrf.mxu0
        %v9557 = vadd.f32 0.0, %v9556
        %9558 = vmatprep.mubr.bf16.mxu0 0
        %9559 = vmatmul.mubr.bf16.gmra.mxu0 %v9489
        %v9560 = vpop.f32.mrf.mxu0
        %v9561 = vadd.f32 0.0, %v9560
        %v9562 = vpop.f32.mrf.mxu0
        %v9563 = vadd.f32 0.0, %v9562
        %v9564 = vpop.f32.mrf.mxu0
        %v9565 = vadd.f32 0.0, %v9564
        %v9566 = vpop.f32.mrf.mxu0
        %v9567 = vadd.f32 0.0, %v9566
        %9568 = vmatprep.mubr.bf16.mxu0 0
        %9569 = vmatmul.mubr.bf16.gmra.mxu0 %v9492
        %v9570 = vpop.f32.mrf.mxu0
        %v9571 = vadd.f32 0.0, %v9570
        %v9572 = vpop.f32.mrf.mxu0
        %v9573 = vadd.f32 0.0, %v9572
        %v9574 = vpop.f32.mrf.mxu0
        %v9575 = vadd.f32 0.0, %v9574
        %v9576 = vpop.f32.mrf.mxu0
        %v9577 = vadd.f32 0.0, %v9576
        %9578 = vmatprep.mubr.bf16.mxu0 0
        %9579 = vmatmul.mubr.bf16.gmra.mxu0 %v9495
        %v9580 = vpop.f32.mrf.mxu0
        %v9581 = vadd.f32 0.0, %v9580
        %v9582 = vpop.f32.mrf.mxu0
        %v9583 = vadd.f32 0.0, %v9582
        %v9584 = vpop.f32.mrf.mxu0
        %v9585 = vadd.f32 0.0, %v9584
        %v9586 = vpop.f32.mrf.mxu0
        %v9587 = vadd.f32 0.0, %v9586
        %9588 = vmatprep.mubr.bf16.mxu0 0
        %9589 = vmatmul.mubr.bf16.gmra.mxu0 %v9498
        %v9590 = vpop.f32.mrf.mxu0
        %v9591 = vadd.f32 0.0, %v9590
        %v9592 = vpop.f32.mrf.mxu0
        %v9593 = vadd.f32 0.0, %v9592
        %v9594 = vpop.f32.mrf.mxu0
        %v9595 = vadd.f32 0.0, %v9594
        %v9596 = vpop.f32.mrf.mxu0
        %v9597 = vadd.f32 0.0, %v9596
        %9598 = vmatprep.mubr.bf16.mxu0 0
        %9599 = vmatmul.mubr.bf16.gmra.mxu0 %v9501
        %v9600 = vpop.f32.mrf.mxu0
        %v9601 = vadd.f32 0.0, %v9600
        %v9602 = vpop.f32.mrf.mxu0
        %v9603 = vadd.f32 0.0, %v9602
        %v9604 = vpop.f32.mrf.mxu0
        %v9605 = vadd.f32 0.0, %v9604
        %v9606 = vpop.f32.mrf.mxu0
        %v9607 = vadd.f32 0.0, %v9606
        %9608 = vmatprep.mubr.bf16.mxu0 0
        %9609 = vmatmul.mubr.bf16.gmra.mxu0 %v9504
        %v9610 = vpop.f32.mrf.mxu0
        %v9611 = vadd.f32 0.0, %v9610
        %v9612 = vpop.f32.mrf.mxu0
        %v9613 = vadd.f32 0.0, %v9612
        %v9614 = vpop.f32.mrf.mxu0
        %v9615 = vadd.f32 0.0, %v9614
        %v9616 = vpop.f32.mrf.mxu0
        %v9617 = vadd.f32 0.0, %v9616
        %9618 = vdwg.mxu0
        %9619 = vmatprep.subr.bf16.mxu0 0
        %9620 = vmatpush1.bf16.msra.mxu0 0
        %9621 = vmatprep.subr.bf16.mxu0 0
        %9622 = vmatpush1.bf16.msra.mxu0 0
        %9623 = vmatprep.subr.bf16.mxu0 0
        %9624 = vmatpush1.bf16.msra.mxu0 0
        %9625 = vmatprep.subr.bf16.mxu0 0
        %9626 = vmatpush1.bf16.msra.mxu0 0
        %9627 = vmatprep.subr.bf16.mxu0 0
        %9628 = vmatpush1.bf16.msra.mxu0 %v9441
        %9629 = vmatprep.subr.bf16.mxu0 0
        %9630 = vmatpush1.bf16.msra.mxu0 %v9438
        %9631 = vmatprep.subr.bf16.mxu0 0
        %9632 = vmatpush1.bf16.msra.mxu0 %v9435
        %9633 = vmatprep.subr.bf16.mxu0 0
        %9634 = vmatpush1.bf16.msra.mxu0 %v9432
        %9635 = vmatprep.subr.bf16.mxu0 0
        %9636 = vmatpush2.bf16.msra.mxu0 0
        %9637 = vmatprep.subr.bf16.mxu0 0
        %9638 = vmatpush2.bf16.msra.mxu0 0
        %9639 = vmatprep.subr.bf16.mxu0 0
        %9640 = vmatpush2.bf16.msra.mxu0 0
        %9641 = vmatprep.subr.bf16.mxu0 0
        %9642 = vmatpush2.bf16.msra.mxu0 0
        %9643 = vmatprep.subr.bf16.mxu0 0
        %9644 = vmatpush2.bf16.msra.mxu0 0
        %9645 = vmatprep.subr.bf16.mxu0 0
        %9646 = vmatpush2.bf16.msra.mxu0 0
        %9647 = vmatprep.subr.bf16.mxu0 0
        %9648 = vmatpush2.bf16.msra.mxu0 0
        %9649 = vmatprep.subr.bf16.mxu0 0
        %9650 = vmatpush2.bf16.msra.mxu0 0
        %9651 = vmatprep.mubr.bf16.mxu0 0
        %9652 = vmatmul.mubr.bf16.gmra.mxu0 %v9483
        %v9653 = vpop.f32.mrf.mxu0
        %v9654 = vadd.f32 0.0, %v9653
        %v9655 = vpop.f32.mrf.mxu0
        %v9656 = vpop.f32.mrf.mxu0
        %v9657 = vadd.f32 0.0, %v9656
        %v9658 = vpop.f32.mrf.mxu0
        %9659 = vmatprep.mubr.bf16.mxu0 0
        %9660 = vmatmul.mubr.bf16.gmra.mxu0 %v9486
        %v9661 = vpop.f32.mrf.mxu0
        %v9662 = vadd.f32 0.0, %v9661
        %v9663 = vpop.f32.mrf.mxu0
        %v9664 = vpop.f32.mrf.mxu0
        %v9665 = vadd.f32 0.0, %v9664
        %v9666 = vpop.f32.mrf.mxu0
        %9667 = vmatprep.mubr.bf16.mxu0 0
        %9668 = vmatmul.mubr.bf16.gmra.mxu0 %v9489
        %v9669 = vpop.f32.mrf.mxu0
        %v9670 = vadd.f32 0.0, %v9669
        %v9671 = vpop.f32.mrf.mxu0
        %v9672 = vpop.f32.mrf.mxu0
        %v9673 = vadd.f32 0.0, %v9672
        %v9674 = vpop.f32.mrf.mxu0
        %9675 = vmatprep.mubr.bf16.mxu0 0
        %9676 = vmatmul.mubr.bf16.gmra.mxu0 %v9492
        %v9677 = vpop.f32.mrf.mxu0
        %v9678 = vadd.f32 0.0, %v9677
        %v9679 = vpop.f32.mrf.mxu0
        %v9680 = vpop.f32.mrf.mxu0
        %v9681 = vadd.f32 0.0, %v9680
        %v9682 = vpop.f32.mrf.mxu0
        %9683 = vmatprep.mubr.bf16.mxu0 0
        %9684 = vmatmul.mubr.bf16.gmra.mxu0 %v9495
        %v9685 = vpop.f32.mrf.mxu0
        %v9686 = vadd.f32 0.0, %v9685
        %v9687 = vpop.f32.mrf.mxu0
        %v9688 = vpop.f32.mrf.mxu0
        %v9689 = vadd.f32 0.0, %v9688
        %v9690 = vpop.f32.mrf.mxu0
        %9691 = vmatprep.mubr.bf16.mxu0 0
        %9692 = vmatmul.mubr.bf16.gmra.mxu0 %v9498
        %v9693 = vpop.f32.mrf.mxu0
        %v9694 = vadd.f32 0.0, %v9693
        %v9695 = vpop.f32.mrf.mxu0
        %v9696 = vpop.f32.mrf.mxu0
        %v9697 = vadd.f32 0.0, %v9696
        %v9698 = vpop.f32.mrf.mxu0
        %9699 = vmatprep.mubr.bf16.mxu0 0
        %9700 = vmatmul.mubr.bf16.gmra.mxu0 %v9501
        %v9701 = vpop.f32.mrf.mxu0
        %v9702 = vadd.f32 0.0, %v9701
        %v9703 = vpop.f32.mrf.mxu0
        %v9704 = vpop.f32.mrf.mxu0
        %v9705 = vadd.f32 0.0, %v9704
        %v9706 = vpop.f32.mrf.mxu0
        %9707 = vmatprep.mubr.bf16.mxu0 0
        %9708 = vmatmul.mubr.bf16.gmra.mxu0 %v9504
        %v9709 = vpop.f32.mrf.mxu0
        %v9710 = vadd.f32 0.0, %v9709
        %v9711 = vpop.f32.mrf.mxu0
        %v9712 = vpop.f32.mrf.mxu0
        %v9713 = vadd.f32 0.0, %v9712
        %v9714 = vpop.f32.mrf.mxu0
        %9715 = vdwg.mxu0
        %v9716 = vadd.f32 %v9238, %v9541
        %v9717 = vadd.f32 %v9240, %v9543
        %v9718 = vadd.f32 %v9351, %v9654
        %v9719 = vadd.f32 %v9242, %v9545
        %v9720 = vadd.f32 %v9244, %v9547
        %v9721 = vadd.f32 %v9354, %v9657
        %v9722 = vadd.f32 %v9248, %v9551
        %v9723 = vadd.f32 %v9250, %v9553
        %v9724 = vadd.f32 %v9359, %v9662
        %v9725 = vadd.f32 %v9252, %v9555
        %v9726 = vadd.f32 %v9254, %v9557
        %v9727 = vadd.f32 %v9362, %v9665
        %v9728 = vadd.f32 %v9258, %v9561
        %v9729 = vadd.f32 %v9260, %v9563
        %v9730 = vadd.f32 %v9367, %v9670
        %v9731 = vadd.f32 %v9262, %v9565
        %v9732 = vadd.f32 %v9264, %v9567
        %v9733 = vadd.f32 %v9370, %v9673
        %v9734 = vadd.f32 %v9268, %v9571
        %v9735 = vadd.f32 %v9270, %v9573
        %v9736 = vadd.f32 %v9375, %v9678
        %v9737 = vadd.f32 %v9272, %v9575
        %v9738 = vadd.f32 %v9274, %v9577
        %v9739 = vadd.f32 %v9378, %v9681
        %v9740 = vadd.f32 %v9278, %v9581
        %v9741 = vadd.f32 %v9280, %v9583
        %v9742 = vadd.f32 %v9383, %v9686
        %v9743 = vadd.f32 %v9282, %v9585
        %v9744 = vadd.f32 %v9284, %v9587
        %v9745 = vadd.f32 %v9386, %v9689
        %v9746 = vadd.f32 %v9288, %v9591
        %v9747 = vadd.f32 %v9290, %v9593
        %v9748 = vadd.f32 %v9391, %v9694
        %v9749 = vadd.f32 %v9292, %v9595
        %v9750 = vadd.f32 %v9294, %v9597
        %v9751 = vadd.f32 %v9394, %v9697
        %v9752 = vadd.f32 %v9298, %v9601
        %v9753 = vadd.f32 %v9300, %v9603
        %v9754 = vadd.f32 %v9399, %v9702
        %v9755 = vadd.f32 %v9302, %v9605
        %v9756 = vadd.f32 %v9304, %v9607
        %v9757 = vadd.f32 %v9402, %v9705
        %v9758 = vadd.f32 %v9308, %v9611
        %v9759 = vadd.f32 %v9310, %v9613
        %v9760 = vadd.f32 %v9407, %v9710
        %v9761 = vadd.f32 %v9312, %v9615
        %v9762 = vadd.f32 %v9314, %v9617
        %v9763 = vadd.f32 %v9410, %v9713
        %s9764 = scalar_lea.vmem %s6, 384
        %v9765 = vld [vmem:[%s9764] sm:$0xff]
        %v9766 = vld [vmem:[%s9764 + $0x8] sm:$0xff]
        %v9767 = vld [vmem:[%s9764 + $0x10] sm:$0xff]
        %v9768 = vld [vmem:[%s9764 + $0x18] sm:$0xff]
        %v9769 = vld [vmem:[%s9764 + $0x20] sm:$0xff]
        %v9770 = vld [vmem:[%s9764 + $0x28] sm:$0xff]
        %v9771 = vld [vmem:[%s9764 + $0x30] sm:$0xff]
        %v9772 = vld [vmem:[%s9764 + $0x38] sm:$0xff]
        %v9773 = vld [vmem:[%s9764 + $0x40] sm:$0xff]
        %v9774 = vld [vmem:[%s9764 + $0x48] sm:$0xff]
        %v9775 = vld [vmem:[%s9764 + $0x50] sm:$0xff]
        %v9776 = vld [vmem:[%s9764 + $0x58] sm:$0xff]
        %v9777 = vld [vmem:[%s9764 + $0x60] sm:$0xff]
        %v9778 = vld [vmem:[%s9764 + $0x68] sm:$0xff]
        %v9779 = vld [vmem:[%s9764 + $0x70] sm:$0xff]
        %v9780 = vld [vmem:[%s9764 + $0x78] sm:$0xff]
        %9782 = vset.pattern.permute.xlu0 0
        %9783 = vperm.xlu0 %9782, %v9765
        %v9784 = vpop.permute.xlu0 %9783
        %9787 = vset.pattern.permute.xlu0 0
        %9788 = vperm.xlu0 %9787, %v9766
        %v9789 = vpop.permute.xlu0 %9788
        %9792 = vset.pattern.permute.xlu0 0
        %9793 = vperm.xlu0 %9792, %v9767
        %v9794 = vpop.permute.xlu0 %9793
        %9797 = vset.pattern.permute.xlu0 0
        %9798 = vperm.xlu0 %9797, %v9768
        %v9799 = vpop.permute.xlu0 %9798
        %9802 = vset.pattern.permute.xlu0 0
        %9803 = vperm.xlu0 %9802, %v9769
        %v9804 = vpop.permute.xlu0 %9803
        %9807 = vset.pattern.permute.xlu0 0
        %9808 = vperm.xlu0 %9807, %v9770
        %v9809 = vpop.permute.xlu0 %9808
        %9812 = vset.pattern.permute.xlu0 0
        %9813 = vperm.xlu0 %9812, %v9771
        %v9814 = vpop.permute.xlu0 %9813
        %9817 = vset.pattern.permute.xlu0 0
        %9818 = vperm.xlu0 %9817, %v9772
        %v9819 = vpop.permute.xlu0 %9818
        %9822 = vset.pattern.permute.xlu0 0
        %9823 = vperm.xlu0 %9822, %v9773
        %v9824 = vpop.permute.xlu0 %9823
        %9827 = vset.pattern.permute.xlu0 0
        %9828 = vperm.xlu0 %9827, %v9774
        %v9829 = vpop.permute.xlu0 %9828
        %9832 = vset.pattern.permute.xlu0 0
        %9833 = vperm.xlu0 %9832, %v9775
        %v9834 = vpop.permute.xlu0 %9833
        %9837 = vset.pattern.permute.xlu0 0
        %9838 = vperm.xlu0 %9837, %v9776
        %v9839 = vpop.permute.xlu0 %9838
        %9842 = vset.pattern.permute.xlu0 0
        %9843 = vperm.xlu0 %9842, %v9777
        %v9844 = vpop.permute.xlu0 %9843
        %9847 = vset.pattern.permute.xlu0 0
        %9848 = vperm.xlu0 %9847, %v9778
        %v9849 = vpop.permute.xlu0 %9848
        %9852 = vset.pattern.permute.xlu0 0
        %9853 = vperm.xlu0 %9852, %v9779
        %v9854 = vpop.permute.xlu0 %9853
        %9857 = vset.pattern.permute.xlu0 0
        %9858 = vperm.xlu0 %9857, %v9780
        %v9859 = vpop.permute.xlu0 %9858
        %v9861 = vadd.f32 %v9716, %v9784
        %v9862 = vadd.f32 %v9717, %v9784
        %v9863 = vadd.f32 %v9718, %v9784
        %v9864 = vadd.f32 %v9719, %v9789
        %v9865 = vadd.f32 %v9720, %v9789
        %v9866 = vadd.f32 %v9721, %v9789
        %v9867 = vadd.f32 %v9722, %v9794
        %v9868 = vadd.f32 %v9723, %v9794
        %v9869 = vadd.f32 %v9724, %v9794
        %v9870 = vadd.f32 %v9725, %v9799
        %v9871 = vadd.f32 %v9726, %v9799
        %v9872 = vadd.f32 %v9727, %v9799
        %v9873 = vadd.f32 %v9728, %v9804
        %v9874 = vadd.f32 %v9729, %v9804
        %v9875 = vadd.f32 %v9730, %v9804
        %v9876 = vadd.f32 %v9731, %v9809
        %v9877 = vadd.f32 %v9732, %v9809
        %v9878 = vadd.f32 %v9733, %v9809
        %v9879 = vadd.f32 %v9734, %v9814
        %v9880 = vadd.f32 %v9735, %v9814
        %v9881 = vadd.f32 %v9736, %v9814
        %v9882 = vadd.f32 %v9737, %v9819
        %v9883 = vadd.f32 %v9738, %v9819
        %v9884 = vadd.f32 %v9739, %v9819
        %v9885 = vadd.f32 %v9740, %v9824
        %v9886 = vadd.f32 %v9741, %v9824
        %v9887 = vadd.f32 %v9742, %v9824
        %v9888 = vadd.f32 %v9743, %v9829
        %v9889 = vadd.f32 %v9744, %v9829
        %v9890 = vadd.f32 %v9745, %v9829
        %v9891 = vadd.f32 %v9746, %v9834
        %v9892 = vadd.f32 %v9747, %v9834
        %v9893 = vadd.f32 %v9748, %v9834
        %v9894 = vadd.f32 %v9749, %v9839
        %v9895 = vadd.f32 %v9750, %v9839
        %v9896 = vadd.f32 %v9751, %v9839
        %v9897 = vadd.f32 %v9752, %v9844
        %v9898 = vadd.f32 %v9753, %v9844
        %v9899 = vadd.f32 %v9754, %v9844
        %v9900 = vadd.f32 %v9755, %v9849
        %v9901 = vadd.f32 %v9756, %v9849
        %v9902 = vadd.f32 %v9757, %v9849
        %v9903 = vadd.f32 %v9758, %v9854
        %v9904 = vadd.f32 %v9759, %v9854
        %v9905 = vadd.f32 %v9760, %v9854
        %v9906 = vadd.f32 %v9761, %v9859
        %v9907 = vadd.f32 %v9762, %v9859
        %v9908 = vadd.f32 %v9763, %v9859
        %v9909 = vadd.f32 %v9861, %v2107
        %v9910 = vadd.f32 %v9862, %v2109
        %v9911 = vadd.f32 %v9863, %v2412
        %v9912 = vadd.f32 %v9864, %v2111
        %v9913 = vadd.f32 %v9865, %v2113
        %v9914 = vadd.f32 %v9866, %v2415
        %v9915 = vadd.f32 %v9867, %v2117
        %v9916 = vadd.f32 %v9868, %v2119
        %v9917 = vadd.f32 %v9869, %v2420
        %v9918 = vadd.f32 %v9870, %v2121
        %v9919 = vadd.f32 %v9871, %v2123
        %v9920 = vadd.f32 %v9872, %v2423
        %v9921 = vadd.f32 %v9873, %v2127
        %v9922 = vadd.f32 %v9874, %v2129
        %v9923 = vadd.f32 %v9875, %v2428
        %v9924 = vadd.f32 %v9876, %v2131
        %v9925 = vadd.f32 %v9877, %v2133
        %v9926 = vadd.f32 %v9878, %v2431
        %v9927 = vadd.f32 %v9879, %v2137
        %v9928 = vadd.f32 %v9880, %v2139
        %v9929 = vadd.f32 %v9881, %v2436
        %v9930 = vadd.f32 %v9882, %v2141
        %v9931 = vadd.f32 %v9883, %v2143
        %v9932 = vadd.f32 %v9884, %v2439
        %v9933 = vadd.f32 %v9885, %v2147
        %v9934 = vadd.f32 %v9886, %v2149
        %v9935 = vadd.f32 %v9887, %v2444
        %v9936 = vadd.f32 %v9888, %v2151
        %v9937 = vadd.f32 %v9889, %v2153
        %v9938 = vadd.f32 %v9890, %v2447
        %v9939 = vadd.f32 %v9891, %v2157
        %v9940 = vadd.f32 %v9892, %v2159
        %v9941 = vadd.f32 %v9893, %v2452
        %v9942 = vadd.f32 %v9894, %v2161
        %v9943 = vadd.f32 %v9895, %v2163
        %v9944 = vadd.f32 %v9896, %v2455
        %v9945 = vadd.f32 %v9897, %v2167
        %v9946 = vadd.f32 %v9898, %v2169
        %v9947 = vadd.f32 %v9899, %v2460
        %v9948 = vadd.f32 %v9900, %v2171
        %v9949 = vadd.f32 %v9901, %v2173
        %v9950 = vadd.f32 %v9902, %v2463
        %v9951 = vadd.f32 %v9903, %v2177
        %v9952 = vadd.f32 %v9904, %v2179
        %v9953 = vadd.f32 %v9905, %v2468
        %v9954 = vadd.f32 %v9906, %v2181
        %v9955 = vadd.f32 %v9907, %v2183
        %v9956 = vadd.f32 %v9908, %v2471
        %v9957 = vtanh.pop %v9909
        %v9958 = vtanh.pop %v9910
        %v9959 = vtanh.pop %v9911
        %v9960 = vtanh.pop %v9912
        %v9961 = vtanh.pop %v9913
        %v9962 = vtanh.pop %v9914
        %v9963 = vtanh.pop %v9915
        %v9964 = vtanh.pop %v9916
        %v9965 = vtanh.pop %v9917
        %v9966 = vtanh.pop %v9918
        %v9967 = vtanh.pop %v9919
        %v9968 = vtanh.pop %v9920
        %v9969 = vtanh.pop %v9921
        %v9970 = vtanh.pop %v9922
        %v9971 = vtanh.pop %v9923
        %v9972 = vtanh.pop %v9924
        %v9973 = vtanh.pop %v9925
        %v9974 = vtanh.pop %v9926
        %v9975 = vtanh.pop %v9927
        %v9976 = vtanh.pop %v9928
        %v9977 = vtanh.pop %v9929
        %v9978 = vtanh.pop %v9930
        %v9979 = vtanh.pop %v9931
        %v9980 = vtanh.pop %v9932
        %v9981 = vxor.u32 %v9933, 2147483648
        %v9982 = vxor.u32 %v9934, 2147483648
        %v9983 = vxor.u32 %v9935, 2147483648
        %v9984 = vxor.u32 %v9936, 2147483648
        %v9985 = vxor.u32 %v9937, 2147483648
        %v9986 = vxor.u32 %v9938, 2147483648
        %v9987 = vxor.u32 %v9939, 2147483648
        %v9988 = vxor.u32 %v9940, 2147483648
        %v9989 = vxor.u32 %v9941, 2147483648
        %v9990 = vxor.u32 %v9942, 2147483648
        %v9991 = vxor.u32 %v9943, 2147483648
        %v9992 = vxor.u32 %v9944, 2147483648
        %v9993 = vxor.u32 %v9945, 2147483648
        %v9994 = vxor.u32 %v9946, 2147483648
        %v9995 = vxor.u32 %v9947, 2147483648
        %v9996 = vxor.u32 %v9948, 2147483648
        %v9997 = vxor.u32 %v9949, 2147483648
        %v9998 = vxor.u32 %v9950, 2147483648
        %v9999 = vxor.u32 %v9951, 2147483648
        %v10000 = vxor.u32 %v9952, 2147483648
        %v10001 = vxor.u32 %v9953, 2147483648
        %v10002 = vxor.u32 %v9954, 2147483648
        %v10003 = vxor.u32 %v9955, 2147483648
        %v10004 = vxor.u32 %v9956, 2147483648
        %v10005 = vmul.f32 %v9981, 1.442695
        %v10006 = vpow.pop %v10005
        %v10007 = vmul.f32 %v9982, 1.442695
        %v10008 = vpow.pop %v10007
        %v10009 = vmul.f32 %v9983, 1.442695
        %v10010 = vpow.pop %v10009
        %v10011 = vmul.f32 %v9984, 1.442695
        %v10012 = vpow.pop %v10011
        %v10013 = vmul.f32 %v9985, 1.442695
        %v10014 = vpow.pop %v10013
        %v10015 = vmul.f32 %v9986, 1.442695
        %v10016 = vpow.pop %v10015
        %v10017 = vmul.f32 %v9987, 1.442695
        %v10018 = vpow.pop %v10017
        %v10019 = vmul.f32 %v9988, 1.442695
        %v10020 = vpow.pop %v10019
        %v10021 = vmul.f32 %v9989, 1.442695
        %v10022 = vpow.pop %v10021
        %v10023 = vmul.f32 %v9990, 1.442695
        %v10024 = vpow.pop %v10023
        %v10025 = vmul.f32 %v9991, 1.442695
        %v10026 = vpow.pop %v10025
        %v10027 = vmul.f32 %v9992, 1.442695
        %v10028 = vpow.pop %v10027
        %v10029 = vmul.f32 %v9993, 1.442695
        %v10030 = vpow.pop %v10029
        %v10031 = vmul.f32 %v9994, 1.442695
        %v10032 = vpow.pop %v10031
        %v10033 = vmul.f32 %v9995, 1.442695
        %v10034 = vpow.pop %v10033
        %v10035 = vmul.f32 %v9996, 1.442695
        %v10036 = vpow.pop %v10035
        %v10037 = vmul.f32 %v9997, 1.442695
        %v10038 = vpow.pop %v10037
        %v10039 = vmul.f32 %v9998, 1.442695
        %v10040 = vpow.pop %v10039
        %v10041 = vmul.f32 %v9999, 1.442695
        %v10042 = vpow.pop %v10041
        %v10043 = vmul.f32 %v10000, 1.442695
        %v10044 = vpow.pop %v10043
        %v10045 = vmul.f32 %v10001, 1.442695
        %v10046 = vpow.pop %v10045
        %v10047 = vmul.f32 %v10002, 1.442695
        %v10048 = vpow.pop %v10047
        %v10049 = vmul.f32 %v10003, 1.442695
        %v10050 = vpow.pop %v10049
        %v10051 = vmul.f32 %v10004, 1.442695
        %v10052 = vpow.pop %v10051
        %v10053 = vadd.f32 %v10006, 1.0
        %v10054 = vadd.f32 %v10008, 1.0
        %v10055 = vadd.f32 %v10010, 1.0
        %v10056 = vadd.f32 %v10012, 1.0
        %v10057 = vadd.f32 %v10014, 1.0
        %v10058 = vadd.f32 %v10016, 1.0
        %v10059 = vadd.f32 %v10018, 1.0
        %v10060 = vadd.f32 %v10020, 1.0
        %v10061 = vadd.f32 %v10022, 1.0
        %v10062 = vadd.f32 %v10024, 1.0
        %v10063 = vadd.f32 %v10026, 1.0
        %v10064 = vadd.f32 %v10028, 1.0
        %v10065 = vadd.f32 %v10030, 1.0
        %v10066 = vadd.f32 %v10032, 1.0
        %v10067 = vadd.f32 %v10034, 1.0
        %v10068 = vadd.f32 %v10036, 1.0
        %v10069 = vadd.f32 %v10038, 1.0
        %v10070 = vadd.f32 %v10040, 1.0
        %v10071 = vadd.f32 %v10042, 1.0
        %v10072 = vadd.f32 %v10044, 1.0
        %v10073 = vadd.f32 %v10046, 1.0
        %v10074 = vadd.f32 %v10048, 1.0
        %v10075 = vadd.f32 %v10050, 1.0
        %v10076 = vadd.f32 %v10052, 1.0
        %v10077 = vrcp.pop %v10053
        %v10078 = vmul.f32 1.0, %v10077
        %v10079 = vrcp.pop %v10054
        %v10080 = vmul.f32 1.0, %v10079
        %v10081 = vrcp.pop %v10055
        %v10082 = vmul.f32 1.0, %v10081
        %v10083 = vrcp.pop %v10056
        %v10084 = vmul.f32 1.0, %v10083
        %v10085 = vrcp.pop %v10057
        %v10086 = vmul.f32 1.0, %v10085
        %v10087 = vrcp.pop %v10058
        %v10088 = vmul.f32 1.0, %v10087
        %v10089 = vrcp.pop %v10059
        %v10090 = vmul.f32 1.0, %v10089
        %v10091 = vrcp.pop %v10060
        %v10092 = vmul.f32 1.0, %v10091
        %v10093 = vrcp.pop %v10061
        %v10094 = vmul.f32 1.0, %v10093
        %v10095 = vrcp.pop %v10062
        %v10096 = vmul.f32 1.0, %v10095
        %v10097 = vrcp.pop %v10063
        %v10098 = vmul.f32 1.0, %v10097
        %v10099 = vrcp.pop %v10064
        %v10100 = vmul.f32 1.0, %v10099
        %v10101 = vrcp.pop %v10065
        %v10102 = vmul.f32 1.0, %v10101
        %v10103 = vrcp.pop %v10066
        %v10104 = vmul.f32 1.0, %v10103
        %v10105 = vrcp.pop %v10067
        %v10106 = vmul.f32 1.0, %v10105
        %v10107 = vrcp.pop %v10068
        %v10108 = vmul.f32 1.0, %v10107
        %v10109 = vrcp.pop %v10069
        %v10110 = vmul.f32 1.0, %v10109
        %v10111 = vrcp.pop %v10070
        %v10112 = vmul.f32 1.0, %v10111
        %v10113 = vrcp.pop %v10071
        %v10114 = vmul.f32 1.0, %v10113
        %v10115 = vrcp.pop %v10072
        %v10116 = vmul.f32 1.0, %v10115
        %v10117 = vrcp.pop %v10073
        %v10118 = vmul.f32 1.0, %v10117
        %v10119 = vrcp.pop %v10074
        %v10120 = vmul.f32 1.0, %v10119
        %v10121 = vrcp.pop %v10075
        %v10122 = vmul.f32 1.0, %v10121
        %v10123 = vrcp.pop %v10076
        %v10124 = vmul.f32 1.0, %v10123
        %v10125 = vmul.f32 %v9957, %v10078
        %v10126 = vmul.f32 %v9958, %v10080
        %v10127 = vmul.f32 %v9959, %v10082
        %v10128 = vmul.f32 %v9960, %v10084
        %v10129 = vmul.f32 %v9961, %v10086
        %v10130 = vmul.f32 %v9962, %v10088
        %v10131 = vmul.f32 %v9963, %v10090
        %v10132 = vmul.f32 %v9964, %v10092
        %v10133 = vmul.f32 %v9965, %v10094
        %v10134 = vmul.f32 %v9966, %v10096
        %v10135 = vmul.f32 %v9967, %v10098
        %v10136 = vmul.f32 %v9968, %v10100
        %v10137 = vmul.f32 %v9969, %v10102
        %v10138 = vmul.f32 %v9970, %v10104
        %v10139 = vmul.f32 %v9971, %v10106
        %v10140 = vmul.f32 %v9972, %v10108
        %v10141 = vmul.f32 %v9973, %v10110
        %v10142 = vmul.f32 %v9974, %v10112
        %v10143 = vmul.f32 %v9975, %v10114
        %v10144 = vmul.f32 %v9976, %v10116
        %v10145 = vmul.f32 %v9977, %v10118
        %v10146 = vmul.f32 %v9978, %v10120
        %v10147 = vmul.f32 %v9979, %v10122
        %v10148 = vmul.f32 %v9980, %v10124
        %s10149 = scalar_lea.vmem %s9, 192
        %v10150 = vld [vmem:[%s10149] sm:$0xf]
        %v10151 = vld [vmem:[%s10149 + $0x4] sm:$0xf]
        %v10152 = vld [vmem:[%s10149 + $0x8] sm:$0xf]
        %v10153 = vld [vmem:[%s10149 + $0xc] sm:$0xf]
        %v10154 = vld [vmem:[%s10149 + $0x10] sm:$0xf]
        %v10155 = vld [vmem:[%s10149 + $0x14] sm:$0xf]
        %v10156 = vld [vmem:[%s10149 + $0x18] sm:$0xf]
        %v10157 = vld [vmem:[%s10149 + $0x1c] sm:$0xf]
        %v10158 = vld [vmem:[%s10149 + $0x20] sm:$0xf]
        %v10159 = vld [vmem:[%s10149 + $0x24] sm:$0xf]
        %v10160 = vld [vmem:[%s10149 + $0x28] sm:$0xf]
        %v10161 = vld [vmem:[%s10149 + $0x2c] sm:$0xf]
        %v10162 = vld [vmem:[%s10149 + $0x30] sm:$0xf]
        %v10163 = vld [vmem:[%s10149 + $0x34] sm:$0xf]
        %v10164 = vld [vmem:[%s10149 + $0x38] sm:$0xf]
        %v10165 = vld [vmem:[%s10149 + $0x3c] sm:$0xf]
        %v10166 = vpack.c.bf16 %v10128, %v10125
        %v10167 = vpack.c.bf16 %v10129, %v10126
        %v10168 = vpack.c.bf16 %v10130, %v10127
        %v10169 = vpack.c.bf16 %v10134, %v10131
        %v10170 = vpack.c.bf16 %v10135, %v10132
        %v10171 = vpack.c.bf16 %v10136, %v10133
        %v10172 = vpack.c.bf16 %v10140, %v10137
        %v10173 = vpack.c.bf16 %v10141, %v10138
        %v10174 = vpack.c.bf16 %v10142, %v10139
        %v10175 = vpack.c.bf16 %v10146, %v10143
        %v10176 = vpack.c.bf16 %v10147, %v10144
        %v10177 = vpack.c.bf16 %v10148, %v10145
        %s10178 = scalar_lea.vmem %s10, 384
        %v10179 = vld [vmem:[%s10178] sm:$0xff]
        %v10180 = vld [vmem:[%s10178 + $0x8] sm:$0xff]
        %v10181 = vld [vmem:[%s10178 + $0x10] sm:$0xff]
        %v10182 = vld [vmem:[%s10178 + $0x18] sm:$0xff]
        %v10183 = vld [vmem:[%s10178 + $0x20] sm:$0xff]
        %v10184 = vld [vmem:[%s10178 + $0x28] sm:$0xff]
        %v10185 = vld [vmem:[%s10178 + $0x30] sm:$0xff]
        %v10186 = vld [vmem:[%s10178 + $0x38] sm:$0xff]
        %v10187 = vld [vmem:[%s10178 + $0x40] sm:$0xff]
        %v10188 = vld [vmem:[%s10178 + $0x48] sm:$0xff]
        %v10189 = vld [vmem:[%s10178 + $0x50] sm:$0xff]
        %v10190 = vld [vmem:[%s10178 + $0x58] sm:$0xff]
        %v10191 = vld [vmem:[%s10178 + $0x60] sm:$0xff]
        %v10192 = vld [vmem:[%s10178 + $0x68] sm:$0xff]
        %v10193 = vld [vmem:[%s10178 + $0x70] sm:$0xff]
        %v10194 = vld [vmem:[%s10178 + $0x78] sm:$0xff]
        %10196 = vset.pattern.permute.xlu0 0
        %10197 = vperm.xlu0 %10196, %v10179
        %v10198 = vpop.permute.xlu0 %10197
        %10200 = vset.pattern.permute.xlu0 0
        %10201 = vperm.xlu0 %10200, %v10180
        %v10202 = vpop.permute.xlu0 %10201
        %10204 = vset.pattern.permute.xlu0 0
        %10205 = vperm.xlu0 %10204, %v10181
        %v10206 = vpop.permute.xlu0 %10205
        %10208 = vset.pattern.permute.xlu0 0
        %10209 = vperm.xlu0 %10208, %v10182
        %v10210 = vpop.permute.xlu0 %10209
        %10212 = vset.pattern.permute.xlu0 0
        %10213 = vperm.xlu0 %10212, %v10183
        %v10214 = vpop.permute.xlu0 %10213
        %10216 = vset.pattern.permute.xlu0 0
        %10217 = vperm.xlu0 %10216, %v10184
        %v10218 = vpop.permute.xlu0 %10217
        %10220 = vset.pattern.permute.xlu0 0
        %10221 = vperm.xlu0 %10220, %v10185
        %v10222 = vpop.permute.xlu0 %10221
        %10224 = vset.pattern.permute.xlu0 0
        %10225 = vperm.xlu0 %10224, %v10186
        %v10226 = vpop.permute.xlu0 %10225
        %10228 = vset.pattern.permute.xlu0 0
        %10229 = vperm.xlu0 %10228, %v10187
        %v10230 = vpop.permute.xlu0 %10229
        %10233 = vset.pattern.permute.xlu0 0
        %10234 = vperm.xlu0 %10233, %v10188
        %v10235 = vpop.permute.xlu0 %10234
        %10238 = vset.pattern.permute.xlu0 0
        %10239 = vperm.xlu0 %10238, %v10189
        %v10240 = vpop.permute.xlu0 %10239
        %10243 = vset.pattern.permute.xlu0 0
        %10244 = vperm.xlu0 %10243, %v10190
        %v10245 = vpop.permute.xlu0 %10244
        %10248 = vset.pattern.permute.xlu0 0
        %10249 = vperm.xlu0 %10248, %v10191
        %v10250 = vpop.permute.xlu0 %10249
        %10253 = vset.pattern.permute.xlu0 0
        %10254 = vperm.xlu0 %10253, %v10192
        %v10255 = vpop.permute.xlu0 %10254
        %10258 = vset.pattern.permute.xlu0 0
        %10259 = vperm.xlu0 %10258, %v10193
        %v10260 = vpop.permute.xlu0 %10259
        %10263 = vset.pattern.permute.xlu0 0
        %10264 = vperm.xlu0 %10263, %v10194
        %v10265 = vpop.permute.xlu0 %10264
        %v10283 = vunpack.c.l.b16 %v10150
        %v10284 = vunpack.c.l.b16 %v10151
        %v10285 = vunpack.c.l.b16 %v10152
        %v10286 = vunpack.c.l.b16 %v10153
        %v10287 = vunpack.c.l.b16 %v10154
        %v10288 = vunpack.c.l.b16 %v10155
        %v10289 = vunpack.c.l.b16 %v10156
        %v10290 = vunpack.c.l.b16 %v10157
        %v10291 = vunpack.c.l.b16 %v10158
        %v10292 = vunpack.c.l.b16 %v10159
        %v10293 = vunpack.c.l.b16 %v10160
        %v10294 = vunpack.c.l.b16 %v10161
        %v10295 = vunpack.c.l.b16 %v10162
        %v10296 = vunpack.c.l.b16 %v10163
        %v10297 = vunpack.c.l.b16 %v10164
        %v10298 = vunpack.c.l.b16 %v10165
        %v10299 = vpack.c.b16 %v10284, %v10283
        %v10300 = vpack.c.b16 %v10286, %v10285
        %v10301 = vpack.c.b16 %v10288, %v10287
        %v10302 = vpack.c.b16 %v10290, %v10289
        %v10303 = vpack.c.b16 %v10292, %v10291
        %v10304 = vpack.c.b16 %v10294, %v10293
        %v10305 = vpack.c.b16 %v10296, %v10295
        %v10306 = vpack.c.b16 %v10298, %v10297
        %v10308 = vsel %vm2813, %v10299, 0
        %v10311 = vsel %vm2813, %v10300, 0
        %v10314 = vsel %vm2813, %v10301, 0
        %v10317 = vsel %vm2813, %v10302, 0
        %v10320 = vsel %vm2813, %v10303, 0
        %v10323 = vsel %vm2813, %v10304, 0
        %v10326 = vsel %vm2813, %v10305, 0
        %v10329 = vsel %vm2813, %v10306, 0
        %10331 = vmatprep.subr.bf16.mxu0 0
        %10332 = vmatpush1.bf16.msra.mxu0 0
        %10333 = vmatprep.subr.bf16.mxu0 0
        %10334 = vmatpush1.bf16.msra.mxu0 0
        %10335 = vmatprep.subr.bf16.mxu0 0
        %10336 = vmatpush1.bf16.msra.mxu0 0
        %10337 = vmatprep.subr.bf16.mxu0 0
        %10338 = vmatpush1.bf16.msra.mxu0 0
        %10339 = vmatprep.subr.bf16.mxu0 %v10176
        %10340 = vmatpush1.bf16.msra.mxu0 %v10175
        %10341 = vmatprep.subr.bf16.mxu0 %v10173
        %10342 = vmatpush1.bf16.msra.mxu0 %v10172
        %10343 = vmatprep.subr.bf16.mxu0 %v10170
        %10344 = vmatpush1.bf16.msra.mxu0 %v10169
        %10345 = vmatprep.subr.bf16.mxu0 %v10167
        %10346 = vmatpush1.bf16.msra.mxu0 %v10166
        %10347 = vmatprep.subr.bf16.mxu0 0
        %10348 = vmatpush2.bf16.msra.mxu0 0
        %10349 = vmatprep.subr.bf16.mxu0 0
        %10350 = vmatpush2.bf16.msra.mxu0 0
        %10351 = vmatprep.subr.bf16.mxu0 0
        %10352 = vmatpush2.bf16.msra.mxu0 0
        %10353 = vmatprep.subr.bf16.mxu0 0
        %10354 = vmatpush2.bf16.msra.mxu0 0
        %10355 = vmatprep.subr.bf16.mxu0 0
        %10356 = vmatpush2.bf16.msra.mxu0 0
        %10357 = vmatprep.subr.bf16.mxu0 0
        %10358 = vmatpush2.bf16.msra.mxu0 0
        %10359 = vmatprep.subr.bf16.mxu0 0
        %10360 = vmatpush2.bf16.msra.mxu0 0
        %10361 = vmatprep.subr.bf16.mxu0 0
        %10362 = vmatpush2.bf16.msra.mxu0 0
        %10363 = vmatprep.mubr.bf16.mxu0 0
        %10364 = vmatmul.mubr.bf16.gmra.mxu0 %v10308
        %v10365 = vpop.f32.mrf.mxu0
        %v10366 = vpop.f32.mrf.mxu0
        %v10367 = vpop.f32.mrf.mxu0
        %v10368 = vpop.f32.mrf.mxu0
        %10369 = vmatprep.mubr.bf16.mxu0 0
        %10370 = vmatmul.mubr.bf16.gmra.mxu0 %v10311
        %v10371 = vpop.f32.mrf.mxu0
        %v10372 = vpop.f32.mrf.mxu0
        %v10373 = vpop.f32.mrf.mxu0
        %v10374 = vpop.f32.mrf.mxu0
        %10375 = vmatprep.mubr.bf16.mxu0 0
        %10376 = vmatmul.mubr.bf16.gmra.mxu0 %v10314
        %v10377 = vpop.f32.mrf.mxu0
        %v10378 = vpop.f32.mrf.mxu0
        %v10379 = vpop.f32.mrf.mxu0
        %v10380 = vpop.f32.mrf.mxu0
        %10381 = vmatprep.mubr.bf16.mxu0 0
        %10382 = vmatmul.mubr.bf16.gmra.mxu0 %v10317
        %v10383 = vpop.f32.mrf.mxu0
        %v10384 = vpop.f32.mrf.mxu0
        %v10385 = vpop.f32.mrf.mxu0
        %v10386 = vpop.f32.mrf.mxu0
        %10387 = vmatprep.mubr.bf16.mxu0 0
        %10388 = vmatmul.mubr.bf16.gmra.mxu0 %v10320
        %v10389 = vpop.f32.mrf.mxu0
        %v10390 = vadd.f32 %v10230, %v10389
        %v10391 = vpop.f32.mrf.mxu0
        %v10392 = vadd.f32 %v10230, %v10391
        %v10393 = vpop.f32.mrf.mxu0
        %v10394 = vadd.f32 %v10235, %v10393
        %v10395 = vpop.f32.mrf.mxu0
        %v10396 = vadd.f32 %v10235, %v10395
        %10397 = vmatprep.mubr.bf16.mxu0 0
        %10398 = vmatmul.mubr.bf16.gmra.mxu0 %v10323
        %v10399 = vpop.f32.mrf.mxu0
        %v10400 = vadd.f32 %v10240, %v10399
        %v10401 = vpop.f32.mrf.mxu0
        %v10402 = vadd.f32 %v10240, %v10401
        %v10403 = vpop.f32.mrf.mxu0
        %v10404 = vadd.f32 %v10245, %v10403
        %v10405 = vpop.f32.mrf.mxu0
        %v10406 = vadd.f32 %v10245, %v10405
        %10407 = vmatprep.mubr.bf16.mxu0 0
        %10408 = vmatmul.mubr.bf16.gmra.mxu0 %v10326
        %v10409 = vpop.f32.mrf.mxu0
        %v10410 = vadd.f32 %v10250, %v10409
        %v10411 = vpop.f32.mrf.mxu0
        %v10412 = vadd.f32 %v10250, %v10411
        %v10413 = vpop.f32.mrf.mxu0
        %v10414 = vadd.f32 %v10255, %v10413
        %v10415 = vpop.f32.mrf.mxu0
        %v10416 = vadd.f32 %v10255, %v10415
        %10417 = vmatprep.mubr.bf16.mxu0 0
        %10418 = vmatmul.mubr.bf16.gmra.mxu0 %v10329
        %v10419 = vpop.f32.mrf.mxu0
        %v10420 = vadd.f32 %v10260, %v10419
        %v10421 = vpop.f32.mrf.mxu0
        %v10422 = vadd.f32 %v10260, %v10421
        %v10423 = vpop.f32.mrf.mxu0
        %v10424 = vadd.f32 %v10265, %v10423
        %v10425 = vpop.f32.mrf.mxu0
        %v10426 = vadd.f32 %v10265, %v10425
        %10427 = vdwg.mxu0
        %10428 = vmatprep.subr.bf16.mxu0 0
        %10429 = vmatpush1.bf16.msra.mxu0 0
        %10430 = vmatprep.subr.bf16.mxu0 0
        %10431 = vmatpush1.bf16.msra.mxu0 0
        %10432 = vmatprep.subr.bf16.mxu0 0
        %10433 = vmatpush1.bf16.msra.mxu0 0
        %10434 = vmatprep.subr.bf16.mxu0 0
        %10435 = vmatpush1.bf16.msra.mxu0 0
        %10436 = vmatprep.subr.bf16.mxu0 0
        %10437 = vmatpush1.bf16.msra.mxu0 %v10177
        %10438 = vmatprep.subr.bf16.mxu0 0
        %10439 = vmatpush1.bf16.msra.mxu0 %v10174
        %10440 = vmatprep.subr.bf16.mxu0 0
        %10441 = vmatpush1.bf16.msra.mxu0 %v10171
        %10442 = vmatprep.subr.bf16.mxu0 0
        %10443 = vmatpush1.bf16.msra.mxu0 %v10168
        %10444 = vmatprep.subr.bf16.mxu0 0
        %10445 = vmatpush2.bf16.msra.mxu0 0
        %10446 = vmatprep.subr.bf16.mxu0 0
        %10447 = vmatpush2.bf16.msra.mxu0 0
        %10448 = vmatprep.subr.bf16.mxu0 0
        %10449 = vmatpush2.bf16.msra.mxu0 0
        %10450 = vmatprep.subr.bf16.mxu0 0
        %10451 = vmatpush2.bf16.msra.mxu0 0
        %10452 = vmatprep.subr.bf16.mxu0 0
        %10453 = vmatpush2.bf16.msra.mxu0 0
        %10454 = vmatprep.subr.bf16.mxu0 0
        %10455 = vmatpush2.bf16.msra.mxu0 0
        %10456 = vmatprep.subr.bf16.mxu0 0
        %10457 = vmatpush2.bf16.msra.mxu0 0
        %10458 = vmatprep.subr.bf16.mxu0 0
        %10459 = vmatpush2.bf16.msra.mxu0 0
        %10460 = vmatprep.mubr.bf16.mxu0 0
        %10461 = vmatmul.mubr.bf16.gmra.mxu0 %v10308
        %v10462 = vpop.f32.mrf.mxu0
        %v10463 = vpop.f32.mrf.mxu0
        %v10464 = vpop.f32.mrf.mxu0
        %v10465 = vpop.f32.mrf.mxu0
        %10466 = vmatprep.mubr.bf16.mxu0 0
        %10467 = vmatmul.mubr.bf16.gmra.mxu0 %v10311
        %v10468 = vpop.f32.mrf.mxu0
        %v10469 = vpop.f32.mrf.mxu0
        %v10470 = vpop.f32.mrf.mxu0
        %v10471 = vpop.f32.mrf.mxu0
        %10472 = vmatprep.mubr.bf16.mxu0 0
        %10473 = vmatmul.mubr.bf16.gmra.mxu0 %v10314
        %v10474 = vpop.f32.mrf.mxu0
        %v10475 = vpop.f32.mrf.mxu0
        %v10476 = vpop.f32.mrf.mxu0
        %v10477 = vpop.f32.mrf.mxu0
        %10478 = vmatprep.mubr.bf16.mxu0 0
        %10479 = vmatmul.mubr.bf16.gmra.mxu0 %v10317
        %v10480 = vpop.f32.mrf.mxu0
        %v10481 = vpop.f32.mrf.mxu0
        %v10482 = vpop.f32.mrf.mxu0
        %v10483 = vpop.f32.mrf.mxu0
        %10484 = vmatprep.mubr.bf16.mxu0 0
        %10485 = vmatmul.mubr.bf16.gmra.mxu0 %v10320
        %v10486 = vpop.f32.mrf.mxu0
        %v10487 = vadd.f32 %v10230, %v10486
        %v10488 = vpop.f32.mrf.mxu0
        %v10489 = vpop.f32.mrf.mxu0
        %v10490 = vadd.f32 %v10235, %v10489
        %v10491 = vpop.f32.mrf.mxu0
        %10492 = vmatprep.mubr.bf16.mxu0 0
        %10493 = vmatmul.mubr.bf16.gmra.mxu0 %v10323
        %v10494 = vpop.f32.mrf.mxu0
        %v10495 = vadd.f32 %v10240, %v10494
        %v10496 = vpop.f32.mrf.mxu0
        %v10497 = vpop.f32.mrf.mxu0
        %v10498 = vadd.f32 %v10245, %v10497
        %v10499 = vpop.f32.mrf.mxu0
        %10500 = vmatprep.mubr.bf16.mxu0 0
        %10501 = vmatmul.mubr.bf16.gmra.mxu0 %v10326
        %v10502 = vpop.f32.mrf.mxu0
        %v10503 = vadd.f32 %v10250, %v10502
        %v10504 = vpop.f32.mrf.mxu0
        %v10505 = vpop.f32.mrf.mxu0
        %v10506 = vadd.f32 %v10255, %v10505
        %v10507 = vpop.f32.mrf.mxu0
        %10508 = vmatprep.mubr.bf16.mxu0 0
        %10509 = vmatmul.mubr.bf16.gmra.mxu0 %v10329
        %v10510 = vpop.f32.mrf.mxu0
        %v10511 = vadd.f32 %v10260, %v10510
        %v10512 = vpop.f32.mrf.mxu0
        %v10513 = vpop.f32.mrf.mxu0
        %v10514 = vadd.f32 %v10265, %v10513
        %v10515 = vpop.f32.mrf.mxu0
        %10516 = vdwg.mxu0
        %v10517 = vadd.f32 %v8542, %v10390
        %v10518 = vadd.f32 %v8543, %v10392
        %v10519 = vadd.f32 %v8544, %v10487
        %v10520 = vadd.f32 %v8545, %v10394
        %v10521 = vadd.f32 %v8546, %v10396
        %v10522 = vadd.f32 %v8547, %v10490
        %v10523 = vadd.f32 %v8548, %v10400
        %v10524 = vadd.f32 %v8549, %v10402
        %v10525 = vadd.f32 %v8550, %v10495
        %v10526 = vadd.f32 %v8551, %v10404
        %v10527 = vadd.f32 %v8552, %v10406
        %v10528 = vadd.f32 %v8553, %v10498
        %v10529 = vadd.f32 %v8554, %v10410
        %v10530 = vadd.f32 %v8555, %v10412
        %v10531 = vadd.f32 %v8556, %v10503
        %v10532 = vadd.f32 %v8557, %v10414
        %v10533 = vadd.f32 %v8558, %v10416
        %v10534 = vadd.f32 %v8559, %v10506
        %v10535 = vadd.f32 %v8560, %v10420
        %v10536 = vadd.f32 %v8561, %v10422
        %v10537 = vadd.f32 %v8562, %v10511
        %v10538 = vadd.f32 %v8563, %v10424
        %v10539 = vadd.f32 %v8564, %v10426
        %v10540 = vadd.f32 %v8565, %v10514
        %v10541 = vld [vmem:[%s11] sm:$0xff]
        %v10542 = vld [vmem:[%s12] sm:$0xff]
        %10544 = vset.pattern.permute.xlu0 0
        %10545 = vperm.xlu0 %10544, %v10542
        %v10546 = vpop.permute.xlu0 %10545
        %10572 = vrot.lane.b32.xlu0 %v10517, 64
        %v10573 = vpop.permute.xlu0 %10572
        %10574 = vrot.lane.b32.xlu0 %v10518, 64
        %v10575 = vpop.permute.xlu0 %10574
        %10576 = vrot.lane.b32.xlu0 %v10519, 64
        %v10577 = vpop.permute.xlu0 %10576
        %10578 = vrot.lane.b32.xlu0 %v10520, 64
        %v10579 = vpop.permute.xlu0 %10578
        %10580 = vrot.lane.b32.xlu0 %v10521, 64
        %v10581 = vpop.permute.xlu0 %10580
        %10582 = vrot.lane.b32.xlu0 %v10522, 64
        %v10583 = vpop.permute.xlu0 %10582
        %10584 = vrot.lane.b32.xlu0 %v10523, 64
        %v10585 = vpop.permute.xlu0 %10584
        %10586 = vrot.lane.b32.xlu0 %v10524, 64
        %v10587 = vpop.permute.xlu0 %10586
        %10588 = vrot.lane.b32.xlu0 %v10525, 64
        %v10589 = vpop.permute.xlu0 %10588
        %10590 = vrot.lane.b32.xlu0 %v10526, 64
        %v10591 = vpop.permute.xlu0 %10590
        %10592 = vrot.lane.b32.xlu0 %v10527, 64
        %v10593 = vpop.permute.xlu0 %10592
        %10594 = vrot.lane.b32.xlu0 %v10528, 64
        %v10595 = vpop.permute.xlu0 %10594
        %10596 = vrot.lane.b32.xlu0 %v10529, 64
        %v10597 = vpop.permute.xlu0 %10596
        %10598 = vrot.lane.b32.xlu0 %v10530, 64
        %v10599 = vpop.permute.xlu0 %10598
        %10600 = vrot.lane.b32.xlu0 %v10531, 64
        %v10601 = vpop.permute.xlu0 %10600
        %10602 = vrot.lane.b32.xlu0 %v10532, 64
        %v10603 = vpop.permute.xlu0 %10602
        %10604 = vrot.lane.b32.xlu0 %v10533, 64
        %v10605 = vpop.permute.xlu0 %10604
        %10606 = vrot.lane.b32.xlu0 %v10534, 64
        %v10607 = vpop.permute.xlu0 %10606
        %10608 = vrot.lane.b32.xlu0 %v10535, 64
        %v10609 = vpop.permute.xlu0 %10608
        %10610 = vrot.lane.b32.xlu0 %v10536, 64
        %v10611 = vpop.permute.xlu0 %10610
        %10612 = vrot.lane.b32.xlu0 %v10537, 64
        %v10613 = vpop.permute.xlu0 %10612
        %10614 = vrot.lane.b32.xlu0 %v10538, 64
        %v10615 = vpop.permute.xlu0 %10614
        %10616 = vrot.lane.b32.xlu0 %v10539, 64
        %v10617 = vpop.permute.xlu0 %10616
        %10618 = vrot.lane.b32.xlu0 %v10540, 64
        %v10619 = vpop.permute.xlu0 %10618
        %v10620 = vsel %vm2813, %v10573, %v10575
        %v10621 = vsel %vm2813, %v10575, %v10577
        %v10622 = vsel %vm2813, %v10579, %v10581
        %v10623 = vsel %vm2813, %v10581, %v10583
        %v10624 = vsel %vm2813, %v10585, %v10587
        %v10625 = vsel %vm2813, %v10587, %v10589
        %v10626 = vsel %vm2813, %v10591, %v10593
        %v10627 = vsel %vm2813, %v10593, %v10595
        %v10628 = vsel %vm2813, %v10597, %v10599
        %v10629 = vsel %vm2813, %v10599, %v10601
        %v10630 = vsel %vm2813, %v10603, %v10605
        %v10631 = vsel %vm2813, %v10605, %v10607
        %v10632 = vsel %vm2813, %v10609, %v10611
        %v10633 = vsel %vm2813, %v10611, %v10613
        %v10634 = vsel %vm2813, %v10615, %v10617
        %v10635 = vsel %vm2813, %v10617, %v10619
        %v10653 = vsel %vm2813, %v10541, 0
        %10655 = vmatprep.subr.mxu0 0.0
        %10656 = vmatpush1.msra.mxu0 0.0
        %10657 = vmatprep.subr.mxu0 0.0
        %10658 = vmatpush1.msra.mxu0 0.0
        %10659 = vmatprep.subr.mxu0 0.0
        %10660 = vmatpush1.msra.mxu0 0.0
        %10661 = vmatprep.subr.mxu0 0.0
        %10662 = vmatpush1.msra.mxu0 0.0
        %10663 = vmatprep.subr.mxu0 0.0
        %10664 = vmatpush1.msra.mxu0 0.0
        %10665 = vmatprep.subr.mxu0 0.0
        %10666 = vmatpush1.msra.mxu0 0.0
        %10667 = vmatprep.subr.mxu0 0.0
        %10668 = vmatpush1.msra.mxu0 0.0
        %10669 = vmatprep.subr.mxu0 0.0
        %10670 = vmatpush1.msra.mxu0 0.0
        %10671 = vmatprep.subr.mxu0 %v10635
        %10672 = vmatpush1.msra.mxu0 %v10634
        %10673 = vmatprep.subr.mxu0 %v10633
        %10674 = vmatpush1.msra.mxu0 %v10632
        %10675 = vmatprep.subr.mxu0 %v10631
        %10676 = vmatpush1.msra.mxu0 %v10630
        %10677 = vmatprep.subr.mxu0 %v10629
        %10678 = vmatpush1.msra.mxu0 %v10628
        %10679 = vmatprep.subr.mxu0 %v10627
        %10680 = vmatpush1.msra.mxu0 %v10626
        %10681 = vmatprep.subr.mxu0 %v10625
        %10682 = vmatpush1.msra.mxu0 %v10624
        %10683 = vmatprep.subr.mxu0 %v10623
        %10684 = vmatpush1.msra.mxu0 %v10622
        %10685 = vmatprep.subr.mxu0 %v10621
        %10686 = vmatpush1.msra.mxu0 %v10620
        %10687 = vmatprep.subr.mxu0 0.0
        %10688 = vmatpush2.msra.mxu0 0.0
        %10689 = vmatprep.subr.mxu0 0.0
        %10690 = vmatpush2.msra.mxu0 0.0
        %10691 = vmatprep.subr.mxu0 0.0
        %10692 = vmatpush2.msra.mxu0 0.0
        %10693 = vmatprep.subr.mxu0 0.0
        %10694 = vmatpush2.msra.mxu0 0.0
        %10695 = vmatprep.subr.mxu0 0.0
        %10696 = vmatpush2.msra.mxu0 0.0
        %10697 = vmatprep.subr.mxu0 0.0
        %10698 = vmatpush2.msra.mxu0 0.0
        %10699 = vmatprep.subr.mxu0 0.0
        %10700 = vmatpush2.msra.mxu0 0.0
        %10701 = vmatprep.subr.mxu0 0.0
        %10702 = vmatpush2.msra.mxu0 0.0
        %10703 = vmatprep.subr.mxu0 0.0
        %10704 = vmatpush2.msra.mxu0 0.0
        %10705 = vmatprep.subr.mxu0 0.0
        %10706 = vmatpush2.msra.mxu0 0.0
        %10707 = vmatprep.subr.mxu0 0.0
        %10708 = vmatpush2.msra.mxu0 0.0
        %10709 = vmatprep.subr.mxu0 0.0
        %10710 = vmatpush2.msra.mxu0 0.0
        %10711 = vmatprep.subr.mxu0 0.0
        %10712 = vmatpush2.msra.mxu0 0.0
        %10713 = vmatprep.subr.mxu0 0.0
        %10714 = vmatpush2.msra.mxu0 0.0
        %10715 = vmatprep.subr.mxu0 0.0
        %10716 = vmatpush2.msra.mxu0 0.0
        %10717 = vmatprep.subr.mxu0 0.0
        %10718 = vmatpush2.msra.mxu0 0.0
        %10719 = vmatprep.mubr.f32.mxu0 0.0
        %10720 = vmatmul.mubr.f32.gmra.mxu0 %v10653
        %v10721 = vpop.f32.mrf.mxu0
        %v10722 = vadd.f32 %v10546, %v10721
        %v10723 = vpop.f32.mrf.mxu0
        %v10724 = vadd.f32 %v10546, %v10723
        %10725 = vdwg.mxu0
        %v10726 = vmul.f32 %v10722, 1.442695
        %v10727 = vpow.pop %v10726
        %v10728 = vmul.f32 %v10724, 1.442695
        %v10729 = vpow.pop %v10728
        %10730 = vrot.lane.b32.xlu0 %v639, 64
        %v10731 = vpop.permute.xlu0 %10730
        %10732 = vrot.lane.b32.xlu0 %v641, 64
        %v10733 = vpop.permute.xlu0 %10732
        %10734 = vrot.lane.b32.xlu0 %v710, 64
        %v10735 = vpop.permute.xlu0 %10734
        %v10736 = vsel %vm2813, %v10731, %v10733
        %v10737 = vsel %vm2813, %v10733, %v10735
        %v10740 = vmul.f32 %v10727, %v10736
        %v10741 = vmul.f32 %v10729, %v10737
        %v10744 = vrot.slane %v10722, 4
        %v10745 = vrot.slane %v10724, 4
        %v10748 = vadd.f32 %v10740, %v10744
        %v10749 = vadd.f32 %v10741, %v10745
        %10752 = vrot.lane.b32.xlu0 %v10748, 64
        %v10753 = vpop.permute.xlu0 %10752
        %10754 = vrot.lane.b32.xlu0 %v10749, 64
        %v10755 = vpop.permute.xlu0 %10754
        %v10756 = vsel %vm2813, %v10753, %v10755
        %v10760 = vsel %vm819, %v639, %v10753
        %v10761 = vsel %vm819, %v641, %v10756
        %v10762 = vsel %vm819, %v710, %v10755
        %10766 = vrot.lane.b32.xlu0 %v10760, 64
        %v10767 = vpop.permute.xlu0 %10766
        %10768 = vrot.lane.b32.xlu0 %v10761, 64
        %v10769 = vpop.permute.xlu0 %10768
        %10770 = vrot.lane.b32.xlu0 %v10762, 64
        %v10771 = vpop.permute.xlu0 %10770
        %v10772 = vsel %vm2813, %v10767, %v10769
        %v10773 = vsel %vm2813, %v10769, %v10771
        %10776 = vst [vmem:[%s515] sm:$0xff] %v10772
        %10777 = vst [vmem:[%s515 + $0x8] sm:$0xff] %v10773
        %v10778 = vcombine.high %v10722, %v10724
        %10780 = vst [vmem:[%s522] sm:$0xff] %v10778
        %s10781 = sand.u32 %s341, 1
        %s10782 = scalar_lea.sflag [#allocation3], %s10781
        %s10783 = sand.u32 %s341, 1
        %s10784 = smul.addr %s10783, 16
        %s10785 = scalar_lea.vmem [#allocation2], %s10784
        %s10786 = sand.u32 %s369, 1
        %s10787 = scalar_lea.sflag [#allocation5], %s10786
        %s10788 = sand.u32 %s369, 1
        %s10789 = smul.addr %s10788, 8
        %s10790 = scalar_lea.vmem [#allocation4], %s10789
        // Predicated region
        $region73: #{flow_forward.1} parent=71 // pred_check
          %p10791 = pneg %p351
        $region74: #{flow_forward.1} parent=71 // pred_check_branch
          %10793 = sbr.rel (%p10791) target = $region76
        $region75: #{flow_forward.1} parent=71 // pred_region
          %s10794 = smul.u32 2, %s37
          %s10796 = ssub.s32 256, 256
          %10797 = vsyncadd %s10782, %s10796
          %s10798 = smul.addr %s36, 8
          %s10799 = sadd.s32 %s10794, %s10798
          %s10800 = smul.addr %s10799, 128
          %s10801 = scalar_lea.hbm %s13, %s10800
          %s10803 = sshll.u32 %s10785, 4
          %s10804 = int_to_ptr.vmem [resolvable:$true] %s10803
          %10806 = dma.vmem_to_hbm [thread:$0]  %s10804, 256, %s10801, %s10782
        $region76: #{flow_forward.1} parent=71 // pred_fallthru
          _
        // Predicated region
        $region77: #{flow_forward.1} parent=71 // pred_check
          %p10807 = pneg %p379
        $region78: #{flow_forward.1} parent=71 // pred_check_branch
          %10809 = sbr.rel (%p10807) target = $region80
        $region79: #{flow_forward.1} parent=71 // pred_region
          %s10810 = smul.u32 2, %s37
          %s10812 = ssub.s32 128, 128
          %10813 = vsyncadd %s10787, %s10812
          %s10814 = smul.addr %s36, 8
          %s10815 = sadd.s32 %s10810, %s10814
          %s10816 = smul.addr %s10815, 64
          %s10817 = scalar_lea.hbm %s14, %s10816
          %s10819 = sshll.u32 %s10790, 4
          %s10820 = int_to_ptr.vmem [resolvable:$true] %s10819
          %10822 = dma.vmem_to_hbm [thread:$0]  %s10820, 128, %s10817, %s10787
        $region80: #{flow_forward.1} parent=71 // pred_fallthru
          _
      $region72: #{flow_forward.1} parent=5 // pred_fallthru
        _
      %p10823 = scmp.le.s32.totalorder 2, %s27
      // Predicated region
      $region81: #{flow_forward.1} parent=5 // pred_check
        %p10824 = pneg %p10823
      $region82: #{flow_forward.1} parent=5 // pred_check_branch
        %10826 = sbr.rel (%p10824) target = $region84
      $region83: #{flow_forward.1} parent=5 // pred_region
        %s10827 = ssub.s32 %s27, 2
        // Predicated region
        $region85: #{flow_forward.1} parent=83 // pred_check
          %p10828 = pneg %p357
        $region86: #{flow_forward.1} parent=83 // pred_check_branch
          %10830 = sbr.rel (%p10828) target = $region88
        $region87: #{flow_forward.1} parent=83 // pred_region
          %s10831 = sand.u32 %s342, 1
          %s10832 = scalar_lea.sflag [#allocation3], %s10831
          %s10833 = sand.u32 %s342, 1
          %s10834 = smul.addr %s10833, 16
          %s10835 = scalar_lea.vmem [#allocation2], %s10834
          %10836 = dma.done %s10832, 256
        $region88: #{flow_forward.1} parent=83 // pred_fallthru
          _
        // Predicated region
        $region89: #{flow_forward.1} parent=83 // pred_check
          %p10837 = pneg %p385
        $region90: #{flow_forward.1} parent=83 // pred_check_branch
          %10839 = sbr.rel (%p10837) target = $region92
        $region91: #{flow_forward.1} parent=83 // pred_region
          %s10840 = sand.u32 %s370, 1
          %s10841 = scalar_lea.sflag [#allocation5], %s10840
          %s10842 = sand.u32 %s370, 1
          %s10843 = smul.addr %s10842, 8
          %s10844 = scalar_lea.vmem [#allocation4], %s10843
          %10845 = dma.done %s10841, 128
        $region92: #{flow_forward.1} parent=83 // pred_fallthru
          _
      $region84: #{flow_forward.1} parent=5 // pred_fallthru
        _
    $region6: #{flow_forward.1} parent=1 // loop_footer
      %s31 = sadd.s32 1, %s27
    $region7: #{flow_forward.1} parent=1 // loop_footer_branch
      %26 = sbr.rel target = $region3
    $region8: #{flow_forward.1} parent=1 // loop_exit
      _
    %10846 = vsyncpa [#allocation3], 1
    %s10847 = scalar_lea.sflag [#allocation3], 1
    %10848 = vsyncpa %s10847, 1
    %10849 = vsyncpa [#allocation5], 1
    %s10850 = scalar_lea.sflag [#allocation5], 1
    %10851 = vsyncpa %s10850, 1

</llo_original>
